<compile_context>
chip_gen: v7x
topology: tpu7x:2x2x1
jax: 0.10.0
libtpu: 0.0.40
codegen_flags: <defaults>
</compile_context>

<pallas_src>
import functools
import math

import jax
import jax.numpy as jnp
from jax.experimental import pallas as pl
from jax.experimental.pallas import tpu as pltpu

BN_EPS = 1e-5


# ----------------------------------------------------------------------------
# In-kernel helpers
# ----------------------------------------------------------------------------
def _apply_act(y, act):
    if act == "relu":
        return jnp.maximum(y, 0.0)
    if act == "sigmoid":
        return 1.0 / (1.0 + jnp.exp(-y))
    return y


def _bn_act(y, gamma, beta, *, fold, act):
    # Train-mode BatchNorm over rows (batch [+ spatial]) per channel.
    # `fold` > 1 means the column axis is laid out as (phase, channel) with
    # `fold` phase blocks that all map to the same channels; statistics are
    # folded across phases (exactly the full set of output positions).
    m, nc = y.shape
    cn = nc // fold
    s1 = jnp.sum(y, axis=0, keepdims=True)           # (1, nc)
    s2 = jnp.sum(y * y, axis=0, keepdims=True)       # (1, nc)
    if fold > 1:
        s1 = sum(s1[:, p * cn:(p + 1) * cn] for p in range(fold))   # (1, cn)
        s2 = sum(s2[:, p * cn:(p + 1) * cn] for p in range(fold))
    inv_cnt = 1.0 / float(m * fold)
    mean = s1 * inv_cnt
    var = jnp.maximum(s2 * inv_cnt - mean * mean, 0.0)
    scale = gamma * jax.lax.rsqrt(var + BN_EPS)       # (1, cn)
    shift = beta - mean * scale
    if fold > 1:
        scale = jnp.concatenate([scale] * fold, axis=1)              # (1, nc)
        shift = jnp.concatenate([shift] * fold, axis=1)
    return _apply_act(y * scale + shift, act)


# ----------------------------------------------------------------------------
# Pallas kernels
# ----------------------------------------------------------------------------
def _mm_bn_act_kernel(x_ref, w_ref, g_ref, b_ref, o_ref, *, act, fold):
    y = jnp.dot(x_ref[...], w_ref[...], preferred_element_type=jnp.float32)
    o_ref[...] = _bn_act(y, g_ref[...], b_ref[...], fold=fold, act=act)


def _mm_act_kernel(x_ref, w_ref, o_ref, *, act):
    y = jnp.dot(x_ref[...], w_ref[...], preferred_element_type=jnp.float32)
    o_ref[...] = _apply_act(y, act)


def _bn_act_kernel(y_ref, g_ref, b_ref, o_ref, *, act, fold):
    o_ref[...] = _bn_act(y_ref[...], g_ref[...], b_ref[...], fold=fold, act=act)


def _encode_head_kernel(x_ref, w_ref, b_ref, n_ref, ml_ref, z_ref, *, latent):
    # One matmul with the concatenated [fc_mu | fc_logvar] weight; the
    # reparameterization z = mu + exp(0.5*logvar)*noise is fused in-body.
    y = jnp.dot(x_ref[...], w_ref[...], preferred_element_type=jnp.float32)
    y = y + b_ref[...]
    ml_ref[...] = y
    mu = y[:, :latent]
    logvar = y[:, latent:]
    z_ref[...] = mu + jnp.exp(0.5 * logvar) * n_ref[...]


# ----------------------------------------------------------------------------
# Kernel wrappers
# ----------------------------------------------------------------------------
_VMEM = pl.BlockSpec(memory_space=pltpu.MemorySpace.VMEM)


def matmul_bn_act(x, w, gamma, beta, *, act, fold=1):
    """(M,K)@(K,N), train-mode BN over rows (phase-folded if fold>1), act."""
    M, K = x.shape
    N = w.shape[1]
    g2 = gamma.reshape(1, -1)
    b2 = beta.reshape(1, -1)
    kern = functools.partial(_mm_bn_act_kernel, act=act, fold=fold)

    if fold == 1 and N >= 512 and N % 256 == 0:
        # Tile the output-channel axis (BN is per-column -> tiles independent).
        tn = 512 if N % 512 == 0 else 256
        return pl.pallas_call(
            kern,
            out_shape=jax.ShapeDtypeStruct((M, N), jnp.float32),
            grid=(N // tn,),
            in_specs=[
                pl.BlockSpec((M, K), lambda j: (0, 0)),
                pl.BlockSpec((K, tn), lambda j: (0, j)),
                pl.BlockSpec((1, tn), lambda j: (0, j)),
                pl.BlockSpec((1, tn), lambda j: (0, j)),
            ],
            out_specs=pl.BlockSpec((M, tn), lambda j: (0, j)),
            compiler_params=pltpu.CompilerParams(
                dimension_semantics=("parallel",)),
        )(x, w, g2, b2)

    return pl.pallas_call(
        kern,
        out_shape=jax.ShapeDtypeStruct((M, N), jnp.float32),
        in_specs=[_VMEM] * 4,
        out_specs=_VMEM,
    )(x, w, g2, b2)


def matmul_act(x, w, *, act="none"):
    M, _ = x.shape
    N = w.shape[1]
    return pl.pallas_call(
        functools.partial(_mm_act_kernel, act=act),
        out_shape=jax.ShapeDtypeStruct((M, N), jnp.float32),
        in_specs=[_VMEM] * 2,
        out_specs=_VMEM,
    )(x, w)


def bn_act(y, gamma, beta, *, act, fold=1):
    M, N = y.shape
    return pl.pallas_call(
        functools.partial(_bn_act_kernel, act=act, fold=fold),
        out_shape=jax.ShapeDtypeStruct((M, N), jnp.float32),
        in_specs=[_VMEM] * 3,
        out_specs=_VMEM,
    )(y, gamma.reshape(1, -1), beta.reshape(1, -1))


def encode_head(flat, w_ml, b_ml, noise):
    M = flat.shape[0]
    L = noise.shape[1]
    ml, z = pl.pallas_call(
        functools.partial(_encode_head_kernel, latent=L),
        out_shape=(jax.ShapeDtypeStruct((M, 2 * L), jnp.float32),
                   jax.ShapeDtypeStruct((M, L), jnp.float32)),
        in_specs=[_VMEM] * 4,
        out_specs=(_VMEM, _VMEM),
    )(flat, w_ml, b_ml.reshape(1, -1), noise)
    return ml[:, :L], ml[:, L:], z


# ----------------------------------------------------------------------------
# JAX glue: channels-last im2col, sub-pixel ConvTranspose weight, pixel shuffle
# ----------------------------------------------------------------------------
def im2col_nhwc(x, kh, kw, stride, pad):
    # x: (N, H, W, C), pad: ((top,bottom),(left,right))
    # -> (N*Ho*Wo, kh*kw*C), feature order (kh, kw, C)
    x = jnp.pad(x, ((0, 0), pad[0], pad[1], (0, 0)))
    N, H, W, C = x.shape
    Ho = (H - kh) // stride + 1
    Wo = (W - kw) // stride + 1
    cols = []
    for i in range(kh):
        for j in range(kw):
            cols.append(x[:, i:i + stride * Ho:stride, j:j + stride * Wo:stride, :])
    cols = jnp.stack(cols, axis=3)                     # (N, Ho, Wo, kh*kw, C)
    return cols.reshape(N * Ho * Wo, kh * kw * C), Ho, Wo


def conv_w_to_mat(w):
    # PyTorch Conv2d weight (Co, Ci, kh, kw) -> (kh*kw*Ci, Co)
    Co, Ci, kh, kw = w.shape
    return w.transpose(2, 3, 1, 0).reshape(kh * kw * Ci, Co)


def convT_subpixel_w(w_ct):
    # PyTorch ConvTranspose2d weight (Ci, Co, 3, 3) -> (4*Ci, 4*Co) sub-pixel
    # weight.  K slots: [x(i,j), x(i,j+1), x(i+1,j), x(i+1,j+1)]; output column
    # blocks: [(even,even), (even,odd), (odd,even), (odd,odd)].
    Ci, Co = w_ct.shape[0], w_ct.shape[1]
    z = jnp.zeros((Ci, Co), w_ct.dtype)

    def tap(kh, kw):
        return w_ct[:, :, kh, kw]

    p_ee = jnp.concatenate([tap(1, 1), z, z, z], axis=0)
    p_eo = jnp.concatenate([tap(1, 2), tap(1, 0), z, z], axis=0)
    p_oe = jnp.concatenate([tap(2, 1), z, tap(0, 1), z], axis=0)
    p_oo = jnp.concatenate([tap(2, 2), tap(2, 0), tap(0, 2), tap(0, 0)], axis=0)
    return jnp.concatenate([p_ee, p_eo, p_oe, p_oo], axis=1)


def pixel_shuffle_2x2(y, Nb, H, W, Co, Ho, Wo):
    # y: (N*H*W, 4*Co) with columns (phase, Co) -> (N, Ho, Wo, Co)
    y = y.reshape(Nb, H, W, 2, 2, Co).transpose(0, 1, 3, 2, 4, 5)
    y = y.reshape(Nb, 2 * H, 2 * W, Co)
    return y[:, :Ho, :Wo, :]


# ----------------------------------------------------------------------------
# Parameters (deterministic, PyTorch-like init shapes / layouts)
# ----------------------------------------------------------------------------
def init_params(key, latent_dim):
    ks = iter(jax.random.split(key, 40))
    p = {}

    def uni(shape, bound):
        return jax.random.uniform(next(ks), shape, jnp.float32, -bound, bound)

    def conv(name, co, ci, k=3):
        bound = 1.0 / math.sqrt(ci * k * k)
        p[name + "_w"] = uni((co, ci, k, k), bound)
        p[name + "_b"] = uni((co,), bound)          # unused (cancelled by BN)

    def convT(name, ci, co, k=3):
        bound = 1.0 / math.sqrt(co * k * k)
        p[name + "_w"] = uni((ci, co, k, k), bound)
        p[name + "_b"] = uni((co,), bound)          # unused (cancelled by BN)

    def linear(name, fin, fout):
        bound = 1.0 / math.sqrt(fin)
        p[name + "_w"] = uni((fin, fout), bound)
        p[name + "_b"] = uni((fout,), bound)

    def bn(name, c):
        p[name + "_g"] = jnp.ones((c,), jnp.float32)
        p[name + "_b"] = jnp.zeros((c,), jnp.float32)

    # encoder
    conv("e1", 32, 1);   bn("ebn1", 32)
    conv("e2", 64, 32);  bn("ebn2", 64)
    conv("e3", 128, 64); bn("ebn3", 128)
    linear("fc_mu", 2048, latent_dim)
    linear("fc_logvar", 2048, latent_dim)
    # decoder
    linear("dfc", latent_dim, 2048); bn("dbn0", 2048)
    convT("d1", 128, 64); bn("dbn1", 64)
    convT("d2", 64, 32);  bn("dbn2", 32)
    convT("d3", 32, 1);   bn("dbn3", 1)
    # logvar_major parameter exists in the module but is unused in forward()
    p["logvar_major"] = jnp.array(1.0, jnp.float32)
    return p


# ----------------------------------------------------------------------------
# MGVAE forward
# ----------------------------------------------------------------------------
def mgvae_forward(params, x, noise):
    p = params
    Nb = x.shape[0]
    L = noise.shape[1]

    # ---- weight re-layout (PyTorch layouts -> channels-last kernel layouts)
    # fc weights consume a (C,H,W)-ordered flatten in PyTorch; ours is (H,W,C).
    def perm_rows_chw_to_hwc(w):                       # (2048, F)
        return w.reshape(128, 4, 4, -1).transpose(1, 2, 0, 3).reshape(2048, -1)

    def perm_cols_chw_to_hwc(w):                       # (F, 2048)
        return w.reshape(w.shape[0], 128, 4, 4).transpose(0, 2, 3, 1).reshape(w.shape[0], 2048)

    def perm_feat_chw_to_hwc(v):                       # (2048,)
        return v.reshape(128, 4, 4).transpose(1, 2, 0).reshape(2048)

    w_ml = jnp.concatenate([perm_rows_chw_to_hwc(p["fc_mu_w"]),
                            perm_rows_chw_to_hwc(p["fc_logvar_w"])], axis=1)
    b_ml = jnp.concatenate([p["fc_mu_b"], p["fc_logvar_b"]], axis=0)
    dfc_w = perm_cols_chw_to_hwc(p["dfc_w"])
    dbn0_g = perm_feat_chw_to_hwc(p["dbn0_g"])
    dbn0_b = perm_feat_chw_to_hwc(p["dbn0_b"])

    # ---- encoder: 3 x (Conv2d(s=2,p=1) + BN2d + ReLU), NHWC throughout ----
    h = x.transpose(0, 2, 3, 1)                        # NCHW -> NHWC (once)

    def conv_block(h, wname, bnname, Co):
        cols, Ho, Wo = im2col_nhwc(h, 3, 3, 2, ((1, 1), (1, 1)))
        y = matmul_bn_act(cols, conv_w_to_mat(p[wname + "_w"]),
                          p[bnname + "_g"], p[bnname + "_b"], act="relu")
        return y.reshape(h.shape[0], Ho, Wo, Co)

    h = conv_block(h, "e1", "ebn1", 32)                # (N,14,14,32)
    h = conv_block(h, "e2", "ebn2", 64)                # (N, 7, 7,64)
    h = conv_block(h, "e3", "ebn3", 128)               # (N, 4, 4,128)
    flat = h.reshape(Nb, 2048)                         # (H,W,C)-ordered flatten

    # ---- fc_mu + fc_logvar + reparameterization (one fused kernel) ----
    mu, logvar, z = encode_head(flat, w_ml, b_ml, noise)

    # ---- decoder ----
    d = matmul_bn_act(z, dfc_w, dbn0_g, dbn0_b, act="relu")   # (N,2048) tiled
    d = d.reshape(Nb, 4, 4, 128)                              # NHWC unflatten

    def convT_block(h, wname, bnname, Co, out_pad, act):
        N_, H, W, _ = h.shape
        Ho, Wo = 2 * H - 1 + out_pad, 2 * W - 1 + out_pad
        pat, _, _ = im2col_nhwc(h, 2, 2, 1, ((0, 1), (0, 1)))  # (N*H*W, 4*Ci)
        wsub = convT_subpixel_w(p[wname + "_w"])               # (4*Ci, 4*Co)
        if out_pad == 1:
            # all 4 phases valid -> BN stats phase-folded inside the kernel
            y = matmul_bn_act(pat, wsub, p[bnname + "_g"], p[bnname + "_b"],
                              act=act, fold=4)
            return pixel_shuffle_2x2(y, N_, H, W, Co, Ho, Wo)
        # out_pad == 0: bottom/right row+col are cropped, so run BN after crop
        y = matmul_act(pat, wsub, act="none")
        y = pixel_shuffle_2x2(y, N_, H, W, Co, Ho, Wo)
        y = bn_act(y.reshape(N_ * Ho * Wo, Co),
                   p[bnname + "_g"], p[bnname + "_b"], act=act)
        return y.reshape(N_, Ho, Wo, Co)

    d = convT_block(d, "d1", "dbn1", 64, 0, "relu")     # (N, 7, 7,64)
    d = convT_block(d, "d2", "dbn2", 32, 1, "relu")     # (N,14,14,32)
    d = convT_block(d, "d3", "dbn3", 1, 1, "sigmoid")   # (N,28,28, 1)

    x_hat = d.transpose(0, 3, 1, 2)                     # NHWC -> NCHW (once)
    return x_hat, mu, logvar, z


# ----------------------------------------------------------------------------
if __name__ == "__main__":
    latent_dim = 32
    key = jax.random.PRNGKey(0)
    pkey, xkey, nkey = jax.random.split(key, 3)

    params = init_params(pkey, latent_dim)
    # the encoder architecture implies 28x28 single-channel inputs (2048 flatten)
    x = jax.random.uniform(xkey, (2, 1, 28, 28), jnp.float32)
    noise = jax.random.normal(nkey, (2, latent_dim), jnp.float32)

    fwd = jax.jit(mgvae_forward)
    x_hat, mu, logvar, z = fwd(params, x, noise)
    jax.block_until_ready((x_hat, mu, logvar, z))

    assert x_hat.shape == (2, 1, 28, 28)
    assert mu.shape == (2, latent_dim)
    assert logvar.shape == (2, latent_dim)
    assert z.shape == (2, latent_dim)
    assert bool(jnp.all(jnp.isfinite(x_hat)))
    assert bool(jnp.all(jnp.isfinite(z)))
    assert float(jnp.min(x_hat)) >= 0.0 and float(jnp.max(x_hat)) <= 1.0
    print("KERNEL_OK")
</pallas_src>

<mosaic_0001>
module attributes {stable_mosaic.version = 11 : i64} {
  func.func @_mm_bn_act_kernel(%arg0: memref<392x9xf32, #tpu.memory_space<vmem>>, %arg1: memref<9x32xf32, #tpu.memory_space<vmem>>, %arg2: memref<1x32xf32, #tpu.memory_space<vmem>>, %arg3: memref<1x32xf32, #tpu.memory_space<vmem>>, %arg4: memref<392x32xf32, #tpu.memory_space<vmem>>) attributes {dimension_semantics = [], scalar_prefetch = 0 : i64, scratch_operands = 0 : i64, tpu.core_type = #tpu.core_type<tc>} {
    %c0 = arith.constant 0 : index
    %c0_0 = arith.constant 0 : index
    %0 = vector.load %arg0[%c0, %c0_0] : memref<392x9xf32, #tpu.memory_space<vmem>>, vector<392x9xf32>
    %c0_1 = arith.constant 0 : index
    %c0_2 = arith.constant 0 : index
    %1 = vector.load %arg1[%c0_1, %c0_2] : memref<9x32xf32, #tpu.memory_space<vmem>>, vector<9x32xf32>
    %cst = arith.constant dense<0.000000e+00> : vector<392x32xf32>
    %2 = tpu.matmul %0, %1, %cst {dimension_numbers = #tpu.dot_dimension_numbers<[1], [0], [0], [1], [0, 0, 1, 1], [], []>} : vector<392x9xf32>, vector<9x32xf32>, vector<392x32xf32> -> vector<392x32xf32>
    %c0_3 = arith.constant 0 : index
    %c0_4 = arith.constant 0 : index
    %3 = vector.load %arg2[%c0_3, %c0_4] : memref<1x32xf32, #tpu.memory_space<vmem>>, vector<1x32xf32>
    %c0_5 = arith.constant 0 : index
    %c0_6 = arith.constant 0 : index
    %4 = vector.load %arg3[%c0_5, %c0_6] : memref<1x32xf32, #tpu.memory_space<vmem>>, vector<1x32xf32>
    %cst_7 = arith.constant dense<0.000000e+00> : vector<32xf32>
    %5 = vector.multi_reduction <add>, %2, %cst_7 [0] : vector<392x32xf32> to vector<32xf32>
    %6 = vector.shape_cast %5 : vector<32xf32> to vector<1x32xf32>
    %7 = arith.mulf %2, %2 : vector<392x32xf32>
    %cst_8 = arith.constant dense<0.000000e+00> : vector<32xf32>
    %8 = vector.multi_reduction <add>, %7, %cst_8 [0] : vector<392x32xf32> to vector<32xf32>
    %9 = vector.shape_cast %8 : vector<32xf32> to vector<1x32xf32>
    %cst_9 = arith.constant 0.00255102036 : f32
    %10 = vector.broadcast %cst_9 : f32 to vector<1x32xf32>
    %11 = arith.mulf %6, %10 : vector<1x32xf32>
    %cst_10 = arith.constant 0.00255102036 : f32
    %12 = vector.broadcast %cst_10 : f32 to vector<1x32xf32>
    %13 = arith.mulf %9, %12 : vector<1x32xf32>
    %14 = arith.mulf %11, %11 : vector<1x32xf32>
    %15 = arith.subf %13, %14 : vector<1x32xf32>
    %cst_11 = arith.constant 0.000000e+00 : f32
    %16 = vector.broadcast %cst_11 : f32 to vector<1x32xf32>
    %17 = arith.maximumf %15, %16 : vector<1x32xf32>
    %cst_12 = arith.constant 9.99999974E-6 : f32
    %18 = vector.broadcast %cst_12 : f32 to vector<1x32xf32>
    %19 = arith.addf %17, %18 : vector<1x32xf32>
    %20 = math.rsqrt %19 : vector<1x32xf32>
    %21 = arith.mulf %3, %20 : vector<1x32xf32>
    %22 = arith.mulf %11, %21 : vector<1x32xf32>
    %23 = arith.subf %4, %22 : vector<1x32xf32>
    %24 = vector.broadcast %21 : vector<1x32xf32> to vector<392x32xf32>
    %25 = arith.mulf %2, %24 : vector<392x32xf32>
    %26 = vector.broadcast %23 : vector<1x32xf32> to vector<392x32xf32>
    %27 = arith.addf %25, %26 : vector<392x32xf32>
    %cst_13 = arith.constant 0.000000e+00 : f32
    %28 = vector.broadcast %cst_13 : f32 to vector<392x32xf32>
    %29 = arith.maximumf %27, %28 : vector<392x32xf32>
    %c0_14 = arith.constant 0 : index
    %c0_15 = arith.constant 0 : index
    %30 = vector.load %arg4[%c0_14, %c0_15] : memref<392x32xf32, #tpu.memory_space<vmem>>, vector<392x32xf32>
    tpu.vector_store %arg4[%c0_14, %c0_15], %29 {strides = array<i32>} : memref<392x32xf32, #tpu.memory_space<vmem>>, vector<392x32xf32>,
    return
  }
}

module attributes {stable_mosaic.version = 11 : i64} {
  func.func @_mm_bn_act_kernel(%arg0: memref<98x288xf32, #tpu.memory_space<vmem>>, %arg1: memref<288x64xf32, #tpu.memory_space<vmem>>, %arg2: memref<1x64xf32, #tpu.memory_space<vmem>>, %arg3: memref<1x64xf32, #tpu.memory_space<vmem>>, %arg4: memref<98x64xf32, #tpu.memory_space<vmem>>) attributes {dimension_semantics = [], scalar_prefetch = 0 : i64, scratch_operands = 0 : i64, tpu.core_type = #tpu.core_type<tc>} {
    %c0 = arith.constant 0 : index
    %c0_0 = arith.constant 0 : index
    %0 = vector.load %arg0[%c0, %c0_0] : memref<98x288xf32, #tpu.memory_space<vmem>>, vector<98x288xf32>
    %c0_1 = arith.constant 0 : index
    %c0_2 = arith.constant 0 : index
    %1 = vector.load %arg1[%c0_1, %c0_2] : memref<288x64xf32, #tpu.memory_space<vmem>>, vector<288x64xf32>
    %cst = arith.constant dense<0.000000e+00> : vector<98x64xf32>
    %2 = tpu.matmul %0, %1, %cst {dimension_numbers = #tpu.dot_dimension_numbers<[1], [0], [0], [1], [0, 0, 1, 1], [], []>} : vector<98x288xf32>, vector<288x64xf32>, vector<98x64xf32> -> vector<98x64xf32>
    %c0_3 = arith.constant 0 : index
    %c0_4 = arith.constant 0 : index
    %3 = vector.load %arg2[%c0_3, %c0_4] : memref<1x64xf32, #tpu.memory_space<vmem>>, vector<1x64xf32>
    %c0_5 = arith.constant 0 : index
    %c0_6 = arith.constant 0 : index
    %4 = vector.load %arg3[%c0_5, %c0_6] : memref<1x64xf32, #tpu.memory_space<vmem>>, vector<1x64xf32>
    %cst_7 = arith.constant dense<0.000000e+00> : vector<64xf32>
    %5 = vector.multi_reduction <add>, %2, %cst_7 [0] : vector<98x64xf32> to vector<64xf32>
    %6 = vector.shape_cast %5 : vector<64xf32> to vector<1x64xf32>
    %7 = arith.mulf %2, %2 : vector<98x64xf32>
    %cst_8 = arith.constant dense<0.000000e+00> : vector<64xf32>
    %8 = vector.multi_reduction <add>, %7, %cst_8 [0] : vector<98x64xf32> to vector<64xf32>
    %9 = vector.shape_cast %8 : vector<64xf32> to vector<1x64xf32>
    %cst_9 = arith.constant 0.0102040814 : f32
    %10 = vector.broadcast %cst_9 : f32 to vector<1x64xf32>
    %11 = arith.mulf %6, %10 : vector<1x64xf32>
    %cst_10 = arith.constant 0.0102040814 : f32
    %12 = vector.broadcast %cst_10 : f32 to vector<1x64xf32>
    %13 = arith.mulf %9, %12 : vector<1x64xf32>
    %14 = arith.mulf %11, %11 : vector<1x64xf32>
    %15 = arith.subf %13, %14 : vector<1x64xf32>
    %cst_11 = arith.constant 0.000000e+00 : f32
    %16 = vector.broadcast %cst_11 : f32 to vector<1x64xf32>
    %17 = arith.maximumf %15, %16 : vector<1x64xf32>
    %cst_12 = arith.constant 9.99999974E-6 : f32
    %18 = vector.broadcast %cst_12 : f32 to vector<1x64xf32>
    %19 = arith.addf %17, %18 : vector<1x64xf32>
    %20 = math.rsqrt %19 : vector<1x64xf32>
    %21 = arith.mulf %3, %20 : vector<1x64xf32>
    %22 = arith.mulf %11, %21 : vector<1x64xf32>
    %23 = arith.subf %4, %22 : vector<1x64xf32>
    %24 = vector.broadcast %21 : vector<1x64xf32> to vector<98x64xf32>
    %25 = arith.mulf %2, %24 : vector<98x64xf32>
    %26 = vector.broadcast %23 : vector<1x64xf32> to vector<98x64xf32>
    %27 = arith.addf %25, %26 : vector<98x64xf32>
    %cst_13 = arith.constant 0.000000e+00 : f32
    %28 = vector.broadcast %cst_13 : f32 to vector<98x64xf32>
    %29 = arith.maximumf %27, %28 : vector<98x64xf32>
    %c0_14 = arith.constant 0 : index
    %c0_15 = arith.constant 0 : index
    %30 = vector.load %arg4[%c0_14, %c0_15] : memref<98x64xf32, #tpu.memory_space<vmem>>, vector<98x64xf32>
    tpu.vector_store %arg4[%c0_14, %c0_15], %29 {strides = array<i32>} : memref<98x64xf32, #tpu.memory_space<vmem>>, vector<98x64xf32>,
    return
  }
}

module attributes {stable_mosaic.version = 11 : i64} {
  func.func @_mm_bn_act_kernel(%arg0: memref<32x576xf32, #tpu.memory_space<vmem>>, %arg1: memref<576x128xf32, #tpu.memory_space<vmem>>, %arg2: memref<1x128xf32, #tpu.memory_space<vmem>>, %arg3: memref<1x128xf32, #tpu.memory_space<vmem>>, %arg4: memref<32x128xf32, #tpu.memory_space<vmem>>) attributes {dimension_semantics = [], scalar_prefetch = 0 : i64, scratch_operands = 0 : i64, tpu.core_type = #tpu.core_type<tc>} {
    %c0 = arith.constant 0 : index
    %c0_0 = arith.constant 0 : index
    %0 = vector.load %arg0[%c0, %c0_0] : memref<32x576xf32, #tpu.memory_space<vmem>>, vector<32x576xf32>
    %c0_1 = arith.constant 0 : index
    %c0_2 = arith.constant 0 : index
    %1 = vector.load %arg1[%c0_1, %c0_2] : memref<576x128xf32, #tpu.memory_space<vmem>>, vector<576x128xf32>
    %cst = arith.constant dense<0.000000e+00> : vector<32x128xf32>
    %2 = tpu.matmul %0, %1, %cst {dimension_numbers = #tpu.dot_dimension_numbers<[1], [0], [0], [1], [0, 0, 1, 1], [], []>} : vector<32x576xf32>, vector<576x128xf32>, vector<32x128xf32> -> vector<32x128xf32>
    %c0_3 = arith.constant 0 : index
    %c0_4 = arith.constant 0 : index
    %3 = vector.load %arg2[%c0_3, %c0_4] : memref<1x128xf32, #tpu.memory_space<vmem>>, vector<1x128xf32>
    %c0_5 = arith.constant 0 : index
    %c0_6 = arith.constant 0 : index
    %4 = vector.load %arg3[%c0_5, %c0_6] : memref<1x128xf32, #tpu.memory_space<vmem>>, vector<1x128xf32>
    %cst_7 = arith.constant dense<0.000000e+00> : vector<128xf32>
    %5 = vector.multi_reduction <add>, %2, %cst_7 [0] : vector<32x128xf32> to vector<128xf32>
    %6 = vector.shape_cast %5 : vector<128xf32> to vector<1x128xf32>
    %7 = arith.mulf %2, %2 : vector<32x128xf32>
    %cst_8 = arith.constant dense<0.000000e+00> : vector<128xf32>
    %8 = vector.multi_reduction <add>, %7, %cst_8 [0] : vector<32x128xf32> to vector<128xf32>
    %9 = vector.shape_cast %8 : vector<128xf32> to vector<1x128xf32>
    %cst_9 = arith.constant 3.125000e-02 : f32
    %10 = vector.broadcast %cst_9 : f32 to vector<1x128xf32>
    %11 = arith.mulf %6, %10 : vector<1x128xf32>
    %cst_10 = arith.constant 3.125000e-02 : f32
    %12 = vector.broadcast %cst_10 : f32 to vector<1x128xf32>
    %13 = arith.mulf %9, %12 : vector<1x128xf32>
    %14 = arith.mulf %11, %11 : vector<1x128xf32>
    %15 = arith.subf %13, %14 : vector<1x128xf32>
    %cst_11 = arith.constant 0.000000e+00 : f32
    %16 = vector.broadcast %cst_11 : f32 to vector<1x128xf32>
    %17 = arith.maximumf %15, %16 : vector<1x128xf32>
    %cst_12 = arith.constant 9.99999974E-6 : f32
    %18 = vector.broadcast %cst_12 : f32 to vector<1x128xf32>
    %19 = arith.addf %17, %18 : vector<1x128xf32>
    %20 = math.rsqrt %19 : vector<1x128xf32>
    %21 = arith.mulf %3, %20 : vector<1x128xf32>
    %22 = arith.mulf %11, %21 : vector<1x128xf32>
    %23 = arith.subf %4, %22 : vector<1x128xf32>
    %24 = vector.broadcast %21 : vector<1x128xf32> to vector<32x128xf32>
    %25 = arith.mulf %2, %24 : vector<32x128xf32>
    %26 = vector.broadcast %23 : vector<1x128xf32> to vector<32x128xf32>
    %27 = arith.addf %25, %26 : vector<32x128xf32>
    %cst_13 = arith.constant 0.000000e+00 : f32
    %28 = vector.broadcast %cst_13 : f32 to vector<32x128xf32>
    %29 = arith.maximumf %27, %28 : vector<32x128xf32>
    %c0_14 = arith.constant 0 : index
    %c0_15 = arith.constant 0 : index
    %30 = vector.load %arg4[%c0_14, %c0_15] : memref<32x128xf32, #tpu.memory_space<vmem>>, vector<32x128xf32>
    tpu.vector_store %arg4[%c0_14, %c0_15], %29 {strides = array<i32>} : memref<32x128xf32, #tpu.memory_space<vmem>>, vector<32x128xf32>,
    return
  }
}

module attributes {stable_mosaic.version = 11 : i64} {
  func.func @_encode_head_kernel(%arg0: memref<2x2048xf32, #tpu.memory_space<vmem>>, %arg1: memref<2048x64xf32, #tpu.memory_space<vmem>>, %arg2: memref<1x64xf32, #tpu.memory_space<vmem>>, %arg3: memref<2x32xf32, #tpu.memory_space<vmem>>, %arg4: memref<2x64xf32, #tpu.memory_space<vmem>>, %arg5: memref<2x32xf32, #tpu.memory_space<vmem>>) attributes {dimension_semantics = [], scalar_prefetch = 0 : i64, scratch_operands = 0 : i64, tpu.core_type = #tpu.core_type<tc>} {
    %c0 = arith.constant 0 : index
    %c0_0 = arith.constant 0 : index
    %0 = vector.load %arg0[%c0, %c0_0] : memref<2x2048xf32, #tpu.memory_space<vmem>>, vector<2x2048xf32>
    %c0_1 = arith.constant 0 : index
    %c0_2 = arith.constant 0 : index
    %1 = vector.load %arg1[%c0_1, %c0_2] : memref<2048x64xf32, #tpu.memory_space<vmem>>, vector<2048x64xf32>
    %cst = arith.constant dense<0.000000e+00> : vector<2x64xf32>
    %2 = tpu.matmul %0, %1, %cst {dimension_numbers = #tpu.dot_dimension_numbers<[1], [0], [0], [1], [0, 0, 1, 1], [], []>} : vector<2x2048xf32>, vector<2048x64xf32>, vector<2x64xf32> -> vector<2x64xf32>
    %c0_3 = arith.constant 0 : index
    %c0_4 = arith.constant 0 : index
    %3 = vector.load %arg2[%c0_3, %c0_4] : memref<1x64xf32, #tpu.memory_space<vmem>>, vector<1x64xf32>
    %4 = vector.broadcast %3 : vector<1x64xf32> to vector<2x64xf32>
    %5 = arith.addf %2, %4 : vector<2x64xf32>
    %c0_5 = arith.constant 0 : index
    %c0_6 = arith.constant 0 : index
    %6 = vector.load %arg4[%c0_5, %c0_6] : memref<2x64xf32, #tpu.memory_space<vmem>>, vector<2x64xf32>
    tpu.vector_store %arg4[%c0_5, %c0_6], %5 {strides = array<i32>} : memref<2x64xf32, #tpu.memory_space<vmem>>, vector<2x64xf32>,
    %7 = vector.extract_strided_slice %5 {offsets = [0, 0], sizes = [2, 32], strides = [1, 1]} : vector<2x64xf32> to vector<2x32xf32>
    %8 = vector.extract_strided_slice %5 {offsets = [0, 32], sizes = [2, 32], strides = [1, 1]} : vector<2x64xf32> to vector<2x32xf32>
    %cst_7 = arith.constant 5.000000e-01 : f32
    %9 = vector.broadcast %cst_7 : f32 to vector<2x32xf32>
    %10 = arith.mulf %9, %8 : vector<2x32xf32>
    %11 = math.exp %10 : vector<2x32xf32>
    %c0_8 = arith.constant 0 : index
    %c0_9 = arith.constant 0 : index
    %12 = vector.load %arg3[%c0_8, %c0_9] : memref<2x32xf32, #tpu.memory_space<vmem>>, vector<2x32xf32>
    %13 = arith.mulf %11, %12 : vector<2x32xf32>
    %14 = arith.addf %7, %13 : vector<2x32xf32>
    %c0_10 = arith.constant 0 : index
    %c0_11 = arith.constant 0 : index
    %15 = vector.load %arg5[%c0_10, %c0_11] : memref<2x32xf32, #tpu.memory_space<vmem>>, vector<2x32xf32>
    tpu.vector_store %arg5[%c0_10, %c0_11], %14 {strides = array<i32>} : memref<2x32xf32, #tpu.memory_space<vmem>>, vector<2x32xf32>,
    return
  }
}

module attributes {stable_mosaic.version = 11 : i64} {
  func.func @_mm_bn_act_kernel(%arg0: i32, %arg1: memref<2x32xf32, #tpu.memory_space<vmem>>, %arg2: memref<32x512xf32, #tpu.memory_space<vmem>>, %arg3: memref<1x512xf32, #tpu.memory_space<vmem>>, %arg4: memref<1x512xf32, #tpu.memory_space<vmem>>, %arg5: memref<2x512xf32, #tpu.memory_space<vmem>>) attributes {dimension_semantics = [#tpu.dimension_semantics<parallel>], iteration_bounds = array<i64: 4>, scalar_prefetch = 0 : i64, scratch_operands = 0 : i64, tpu.core_type = #tpu.core_type<tc>, window_params = [{pipeline_mode = #tpu.pipeline_mode<synchronous>, transform_indices = @transform_0, window_bounds = array<i64: 2, 32>}, {transform_indices = @transform_1, window_bounds = array<i64: 32, 512>}, {transform_indices = @transform_2, window_bounds = array<i64: 1, 512>}, {transform_indices = @transform_3, window_bounds = array<i64: 1, 512>}, {transform_indices = @transform_4, window_bounds = array<i64: 2, 512>}]} {
    %c0 = arith.constant 0 : index
    %c0_0 = arith.constant 0 : index
    %0 = vector.load %arg1[%c0, %c0_0] : memref<2x32xf32, #tpu.memory_space<vmem>>, vector<2x32xf32>
    %c0_1 = arith.constant 0 : index
    %c0_2 = arith.constant 0 : index
    %1 = vector.load %arg2[%c0_1, %c0_2] : memref<32x512xf32, #tpu.memory_space<vmem>>, vector<32x512xf32>
    %cst = arith.constant dense<0.000000e+00> : vector<2x512xf32>
    %2 = tpu.matmul %0, %1, %cst {dimension_numbers = #tpu.dot_dimension_numbers<[1], [0], [0], [1], [0, 0, 1, 1], [], []>} : vector<2x32xf32>, vector<32x512xf32>, vector<2x512xf32> -> vector<2x512xf32>
    %c0_3 = arith.constant 0 : index
    %c0_4 = arith.constant 0 : index
    %3 = vector.load %arg3[%c0_3, %c0_4] : memref<1x512xf32, #tpu.memory_space<vmem>>, vector<1x512xf32>
    %c0_5 = arith.constant 0 : index
    %c0_6 = arith.constant 0 : index
    %4 = vector.load %arg4[%c0_5, %c0_6] : memref<1x512xf32, #tpu.memory_space<vmem>>, vector<1x512xf32>
    %cst_7 = arith.constant dense<0.000000e+00> : vector<512xf32>
    %5 = vector.multi_reduction <add>, %2, %cst_7 [0] : vector<2x512xf32> to vector<512xf32>
    %6 = vector.shape_cast %5 : vector<512xf32> to vector<1x512xf32>
    %7 = arith.mulf %2, %2 : vector<2x512xf32>
    %cst_8 = arith.constant dense<0.000000e+00> : vector<512xf32>
    %8 = vector.multi_reduction <add>, %7, %cst_8 [0] : vector<2x512xf32> to vector<512xf32>
    %9 = vector.shape_cast %8 : vector<512xf32> to vector<1x512xf32>
    %cst_9 = arith.constant 5.000000e-01 : f32
    %10 = vector.broadcast %cst_9 : f32 to vector<1x512xf32>
    %11 = arith.mulf %6, %10 : vector<1x512xf32>
    %cst_10 = arith.constant 5.000000e-01 : f32
    %12 = vector.broadcast %cst_10 : f32 to vector<1x512xf32>
    %13 = arith.mulf %9, %12 : vector<1x512xf32>
    %14 = arith.mulf %11, %11 : vector<1x512xf32>
    %15 = arith.subf %13, %14 : vector<1x512xf32>
    %cst_11 = arith.constant 0.000000e+00 : f32
    %16 = vector.broadcast %cst_11 : f32 to vector<1x512xf32>
    %17 = arith.maximumf %15, %16 : vector<1x512xf32>
    %cst_12 = arith.constant 9.99999974E-6 : f32
    %18 = vector.broadcast %cst_12 : f32 to vector<1x512xf32>
    %19 = arith.addf %17, %18 : vector<1x512xf32>
    %20 = math.rsqrt %19 : vector<1x512xf32>
    %21 = arith.mulf %3, %20 : vector<1x512xf32>
    %22 = arith.mulf %11, %21 : vector<1x512xf32>
    %23 = arith.subf %4, %22 : vector<1x512xf32>
    %24 = vector.broadcast %21 : vector<1x512xf32> to vector<2x512xf32>
    %25 = arith.mulf %2, %24 : vector<2x512xf32>
    %26 = vector.broadcast %23 : vector<1x512xf32> to vector<2x512xf32>
    %27 = arith.addf %25, %26 : vector<2x512xf32>
    %cst_13 = arith.constant 0.000000e+00 : f32
    %28 = vector.broadcast %cst_13 : f32 to vector<2x512xf32>
    %29 = arith.maximumf %27, %28 : vector<2x512xf32>
    %c0_14 = arith.constant 0 : index
    %c0_15 = arith.constant 0 : index
    %30 = vector.load %arg5[%c0_14, %c0_15] : memref<2x512xf32, #tpu.memory_space<vmem>>, vector<2x512xf32>
    tpu.vector_store %arg5[%c0_14, %c0_15], %29 {strides = array<i32>} : memref<2x512xf32, #tpu.memory_space<vmem>>, vector<2x512xf32>,
    return
  }
  func.func @transform_0(%arg0: i32) -> (i32, i32) {
    %c0_i32 = arith.constant 0 : i32
    %c0_i32_0 = arith.constant 0 : i32
    %c0_i32_1 = arith.constant 0 : i32
    return %c0_i32, %c0_i32_0 : i32, i32
  }
  func.func @transform_1(%arg0: i32) -> (i32, i32) {
    %c0_i32 = arith.constant 0 : i32
    %c0_i32_0 = arith.constant 0 : i32
    return %c0_i32, %arg0 : i32, i32
  }
  func.func @transform_2(%arg0: i32) -> (i32, i32) {
    %c0_i32 = arith.constant 0 : i32
    %c0_i32_0 = arith.constant 0 : i32
    return %c0_i32, %arg0 : i32, i32
  }
  func.func @transform_3(%arg0: i32) -> (i32, i32) {
    %c0_i32 = arith.constant 0 : i32
    %c0_i32_0 = arith.constant 0 : i32
    return %c0_i32, %arg0 : i32, i32
  }
  func.func @transform_4(%arg0: i32) -> (i32, i32) {
    %c0_i32 = arith.constant 0 : i32
    %c0_i32_0 = arith.constant 0 : i32
    return %c0_i32, %arg0 : i32, i32
  }
}

module attributes {stable_mosaic.version = 11 : i64} {
  func.func @_mm_act_kernel(%arg0: memref<32x512xf32, #tpu.memory_space<vmem>>, %arg1: memref<512x256xf32, #tpu.memory_space<vmem>>, %arg2: memref<32x256xf32, #tpu.memory_space<vmem>>) attributes {dimension_semantics = [], scalar_prefetch = 0 : i64, scratch_operands = 0 : i64, tpu.core_type = #tpu.core_type<tc>} {
    %c0 = arith.constant 0 : index
    %c0_0 = arith.constant 0 : index
    %0 = vector.load %arg0[%c0, %c0_0] : memref<32x512xf32, #tpu.memory_space<vmem>>, vector<32x512xf32>
    %c0_1 = arith.constant 0 : index
    %c0_2 = arith.constant 0 : index
    %1 = vector.load %arg1[%c0_1, %c0_2] : memref<512x256xf32, #tpu.memory_space<vmem>>, vector<512x256xf32>
    %cst = arith.constant dense<0.000000e+00> : vector<32x256xf32>
    %2 = tpu.matmul %0, %1, %cst {dimension_numbers = #tpu.dot_dimension_numbers<[1], [0], [0], [1], [0, 0, 1, 1], [], []>} : vector<32x512xf32>, vector<512x256xf32>, vector<32x256xf32> -> vector<32x256xf32>
    %c0_3 = arith.constant 0 : index
    %c0_4 = arith.constant 0 : index
    %3 = vector.load %arg2[%c0_3, %c0_4] : memref<32x256xf32, #tpu.memory_space<vmem>>, vector<32x256xf32>
    tpu.vector_store %arg2[%c0_3, %c0_4], %2 {strides = array<i32>} : memref<32x256xf32, #tpu.memory_space<vmem>>, vector<32x256xf32>,
    return
  }
}

module attributes {stable_mosaic.version = 11 : i64} {
  func.func @_bn_act_kernel(%arg0: memref<98x64xf32, #tpu.memory_space<vmem>>, %arg1: memref<1x64xf32, #tpu.memory_space<vmem>>, %arg2: memref<1x64xf32, #tpu.memory_space<vmem>>, %arg3: memref<98x64xf32, #tpu.memory_space<vmem>>) attributes {dimension_semantics = [], scalar_prefetch = 0 : i64, scratch_operands = 0 : i64, tpu.core_type = #tpu.core_type<tc>} {
    %c0 = arith.constant 0 : index
    %c0_0 = arith.constant 0 : index
    %0 = vector.load %arg0[%c0, %c0_0] : memref<98x64xf32, #tpu.memory_space<vmem>>, vector<98x64xf32>
    %c0_1 = arith.constant 0 : index
    %c0_2 = arith.constant 0 : index
    %1 = vector.load %arg1[%c0_1, %c0_2] : memref<1x64xf32, #tpu.memory_space<vmem>>, vector<1x64xf32>
    %c0_3 = arith.constant 0 : index
    %c0_4 = arith.constant 0 : index
    %2 = vector.load %arg2[%c0_3, %c0_4] : memref<1x64xf32, #tpu.memory_space<vmem>>, vector<1x64xf32>
    %cst = arith.constant dense<0.000000e+00> : vector<64xf32>
    %3 = vector.multi_reduction <add>, %0, %cst [0] : vector<98x64xf32> to vector<64xf32>
    %4 = vector.shape_cast %3 : vector<64xf32> to vector<1x64xf32>
    %5 = arith.mulf %0, %0 : vector<98x64xf32>
    %cst_5 = arith.constant dense<0.000000e+00> : vector<64xf32>
    %6 = vector.multi_reduction <add>, %5, %cst_5 [0] : vector<98x64xf32> to vector<64xf32>
    %7 = vector.shape_cast %6 : vector<64xf32> to vector<1x64xf32>
    %cst_6 = arith.constant 0.0102040814 : f32
    %8 = vector.broadcast %cst_6 : f32 to vector<1x64xf32>
    %9 = arith.mulf %4, %8 : vector<1x64xf32>
    %cst_7 = arith.constant 0.0102040814 : f32
    %10 = vector.broadcast %cst_7 : f32 to vector<1x64xf32>
    %11 = arith.mulf %7, %10 : vector<1x64xf32>
    %12 = arith.mulf %9, %9 : vector<1x64xf32>
    %13 = arith.subf %11, %12 : vector<1x64xf32>
    %cst_8 = arith.constant 0.000000e+00 : f32
    %14 = vector.broadcast %cst_8 : f32 to vector<1x64xf32>
    %15 = arith.maximumf %13, %14 : vector<1x64xf32>
    %cst_9 = arith.constant 9.99999974E-6 : f32
    %16 = vector.broadcast %cst_9 : f32 to vector<1x64xf32>
    %17 = arith.addf %15, %16 : vector<1x64xf32>
    %18 = math.rsqrt %17 : vector<1x64xf32>
    %19 = arith.mulf %1, %18 : vector<1x64xf32>
    %20 = arith.mulf %9, %19 : vector<1x64xf32>
    %21 = arith.subf %2, %20 : vector<1x64xf32>
    %22 = vector.broadcast %19 : vector<1x64xf32> to vector<98x64xf32>
    %23 = arith.mulf %0, %22 : vector<98x64xf32>
    %24 = vector.broadcast %21 : vector<1x64xf32> to vector<98x64xf32>
    %25 = arith.addf %23, %24 : vector<98x64xf32>
    %cst_10 = arith.constant 0.000000e+00 : f32
    %26 = vector.broadcast %cst_10 : f32 to vector<98x64xf32>
    %27 = arith.maximumf %25, %26 : vector<98x64xf32>
    %c0_11 = arith.constant 0 : index
    %c0_12 = arith.constant 0 : index
    %28 = vector.load %arg3[%c0_11, %c0_12] : memref<98x64xf32, #tpu.memory_space<vmem>>, vector<98x64xf32>
    tpu.vector_store %arg3[%c0_11, %c0_12], %27 {strides = array<i32>} : memref<98x64xf32, #tpu.memory_space<vmem>>, vector<98x64xf32>,
    return
  }
}

module attributes {stable_mosaic.version = 11 : i64} {
  func.func @_mm_bn_act_kernel(%arg0: memref<98x256xf32, #tpu.memory_space<vmem>>, %arg1: memref<256x128xf32, #tpu.memory_space<vmem>>, %arg2: memref<1x32xf32, #tpu.memory_space<vmem>>, %arg3: memref<1x32xf32, #tpu.memory_space<vmem>>, %arg4: memref<98x128xf32, #tpu.memory_space<vmem>>) attributes {dimension_semantics = [], scalar_prefetch = 0 : i64, scratch_operands = 0 : i64, tpu.core_type = #tpu.core_type<tc>} {
    %c0 = arith.constant 0 : index
    %c0_0 = arith.constant 0 : index
    %0 = vector.load %arg0[%c0, %c0_0] : memref<98x256xf32, #tpu.memory_space<vmem>>, vector<98x256xf32>
    %c0_1 = arith.constant 0 : index
    %c0_2 = arith.constant 0 : index
    %1 = vector.load %arg1[%c0_1, %c0_2] : memref<256x128xf32, #tpu.memory_space<vmem>>, vector<256x128xf32>
    %cst = arith.constant dense<0.000000e+00> : vector<98x128xf32>
    %2 = tpu.matmul %0, %1, %cst {dimension_numbers = #tpu.dot_dimension_numbers<[1], [0], [0], [1], [0, 0, 1, 1], [], []>} : vector<98x256xf32>, vector<256x128xf32>, vector<98x128xf32> -> vector<98x128xf32>
    %c0_3 = arith.constant 0 : index
    %c0_4 = arith.constant 0 : index
    %3 = vector.load %arg2[%c0_3, %c0_4] : memref<1x32xf32, #tpu.memory_space<vmem>>, vector<1x32xf32>
    %c0_5 = arith.constant 0 : index
    %c0_6 = arith.constant 0 : index
    %4 = vector.load %arg3[%c0_5, %c0_6] : memref<1x32xf32, #tpu.memory_space<vmem>>, vector<1x32xf32>
    %cst_7 = arith.constant dense<0.000000e+00> : vector<128xf32>
    %5 = vector.multi_reduction <add>, %2, %cst_7 [0] : vector<98x128xf32> to vector<128xf32>
    %6 = vector.shape_cast %5 : vector<128xf32> to vector<1x128xf32>
    %7 = arith.mulf %2, %2 : vector<98x128xf32>
    %cst_8 = arith.constant dense<0.000000e+00> : vector<128xf32>
    %8 = vector.multi_reduction <add>, %7, %cst_8 [0] : vector<98x128xf32> to vector<128xf32>
    %9 = vector.shape_cast %8 : vector<128xf32> to vector<1x128xf32>
    %10 = vector.extract_strided_slice %6 {offsets = [0, 0], sizes = [1, 32], strides = [1, 1]} : vector<1x128xf32> to vector<1x32xf32>
    %cst_9 = arith.constant 0.000000e+00 : f32
    %11 = vector.broadcast %cst_9 : f32 to vector<1x32xf32>
    %12 = arith.addf %11, %10 : vector<1x32xf32>
    %13 = vector.extract_strided_slice %6 {offsets = [0, 32], sizes = [1, 32], strides = [1, 1]} : vector<1x128xf32> to vector<1x32xf32>
    %14 = arith.addf %12, %13 : vector<1x32xf32>
    %15 = vector.extract_strided_slice %6 {offsets = [0, 64], sizes = [1, 32], strides = [1, 1]} : vector<1x128xf32> to vector<1x32xf32>
    %16 = arith.addf %14, %15 : vector<1x32xf32>
    %17 = vector.extract_strided_slice %6 {offsets = [0, 96], sizes = [1, 32], strides = [1, 1]} : vector<1x128xf32> to vector<1x32xf32>
    %18 = arith.addf %16, %17 : vector<1x32xf32>
    %19 = vector.extract_strided_slice %9 {offsets = [0, 0], sizes = [1, 32], strides = [1, 1]} : vector<1x128xf32> to vector<1x32xf32>
    %cst_10 = arith.constant 0.000000e+00 : f32
    %20 = vector.broadcast %cst_10 : f32 to vector<1x32xf32>
    %21 = arith.addf %20, %19 : vector<1x32xf32>
    %22 = vector.extract_strided_slice %9 {offsets = [0, 32], sizes = [1, 32], strides = [1, 1]} : vector<1x128xf32> to vector<1x32xf32>
    %23 = arith.addf %21, %22 : vector<1x32xf32>
    %24 = vector.extract_strided_slice %9 {offsets = [0, 64], sizes = [1, 32], strides = [1, 1]} : vector<1x128xf32> to vector<1x32xf32>
    %25 = arith.addf %23, %24 : vector<1x32xf32>
    %26 = vector.extract_strided_slice %9 {offsets = [0, 96], sizes = [1, 32], strides = [1, 1]} : vector<1x128xf32> to vector<1x32xf32>
    %27 = arith.addf %25, %26 : vector<1x32xf32>
    %cst_11 = arith.constant 0.00255102036 : f32
    %28 = vector.broadcast %cst_11 : f32 to vector<1x32xf32>
    %29 = arith.mulf %18, %28 : vector<1x32xf32>
    %cst_12 = arith.constant 0.00255102036 : f32
    %30 = vector.broadcast %cst_12 : f32 to vector<1x32xf32>
    %31 = arith.mulf %27, %30 : vector<1x32xf32>
    %32 = arith.mulf %29, %29 : vector<1x32xf32>
    %33 = arith.subf %31, %32 : vector<1x32xf32>
    %cst_13 = arith.constant 0.000000e+00 : f32
    %34 = vector.broadcast %cst_13 : f32 to vector<1x32xf32>
    %35 = arith.maximumf %33, %34 : vector<1x32xf32>
    %cst_14 = arith.constant 9.99999974E-6 : f32
    %36 = vector.broadcast %cst_14 : f32 to vector<1x32xf32>
    %37 = arith.addf %35, %36 : vector<1x32xf32>
    %38 = math.rsqrt %37 : vector<1x32xf32>
    %39 = arith.mulf %3, %38 : vector<1x32xf32>
    %40 = arith.mulf %29, %39 : vector<1x32xf32>
    %41 = arith.subf %4, %40 : vector<1x32xf32>
    %42 = tpu.concatenate %39, %39, %39, %39 in 1 : vector<1x32xf32>, vector<1x32xf32>, vector<1x32xf32>, vector<1x32xf32> -> vector<1x128xf32>
    %43 = tpu.concatenate %41, %41, %41, %41 in 1 : vector<1x32xf32>, vector<1x32xf32>, vector<1x32xf32>, vector<1x32xf32> -> vector<1x128xf32>
    %44 = vector.broadcast %42 : vector<1x128xf32> to vector<98x128xf32>
    %45 = arith.mulf %2, %44 : vector<98x128xf32>
    %46 = vector.broadcast %43 : vector<1x128xf32> to vector<98x128xf32>
    %47 = arith.addf %45, %46 : vector<98x128xf32>
    %cst_15 = arith.constant 0.000000e+00 : f32
    %48 = vector.broadcast %cst_15 : f32 to vector<98x128xf32>
    %49 = arith.maximumf %47, %48 : vector<98x128xf32>
    %c0_16 = arith.constant 0 : index
    %c0_17 = arith.constant 0 : index
    %50 = vector.load %arg4[%c0_16, %c0_17] : memref<98x128xf32, #tpu.memory_space<vmem>>, vector<98x128xf32>
    tpu.vector_store %arg4[%c0_16, %c0_17], %49 {strides = array<i32>} : memref<98x128xf32, #tpu.memory_space<vmem>>, vector<98x128xf32>,
    return
  }
}

module attributes {stable_mosaic.version = 11 : i64} {
  func.func @_mm_bn_act_kernel(%arg0: memref<392x128xf32, #tpu.memory_space<vmem>>, %arg1: memref<128x4xf32, #tpu.memory_space<vmem>>, %arg2: memref<1x1xf32, #tpu.memory_space<vmem>>, %arg3: memref<1x1xf32, #tpu.memory_space<vmem>>, %arg4: memref<392x4xf32, #tpu.memory_space<vmem>>) attributes {dimension_semantics = [], scalar_prefetch = 0 : i64, scratch_operands = 0 : i64, tpu.core_type = #tpu.core_type<tc>} {
    %c0 = arith.constant 0 : index
    %c0_0 = arith.constant 0 : index
    %0 = vector.load %arg0[%c0, %c0_0] : memref<392x128xf32, #tpu.memory_space<vmem>>, vector<392x128xf32>
    %c0_1 = arith.constant 0 : index
    %c0_2 = arith.constant 0 : index
    %1 = vector.load %arg1[%c0_1, %c0_2] : memref<128x4xf32, #tpu.memory_space<vmem>>, vector<128x4xf32>
    %cst = arith.constant dense<0.000000e+00> : vector<392x4xf32>
    %2 = tpu.matmul %0, %1, %cst {dimension_numbers = #tpu.dot_dimension_numbers<[1], [0], [0], [1], [0, 0, 1, 1], [], []>} : vector<392x128xf32>, vector<128x4xf32>, vector<392x4xf32> -> vector<392x4xf32>
    %c0_3 = arith.constant 0 : index
    %c0_4 = arith.constant 0 : index
    %3 = vector.load %arg2[%c0_3, %c0_4] : memref<1x1xf32, #tpu.memory_space<vmem>>, vector<1x1xf32>
    %c0_5 = arith.constant 0 : index
    %c0_6 = arith.constant 0 : index
    %4 = vector.load %arg3[%c0_5, %c0_6] : memref<1x1xf32, #tpu.memory_space<vmem>>, vector<1x1xf32>
    %cst_7 = arith.constant dense<0.000000e+00> : vector<4xf32>
    %5 = vector.multi_reduction <add>, %2, %cst_7 [0] : vector<392x4xf32> to vector<4xf32>
    %6 = vector.shape_cast %5 : vector<4xf32> to vector<1x4xf32>
    %7 = arith.mulf %2, %2 : vector<392x4xf32>
    %cst_8 = arith.constant dense<0.000000e+00> : vector<4xf32>
    %8 = vector.multi_reduction <add>, %7, %cst_8 [0] : vector<392x4xf32> to vector<4xf32>
    %9 = vector.shape_cast %8 : vector<4xf32> to vector<1x4xf32>
    %10 = vector.extract_strided_slice %6 {offsets = [0, 0], sizes = [1, 1], strides = [1, 1]} : vector<1x4xf32> to vector<1x1xf32>
    %cst_9 = arith.constant 0.000000e+00 : f32
    %11 = vector.broadcast %cst_9 : f32 to vector<1x1xf32>
    %12 = arith.addf %11, %10 : vector<1x1xf32>
    %13 = vector.extract_strided_slice %6 {offsets = [0, 1], sizes = [1, 1], strides = [1, 1]} : vector<1x4xf32> to vector<1x1xf32>
    %14 = arith.addf %12, %13 : vector<1x1xf32>
    %15 = vector.extract_strided_slice %6 {offsets = [0, 2], sizes = [1, 1], strides = [1, 1]} : vector<1x4xf32> to vector<1x1xf32>
    %16 = arith.addf %14, %15 : vector<1x1xf32>
    %17 = vector.extract_strided_slice %6 {offsets = [0, 3], sizes = [1, 1], strides = [1, 1]} : vector<1x4xf32> to vector<1x1xf32>
    %18 = arith.addf %16, %17 : vector<1x1xf32>
    %19 = vector.extract_strided_slice %9 {offsets = [0, 0], sizes = [1, 1], strides = [1, 1]} : vector<1x4xf32> to vector<1x1xf32>
    %cst_10 = arith.constant 0.000000e+00 : f32
    %20 = vector.broadcast %cst_10 : f32 to vector<1x1xf32>
    %21 = arith.addf %20, %19 : vector<1x1xf32>
    %22 = vector.extract_strided_slice %9 {offsets = [0, 1], sizes = [1, 1], strides = [1, 1]} : vector<1x4xf32> to vector<1x1xf32>
    %23 = arith.addf %21, %22 : vector<1x1xf32>
    %24 = vector.extract_strided_slice %9 {offsets = [0, 2], sizes = [1, 1], strides = [1, 1]} : vector<1x4xf32> to vector<1x1xf32>
    %25 = arith.addf %23, %24 : vector<1x1xf32>
    %26 = vector.extract_strided_slice %9 {offsets = [0, 3], sizes = [1, 1], strides = [1, 1]} : vector<1x4xf32> to vector<1x1xf32>
    %27 = arith.addf %25, %26 : vector<1x1xf32>
    %cst_11 = arith.constant 6.37755089E-4 : f32
    %28 = vector.broadcast %cst_11 : f32 to vector<1x1xf32>
    %29 = arith.mulf %18, %28 : vector<1x1xf32>
    %cst_12 = arith.constant 6.37755089E-4 : f32
    %30 = vector.broadcast %cst_12 : f32 to vector<1x1xf32>
    %31 = arith.mulf %27, %30 : vector<1x1xf32>
    %32 = arith.mulf %29, %29 : vector<1x1xf32>
    %33 = arith.subf %31, %32 : vector<1x1xf32>
    %cst_13 = arith.constant 0.000000e+00 : f32
    %34 = vector.broadcast %cst_13 : f32 to vector<1x1xf32>
    %35 = arith.maximumf %33, %34 : vector<1x1xf32>
    %cst_14 = arith.constant 9.99999974E-6 : f32
    %36 = vector.broadcast %cst_14 : f32 to vector<1x1xf32>
    %37 = arith.addf %35, %36 : vector<1x1xf32>
    %38 = math.rsqrt %37 : vector<1x1xf32>
    %39 = arith.mulf %3, %38 : vector<1x1xf32>
    %40 = arith.mulf %29, %39 : vector<1x1xf32>
    %41 = arith.subf %4, %40 : vector<1x1xf32>
    %42 = tpu.concatenate %39, %39, %39, %39 in 1 : vector<1x1xf32>, vector<1x1xf32>, vector<1x1xf32>, vector<1x1xf32> -> vector<1x4xf32>
    %43 = tpu.concatenate %41, %41, %41, %41 in 1 : vector<1x1xf32>, vector<1x1xf32>, vector<1x1xf32>, vector<1x1xf32> -> vector<1x4xf32>
    %44 = vector.broadcast %42 : vector<1x4xf32> to vector<392x4xf32>
    %45 = arith.mulf %2, %44 : vector<392x4xf32>
    %46 = vector.broadcast %43 : vector<1x4xf32> to vector<392x4xf32>
    %47 = arith.addf %45, %46 : vector<392x4xf32>
    %cst_15 = arith.constant 0.000000e+00 : f32
    %48 = vector.broadcast %cst_15 : f32 to vector<392x4xf32>
    %49 = arith.subf %48, %47 : vector<392x4xf32>
    %50 = math.exp %49 : vector<392x4xf32>
    %cst_16 = arith.constant 1.000000e+00 : f32
    %51 = vector.broadcast %cst_16 : f32 to vector<392x4xf32>
    %52 = arith.addf %51, %50 : vector<392x4xf32>
    %cst_17 = arith.constant 1.000000e+00 : f32
    %53 = vector.broadcast %cst_17 : f32 to vector<392x4xf32>
    %54 = arith.divf %53, %52 : vector<392x4xf32>
    %c0_18 = arith.constant 0 : index
    %c0_19 = arith.constant 0 : index
    %55 = vector.load %arg4[%c0_18, %c0_19] : memref<392x4xf32, #tpu.memory_space<vmem>>, vector<392x4xf32>
    tpu.vector_store %arg4[%c0_18, %c0_19], %54 {strides = array<i32>} : memref<392x4xf32, #tpu.memory_space<vmem>>, vector<392x4xf32>,
    return
  }
}

</mosaic_0001>

<llo_original>
// kernel: mgvae_forward.9
$region0: #{mgvae_forward.9}
  #allocation0 [shape = 'u32[]', space=smem, size = 0x4, offset = 0x4, fixed_abs, tag = 'smem constant byte address 0x4 - core index']
  #allocation1 [shape = 'u32[144,128]{1,0:T(1,128)}', space=vmem, size = 0x12000, scoped, tag = 'internal scratch']
  %s0 = inlined_call_operand.vmem [shape: f32[392,9], index: 0, kind: input, shape index: {}]
  %s1 = inlined_call_operand.vmem [shape: f32[9,32], index: 1, kind: input, shape index: {}]
  %s2 = inlined_call_operand.vmem [shape: f32[1,32], index: 2, kind: input, shape index: {}]
  %s3 = inlined_call_operand.vmem [shape: f32[1,32], index: 3, kind: input, shape index: {}]
  %s4 = inlined_call_operand.vmem [shape: f32[392,32], index: 4, kind: output, shape index: {}]
  %s5 = sld [smem:[#allocation0]]
  $region26: #{mgvae_forward.9} parent=0
    _
  %s7 = ssub.s32 1, %s5
  %s8 = scalar_select 0, %s7, %s5
  // Predicated region
  $region2: #{mgvae_forward.9} parent=0 // pred_check
    _
  $region3: #{mgvae_forward.9} parent=0 // pred_check_branch
    %10 = sbr.rel (0) target = $region5
  $region4: #{mgvae_forward.9} parent=0 // pred_region
    _
  $region5: #{mgvae_forward.9} parent=0 // pred_fallthru
    _
  // Predicated region
  $region6: #{mgvae_forward.9} parent=0 // pred_check
    _
  $region7: #{mgvae_forward.9} parent=0 // pred_check_branch
    %12 = sbr.rel (0) target = $region9
  $region8: #{mgvae_forward.9} parent=0 // pred_region
    _
  $region9: #{mgvae_forward.9} parent=0 // pred_fallthru
    _
  // Predicated region
  $region10: #{mgvae_forward.9} parent=0 // pred_check
    _
  $region11: #{mgvae_forward.9} parent=0 // pred_check_branch
    %14 = sbr.rel (0) target = $region13
  $region12: #{mgvae_forward.9} parent=0 // pred_region
    _
  $region13: #{mgvae_forward.9} parent=0 // pred_fallthru
    _
  // Predicated region
  $region14: #{mgvae_forward.9} parent=0 // pred_check
    _
  $region15: #{mgvae_forward.9} parent=0 // pred_check_branch
    %16 = sbr.rel (0) target = $region17
  $region16: #{mgvae_forward.9} parent=0 // pred_region
    _
  $region17: #{mgvae_forward.9} parent=0 // pred_fallthru
    _
  %v17 = vld [vmem:[%s0] sm:$0xff]
  %v18 = vld [vmem:[%s0 + $0x8] sm:$0xff]
  %v19 = vld [vmem:[%s0 + $0x10] sm:$0xff]
  %v20 = vld [vmem:[%s0 + $0x18] sm:$0xff]
  %v21 = vld [vmem:[%s0 + $0x20] sm:$0xff]
  %v22 = vld [vmem:[%s0 + $0x28] sm:$0xff]
  %v23 = vld [vmem:[%s0 + $0x30] sm:$0xff]
  %v24 = vld [vmem:[%s0 + $0x38] sm:$0xff]
  %v25 = vld [vmem:[%s0 + $0x40] sm:$0xff]
  %v26 = vld [vmem:[%s0 + $0x48] sm:$0xff]
  %v27 = vld [vmem:[%s0 + $0x50] sm:$0xff]
  %v28 = vld [vmem:[%s0 + $0x58] sm:$0xff]
  %v29 = vld [vmem:[%s0 + $0x60] sm:$0xff]
  %v30 = vld [vmem:[%s0 + $0x68] sm:$0xff]
  %v31 = vld [vmem:[%s0 + $0x70] sm:$0xff]
  %v32 = vld [vmem:[%s0 + $0x78] sm:$0xff]
  %v33 = vld [vmem:[%s0 + $0x80] sm:$0xff]
  %v34 = vld [vmem:[%s0 + $0x88] sm:$0xff]
  %v35 = vld [vmem:[%s0 + $0x90] sm:$0xff]
  %v36 = vld [vmem:[%s0 + $0x98] sm:$0xff]
  %v37 = vld [vmem:[%s0 + $0xa0] sm:$0xff]
  %v38 = vld [vmem:[%s0 + $0xa8] sm:$0xff]
  %v39 = vld [vmem:[%s0 + $0xb0] sm:$0xff]
  %v40 = vld [vmem:[%s0 + $0xb8] sm:$0xff]
  %v41 = vld [vmem:[%s0 + $0xc0] sm:$0xff]
  %v42 = vld [vmem:[%s0 + $0xc8] sm:$0xff]
  %v43 = vld [vmem:[%s0 + $0xd0] sm:$0xff]
  %v44 = vld [vmem:[%s0 + $0xd8] sm:$0xff]
  %v45 = vld [vmem:[%s0 + $0xe0] sm:$0xff]
  %v46 = vld [vmem:[%s0 + $0xe8] sm:$0xff]
  %v47 = vld [vmem:[%s0 + $0xf0] sm:$0xff]
  %v48 = vld [vmem:[%s0 + $0xf8] sm:$0xff]
  %v49 = vld [vmem:[%s0 + $0x100] sm:$0xff]
  %v50 = vld [vmem:[%s0 + $0x108] sm:$0xff]
  %v51 = vld [vmem:[%s0 + $0x110] sm:$0xff]
  %v52 = vld [vmem:[%s0 + $0x118] sm:$0xff]
  %v53 = vld [vmem:[%s0 + $0x120] sm:$0xff]
  %v54 = vld [vmem:[%s0 + $0x128] sm:$0xff]
  %v55 = vld [vmem:[%s0 + $0x130] sm:$0xff]
  %v56 = vld [vmem:[%s0 + $0x138] sm:$0xff]
  %v57 = vld [vmem:[%s0 + $0x140] sm:$0xff]
  %v58 = vld [vmem:[%s0 + $0x148] sm:$0xff]
  %v59 = vld [vmem:[%s0 + $0x150] sm:$0xff]
  %v60 = vld [vmem:[%s0 + $0x158] sm:$0xff]
  %v61 = vld [vmem:[%s0 + $0x160] sm:$0xff]
  %v62 = vld [vmem:[%s0 + $0x168] sm:$0xff]
  %v63 = vld [vmem:[%s0 + $0x170] sm:$0xff]
  %v64 = vld [vmem:[%s0 + $0x178] sm:$0xff]
  %v65 = vld [vmem:[%s0 + $0x180] sm:$0xff]
  %v66 = vld [vmem:[%s1] sm:$0xff]
  %v67 = vld [vmem:[%s1 + $0x8] sm:$0x1]
  %vm68 = vcmask 72704
  %v70 = vsel %vm68, %v17, 0
  %v73 = vsel %vm68, %v18, 0
  %v76 = vsel %vm68, %v19, 0
  %v79 = vsel %vm68, %v20, 0
  %v82 = vsel %vm68, %v21, 0
  %v85 = vsel %vm68, %v22, 0
  %v88 = vsel %vm68, %v23, 0
  %v91 = vsel %vm68, %v24, 0
  %v94 = vsel %vm68, %v25, 0
  %v97 = vsel %vm68, %v26, 0
  %v100 = vsel %vm68, %v27, 0
  %v103 = vsel %vm68, %v28, 0
  %v106 = vsel %vm68, %v29, 0
  %v109 = vsel %vm68, %v30, 0
  %v112 = vsel %vm68, %v31, 0
  %v115 = vsel %vm68, %v32, 0
  %v118 = vsel %vm68, %v33, 0
  %v121 = vsel %vm68, %v34, 0
  %v124 = vsel %vm68, %v35, 0
  %v127 = vsel %vm68, %v36, 0
  %v130 = vsel %vm68, %v37, 0
  %v133 = vsel %vm68, %v38, 0
  %v136 = vsel %vm68, %v39, 0
  %v139 = vsel %vm68, %v40, 0
  %v142 = vsel %vm68, %v41, 0
  %v145 = vsel %vm68, %v42, 0
  %v148 = vsel %vm68, %v43, 0
  %v151 = vsel %vm68, %v44, 0
  %v154 = vsel %vm68, %v45, 0
  %v157 = vsel %vm68, %v46, 0
  %v160 = vsel %vm68, %v47, 0
  %v163 = vsel %vm68, %v48, 0
  %v166 = vsel %vm68, %v49, 0
  %v169 = vsel %vm68, %v50, 0
  %v172 = vsel %vm68, %v51, 0
  %v175 = vsel %vm68, %v52, 0
  %v178 = vsel %vm68, %v53, 0
  %v181 = vsel %vm68, %v54, 0
  %v184 = vsel %vm68, %v55, 0
  %v187 = vsel %vm68, %v56, 0
  %v190 = vsel %vm68, %v57, 0
  %v193 = vsel %vm68, %v58, 0
  %v196 = vsel %vm68, %v59, 0
  %v199 = vsel %vm68, %v60, 0
  %v202 = vsel %vm68, %v61, 0
  %v205 = vsel %vm68, %v62, 0
  %v208 = vsel %vm68, %v63, 0
  %v211 = vsel %vm68, %v64, 0
  %v214 = vsel %vm68, %v65, 0
  %vm216 = vcmask 1040384
  %v218 = vsel %vm216, %v67, 0
  %220 = vmatprep.subr.mxu0 0.0
  %221 = vmatpush1.msra.mxu0 %v66
  %222 = vmatprep.subr.mxu0 0.0
  %223 = vmatpush1.msra.mxu0 %v218
  %224 = vmatprep.subr.mxu0 0.0
  %225 = vmatpush1.msra.mxu0 0.0
  %226 = vmatprep.subr.mxu0 0.0
  %227 = vmatpush1.msra.mxu0 0.0
  %228 = vmatprep.subr.mxu0 0.0
  %229 = vmatpush1.msra.mxu0 0.0
  %230 = vmatprep.subr.mxu0 0.0
  %231 = vmatpush1.msra.mxu0 0.0
  %232 = vmatprep.subr.mxu0 0.0
  %233 = vmatpush1.msra.mxu0 0.0
  %234 = vmatprep.subr.mxu0 0.0
  %235 = vmatpush1.msra.mxu0 0.0
  %236 = vmatprep.subr.mxu0 0.0
  %237 = vmatpush1.msra.mxu0 0.0
  %238 = vmatprep.subr.mxu0 0.0
  %239 = vmatpush1.msra.mxu0 0.0
  %240 = vmatprep.subr.mxu0 0.0
  %241 = vmatpush1.msra.mxu0 0.0
  %242 = vmatprep.subr.mxu0 0.0
  %243 = vmatpush1.msra.mxu0 0.0
  %244 = vmatprep.subr.mxu0 0.0
  %245 = vmatpush1.msra.mxu0 0.0
  %246 = vmatprep.subr.mxu0 0.0
  %247 = vmatpush1.msra.mxu0 0.0
  %248 = vmatprep.subr.mxu0 0.0
  %249 = vmatpush1.msra.mxu0 0.0
  %250 = vmatprep.subr.mxu0 0.0
  %251 = vmatpush1.msra.mxu0 0.0
  %252 = vmatprep.subr.mxu0 0.0
  %253 = vmatpush1.msra.mxu0 0.0
  %254 = vmatprep.subr.mxu0 0.0
  %255 = vmatpush1.msra.mxu0 0.0
  %256 = vmatprep.subr.mxu0 0.0
  %257 = vmatpush1.msra.mxu0 0.0
  %258 = vmatprep.subr.mxu0 0.0
  %259 = vmatpush1.msra.mxu0 0.0
  %260 = vmatprep.subr.mxu0 0.0
  %261 = vmatpush1.msra.mxu0 0.0
  %262 = vmatprep.subr.mxu0 0.0
  %263 = vmatpush1.msra.mxu0 0.0
  %264 = vmatprep.subr.mxu0 0.0
  %265 = vmatpush1.msra.mxu0 0.0
  %266 = vmatprep.subr.mxu0 0.0
  %267 = vmatpush1.msra.mxu0 0.0
  %268 = vmatprep.subr.mxu0 0.0
  %269 = vmatpush1.msra.mxu0 0.0
  %270 = vmatprep.subr.mxu0 0.0
  %271 = vmatpush1.msra.mxu0 0.0
  %272 = vmatprep.subr.mxu0 0.0
  %273 = vmatpush1.msra.mxu0 0.0
  %274 = vmatprep.subr.mxu0 0.0
  %275 = vmatpush1.msra.mxu0 0.0
  %276 = vmatprep.subr.mxu0 0.0
  %277 = vmatpush1.msra.mxu0 0.0
  %278 = vmatprep.subr.mxu0 0.0
  %279 = vmatpush1.msra.mxu0 0.0
  %280 = vmatprep.subr.mxu0 0.0
  %281 = vmatpush1.msra.mxu0 0.0
  %282 = vmatprep.subr.mxu0 0.0
  %283 = vmatpush1.msra.mxu0 0.0
  %284 = vmatprep.mubr.f32.mxu0 0.0
  %285 = vmatmul.mubr.f32.gmra.mrb[0].mxu0 %v70
  %v286 = vpop.f32.mrb[0].mxu0
  %v287 = vadd.f32 0.0, %v286
  %v288 = vpop.f32.mrb[0].mxu0
  %289 = vmatprep.mubr.f32.mxu0 0.0
  %290 = vmatmul.mubr.f32.gmra.mrb[0].mxu0 %v73
  %v291 = vpop.f32.mrb[0].mxu0
  %v292 = vadd.f32 0.0, %v291
  %v293 = vpop.f32.mrb[0].mxu0
  %294 = vmatprep.mubr.f32.mxu0 0.0
  %295 = vmatmul.mubr.f32.gmra.mrb[0].mxu0 %v76
  %v296 = vpop.f32.mrb[0].mxu0
  %v297 = vadd.f32 0.0, %v296
  %v298 = vpop.f32.mrb[0].mxu0
  %299 = vmatprep.mubr.f32.mxu0 0.0
  %300 = vmatmul.mubr.f32.gmra.mrb[0].mxu0 %v79
  %v301 = vpop.f32.mrb[0].mxu0
  %v302 = vadd.f32 0.0, %v301
  %v303 = vpop.f32.mrb[0].mxu0
  %304 = vmatprep.mubr.f32.mxu0 0.0
  %305 = vmatmul.mubr.f32.gmra.mrb[0].mxu0 %v82
  %v306 = vpop.f32.mrb[0].mxu0
  %v307 = vadd.f32 0.0, %v306
  %v308 = vpop.f32.mrb[0].mxu0
  %309 = vmatprep.mubr.f32.mxu0 0.0
  %310 = vmatmul.mubr.f32.gmra.mrb[0].mxu0 %v85
  %v311 = vpop.f32.mrb[0].mxu0
  %v312 = vadd.f32 0.0, %v311
  %v313 = vpop.f32.mrb[0].mxu0
  %314 = vmatprep.mubr.f32.mxu0 0.0
  %315 = vmatmul.mubr.f32.gmra.mrb[0].mxu0 %v88
  %v316 = vpop.f32.mrb[0].mxu0
  %v317 = vadd.f32 0.0, %v316
  %v318 = vpop.f32.mrb[0].mxu0
  %319 = vmatprep.mubr.f32.mxu0 0.0
  %320 = vmatmul.mubr.f32.gmra.mrb[0].mxu0 %v91
  %v321 = vpop.f32.mrb[0].mxu0
  %v322 = vadd.f32 0.0, %v321
  %v323 = vpop.f32.mrb[0].mxu0
  %324 = vmatprep.mubr.f32.mxu0 0.0
  %325 = vmatmul.mubr.f32.gmra.mrb[0].mxu0 %v94
  %v326 = vpop.f32.mrb[0].mxu0
  %v327 = vadd.f32 0.0, %v326
  %v328 = vpop.f32.mrb[0].mxu0
  %329 = vmatprep.mubr.f32.mxu0 0.0
  %330 = vmatmul.mubr.f32.gmra.mrb[0].mxu0 %v97
  %v331 = vpop.f32.mrb[0].mxu0
  %v332 = vadd.f32 0.0, %v331
  %v333 = vpop.f32.mrb[0].mxu0
  %334 = vmatprep.mubr.f32.mxu0 0.0
  %335 = vmatmul.mubr.f32.gmra.mrb[0].mxu0 %v100
  %v336 = vpop.f32.mrb[0].mxu0
  %v337 = vadd.f32 0.0, %v336
  %v338 = vpop.f32.mrb[0].mxu0
  %339 = vmatprep.mubr.f32.mxu0 0.0
  %340 = vmatmul.mubr.f32.gmra.mrb[0].mxu0 %v103
  %v341 = vpop.f32.mrb[0].mxu0
  %v342 = vadd.f32 0.0, %v341
  %v343 = vpop.f32.mrb[0].mxu0
  %344 = vmatprep.mubr.f32.mxu0 0.0
  %345 = vmatmul.mubr.f32.gmra.mrb[0].mxu0 %v106
  %v346 = vpop.f32.mrb[0].mxu0
  %v347 = vadd.f32 0.0, %v346
  %v348 = vpop.f32.mrb[0].mxu0
  %349 = vmatprep.mubr.f32.mxu0 0.0
  %350 = vmatmul.mubr.f32.gmra.mrb[0].mxu0 %v109
  %v351 = vpop.f32.mrb[0].mxu0
  %v352 = vadd.f32 0.0, %v351
  %v353 = vpop.f32.mrb[0].mxu0
  %354 = vmatprep.mubr.f32.mxu0 0.0
  %355 = vmatmul.mubr.f32.gmra.mrb[0].mxu0 %v112
  %v356 = vpop.f32.mrb[0].mxu0
  %v357 = vadd.f32 0.0, %v356
  %v358 = vpop.f32.mrb[0].mxu0
  %359 = vmatprep.mubr.f32.mxu0 0.0
  %360 = vmatmul.mubr.f32.gmra.mrb[0].mxu0 %v115
  %v361 = vpop.f32.mrb[0].mxu0
  %v362 = vadd.f32 0.0, %v361
  %v363 = vpop.f32.mrb[0].mxu0
  %364 = vmatprep.mubr.f32.mxu0 0.0
  %365 = vmatmul.mubr.f32.gmra.mrb[0].mxu0 %v118
  %v366 = vpop.f32.mrb[0].mxu0
  %v367 = vadd.f32 0.0, %v366
  %v368 = vpop.f32.mrb[0].mxu0
  %369 = vmatprep.mubr.f32.mxu0 0.0
  %370 = vmatmul.mubr.f32.gmra.mrb[0].mxu0 %v121
  %v371 = vpop.f32.mrb[0].mxu0
  %v372 = vadd.f32 0.0, %v371
  %v373 = vpop.f32.mrb[0].mxu0
  %374 = vmatprep.mubr.f32.mxu0 0.0
  %375 = vmatmul.mubr.f32.gmra.mrb[0].mxu0 %v124
  %v376 = vpop.f32.mrb[0].mxu0
  %v377 = vadd.f32 0.0, %v376
  %v378 = vpop.f32.mrb[0].mxu0
  %379 = vmatprep.mubr.f32.mxu0 0.0
  %380 = vmatmul.mubr.f32.gmra.mrb[0].mxu0 %v127
  %v381 = vpop.f32.mrb[0].mxu0
  %v382 = vadd.f32 0.0, %v381
  %v383 = vpop.f32.mrb[0].mxu0
  %384 = vmatprep.mubr.f32.mxu0 0.0
  %385 = vmatmul.mubr.f32.gmra.mrb[0].mxu0 %v130
  %v386 = vpop.f32.mrb[0].mxu0
  %v387 = vadd.f32 0.0, %v386
  %v388 = vpop.f32.mrb[0].mxu0
  %389 = vmatprep.mubr.f32.mxu0 0.0
  %390 = vmatmul.mubr.f32.gmra.mrb[0].mxu0 %v133
  %v391 = vpop.f32.mrb[0].mxu0
  %v392 = vadd.f32 0.0, %v391
  %v393 = vpop.f32.mrb[0].mxu0
  %394 = vmatprep.mubr.f32.mxu0 0.0
  %395 = vmatmul.mubr.f32.gmra.mrb[0].mxu0 %v136
  %v396 = vpop.f32.mrb[0].mxu0
  %v397 = vadd.f32 0.0, %v396
  %v398 = vpop.f32.mrb[0].mxu0
  %399 = vmatprep.mubr.f32.mxu0 0.0
  %400 = vmatmul.mubr.f32.gmra.mrb[0].mxu0 %v139
  %v401 = vpop.f32.mrb[0].mxu0
  %v402 = vadd.f32 0.0, %v401
  %v403 = vpop.f32.mrb[0].mxu0
  %404 = vmatprep.mubr.f32.mxu0 0.0
  %405 = vmatmul.mubr.f32.gmra.mrb[0].mxu0 %v142
  %v406 = vpop.f32.mrb[0].mxu0
  %v407 = vadd.f32 0.0, %v406
  %v408 = vpop.f32.mrb[0].mxu0
  %409 = vmatprep.mubr.f32.mxu0 0.0
  %410 = vmatmul.mubr.f32.gmra.mrb[0].mxu0 %v145
  %v411 = vpop.f32.mrb[0].mxu0
  %v412 = vadd.f32 0.0, %v411
  %v413 = vpop.f32.mrb[0].mxu0
  %414 = vmatprep.mubr.f32.mxu0 0.0
  %415 = vmatmul.mubr.f32.gmra.mrb[0].mxu0 %v148
  %v416 = vpop.f32.mrb[0].mxu0
  %v417 = vadd.f32 0.0, %v416
  %v418 = vpop.f32.mrb[0].mxu0
  %419 = vmatprep.mubr.f32.mxu0 0.0
  %420 = vmatmul.mubr.f32.gmra.mrb[0].mxu0 %v151
  %v421 = vpop.f32.mrb[0].mxu0
  %v422 = vadd.f32 0.0, %v421
  %v423 = vpop.f32.mrb[0].mxu0
  %424 = vmatprep.mubr.f32.mxu0 0.0
  %425 = vmatmul.mubr.f32.gmra.mrb[0].mxu0 %v154
  %v426 = vpop.f32.mrb[0].mxu0
  %v427 = vadd.f32 0.0, %v426
  %v428 = vpop.f32.mrb[0].mxu0
  %429 = vmatprep.mubr.f32.mxu0 0.0
  %430 = vmatmul.mubr.f32.gmra.mrb[0].mxu0 %v157
  %v431 = vpop.f32.mrb[0].mxu0
  %v432 = vadd.f32 0.0, %v431
  %v433 = vpop.f32.mrb[0].mxu0
  %434 = vmatprep.mubr.f32.mxu0 0.0
  %435 = vmatmul.mubr.f32.gmra.mrb[0].mxu0 %v160
  %v436 = vpop.f32.mrb[0].mxu0
  %v437 = vadd.f32 0.0, %v436
  %v438 = vpop.f32.mrb[0].mxu0
  %439 = vmatprep.mubr.f32.mxu0 0.0
  %440 = vmatmul.mubr.f32.gmra.mrb[0].mxu0 %v163
  %v441 = vpop.f32.mrb[0].mxu0
  %v442 = vadd.f32 0.0, %v441
  %v443 = vpop.f32.mrb[0].mxu0
  %444 = vmatprep.mubr.f32.mxu0 0.0
  %445 = vmatmul.mubr.f32.gmra.mrb[0].mxu0 %v166
  %v446 = vpop.f32.mrb[0].mxu0
  %v447 = vadd.f32 0.0, %v446
  %v448 = vpop.f32.mrb[0].mxu0
  %449 = vmatprep.mubr.f32.mxu0 0.0
  %450 = vmatmul.mubr.f32.gmra.mrb[0].mxu0 %v169
  %v451 = vpop.f32.mrb[0].mxu0
  %v452 = vadd.f32 0.0, %v451
  %v453 = vpop.f32.mrb[0].mxu0
  %454 = vmatprep.mubr.f32.mxu0 0.0
  %455 = vmatmul.mubr.f32.gmra.mrb[0].mxu0 %v172
  %v456 = vpop.f32.mrb[0].mxu0
  %v457 = vadd.f32 0.0, %v456
  %v458 = vpop.f32.mrb[0].mxu0
  %459 = vmatprep.mubr.f32.mxu0 0.0
  %460 = vmatmul.mubr.f32.gmra.mrb[0].mxu0 %v175
  %v461 = vpop.f32.mrb[0].mxu0
  %v462 = vadd.f32 0.0, %v461
  %v463 = vpop.f32.mrb[0].mxu0
  %464 = vmatprep.mubr.f32.mxu0 0.0
  %465 = vmatmul.mubr.f32.gmra.mrb[0].mxu0 %v178
  %v466 = vpop.f32.mrb[0].mxu0
  %v467 = vadd.f32 0.0, %v466
  %v468 = vpop.f32.mrb[0].mxu0
  %469 = vmatprep.mubr.f32.mxu0 0.0
  %470 = vmatmul.mubr.f32.gmra.mrb[0].mxu0 %v181
  %v471 = vpop.f32.mrb[0].mxu0
  %v472 = vadd.f32 0.0, %v471
  %v473 = vpop.f32.mrb[0].mxu0
  %474 = vmatprep.mubr.f32.mxu0 0.0
  %475 = vmatmul.mubr.f32.gmra.mrb[0].mxu0 %v184
  %v476 = vpop.f32.mrb[0].mxu0
  %v477 = vadd.f32 0.0, %v476
  %v478 = vpop.f32.mrb[0].mxu0
  %479 = vmatprep.mubr.f32.mxu0 0.0
  %480 = vmatmul.mubr.f32.gmra.mrb[0].mxu0 %v187
  %v481 = vpop.f32.mrb[0].mxu0
  %v482 = vadd.f32 0.0, %v481
  %v483 = vpop.f32.mrb[0].mxu0
  %484 = vmatprep.mubr.f32.mxu0 0.0
  %485 = vmatmul.mubr.f32.gmra.mrb[0].mxu0 %v190
  %v486 = vpop.f32.mrb[0].mxu0
  %v487 = vadd.f32 0.0, %v486
  %v488 = vpop.f32.mrb[0].mxu0
  %489 = vmatprep.mubr.f32.mxu0 0.0
  %490 = vmatmul.mubr.f32.gmra.mrb[0].mxu0 %v193
  %v491 = vpop.f32.mrb[0].mxu0
  %v492 = vadd.f32 0.0, %v491
  %v493 = vpop.f32.mrb[0].mxu0
  %494 = vmatprep.mubr.f32.mxu0 0.0
  %495 = vmatmul.mubr.f32.gmra.mrb[0].mxu0 %v196
  %v496 = vpop.f32.mrb[0].mxu0
  %v497 = vadd.f32 0.0, %v496
  %v498 = vpop.f32.mrb[0].mxu0
  %499 = vmatprep.mubr.f32.mxu0 0.0
  %500 = vmatmul.mubr.f32.gmra.mrb[0].mxu0 %v199
  %v501 = vpop.f32.mrb[0].mxu0
  %v502 = vadd.f32 0.0, %v501
  %v503 = vpop.f32.mrb[0].mxu0
  %504 = vmatprep.mubr.f32.mxu0 0.0
  %505 = vmatmul.mubr.f32.gmra.mrb[0].mxu0 %v202
  %v506 = vpop.f32.mrb[0].mxu0
  %v507 = vadd.f32 0.0, %v506
  %v508 = vpop.f32.mrb[0].mxu0
  %509 = vmatprep.mubr.f32.mxu0 0.0
  %510 = vmatmul.mubr.f32.gmra.mrb[0].mxu0 %v205
  %v511 = vpop.f32.mrb[0].mxu0
  %v512 = vadd.f32 0.0, %v511
  %v513 = vpop.f32.mrb[0].mxu0
  %514 = vmatprep.mubr.f32.mxu0 0.0
  %515 = vmatmul.mubr.f32.gmra.mrb[0].mxu0 %v208
  %v516 = vpop.f32.mrb[0].mxu0
  %v517 = vadd.f32 0.0, %v516
  %v518 = vpop.f32.mrb[0].mxu0
  %519 = vmatprep.mubr.f32.mxu0 0.0
  %520 = vmatmul.mubr.f32.gmra.mrb[0].mxu0 %v211
  %v521 = vpop.f32.mrb[0].mxu0
  %v522 = vadd.f32 0.0, %v521
  %v523 = vpop.f32.mrb[0].mxu0
  %524 = vmatprep.mubr.f32.mxu0 0.0
  %525 = vmatmul.mubr.f32.gmra.mrb[0].mxu0 %v214
  %v526 = vpop.f32.mrb[0].mxu0
  %v527 = vadd.f32 0.0, %v526
  %v528 = vpop.f32.mrb[0].mxu0
  %529 = vdwg.mxu0
  %v530 = vld [vmem:[%s2] sm:$0x1]
  %v531 = vld [vmem:[%s3] sm:$0x1]
  %vm532 = vcmask 261120
  %v533 = vsel %vm532, %v287, 0.0
  %v534 = vsel %vm532, %v292, 0.0
  %v535 = vadd.f32 %v533, %v534
  %v536 = vsel %vm532, %v297, 0.0
  %v537 = vadd.f32 %v535, %v536
  %v538 = vsel %vm532, %v302, 0.0
  %v539 = vadd.f32 %v537, %v538
  %v540 = vsel %vm532, %v307, 0.0
  %v541 = vadd.f32 %v539, %v540
  %v542 = vsel %vm532, %v312, 0.0
  %v543 = vadd.f32 %v541, %v542
  %v544 = vsel %vm532, %v317, 0.0
  %v545 = vadd.f32 %v543, %v544
  %v546 = vsel %vm532, %v322, 0.0
  %v547 = vadd.f32 %v545, %v546
  %v548 = vsel %vm532, %v327, 0.0
  %v549 = vadd.f32 %v547, %v548
  %v550 = vsel %vm532, %v332, 0.0
  %v551 = vadd.f32 %v549, %v550
  %v552 = vsel %vm532, %v337, 0.0
  %v553 = vadd.f32 %v551, %v552
  %v554 = vsel %vm532, %v342, 0.0
  %v555 = vadd.f32 %v553, %v554
  %v556 = vsel %vm532, %v347, 0.0
  %v557 = vadd.f32 %v555, %v556
  %v558 = vsel %vm532, %v352, 0.0
  %v559 = vadd.f32 %v557, %v558
  %v560 = vsel %vm532, %v357, 0.0
  %v561 = vadd.f32 %v559, %v560
  %v562 = vsel %vm532, %v362, 0.0
  %v563 = vadd.f32 %v561, %v562
  %v564 = vsel %vm532, %v367, 0.0
  %v565 = vadd.f32 %v563, %v564
  %v566 = vsel %vm532, %v372, 0.0
  %v567 = vadd.f32 %v565, %v566
  %v568 = vsel %vm532, %v377, 0.0
  %v569 = vadd.f32 %v567, %v568
  %v570 = vsel %vm532, %v382, 0.0
  %v571 = vadd.f32 %v569, %v570
  %v572 = vsel %vm532, %v387, 0.0
  %v573 = vadd.f32 %v571, %v572
  %v574 = vsel %vm532, %v392, 0.0
  %v575 = vadd.f32 %v573, %v574
  %v576 = vsel %vm532, %v397, 0.0
  %v577 = vadd.f32 %v575, %v576
  %v578 = vsel %vm532, %v402, 0.0
  %v579 = vadd.f32 %v577, %v578
  %v580 = vsel %vm532, %v407, 0.0
  %v581 = vadd.f32 %v579, %v580
  %v582 = vsel %vm532, %v412, 0.0
  %v583 = vadd.f32 %v581, %v582
  %v584 = vsel %vm532, %v417, 0.0
  %v585 = vadd.f32 %v583, %v584
  %v586 = vsel %vm532, %v422, 0.0
  %v587 = vadd.f32 %v585, %v586
  %v588 = vsel %vm532, %v427, 0.0
  %v589 = vadd.f32 %v587, %v588
  %v590 = vsel %vm532, %v432, 0.0
  %v591 = vadd.f32 %v589, %v590
  %v592 = vsel %vm532, %v437, 0.0
  %v593 = vadd.f32 %v591, %v592
  %v594 = vsel %vm532, %v442, 0.0
  %v595 = vadd.f32 %v593, %v594
  %v596 = vsel %vm532, %v447, 0.0
  %v597 = vadd.f32 %v595, %v596
  %v598 = vsel %vm532, %v452, 0.0
  %v599 = vadd.f32 %v597, %v598
  %v600 = vsel %vm532, %v457, 0.0
  %v601 = vadd.f32 %v599, %v600
  %v602 = vsel %vm532, %v462, 0.0
  %v603 = vadd.f32 %v601, %v602
  %v604 = vsel %vm532, %v467, 0.0
  %v605 = vadd.f32 %v603, %v604
  %v606 = vsel %vm532, %v472, 0.0
  %v607 = vadd.f32 %v605, %v606
  %v608 = vsel %vm532, %v477, 0.0
  %v609 = vadd.f32 %v607, %v608
  %v610 = vsel %vm532, %v482, 0.0
  %v611 = vadd.f32 %v609, %v610
  %v612 = vsel %vm532, %v487, 0.0
  %v613 = vadd.f32 %v611, %v612
  %v614 = vsel %vm532, %v492, 0.0
  %v615 = vadd.f32 %v613, %v614
  %v616 = vsel %vm532, %v497, 0.0
  %v617 = vadd.f32 %v615, %v616
  %v618 = vsel %vm532, %v502, 0.0
  %v619 = vadd.f32 %v617, %v618
  %v620 = vsel %vm532, %v507, 0.0
  %v621 = vadd.f32 %v619, %v620
  %v622 = vsel %vm532, %v512, 0.0
  %v623 = vadd.f32 %v621, %v622
  %v624 = vsel %vm532, %v517, 0.0
  %v625 = vadd.f32 %v623, %v624
  %v626 = vsel %vm532, %v522, 0.0
  %v627 = vadd.f32 %v625, %v626
  %v628 = vsel %vm532, %v527, 0.0
  %v629 = vadd.f32 %v627, %v628
  %v630 = vrot.slane %v629, 4
  %v631 = vadd.f32 %v629, %v630
  %v632 = vrot.slane %v631, 2
  %v633 = vadd.f32 %v631, %v632
  %v634 = vrot.slane %v633, 1
  %v635 = vadd.f32 %v633, %v634
  %v636 = vmul.f32 %v287, %v287
  %v637 = vmul.f32 %v292, %v292
  %v638 = vmul.f32 %v297, %v297
  %v639 = vmul.f32 %v302, %v302
  %v640 = vmul.f32 %v307, %v307
  %v641 = vmul.f32 %v312, %v312
  %v642 = vmul.f32 %v317, %v317
  %v643 = vmul.f32 %v322, %v322
  %v644 = vmul.f32 %v327, %v327
  %v645 = vmul.f32 %v332, %v332
  %v646 = vmul.f32 %v337, %v337
  %v647 = vmul.f32 %v342, %v342
  %v648 = vmul.f32 %v347, %v347
  %v649 = vmul.f32 %v352, %v352
  %v650 = vmul.f32 %v357, %v357
  %v651 = vmul.f32 %v362, %v362
  %v652 = vmul.f32 %v367, %v367
  %v653 = vmul.f32 %v372, %v372
  %v654 = vmul.f32 %v377, %v377
  %v655 = vmul.f32 %v382, %v382
  %v656 = vmul.f32 %v387, %v387
  %v657 = vmul.f32 %v392, %v392
  %v658 = vmul.f32 %v397, %v397
  %v659 = vmul.f32 %v402, %v402
  %v660 = vmul.f32 %v407, %v407
  %v661 = vmul.f32 %v412, %v412
  %v662 = vmul.f32 %v417, %v417
  %v663 = vmul.f32 %v422, %v422
  %v664 = vmul.f32 %v427, %v427
  %v665 = vmul.f32 %v432, %v432
  %v666 = vmul.f32 %v437, %v437
  %v667 = vmul.f32 %v442, %v442
  %v668 = vmul.f32 %v447, %v447
  %v669 = vmul.f32 %v452, %v452
  %v670 = vmul.f32 %v457, %v457
  %v671 = vmul.f32 %v462, %v462
  %v672 = vmul.f32 %v467, %v467
  %v673 = vmul.f32 %v472, %v472
  %v674 = vmul.f32 %v477, %v477
  %v675 = vmul.f32 %v482, %v482
  %v676 = vmul.f32 %v487, %v487
  %v677 = vmul.f32 %v492, %v492
  %v678 = vmul.f32 %v497, %v497
  %v679 = vmul.f32 %v502, %v502
  %v680 = vmul.f32 %v507, %v507
  %v681 = vmul.f32 %v512, %v512
  %v682 = vmul.f32 %v517, %v517
  %v683 = vmul.f32 %v522, %v522
  %v684 = vmul.f32 %v527, %v527
  %v685 = vsel %vm532, %v636, 0.0
  %v686 = vsel %vm532, %v637, 0.0
  %v687 = vadd.f32 %v685, %v686
  %v688 = vsel %vm532, %v638, 0.0
  %v689 = vadd.f32 %v687, %v688
  %v690 = vsel %vm532, %v639, 0.0
  %v691 = vadd.f32 %v689, %v690
  %v692 = vsel %vm532, %v640, 0.0
  %v693 = vadd.f32 %v691, %v692
  %v694 = vsel %vm532, %v641, 0.0
  %v695 = vadd.f32 %v693, %v694
  %v696 = vsel %vm532, %v642, 0.0
  %v697 = vadd.f32 %v695, %v696
  %v698 = vsel %vm532, %v643, 0.0
  %v699 = vadd.f32 %v697, %v698
  %v700 = vsel %vm532, %v644, 0.0
  %v701 = vadd.f32 %v699, %v700
  %v702 = vsel %vm532, %v645, 0.0
  %v703 = vadd.f32 %v701, %v702
  %v704 = vsel %vm532, %v646, 0.0
  %v705 = vadd.f32 %v703, %v704
  %v706 = vsel %vm532, %v647, 0.0
  %v707 = vadd.f32 %v705, %v706
  %v708 = vsel %vm532, %v648, 0.0
  %v709 = vadd.f32 %v707, %v708
  %v710 = vsel %vm532, %v649, 0.0
  %v711 = vadd.f32 %v709, %v710
  %v712 = vsel %vm532, %v650, 0.0
  %v713 = vadd.f32 %v711, %v712
  %v714 = vsel %vm532, %v651, 0.0
  %v715 = vadd.f32 %v713, %v714
  %v716 = vsel %vm532, %v652, 0.0
  %v717 = vadd.f32 %v715, %v716
  %v718 = vsel %vm532, %v653, 0.0
  %v719 = vadd.f32 %v717, %v718
  %v720 = vsel %vm532, %v654, 0.0
  %v721 = vadd.f32 %v719, %v720
  %v722 = vsel %vm532, %v655, 0.0
  %v723 = vadd.f32 %v721, %v722
  %v724 = vsel %vm532, %v656, 0.0
  %v725 = vadd.f32 %v723, %v724
  %v726 = vsel %vm532, %v657, 0.0
  %v727 = vadd.f32 %v725, %v726
  %v728 = vsel %vm532, %v658, 0.0
  %v729 = vadd.f32 %v727, %v728
  %v730 = vsel %vm532, %v659, 0.0
  %v731 = vadd.f32 %v729, %v730
  %v732 = vsel %vm532, %v660, 0.0
  %v733 = vadd.f32 %v731, %v732
  %v734 = vsel %vm532, %v661, 0.0
  %v735 = vadd.f32 %v733, %v734
  %v736 = vsel %vm532, %v662, 0.0
  %v737 = vadd.f32 %v735, %v736
  %v738 = vsel %vm532, %v663, 0.0
  %v739 = vadd.f32 %v737, %v738
  %v740 = vsel %vm532, %v664, 0.0
  %v741 = vadd.f32 %v739, %v740
  %v742 = vsel %vm532, %v665, 0.0
  %v743 = vadd.f32 %v741, %v742
  %v744 = vsel %vm532, %v666, 0.0
  %v745 = vadd.f32 %v743, %v744
  %v746 = vsel %vm532, %v667, 0.0
  %v747 = vadd.f32 %v745, %v746
  %v748 = vsel %vm532, %v668, 0.0
  %v749 = vadd.f32 %v747, %v748
  %v750 = vsel %vm532, %v669, 0.0
  %v751 = vadd.f32 %v749, %v750
  %v752 = vsel %vm532, %v670, 0.0
  %v753 = vadd.f32 %v751, %v752
  %v754 = vsel %vm532, %v671, 0.0
  %v755 = vadd.f32 %v753, %v754
  %v756 = vsel %vm532, %v672, 0.0
  %v757 = vadd.f32 %v755, %v756
  %v758 = vsel %vm532, %v673, 0.0
  %v759 = vadd.f32 %v757, %v758
  %v760 = vsel %vm532, %v674, 0.0
  %v761 = vadd.f32 %v759, %v760
  %v762 = vsel %vm532, %v675, 0.0
  %v763 = vadd.f32 %v761, %v762
  %v764 = vsel %vm532, %v676, 0.0
  %v765 = vadd.f32 %v763, %v764
  %v766 = vsel %vm532, %v677, 0.0
  %v767 = vadd.f32 %v765, %v766
  %v768 = vsel %vm532, %v678, 0.0
  %v769 = vadd.f32 %v767, %v768
  %v770 = vsel %vm532, %v679, 0.0
  %v771 = vadd.f32 %v769, %v770
  %v772 = vsel %vm532, %v680, 0.0
  %v773 = vadd.f32 %v771, %v772
  %v774 = vsel %vm532, %v681, 0.0
  %v775 = vadd.f32 %v773, %v774
  %v776 = vsel %vm532, %v682, 0.0
  %v777 = vadd.f32 %v775, %v776
  %v778 = vsel %vm532, %v683, 0.0
  %v779 = vadd.f32 %v777, %v778
  %v780 = vsel %vm532, %v684, 0.0
  %v781 = vadd.f32 %v779, %v780
  %v782 = vrot.slane %v781, 4
  %v783 = vadd.f32 %v781, %v782
  %v784 = vrot.slane %v783, 2
  %v785 = vadd.f32 %v783, %v784
  %v786 = vrot.slane %v785, 1
  %v787 = vadd.f32 %v785, %v786
  %v788 = vmul.f32 %v635, 0.0025510204
  %v789 = vmul.f32 %v787, 0.0025510204
  %v790 = vmul.f32 %v788, %v788
  %v791 = vsub.f32 %v789, %v790
  %v792 = vmax.f32 %v791, 0.0
  %v793 = vadd.f32 %v792, 1e-05
  %v794 = vrsqrt.pop %v793
  %v795 = vmul.f32 %v530, %v794
  %v796 = vmul.f32 %v788, %v795
  %v797 = vsub.f32 %v531, %v796
  %v799 = vlaneseq
  %v800 = vshrl.u32 %v799, 7
  %v801 = vsub.s32 0, %v800
  %v802 = vrot.slane %v795, %v801
  %v804 = vmul.f32 %v287, %v802
  %v805 = vmul.f32 %v292, %v802
  %v806 = vmul.f32 %v297, %v802
  %v807 = vmul.f32 %v302, %v802
  %v808 = vmul.f32 %v307, %v802
  %v809 = vmul.f32 %v312, %v802
  %v810 = vmul.f32 %v317, %v802
  %v811 = vmul.f32 %v322, %v802
  %v812 = vmul.f32 %v327, %v802
  %v813 = vmul.f32 %v332, %v802
  %v814 = vmul.f32 %v337, %v802
  %v815 = vmul.f32 %v342, %v802
  %v816 = vmul.f32 %v347, %v802
  %v817 = vmul.f32 %v352, %v802
  %v818 = vmul.f32 %v357, %v802
  %v819 = vmul.f32 %v362, %v802
  %v820 = vmul.f32 %v367, %v802
  %v821 = vmul.f32 %v372, %v802
  %v822 = vmul.f32 %v377, %v802
  %v823 = vmul.f32 %v382, %v802
  %v824 = vmul.f32 %v387, %v802
  %v825 = vmul.f32 %v392, %v802
  %v826 = vmul.f32 %v397, %v802
  %v827 = vmul.f32 %v402, %v802
  %v828 = vmul.f32 %v407, %v802
  %v829 = vmul.f32 %v412, %v802
  %v830 = vmul.f32 %v417, %v802
  %v831 = vmul.f32 %v422, %v802
  %v832 = vmul.f32 %v427, %v802
  %v833 = vmul.f32 %v432, %v802
  %v834 = vmul.f32 %v437, %v802
  %v835 = vmul.f32 %v442, %v802
  %v836 = vmul.f32 %v447, %v802
  %v837 = vmul.f32 %v452, %v802
  %v838 = vmul.f32 %v457, %v802
  %v839 = vmul.f32 %v462, %v802
  %v840 = vmul.f32 %v467, %v802
  %v841 = vmul.f32 %v472, %v802
  %v842 = vmul.f32 %v477, %v802
  %v843 = vmul.f32 %v482, %v802
  %v844 = vmul.f32 %v487, %v802
  %v845 = vmul.f32 %v492, %v802
  %v846 = vmul.f32 %v497, %v802
  %v847 = vmul.f32 %v502, %v802
  %v848 = vmul.f32 %v507, %v802
  %v849 = vmul.f32 %v512, %v802
  %v850 = vmul.f32 %v517, %v802
  %v851 = vmul.f32 %v522, %v802
  %v852 = vmul.f32 %v527, %v802
  %v854 = vlaneseq
  %v855 = vshrl.u32 %v854, 7
  %v856 = vsub.s32 0, %v855
  %v857 = vrot.slane %v797, %v856
  %v859 = vadd.f32 %v804, %v857
  %v860 = vadd.f32 %v805, %v857
  %v861 = vadd.f32 %v806, %v857
  %v862 = vadd.f32 %v807, %v857
  %v863 = vadd.f32 %v808, %v857
  %v864 = vadd.f32 %v809, %v857
  %v865 = vadd.f32 %v810, %v857
  %v866 = vadd.f32 %v811, %v857
  %v867 = vadd.f32 %v812, %v857
  %v868 = vadd.f32 %v813, %v857
  %v869 = vadd.f32 %v814, %v857
  %v870 = vadd.f32 %v815, %v857
  %v871 = vadd.f32 %v816, %v857
  %v872 = vadd.f32 %v817, %v857
  %v873 = vadd.f32 %v818, %v857
  %v874 = vadd.f32 %v819, %v857
  %v875 = vadd.f32 %v820, %v857
  %v876 = vadd.f32 %v821, %v857
  %v877 = vadd.f32 %v822, %v857
  %v878 = vadd.f32 %v823, %v857
  %v879 = vadd.f32 %v824, %v857
  %v880 = vadd.f32 %v825, %v857
  %v881 = vadd.f32 %v826, %v857
  %v882 = vadd.f32 %v827, %v857
  %v883 = vadd.f32 %v828, %v857
  %v884 = vadd.f32 %v829, %v857
  %v885 = vadd.f32 %v830, %v857
  %v886 = vadd.f32 %v831, %v857
  %v887 = vadd.f32 %v832, %v857
  %v888 = vadd.f32 %v833, %v857
  %v889 = vadd.f32 %v834, %v857
  %v890 = vadd.f32 %v835, %v857
  %v891 = vadd.f32 %v836, %v857
  %v892 = vadd.f32 %v837, %v857
  %v893 = vadd.f32 %v838, %v857
  %v894 = vadd.f32 %v839, %v857
  %v895 = vadd.f32 %v840, %v857
  %v896 = vadd.f32 %v841, %v857
  %v897 = vadd.f32 %v842, %v857
  %v898 = vadd.f32 %v843, %v857
  %v899 = vadd.f32 %v844, %v857
  %v900 = vadd.f32 %v845, %v857
  %v901 = vadd.f32 %v846, %v857
  %v902 = vadd.f32 %v847, %v857
  %v903 = vadd.f32 %v848, %v857
  %v904 = vadd.f32 %v849, %v857
  %v905 = vadd.f32 %v850, %v857
  %v906 = vadd.f32 %v851, %v857
  %v907 = vadd.f32 %v852, %v857
  %v908 = vmax.f32 %v859, 0.0
  %v909 = vmax.f32 %v860, 0.0
  %v910 = vmax.f32 %v861, 0.0
  %v911 = vmax.f32 %v862, 0.0
  %v912 = vmax.f32 %v863, 0.0
  %v913 = vmax.f32 %v864, 0.0
  %v914 = vmax.f32 %v865, 0.0
  %v915 = vmax.f32 %v866, 0.0
  %v916 = vmax.f32 %v867, 0.0
  %v917 = vmax.f32 %v868, 0.0
  %v918 = vmax.f32 %v869, 0.0
  %v919 = vmax.f32 %v870, 0.0
  %v920 = vmax.f32 %v871, 0.0
  %v921 = vmax.f32 %v872, 0.0
  %v922 = vmax.f32 %v873, 0.0
  %v923 = vmax.f32 %v874, 0.0
  %v924 = vmax.f32 %v875, 0.0
  %v925 = vmax.f32 %v876, 0.0
  %v926 = vmax.f32 %v877, 0.0
  %v927 = vmax.f32 %v878, 0.0
  %v928 = vmax.f32 %v879, 0.0
  %v929 = vmax.f32 %v880, 0.0
  %v930 = vmax.f32 %v881, 0.0
  %v931 = vmax.f32 %v882, 0.0
  %v932 = vmax.f32 %v883, 0.0
  %v933 = vmax.f32 %v884, 0.0
  %v934 = vmax.f32 %v885, 0.0
  %v935 = vmax.f32 %v886, 0.0
  %v936 = vmax.f32 %v887, 0.0
  %v937 = vmax.f32 %v888, 0.0
  %v938 = vmax.f32 %v889, 0.0
  %v939 = vmax.f32 %v890, 0.0
  %v940 = vmax.f32 %v891, 0.0
  %v941 = vmax.f32 %v892, 0.0
  %v942 = vmax.f32 %v893, 0.0
  %v943 = vmax.f32 %v894, 0.0
  %v944 = vmax.f32 %v895, 0.0
  %v945 = vmax.f32 %v896, 0.0
  %v946 = vmax.f32 %v897, 0.0
  %v947 = vmax.f32 %v898, 0.0
  %v948 = vmax.f32 %v899, 0.0
  %v949 = vmax.f32 %v900, 0.0
  %v950 = vmax.f32 %v901, 0.0
  %v951 = vmax.f32 %v902, 0.0
  %v952 = vmax.f32 %v903, 0.0
  %v953 = vmax.f32 %v904, 0.0
  %v954 = vmax.f32 %v905, 0.0
  %v955 = vmax.f32 %v906, 0.0
  %v956 = vmax.f32 %v907, 0.0
  %957 = vst.msk [vmem:[%s4] sm:$0xff] %vm532, %v908
  %958 = vst.msk [vmem:[%s4 + $0x8] sm:$0xff] %vm532, %v909
  %959 = vst.msk [vmem:[%s4 + $0x10] sm:$0xff] %vm532, %v910
  %960 = vst.msk [vmem:[%s4 + $0x18] sm:$0xff] %vm532, %v911
  %961 = vst.msk [vmem:[%s4 + $0x20] sm:$0xff] %vm532, %v912
  %962 = vst.msk [vmem:[%s4 + $0x28] sm:$0xff] %vm532, %v913
  %963 = vst.msk [vmem:[%s4 + $0x30] sm:$0xff] %vm532, %v914
  %964 = vst.msk [vmem:[%s4 + $0x38] sm:$0xff] %vm532, %v915
  %965 = vst.msk [vmem:[%s4 + $0x40] sm:$0xff] %vm532, %v916
  %966 = vst.msk [vmem:[%s4 + $0x48] sm:$0xff] %vm532, %v917
  %967 = vst.msk [vmem:[%s4 + $0x50] sm:$0xff] %vm532, %v918
  %968 = vst.msk [vmem:[%s4 + $0x58] sm:$0xff] %vm532, %v919
  %969 = vst.msk [vmem:[%s4 + $0x60] sm:$0xff] %vm532, %v920
  %970 = vst.msk [vmem:[%s4 + $0x68] sm:$0xff] %vm532, %v921
  %971 = vst.msk [vmem:[%s4 + $0x70] sm:$0xff] %vm532, %v922
  %972 = vst.msk [vmem:[%s4 + $0x78] sm:$0xff] %vm532, %v923
  %973 = vst.msk [vmem:[%s4 + $0x80] sm:$0xff] %vm532, %v924
  %974 = vst.msk [vmem:[%s4 + $0x88] sm:$0xff] %vm532, %v925
  %975 = vst.msk [vmem:[%s4 + $0x90] sm:$0xff] %vm532, %v926
  %976 = vst.msk [vmem:[%s4 + $0x98] sm:$0xff] %vm532, %v927
  %977 = vst.msk [vmem:[%s4 + $0xa0] sm:$0xff] %vm532, %v928
  %978 = vst.msk [vmem:[%s4 + $0xa8] sm:$0xff] %vm532, %v929
  %979 = vst.msk [vmem:[%s4 + $0xb0] sm:$0xff] %vm532, %v930
  %980 = vst.msk [vmem:[%s4 + $0xb8] sm:$0xff] %vm532, %v931
  %981 = vst.msk [vmem:[%s4 + $0xc0] sm:$0xff] %vm532, %v932
  %982 = vst.msk [vmem:[%s4 + $0xc8] sm:$0xff] %vm532, %v933
  %983 = vst.msk [vmem:[%s4 + $0xd0] sm:$0xff] %vm532, %v934
  %984 = vst.msk [vmem:[%s4 + $0xd8] sm:$0xff] %vm532, %v935
  %985 = vst.msk [vmem:[%s4 + $0xe0] sm:$0xff] %vm532, %v936
  %986 = vst.msk [vmem:[%s4 + $0xe8] sm:$0xff] %vm532, %v937
  %987 = vst.msk [vmem:[%s4 + $0xf0] sm:$0xff] %vm532, %v938
  %988 = vst.msk [vmem:[%s4 + $0xf8] sm:$0xff] %vm532, %v939
  %989 = vst.msk [vmem:[%s4 + $0x100] sm:$0xff] %vm532, %v940
  %990 = vst.msk [vmem:[%s4 + $0x108] sm:$0xff] %vm532, %v941
  %991 = vst.msk [vmem:[%s4 + $0x110] sm:$0xff] %vm532, %v942
  %992 = vst.msk [vmem:[%s4 + $0x118] sm:$0xff] %vm532, %v943
  %993 = vst.msk [vmem:[%s4 + $0x120] sm:$0xff] %vm532, %v944
  %994 = vst.msk [vmem:[%s4 + $0x128] sm:$0xff] %vm532, %v945
  %995 = vst.msk [vmem:[%s4 + $0x130] sm:$0xff] %vm532, %v946
  %996 = vst.msk [vmem:[%s4 + $0x138] sm:$0xff] %vm532, %v947
  %997 = vst.msk [vmem:[%s4 + $0x140] sm:$0xff] %vm532, %v948
  %998 = vst.msk [vmem:[%s4 + $0x148] sm:$0xff] %vm532, %v949
  %999 = vst.msk [vmem:[%s4 + $0x150] sm:$0xff] %vm532, %v950
  %1000 = vst.msk [vmem:[%s4 + $0x158] sm:$0xff] %vm532, %v951
  %1001 = vst.msk [vmem:[%s4 + $0x160] sm:$0xff] %vm532, %v952
  %1002 = vst.msk [vmem:[%s4 + $0x168] sm:$0xff] %vm532, %v953
  %1003 = vst.msk [vmem:[%s4 + $0x170] sm:$0xff] %vm532, %v954
  %1004 = vst.msk [vmem:[%s4 + $0x178] sm:$0xff] %vm532, %v955
  %1005 = vst.msk [vmem:[%s4 + $0x180] sm:$0xff] %vm532, %v956
  // Predicated region
  $region18: #{mgvae_forward.9} parent=0 // pred_check
    _
  $region19: #{mgvae_forward.9} parent=0 // pred_check_branch
    %1007 = sbr.rel (0) target = $region21
  $region20: #{mgvae_forward.9} parent=0 // pred_region
    _
  $region21: #{mgvae_forward.9} parent=0 // pred_fallthru
    _
  // Predicated region
  $region22: #{mgvae_forward.9} parent=0 // pred_check
    _
  $region23: #{mgvae_forward.9} parent=0 // pred_check_branch
    %1009 = sbr.rel (0) target = $region25
  $region24: #{mgvae_forward.9} parent=0 // pred_region
    _
  $region25: #{mgvae_forward.9} parent=0 // pred_fallthru
    _

// kernel: mgvae_forward.10
$region0: #{mgvae_forward.10}
  #allocation0 [shape = 'u32[]', space=smem, size = 0x4, offset = 0x4, fixed_abs, tag = 'smem constant byte address 0x4 - core index']
  #allocation1 [shape = 'u32[144,128]{1,0:T(1,128)}', space=vmem, size = 0x12000, scoped, tag = 'internal scratch']
  %s0 = inlined_call_operand.vmem [shape: f32[98,288], index: 0, kind: input, shape index: {}]
  %s1 = inlined_call_operand.vmem [shape: f32[288,64], index: 1, kind: input, shape index: {}]
  %s2 = inlined_call_operand.vmem [shape: f32[1,64], index: 2, kind: input, shape index: {}]
  %s3 = inlined_call_operand.vmem [shape: f32[1,64], index: 3, kind: input, shape index: {}]
  %s4 = inlined_call_operand.vmem [shape: f32[98,64], index: 4, kind: output, shape index: {}]
  %s5 = sld [smem:[#allocation0]]
  $region26: #{mgvae_forward.10} parent=0
    _
  %s7 = ssub.s32 1, %s5
  %s8 = scalar_select 0, %s7, %s5
  // Predicated region
  $region2: #{mgvae_forward.10} parent=0 // pred_check
    _
  $region3: #{mgvae_forward.10} parent=0 // pred_check_branch
    %10 = sbr.rel (0) target = $region5
  $region4: #{mgvae_forward.10} parent=0 // pred_region
    _
  $region5: #{mgvae_forward.10} parent=0 // pred_fallthru
    _
  // Predicated region
  $region6: #{mgvae_forward.10} parent=0 // pred_check
    _
  $region7: #{mgvae_forward.10} parent=0 // pred_check_branch
    %12 = sbr.rel (0) target = $region9
  $region8: #{mgvae_forward.10} parent=0 // pred_region
    _
  $region9: #{mgvae_forward.10} parent=0 // pred_fallthru
    _
  // Predicated region
  $region10: #{mgvae_forward.10} parent=0 // pred_check
    _
  $region11: #{mgvae_forward.10} parent=0 // pred_check_branch
    %14 = sbr.rel (0) target = $region13
  $region12: #{mgvae_forward.10} parent=0 // pred_region
    _
  $region13: #{mgvae_forward.10} parent=0 // pred_fallthru
    _
  // Predicated region
  $region14: #{mgvae_forward.10} parent=0 // pred_check
    _
  $region15: #{mgvae_forward.10} parent=0 // pred_check_branch
    %16 = sbr.rel (0) target = $region17
  $region16: #{mgvae_forward.10} parent=0 // pred_region
    _
  $region17: #{mgvae_forward.10} parent=0 // pred_fallthru
    _
  %v17 = vld [vmem:[%s0] sm:$0xff]
  %v18 = vld [vmem:[%s0 + $0x8] sm:$0xff]
  %v19 = vld [vmem:[%s0 + $0x10] sm:$0xff]
  %v20 = vld [vmem:[%s0 + $0x18] sm:$0xff]
  %v21 = vld [vmem:[%s0 + $0x20] sm:$0xff]
  %v22 = vld [vmem:[%s0 + $0x28] sm:$0xff]
  %v23 = vld [vmem:[%s0 + $0x30] sm:$0xff]
  %v24 = vld [vmem:[%s0 + $0x38] sm:$0xff]
  %v25 = vld [vmem:[%s0 + $0x40] sm:$0xff]
  %v26 = vld [vmem:[%s0 + $0x48] sm:$0xff]
  %v27 = vld [vmem:[%s0 + $0x50] sm:$0xff]
  %v28 = vld [vmem:[%s0 + $0x58] sm:$0xff]
  %v29 = vld [vmem:[%s0 + $0x60] sm:$0xff]
  %v30 = vld [vmem:[%s0 + $0x68] sm:$0xff]
  %v31 = vld [vmem:[%s0 + $0x70] sm:$0xff]
  %v32 = vld [vmem:[%s0 + $0x78] sm:$0xff]
  %v33 = vld [vmem:[%s0 + $0x80] sm:$0xff]
  %v34 = vld [vmem:[%s0 + $0x88] sm:$0xff]
  %v35 = vld [vmem:[%s0 + $0x90] sm:$0xff]
  %v36 = vld [vmem:[%s0 + $0x98] sm:$0xff]
  %v37 = vld [vmem:[%s0 + $0xa0] sm:$0xff]
  %v38 = vld [vmem:[%s0 + $0xa8] sm:$0xff]
  %v39 = vld [vmem:[%s0 + $0xb0] sm:$0xff]
  %v40 = vld [vmem:[%s0 + $0xb8] sm:$0xff]
  %v41 = vld [vmem:[%s0 + $0xc0] sm:$0xff]
  %v42 = vld [vmem:[%s0 + $0xc8] sm:$0xff]
  %v43 = vld [vmem:[%s0 + $0xd0] sm:$0xff]
  %v44 = vld [vmem:[%s0 + $0xd8] sm:$0xff]
  %v45 = vld [vmem:[%s0 + $0xe0] sm:$0xff]
  %v46 = vld [vmem:[%s0 + $0xe8] sm:$0xff]
  %v47 = vld [vmem:[%s0 + $0xf0] sm:$0xff]
  %v48 = vld [vmem:[%s0 + $0xf8] sm:$0xff]
  %v49 = vld [vmem:[%s0 + $0x100] sm:$0xff]
  %v50 = vld [vmem:[%s0 + $0x108] sm:$0xff]
  %v51 = vld [vmem:[%s0 + $0x110] sm:$0xff]
  %v52 = vld [vmem:[%s0 + $0x118] sm:$0xff]
  %v53 = vld [vmem:[%s0 + $0x120] sm:$0x3]
  %v54 = vld [vmem:[%s0 + $0x128] sm:$0x3]
  %v55 = vld [vmem:[%s0 + $0x130] sm:$0x3]
  %v56 = vld [vmem:[%s1] sm:$0xff]
  %v57 = vld [vmem:[%s1 + $0x8] sm:$0xff]
  %v58 = vld [vmem:[%s1 + $0x10] sm:$0xff]
  %v59 = vld [vmem:[%s1 + $0x18] sm:$0xff]
  %v60 = vld [vmem:[%s1 + $0x20] sm:$0xff]
  %v61 = vld [vmem:[%s1 + $0x28] sm:$0xff]
  %v62 = vld [vmem:[%s1 + $0x30] sm:$0xff]
  %v63 = vld [vmem:[%s1 + $0x38] sm:$0xff]
  %v64 = vld [vmem:[%s1 + $0x40] sm:$0xff]
  %v65 = vld [vmem:[%s1 + $0x48] sm:$0xff]
  %v66 = vld [vmem:[%s1 + $0x50] sm:$0xff]
  %v67 = vld [vmem:[%s1 + $0x58] sm:$0xff]
  %v68 = vld [vmem:[%s1 + $0x60] sm:$0xff]
  %v69 = vld [vmem:[%s1 + $0x68] sm:$0xff]
  %v70 = vld [vmem:[%s1 + $0x70] sm:$0xff]
  %v71 = vld [vmem:[%s1 + $0x78] sm:$0xff]
  %v72 = vld [vmem:[%s1 + $0x80] sm:$0xff]
  %v73 = vld [vmem:[%s1 + $0x88] sm:$0xff]
  %v74 = vld [vmem:[%s1 + $0x90] sm:$0xff]
  %v75 = vld [vmem:[%s1 + $0x98] sm:$0xff]
  %v76 = vld [vmem:[%s1 + $0xa0] sm:$0xff]
  %v77 = vld [vmem:[%s1 + $0xa8] sm:$0xff]
  %v78 = vld [vmem:[%s1 + $0xb0] sm:$0xff]
  %v79 = vld [vmem:[%s1 + $0xb8] sm:$0xff]
  %v80 = vld [vmem:[%s1 + $0xc0] sm:$0xff]
  %v81 = vld [vmem:[%s1 + $0xc8] sm:$0xff]
  %v82 = vld [vmem:[%s1 + $0xd0] sm:$0xff]
  %v83 = vld [vmem:[%s1 + $0xd8] sm:$0xff]
  %v84 = vld [vmem:[%s1 + $0xe0] sm:$0xff]
  %v85 = vld [vmem:[%s1 + $0xe8] sm:$0xff]
  %v86 = vld [vmem:[%s1 + $0xf0] sm:$0xff]
  %v87 = vld [vmem:[%s1 + $0xf8] sm:$0xff]
  %v88 = vld [vmem:[%s1 + $0x100] sm:$0xff]
  %v89 = vld [vmem:[%s1 + $0x108] sm:$0xff]
  %v90 = vld [vmem:[%s1 + $0x110] sm:$0xff]
  %v91 = vld [vmem:[%s1 + $0x118] sm:$0xff]
  %vm92 = vcmask 261120
  %v94 = vsel %vm92, %v19, 0
  %v97 = vsel %vm92, %v22, 0
  %v100 = vsel %vm92, %v25, 0
  %v103 = vsel %vm92, %v28, 0
  %v106 = vsel %vm92, %v31, 0
  %v109 = vsel %vm92, %v34, 0
  %v112 = vsel %vm92, %v37, 0
  %v115 = vsel %vm92, %v40, 0
  %v118 = vsel %vm92, %v43, 0
  %v121 = vsel %vm92, %v46, 0
  %v124 = vsel %vm92, %v49, 0
  %v127 = vsel %vm92, %v52, 0
  %v130 = vsel %vm92, %v55, 0
  %132 = vmatprep.subr.mxu0 0.0
  %133 = vmatpush1.msra.mxu0 %v56
  %134 = vmatprep.subr.mxu0 0.0
  %135 = vmatpush1.msra.mxu0 %v57
  %136 = vmatprep.subr.mxu0 0.0
  %137 = vmatpush1.msra.mxu0 %v58
  %138 = vmatprep.subr.mxu0 0.0
  %139 = vmatpush1.msra.mxu0 %v59
  %140 = vmatprep.subr.mxu0 0.0
  %141 = vmatpush1.msra.mxu0 %v60
  %142 = vmatprep.subr.mxu0 0.0
  %143 = vmatpush1.msra.mxu0 %v61
  %144 = vmatprep.subr.mxu0 0.0
  %145 = vmatpush1.msra.mxu0 %v62
  %146 = vmatprep.subr.mxu0 0.0
  %147 = vmatpush1.msra.mxu0 %v63
  %148 = vmatprep.subr.mxu0 0.0
  %149 = vmatpush1.msra.mxu0 %v64
  %150 = vmatprep.subr.mxu0 0.0
  %151 = vmatpush1.msra.mxu0 %v65
  %152 = vmatprep.subr.mxu0 0.0
  %153 = vmatpush1.msra.mxu0 %v66
  %154 = vmatprep.subr.mxu0 0.0
  %155 = vmatpush1.msra.mxu0 %v67
  %156 = vmatprep.subr.mxu0 0.0
  %157 = vmatpush1.msra.mxu0 %v68
  %158 = vmatprep.subr.mxu0 0.0
  %159 = vmatpush1.msra.mxu0 %v69
  %160 = vmatprep.subr.mxu0 0.0
  %161 = vmatpush1.msra.mxu0 %v70
  %162 = vmatprep.subr.mxu0 0.0
  %163 = vmatpush1.msra.mxu0 %v71
  %164 = vmatprep.subr.mxu0 0.0
  %165 = vmatpush1.msra.mxu0 %v72
  %166 = vmatprep.subr.mxu0 0.0
  %167 = vmatpush1.msra.mxu0 %v73
  %168 = vmatprep.subr.mxu0 0.0
  %169 = vmatpush1.msra.mxu0 %v74
  %170 = vmatprep.subr.mxu0 0.0
  %171 = vmatpush1.msra.mxu0 %v75
  %172 = vmatprep.subr.mxu0 0.0
  %173 = vmatpush1.msra.mxu0 %v76
  %174 = vmatprep.subr.mxu0 0.0
  %175 = vmatpush1.msra.mxu0 %v77
  %176 = vmatprep.subr.mxu0 0.0
  %177 = vmatpush1.msra.mxu0 %v78
  %178 = vmatprep.subr.mxu0 0.0
  %179 = vmatpush1.msra.mxu0 %v79
  %180 = vmatprep.subr.mxu0 0.0
  %181 = vmatpush1.msra.mxu0 %v80
  %182 = vmatprep.subr.mxu0 0.0
  %183 = vmatpush1.msra.mxu0 %v81
  %184 = vmatprep.subr.mxu0 0.0
  %185 = vmatpush1.msra.mxu0 %v82
  %186 = vmatprep.subr.mxu0 0.0
  %187 = vmatpush1.msra.mxu0 %v83
  %188 = vmatprep.subr.mxu0 0.0
  %189 = vmatpush1.msra.mxu0 %v84
  %190 = vmatprep.subr.mxu0 0.0
  %191 = vmatpush1.msra.mxu0 %v85
  %192 = vmatprep.subr.mxu0 0.0
  %193 = vmatpush1.msra.mxu0 %v86
  %194 = vmatprep.subr.mxu0 0.0
  %195 = vmatpush1.msra.mxu0 %v87
  %196 = vmatprep.mubr.f32.mxu0 %v18
  %197 = vmatmul.mubr.f32.gmra.mrb[0].mxu0 %v17
  %v198 = vpop.f32.mrb[0].mxu0
  %v199 = vadd.f32 0.0, %v198
  %v200 = vpop.f32.mrb[0].mxu0
  %201 = vmatprep.mubr.f32.mxu0 %v21
  %202 = vmatmul.mubr.f32.gmra.mrb[0].mxu0 %v20
  %v203 = vpop.f32.mrb[0].mxu0
  %v204 = vadd.f32 0.0, %v203
  %v205 = vpop.f32.mrb[0].mxu0
  %206 = vmatprep.mubr.f32.mxu0 %v24
  %207 = vmatmul.mubr.f32.gmra.mrb[0].mxu0 %v23
  %v208 = vpop.f32.mrb[0].mxu0
  %v209 = vadd.f32 0.0, %v208
  %v210 = vpop.f32.mrb[0].mxu0
  %211 = vmatprep.mubr.f32.mxu0 %v27
  %212 = vmatmul.mubr.f32.gmra.mrb[0].mxu0 %v26
  %v213 = vpop.f32.mrb[0].mxu0
  %v214 = vadd.f32 0.0, %v213
  %v215 = vpop.f32.mrb[0].mxu0
  %216 = vmatprep.mubr.f32.mxu0 %v30
  %217 = vmatmul.mubr.f32.gmra.mrb[0].mxu0 %v29
  %v218 = vpop.f32.mrb[0].mxu0
  %v219 = vadd.f32 0.0, %v218
  %v220 = vpop.f32.mrb[0].mxu0
  %221 = vmatprep.mubr.f32.mxu0 %v33
  %222 = vmatmul.mubr.f32.gmra.mrb[0].mxu0 %v32
  %v223 = vpop.f32.mrb[0].mxu0
  %v224 = vadd.f32 0.0, %v223
  %v225 = vpop.f32.mrb[0].mxu0
  %226 = vmatprep.mubr.f32.mxu0 %v36
  %227 = vmatmul.mubr.f32.gmra.mrb[0].mxu0 %v35
  %v228 = vpop.f32.mrb[0].mxu0
  %v229 = vadd.f32 0.0, %v228
  %v230 = vpop.f32.mrb[0].mxu0
  %231 = vmatprep.mubr.f32.mxu0 %v39
  %232 = vmatmul.mubr.f32.gmra.mrb[0].mxu0 %v38
  %v233 = vpop.f32.mrb[0].mxu0
  %v234 = vadd.f32 0.0, %v233
  %v235 = vpop.f32.mrb[0].mxu0
  %236 = vmatprep.mubr.f32.mxu0 %v42
  %237 = vmatmul.mubr.f32.gmra.mrb[0].mxu0 %v41
  %v238 = vpop.f32.mrb[0].mxu0
  %v239 = vadd.f32 0.0, %v238
  %v240 = vpop.f32.mrb[0].mxu0
  %241 = vmatprep.mubr.f32.mxu0 %v45
  %242 = vmatmul.mubr.f32.gmra.mrb[0].mxu0 %v44
  %v243 = vpop.f32.mrb[0].mxu0
  %v244 = vadd.f32 0.0, %v243
  %v245 = vpop.f32.mrb[0].mxu0
  %246 = vmatprep.mubr.f32.mxu0 %v48
  %247 = vmatmul.mubr.f32.gmra.mrb[0].mxu0 %v47
  %v248 = vpop.f32.mrb[0].mxu0
  %v249 = vadd.f32 0.0, %v248
  %v250 = vpop.f32.mrb[0].mxu0
  %251 = vmatprep.mubr.f32.mxu0 %v51
  %252 = vmatmul.mubr.f32.gmra.mrb[0].mxu0 %v50
  %v253 = vpop.f32.mrb[0].mxu0
  %v254 = vadd.f32 0.0, %v253
  %v255 = vpop.f32.mrb[0].mxu0
  %256 = vmatprep.mubr.f32.mxu0 %v54
  %257 = vmatmul.mubr.f32.gmra.mrb[0].mxu0 %v53
  %v258 = vpop.f32.mrb[0].mxu0
  %v259 = vadd.f32 0.0, %v258
  %v260 = vpop.f32.mrb[0].mxu0
  %261 = vdwg.mxu0
  %262 = vmatprep.subr.mxu0 0.0
  %263 = vmatpush1.msra.mxu0 %v88
  %264 = vmatprep.subr.mxu0 0.0
  %265 = vmatpush1.msra.mxu0 %v89
  %266 = vmatprep.subr.mxu0 0.0
  %267 = vmatpush1.msra.mxu0 %v90
  %268 = vmatprep.subr.mxu0 0.0
  %269 = vmatpush1.msra.mxu0 %v91
  %270 = vmatprep.subr.mxu0 0.0
  %271 = vmatpush1.msra.mxu0 0.0
  %272 = vmatprep.subr.mxu0 0.0
  %273 = vmatpush1.msra.mxu0 0.0
  %274 = vmatprep.subr.mxu0 0.0
  %275 = vmatpush1.msra.mxu0 0.0
  %276 = vmatprep.subr.mxu0 0.0
  %277 = vmatpush1.msra.mxu0 0.0
  %278 = vmatprep.subr.mxu0 0.0
  %279 = vmatpush1.msra.mxu0 0.0
  %280 = vmatprep.subr.mxu0 0.0
  %281 = vmatpush1.msra.mxu0 0.0
  %282 = vmatprep.subr.mxu0 0.0
  %283 = vmatpush1.msra.mxu0 0.0
  %284 = vmatprep.subr.mxu0 0.0
  %285 = vmatpush1.msra.mxu0 0.0
  %286 = vmatprep.subr.mxu0 0.0
  %287 = vmatpush1.msra.mxu0 0.0
  %288 = vmatprep.subr.mxu0 0.0
  %289 = vmatpush1.msra.mxu0 0.0
  %290 = vmatprep.subr.mxu0 0.0
  %291 = vmatpush1.msra.mxu0 0.0
  %292 = vmatprep.subr.mxu0 0.0
  %293 = vmatpush1.msra.mxu0 0.0
  %294 = vmatprep.subr.mxu0 0.0
  %295 = vmatpush1.msra.mxu0 0.0
  %296 = vmatprep.subr.mxu0 0.0
  %297 = vmatpush1.msra.mxu0 0.0
  %298 = vmatprep.subr.mxu0 0.0
  %299 = vmatpush1.msra.mxu0 0.0
  %300 = vmatprep.subr.mxu0 0.0
  %301 = vmatpush1.msra.mxu0 0.0
  %302 = vmatprep.subr.mxu0 0.0
  %303 = vmatpush1.msra.mxu0 0.0
  %304 = vmatprep.subr.mxu0 0.0
  %305 = vmatpush1.msra.mxu0 0.0
  %306 = vmatprep.subr.mxu0 0.0
  %307 = vmatpush1.msra.mxu0 0.0
  %308 = vmatprep.subr.mxu0 0.0
  %309 = vmatpush1.msra.mxu0 0.0
  %310 = vmatprep.subr.mxu0 0.0
  %311 = vmatpush1.msra.mxu0 0.0
  %312 = vmatprep.subr.mxu0 0.0
  %313 = vmatpush1.msra.mxu0 0.0
  %314 = vmatprep.subr.mxu0 0.0
  %315 = vmatpush1.msra.mxu0 0.0
  %316 = vmatprep.subr.mxu0 0.0
  %317 = vmatpush1.msra.mxu0 0.0
  %318 = vmatprep.subr.mxu0 0.0
  %319 = vmatpush1.msra.mxu0 0.0
  %320 = vmatprep.subr.mxu0 0.0
  %321 = vmatpush1.msra.mxu0 0.0
  %322 = vmatprep.subr.mxu0 0.0
  %323 = vmatpush1.msra.mxu0 0.0
  %324 = vmatprep.subr.mxu0 0.0
  %325 = vmatpush1.msra.mxu0 0.0
  %326 = vmatprep.mubr.f32.mxu0 0.0
  %327 = vmatmul.mubr.f32.gmra.mrb[0].mxu0 %v94
  %v328 = vpop.f32.mrb[0].mxu0
  %v329 = vadd.f32 %v199, %v328
  %v330 = vpop.f32.mrb[0].mxu0
  %331 = vmatprep.mubr.f32.mxu0 0.0
  %332 = vmatmul.mubr.f32.gmra.mrb[0].mxu0 %v97
  %v333 = vpop.f32.mrb[0].mxu0
  %v334 = vadd.f32 %v204, %v333
  %v335 = vpop.f32.mrb[0].mxu0
  %336 = vmatprep.mubr.f32.mxu0 0.0
  %337 = vmatmul.mubr.f32.gmra.mrb[0].mxu0 %v100
  %v338 = vpop.f32.mrb[0].mxu0
  %v339 = vadd.f32 %v209, %v338
  %v340 = vpop.f32.mrb[0].mxu0
  %341 = vmatprep.mubr.f32.mxu0 0.0
  %342 = vmatmul.mubr.f32.gmra.mrb[0].mxu0 %v103
  %v343 = vpop.f32.mrb[0].mxu0
  %v344 = vadd.f32 %v214, %v343
  %v345 = vpop.f32.mrb[0].mxu0
  %346 = vmatprep.mubr.f32.mxu0 0.0
  %347 = vmatmul.mubr.f32.gmra.mrb[0].mxu0 %v106
  %v348 = vpop.f32.mrb[0].mxu0
  %v349 = vadd.f32 %v219, %v348
  %v350 = vpop.f32.mrb[0].mxu0
  %351 = vmatprep.mubr.f32.mxu0 0.0
  %352 = vmatmul.mubr.f32.gmra.mrb[0].mxu0 %v109
  %v353 = vpop.f32.mrb[0].mxu0
  %v354 = vadd.f32 %v224, %v353
  %v355 = vpop.f32.mrb[0].mxu0
  %356 = vmatprep.mubr.f32.mxu0 0.0
  %357 = vmatmul.mubr.f32.gmra.mrb[0].mxu0 %v112
  %v358 = vpop.f32.mrb[0].mxu0
  %v359 = vadd.f32 %v229, %v358
  %v360 = vpop.f32.mrb[0].mxu0
  %361 = vmatprep.mubr.f32.mxu0 0.0
  %362 = vmatmul.mubr.f32.gmra.mrb[0].mxu0 %v115
  %v363 = vpop.f32.mrb[0].mxu0
  %v364 = vadd.f32 %v234, %v363
  %v365 = vpop.f32.mrb[0].mxu0
  %366 = vmatprep.mubr.f32.mxu0 0.0
  %367 = vmatmul.mubr.f32.gmra.mrb[0].mxu0 %v118
  %v368 = vpop.f32.mrb[0].mxu0
  %v369 = vadd.f32 %v239, %v368
  %v370 = vpop.f32.mrb[0].mxu0
  %371 = vmatprep.mubr.f32.mxu0 0.0
  %372 = vmatmul.mubr.f32.gmra.mrb[0].mxu0 %v121
  %v373 = vpop.f32.mrb[0].mxu0
  %v374 = vadd.f32 %v244, %v373
  %v375 = vpop.f32.mrb[0].mxu0
  %376 = vmatprep.mubr.f32.mxu0 0.0
  %377 = vmatmul.mubr.f32.gmra.mrb[0].mxu0 %v124
  %v378 = vpop.f32.mrb[0].mxu0
  %v379 = vadd.f32 %v249, %v378
  %v380 = vpop.f32.mrb[0].mxu0
  %381 = vmatprep.mubr.f32.mxu0 0.0
  %382 = vmatmul.mubr.f32.gmra.mrb[0].mxu0 %v127
  %v383 = vpop.f32.mrb[0].mxu0
  %v384 = vadd.f32 %v254, %v383
  %v385 = vpop.f32.mrb[0].mxu0
  %386 = vmatprep.mubr.f32.mxu0 0.0
  %387 = vmatmul.mubr.f32.gmra.mrb[0].mxu0 %v130
  %v388 = vpop.f32.mrb[0].mxu0
  %v389 = vadd.f32 %v259, %v388
  %v390 = vpop.f32.mrb[0].mxu0
  %391 = vdwg.mxu0
  %v392 = vld [vmem:[%s2] sm:$0x1]
  %v393 = vld [vmem:[%s3] sm:$0x1]
  %vm394 = vcmask 523264
  %v395 = vsel %vm394, %v329, 0.0
  %v396 = vsel %vm394, %v334, 0.0
  %v397 = vadd.f32 %v395, %v396
  %v398 = vsel %vm394, %v339, 0.0
  %v399 = vadd.f32 %v397, %v398
  %v400 = vsel %vm394, %v344, 0.0
  %v401 = vadd.f32 %v399, %v400
  %v402 = vsel %vm394, %v349, 0.0
  %v403 = vadd.f32 %v401, %v402
  %v404 = vsel %vm394, %v354, 0.0
  %v405 = vadd.f32 %v403, %v404
  %v406 = vsel %vm394, %v359, 0.0
  %v407 = vadd.f32 %v405, %v406
  %v408 = vsel %vm394, %v364, 0.0
  %v409 = vadd.f32 %v407, %v408
  %v410 = vsel %vm394, %v369, 0.0
  %v411 = vadd.f32 %v409, %v410
  %v412 = vsel %vm394, %v374, 0.0
  %v413 = vadd.f32 %v411, %v412
  %v414 = vsel %vm394, %v379, 0.0
  %v415 = vadd.f32 %v413, %v414
  %v416 = vsel %vm394, %v384, 0.0
  %v417 = vadd.f32 %v415, %v416
  %vm418 = vcmask 517120
  %v419 = vsel %vm418, %v389, 0.0
  %v420 = vadd.f32 %v417, %v419
  %v421 = vrot.slane %v420, 4
  %v422 = vadd.f32 %v420, %v421
  %v423 = vrot.slane %v422, 2
  %v424 = vadd.f32 %v422, %v423
  %v425 = vrot.slane %v424, 1
  %v426 = vadd.f32 %v424, %v425
  %v427 = vmul.f32 %v329, %v329
  %v428 = vmul.f32 %v334, %v334
  %v429 = vmul.f32 %v339, %v339
  %v430 = vmul.f32 %v344, %v344
  %v431 = vmul.f32 %v349, %v349
  %v432 = vmul.f32 %v354, %v354
  %v433 = vmul.f32 %v359, %v359
  %v434 = vmul.f32 %v364, %v364
  %v435 = vmul.f32 %v369, %v369
  %v436 = vmul.f32 %v374, %v374
  %v437 = vmul.f32 %v379, %v379
  %v438 = vmul.f32 %v384, %v384
  %v439 = vmul.f32 %v389, %v389
  %v440 = vsel %vm394, %v427, 0.0
  %v441 = vsel %vm394, %v428, 0.0
  %v442 = vadd.f32 %v440, %v441
  %v443 = vsel %vm394, %v429, 0.0
  %v444 = vadd.f32 %v442, %v443
  %v445 = vsel %vm394, %v430, 0.0
  %v446 = vadd.f32 %v444, %v445
  %v447 = vsel %vm394, %v431, 0.0
  %v448 = vadd.f32 %v446, %v447
  %v449 = vsel %vm394, %v432, 0.0
  %v450 = vadd.f32 %v448, %v449
  %v451 = vsel %vm394, %v433, 0.0
  %v452 = vadd.f32 %v450, %v451
  %v453 = vsel %vm394, %v434, 0.0
  %v454 = vadd.f32 %v452, %v453
  %v455 = vsel %vm394, %v435, 0.0
  %v456 = vadd.f32 %v454, %v455
  %v457 = vsel %vm394, %v436, 0.0
  %v458 = vadd.f32 %v456, %v457
  %v459 = vsel %vm394, %v437, 0.0
  %v460 = vadd.f32 %v458, %v459
  %v461 = vsel %vm394, %v438, 0.0
  %v462 = vadd.f32 %v460, %v461
  %v463 = vsel %vm418, %v439, 0.0
  %v464 = vadd.f32 %v462, %v463
  %v465 = vrot.slane %v464, 4
  %v466 = vadd.f32 %v464, %v465
  %v467 = vrot.slane %v466, 2
  %v468 = vadd.f32 %v466, %v467
  %v469 = vrot.slane %v468, 1
  %v470 = vadd.f32 %v468, %v469
  %v471 = vmul.f32 %v426, 0.010204081
  %v472 = vmul.f32 %v470, 0.010204081
  %v473 = vmul.f32 %v471, %v471
  %v474 = vsub.f32 %v472, %v473
  %v475 = vmax.f32 %v474, 0.0
  %v476 = vadd.f32 %v475, 1e-05
  %v477 = vrsqrt.pop %v476
  %v478 = vmul.f32 %v392, %v477
  %v479 = vmul.f32 %v471, %v478
  %v480 = vsub.f32 %v393, %v479
  %v482 = vlaneseq
  %v483 = vshrl.u32 %v482, 7
  %v484 = vsub.s32 0, %v483
  %v485 = vrot.slane %v478, %v484
  %v487 = vmul.f32 %v329, %v485
  %v488 = vmul.f32 %v334, %v485
  %v489 = vmul.f32 %v339, %v485
  %v490 = vmul.f32 %v344, %v485
  %v491 = vmul.f32 %v349, %v485
  %v492 = vmul.f32 %v354, %v485
  %v493 = vmul.f32 %v359, %v485
  %v494 = vmul.f32 %v364, %v485
  %v495 = vmul.f32 %v369, %v485
  %v496 = vmul.f32 %v374, %v485
  %v497 = vmul.f32 %v379, %v485
  %v498 = vmul.f32 %v384, %v485
  %v499 = vmul.f32 %v389, %v485
  %v501 = vlaneseq
  %v502 = vshrl.u32 %v501, 7
  %v503 = vsub.s32 0, %v502
  %v504 = vrot.slane %v480, %v503
  %v506 = vadd.f32 %v487, %v504
  %v507 = vadd.f32 %v488, %v504
  %v508 = vadd.f32 %v489, %v504
  %v509 = vadd.f32 %v490, %v504
  %v510 = vadd.f32 %v491, %v504
  %v511 = vadd.f32 %v492, %v504
  %v512 = vadd.f32 %v493, %v504
  %v513 = vadd.f32 %v494, %v504
  %v514 = vadd.f32 %v495, %v504
  %v515 = vadd.f32 %v496, %v504
  %v516 = vadd.f32 %v497, %v504
  %v517 = vadd.f32 %v498, %v504
  %v518 = vadd.f32 %v499, %v504
  %v519 = vmax.f32 %v506, 0.0
  %v520 = vmax.f32 %v507, 0.0
  %v521 = vmax.f32 %v508, 0.0
  %v522 = vmax.f32 %v509, 0.0
  %v523 = vmax.f32 %v510, 0.0
  %v524 = vmax.f32 %v511, 0.0
  %v525 = vmax.f32 %v512, 0.0
  %v526 = vmax.f32 %v513, 0.0
  %v527 = vmax.f32 %v514, 0.0
  %v528 = vmax.f32 %v515, 0.0
  %v529 = vmax.f32 %v516, 0.0
  %v530 = vmax.f32 %v517, 0.0
  %v531 = vmax.f32 %v518, 0.0
  %532 = vst.msk [vmem:[%s4] sm:$0xff] %vm394, %v519
  %533 = vst.msk [vmem:[%s4 + $0x8] sm:$0xff] %vm394, %v520
  %534 = vst.msk [vmem:[%s4 + $0x10] sm:$0xff] %vm394, %v521
  %535 = vst.msk [vmem:[%s4 + $0x18] sm:$0xff] %vm394, %v522
  %536 = vst.msk [vmem:[%s4 + $0x20] sm:$0xff] %vm394, %v523
  %537 = vst.msk [vmem:[%s4 + $0x28] sm:$0xff] %vm394, %v524
  %538 = vst.msk [vmem:[%s4 + $0x30] sm:$0xff] %vm394, %v525
  %539 = vst.msk [vmem:[%s4 + $0x38] sm:$0xff] %vm394, %v526
  %540 = vst.msk [vmem:[%s4 + $0x40] sm:$0xff] %vm394, %v527
  %541 = vst.msk [vmem:[%s4 + $0x48] sm:$0xff] %vm394, %v528
  %542 = vst.msk [vmem:[%s4 + $0x50] sm:$0xff] %vm394, %v529
  %543 = vst.msk [vmem:[%s4 + $0x58] sm:$0xff] %vm394, %v530
  %544 = vst.msk [vmem:[%s4 + $0x60] sm:$0x3] %vm418, %v531
  // Predicated region
  $region18: #{mgvae_forward.10} parent=0 // pred_check
    _
  $region19: #{mgvae_forward.10} parent=0 // pred_check_branch
    %546 = sbr.rel (0) target = $region21
  $region20: #{mgvae_forward.10} parent=0 // pred_region
    _
  $region21: #{mgvae_forward.10} parent=0 // pred_fallthru
    _
  // Predicated region
  $region22: #{mgvae_forward.10} parent=0 // pred_check
    _
  $region23: #{mgvae_forward.10} parent=0 // pred_check_branch
    %548 = sbr.rel (0) target = $region25
  $region24: #{mgvae_forward.10} parent=0 // pred_region
    _
  $region25: #{mgvae_forward.10} parent=0 // pred_fallthru
    _

// kernel: mgvae_forward.11
$region0: #{mgvae_forward.11}
  #allocation0 [shape = 'u32[]', space=smem, size = 0x4, offset = 0x4, fixed_abs, tag = 'smem constant byte address 0x4 - core index']
  #allocation1 [shape = 'u32[144,128]{1,0:T(1,128)}', space=vmem, size = 0x12000, scoped, tag = 'internal scratch']
  %s0 = inlined_call_operand.vmem [shape: f32[32,576], index: 0, kind: input, shape index: {}]
  %s1 = inlined_call_operand.vmem [shape: f32[576,128], index: 1, kind: input, shape index: {}]
  %s2 = inlined_call_operand.vmem [shape: f32[1,128], index: 2, kind: input, shape index: {}]
  %s3 = inlined_call_operand.vmem [shape: f32[1,128], index: 3, kind: input, shape index: {}]
  %s4 = inlined_call_operand.vmem [shape: f32[32,128], index: 4, kind: output, shape index: {}]
  %s5 = sld [smem:[#allocation0]]
  $region26: #{mgvae_forward.11} parent=0
    _
  %s7 = ssub.s32 1, %s5
  %s8 = scalar_select 0, %s7, %s5
  // Predicated region
  $region2: #{mgvae_forward.11} parent=0 // pred_check
    _
  $region3: #{mgvae_forward.11} parent=0 // pred_check_branch
    %10 = sbr.rel (0) target = $region5
  $region4: #{mgvae_forward.11} parent=0 // pred_region
    _
  $region5: #{mgvae_forward.11} parent=0 // pred_fallthru
    _
  // Predicated region
  $region6: #{mgvae_forward.11} parent=0 // pred_check
    _
  $region7: #{mgvae_forward.11} parent=0 // pred_check_branch
    %12 = sbr.rel (0) target = $region9
  $region8: #{mgvae_forward.11} parent=0 // pred_region
    _
  $region9: #{mgvae_forward.11} parent=0 // pred_fallthru
    _
  // Predicated region
  $region10: #{mgvae_forward.11} parent=0 // pred_check
    _
  $region11: #{mgvae_forward.11} parent=0 // pred_check_branch
    %14 = sbr.rel (0) target = $region13
  $region12: #{mgvae_forward.11} parent=0 // pred_region
    _
  $region13: #{mgvae_forward.11} parent=0 // pred_fallthru
    _
  // Predicated region
  $region14: #{mgvae_forward.11} parent=0 // pred_check
    _
  $region15: #{mgvae_forward.11} parent=0 // pred_check_branch
    %16 = sbr.rel (0) target = $region17
  $region16: #{mgvae_forward.11} parent=0 // pred_region
    _
  $region17: #{mgvae_forward.11} parent=0 // pred_fallthru
    _
  %v17 = vld [vmem:[%s0] sm:$0xff]
  %v18 = vld [vmem:[%s0 + $0x8] sm:$0xff]
  %v19 = vld [vmem:[%s0 + $0x10] sm:$0xff]
  %v20 = vld [vmem:[%s0 + $0x18] sm:$0xff]
  %v21 = vld [vmem:[%s0 + $0x20] sm:$0xff]
  %v22 = vld [vmem:[%s0 + $0x28] sm:$0xff]
  %v23 = vld [vmem:[%s0 + $0x30] sm:$0xff]
  %v24 = vld [vmem:[%s0 + $0x38] sm:$0xff]
  %v25 = vld [vmem:[%s0 + $0x40] sm:$0xff]
  %v26 = vld [vmem:[%s0 + $0x48] sm:$0xff]
  %v27 = vld [vmem:[%s0 + $0x50] sm:$0xff]
  %v28 = vld [vmem:[%s0 + $0x58] sm:$0xff]
  %v29 = vld [vmem:[%s0 + $0x60] sm:$0xff]
  %v30 = vld [vmem:[%s0 + $0x68] sm:$0xff]
  %v31 = vld [vmem:[%s0 + $0x70] sm:$0xff]
  %v32 = vld [vmem:[%s0 + $0x78] sm:$0xff]
  %v33 = vld [vmem:[%s0 + $0x80] sm:$0xff]
  %v34 = vld [vmem:[%s0 + $0x88] sm:$0xff]
  %v35 = vld [vmem:[%s0 + $0x90] sm:$0xff]
  %v36 = vld [vmem:[%s0 + $0x98] sm:$0xff]
  %v37 = vld [vmem:[%s1] sm:$0xff]
  %v38 = vld [vmem:[%s1 + $0x8] sm:$0xff]
  %v39 = vld [vmem:[%s1 + $0x10] sm:$0xff]
  %v40 = vld [vmem:[%s1 + $0x18] sm:$0xff]
  %v41 = vld [vmem:[%s1 + $0x20] sm:$0xff]
  %v42 = vld [vmem:[%s1 + $0x28] sm:$0xff]
  %v43 = vld [vmem:[%s1 + $0x30] sm:$0xff]
  %v44 = vld [vmem:[%s1 + $0x38] sm:$0xff]
  %v45 = vld [vmem:[%s1 + $0x40] sm:$0xff]
  %v46 = vld [vmem:[%s1 + $0x48] sm:$0xff]
  %v47 = vld [vmem:[%s1 + $0x50] sm:$0xff]
  %v48 = vld [vmem:[%s1 + $0x58] sm:$0xff]
  %v49 = vld [vmem:[%s1 + $0x60] sm:$0xff]
  %v50 = vld [vmem:[%s1 + $0x68] sm:$0xff]
  %v51 = vld [vmem:[%s1 + $0x70] sm:$0xff]
  %v52 = vld [vmem:[%s1 + $0x78] sm:$0xff]
  %v53 = vld [vmem:[%s1 + $0x80] sm:$0xff]
  %v54 = vld [vmem:[%s1 + $0x88] sm:$0xff]
  %v55 = vld [vmem:[%s1 + $0x90] sm:$0xff]
  %v56 = vld [vmem:[%s1 + $0x98] sm:$0xff]
  %v57 = vld [vmem:[%s1 + $0xa0] sm:$0xff]
  %v58 = vld [vmem:[%s1 + $0xa8] sm:$0xff]
  %v59 = vld [vmem:[%s1 + $0xb0] sm:$0xff]
  %v60 = vld [vmem:[%s1 + $0xb8] sm:$0xff]
  %v61 = vld [vmem:[%s1 + $0xc0] sm:$0xff]
  %v62 = vld [vmem:[%s1 + $0xc8] sm:$0xff]
  %v63 = vld [vmem:[%s1 + $0xd0] sm:$0xff]
  %v64 = vld [vmem:[%s1 + $0xd8] sm:$0xff]
  %v65 = vld [vmem:[%s1 + $0xe0] sm:$0xff]
  %v66 = vld [vmem:[%s1 + $0xe8] sm:$0xff]
  %v67 = vld [vmem:[%s1 + $0xf0] sm:$0xff]
  %v68 = vld [vmem:[%s1 + $0xf8] sm:$0xff]
  %v69 = vld [vmem:[%s1 + $0x100] sm:$0xff]
  %v70 = vld [vmem:[%s1 + $0x108] sm:$0xff]
  %v71 = vld [vmem:[%s1 + $0x110] sm:$0xff]
  %v72 = vld [vmem:[%s1 + $0x118] sm:$0xff]
  %v73 = vld [vmem:[%s1 + $0x120] sm:$0xff]
  %v74 = vld [vmem:[%s1 + $0x128] sm:$0xff]
  %v75 = vld [vmem:[%s1 + $0x130] sm:$0xff]
  %v76 = vld [vmem:[%s1 + $0x138] sm:$0xff]
  %v77 = vld [vmem:[%s1 + $0x140] sm:$0xff]
  %v78 = vld [vmem:[%s1 + $0x148] sm:$0xff]
  %v79 = vld [vmem:[%s1 + $0x150] sm:$0xff]
  %v80 = vld [vmem:[%s1 + $0x158] sm:$0xff]
  %v81 = vld [vmem:[%s1 + $0x160] sm:$0xff]
  %v82 = vld [vmem:[%s1 + $0x168] sm:$0xff]
  %v83 = vld [vmem:[%s1 + $0x170] sm:$0xff]
  %v84 = vld [vmem:[%s1 + $0x178] sm:$0xff]
  %v85 = vld [vmem:[%s1 + $0x180] sm:$0xff]
  %v86 = vld [vmem:[%s1 + $0x188] sm:$0xff]
  %v87 = vld [vmem:[%s1 + $0x190] sm:$0xff]
  %v88 = vld [vmem:[%s1 + $0x198] sm:$0xff]
  %v89 = vld [vmem:[%s1 + $0x1a0] sm:$0xff]
  %v90 = vld [vmem:[%s1 + $0x1a8] sm:$0xff]
  %v91 = vld [vmem:[%s1 + $0x1b0] sm:$0xff]
  %v92 = vld [vmem:[%s1 + $0x1b8] sm:$0xff]
  %v93 = vld [vmem:[%s1 + $0x1c0] sm:$0xff]
  %v94 = vld [vmem:[%s1 + $0x1c8] sm:$0xff]
  %v95 = vld [vmem:[%s1 + $0x1d0] sm:$0xff]
  %v96 = vld [vmem:[%s1 + $0x1d8] sm:$0xff]
  %v97 = vld [vmem:[%s1 + $0x1e0] sm:$0xff]
  %v98 = vld [vmem:[%s1 + $0x1e8] sm:$0xff]
  %v99 = vld [vmem:[%s1 + $0x1f0] sm:$0xff]
  %v100 = vld [vmem:[%s1 + $0x1f8] sm:$0xff]
  %v101 = vld [vmem:[%s1 + $0x200] sm:$0xff]
  %v102 = vld [vmem:[%s1 + $0x208] sm:$0xff]
  %v103 = vld [vmem:[%s1 + $0x210] sm:$0xff]
  %v104 = vld [vmem:[%s1 + $0x218] sm:$0xff]
  %v105 = vld [vmem:[%s1 + $0x220] sm:$0xff]
  %v106 = vld [vmem:[%s1 + $0x228] sm:$0xff]
  %v107 = vld [vmem:[%s1 + $0x230] sm:$0xff]
  %v108 = vld [vmem:[%s1 + $0x238] sm:$0xff]
  %vm109 = vcmask 523264
  %v111 = vsel %vm109, %v21, 0
  %v114 = vsel %vm109, %v26, 0
  %v117 = vsel %vm109, %v31, 0
  %v120 = vsel %vm109, %v36, 0
  %122 = vmatprep.subr.mxu0 0.0
  %123 = vmatpush1.msra.mxu0 %v37
  %124 = vmatprep.subr.mxu0 0.0
  %125 = vmatpush1.msra.mxu0 %v38
  %126 = vmatprep.subr.mxu0 0.0
  %127 = vmatpush1.msra.mxu0 %v39
  %128 = vmatprep.subr.mxu0 0.0
  %129 = vmatpush1.msra.mxu0 %v40
  %130 = vmatprep.subr.mxu0 0.0
  %131 = vmatpush1.msra.mxu0 %v41
  %132 = vmatprep.subr.mxu0 0.0
  %133 = vmatpush1.msra.mxu0 %v42
  %134 = vmatprep.subr.mxu0 0.0
  %135 = vmatpush1.msra.mxu0 %v43
  %136 = vmatprep.subr.mxu0 0.0
  %137 = vmatpush1.msra.mxu0 %v44
  %138 = vmatprep.subr.mxu0 0.0
  %139 = vmatpush1.msra.mxu0 %v45
  %140 = vmatprep.subr.mxu0 0.0
  %141 = vmatpush1.msra.mxu0 %v46
  %142 = vmatprep.subr.mxu0 0.0
  %143 = vmatpush1.msra.mxu0 %v47
  %144 = vmatprep.subr.mxu0 0.0
  %145 = vmatpush1.msra.mxu0 %v48
  %146 = vmatprep.subr.mxu0 0.0
  %147 = vmatpush1.msra.mxu0 %v49
  %148 = vmatprep.subr.mxu0 0.0
  %149 = vmatpush1.msra.mxu0 %v50
  %150 = vmatprep.subr.mxu0 0.0
  %151 = vmatpush1.msra.mxu0 %v51
  %152 = vmatprep.subr.mxu0 0.0
  %153 = vmatpush1.msra.mxu0 %v52
  %154 = vmatprep.subr.mxu0 0.0
  %155 = vmatpush1.msra.mxu0 %v53
  %156 = vmatprep.subr.mxu0 0.0
  %157 = vmatpush1.msra.mxu0 %v54
  %158 = vmatprep.subr.mxu0 0.0
  %159 = vmatpush1.msra.mxu0 %v55
  %160 = vmatprep.subr.mxu0 0.0
  %161 = vmatpush1.msra.mxu0 %v56
  %162 = vmatprep.subr.mxu0 0.0
  %163 = vmatpush1.msra.mxu0 %v57
  %164 = vmatprep.subr.mxu0 0.0
  %165 = vmatpush1.msra.mxu0 %v58
  %166 = vmatprep.subr.mxu0 0.0
  %167 = vmatpush1.msra.mxu0 %v59
  %168 = vmatprep.subr.mxu0 0.0
  %169 = vmatpush1.msra.mxu0 %v60
  %170 = vmatprep.subr.mxu0 0.0
  %171 = vmatpush1.msra.mxu0 %v61
  %172 = vmatprep.subr.mxu0 0.0
  %173 = vmatpush1.msra.mxu0 %v62
  %174 = vmatprep.subr.mxu0 0.0
  %175 = vmatpush1.msra.mxu0 %v63
  %176 = vmatprep.subr.mxu0 0.0
  %177 = vmatpush1.msra.mxu0 %v64
  %178 = vmatprep.subr.mxu0 0.0
  %179 = vmatpush1.msra.mxu0 %v65
  %180 = vmatprep.subr.mxu0 0.0
  %181 = vmatpush1.msra.mxu0 %v66
  %182 = vmatprep.subr.mxu0 0.0
  %183 = vmatpush1.msra.mxu0 %v67
  %184 = vmatprep.subr.mxu0 0.0
  %185 = vmatpush1.msra.mxu0 %v68
  %186 = vmatprep.mubr.f32.mxu0 %v18
  %187 = vmatmul.mubr.f32.gmra.mrb[0].mxu0 %v17
  %v188 = vpop.f32.mrb[0].mxu0
  %v189 = vadd.f32 0.0, %v188
  %v190 = vpop.f32.mrb[0].mxu0
  %191 = vmatprep.mubr.f32.mxu0 %v23
  %192 = vmatmul.mubr.f32.gmra.mrb[0].mxu0 %v22
  %v193 = vpop.f32.mrb[0].mxu0
  %v194 = vadd.f32 0.0, %v193
  %v195 = vpop.f32.mrb[0].mxu0
  %196 = vmatprep.mubr.f32.mxu0 %v28
  %197 = vmatmul.mubr.f32.gmra.mrb[0].mxu0 %v27
  %v198 = vpop.f32.mrb[0].mxu0
  %v199 = vadd.f32 0.0, %v198
  %v200 = vpop.f32.mrb[0].mxu0
  %201 = vmatprep.mubr.f32.mxu0 %v33
  %202 = vmatmul.mubr.f32.gmra.mrb[0].mxu0 %v32
  %v203 = vpop.f32.mrb[0].mxu0
  %v204 = vadd.f32 0.0, %v203
  %v205 = vpop.f32.mrb[0].mxu0
  %206 = vdwg.mxu0
  %207 = vmatprep.subr.mxu0 0.0
  %208 = vmatpush1.msra.mxu0 %v69
  %209 = vmatprep.subr.mxu0 0.0
  %210 = vmatpush1.msra.mxu0 %v70
  %211 = vmatprep.subr.mxu0 0.0
  %212 = vmatpush1.msra.mxu0 %v71
  %213 = vmatprep.subr.mxu0 0.0
  %214 = vmatpush1.msra.mxu0 %v72
  %215 = vmatprep.subr.mxu0 0.0
  %216 = vmatpush1.msra.mxu0 %v73
  %217 = vmatprep.subr.mxu0 0.0
  %218 = vmatpush1.msra.mxu0 %v74
  %219 = vmatprep.subr.mxu0 0.0
  %220 = vmatpush1.msra.mxu0 %v75
  %221 = vmatprep.subr.mxu0 0.0
  %222 = vmatpush1.msra.mxu0 %v76
  %223 = vmatprep.subr.mxu0 0.0
  %224 = vmatpush1.msra.mxu0 %v77
  %225 = vmatprep.subr.mxu0 0.0
  %226 = vmatpush1.msra.mxu0 %v78
  %227 = vmatprep.subr.mxu0 0.0
  %228 = vmatpush1.msra.mxu0 %v79
  %229 = vmatprep.subr.mxu0 0.0
  %230 = vmatpush1.msra.mxu0 %v80
  %231 = vmatprep.subr.mxu0 0.0
  %232 = vmatpush1.msra.mxu0 %v81
  %233 = vmatprep.subr.mxu0 0.0
  %234 = vmatpush1.msra.mxu0 %v82
  %235 = vmatprep.subr.mxu0 0.0
  %236 = vmatpush1.msra.mxu0 %v83
  %237 = vmatprep.subr.mxu0 0.0
  %238 = vmatpush1.msra.mxu0 %v84
  %239 = vmatprep.subr.mxu0 0.0
  %240 = vmatpush1.msra.mxu0 %v85
  %241 = vmatprep.subr.mxu0 0.0
  %242 = vmatpush1.msra.mxu0 %v86
  %243 = vmatprep.subr.mxu0 0.0
  %244 = vmatpush1.msra.mxu0 %v87
  %245 = vmatprep.subr.mxu0 0.0
  %246 = vmatpush1.msra.mxu0 %v88
  %247 = vmatprep.subr.mxu0 0.0
  %248 = vmatpush1.msra.mxu0 %v89
  %249 = vmatprep.subr.mxu0 0.0
  %250 = vmatpush1.msra.mxu0 %v90
  %251 = vmatprep.subr.mxu0 0.0
  %252 = vmatpush1.msra.mxu0 %v91
  %253 = vmatprep.subr.mxu0 0.0
  %254 = vmatpush1.msra.mxu0 %v92
  %255 = vmatprep.subr.mxu0 0.0
  %256 = vmatpush1.msra.mxu0 %v93
  %257 = vmatprep.subr.mxu0 0.0
  %258 = vmatpush1.msra.mxu0 %v94
  %259 = vmatprep.subr.mxu0 0.0
  %260 = vmatpush1.msra.mxu0 %v95
  %261 = vmatprep.subr.mxu0 0.0
  %262 = vmatpush1.msra.mxu0 %v96
  %263 = vmatprep.subr.mxu0 0.0
  %264 = vmatpush1.msra.mxu0 %v97
  %265 = vmatprep.subr.mxu0 0.0
  %266 = vmatpush1.msra.mxu0 %v98
  %267 = vmatprep.subr.mxu0 0.0
  %268 = vmatpush1.msra.mxu0 %v99
  %269 = vmatprep.subr.mxu0 0.0
  %270 = vmatpush1.msra.mxu0 %v100
  %271 = vmatprep.mubr.f32.mxu0 %v20
  %272 = vmatmul.mubr.f32.gmra.mrb[0].mxu0 %v19
  %v273 = vpop.f32.mrb[0].mxu0
  %v274 = vadd.f32 %v189, %v273
  %v275 = vpop.f32.mrb[0].mxu0
  %276 = vmatprep.mubr.f32.mxu0 %v25
  %277 = vmatmul.mubr.f32.gmra.mrb[0].mxu0 %v24
  %v278 = vpop.f32.mrb[0].mxu0
  %v279 = vadd.f32 %v194, %v278
  %v280 = vpop.f32.mrb[0].mxu0
  %281 = vmatprep.mubr.f32.mxu0 %v30
  %282 = vmatmul.mubr.f32.gmra.mrb[0].mxu0 %v29
  %v283 = vpop.f32.mrb[0].mxu0
  %v284 = vadd.f32 %v199, %v283
  %v285 = vpop.f32.mrb[0].mxu0
  %286 = vmatprep.mubr.f32.mxu0 %v35
  %287 = vmatmul.mubr.f32.gmra.mrb[0].mxu0 %v34
  %v288 = vpop.f32.mrb[0].mxu0
  %v289 = vadd.f32 %v204, %v288
  %v290 = vpop.f32.mrb[0].mxu0
  %291 = vdwg.mxu0
  %292 = vmatprep.subr.mxu0 0.0
  %293 = vmatpush1.msra.mxu0 %v101
  %294 = vmatprep.subr.mxu0 0.0
  %295 = vmatpush1.msra.mxu0 %v102
  %296 = vmatprep.subr.mxu0 0.0
  %297 = vmatpush1.msra.mxu0 %v103
  %298 = vmatprep.subr.mxu0 0.0
  %299 = vmatpush1.msra.mxu0 %v104
  %300 = vmatprep.subr.mxu0 0.0
  %301 = vmatpush1.msra.mxu0 %v105
  %302 = vmatprep.subr.mxu0 0.0
  %303 = vmatpush1.msra.mxu0 %v106
  %304 = vmatprep.subr.mxu0 0.0
  %305 = vmatpush1.msra.mxu0 %v107
  %306 = vmatprep.subr.mxu0 0.0
  %307 = vmatpush1.msra.mxu0 %v108
  %308 = vmatprep.subr.mxu0 0.0
  %309 = vmatpush1.msra.mxu0 0.0
  %310 = vmatprep.subr.mxu0 0.0
  %311 = vmatpush1.msra.mxu0 0.0
  %312 = vmatprep.subr.mxu0 0.0
  %313 = vmatpush1.msra.mxu0 0.0
  %314 = vmatprep.subr.mxu0 0.0
  %315 = vmatpush1.msra.mxu0 0.0
  %316 = vmatprep.subr.mxu0 0.0
  %317 = vmatpush1.msra.mxu0 0.0
  %318 = vmatprep.subr.mxu0 0.0
  %319 = vmatpush1.msra.mxu0 0.0
  %320 = vmatprep.subr.mxu0 0.0
  %321 = vmatpush1.msra.mxu0 0.0
  %322 = vmatprep.subr.mxu0 0.0
  %323 = vmatpush1.msra.mxu0 0.0
  %324 = vmatprep.subr.mxu0 0.0
  %325 = vmatpush1.msra.mxu0 0.0
  %326 = vmatprep.subr.mxu0 0.0
  %327 = vmatpush1.msra.mxu0 0.0
  %328 = vmatprep.subr.mxu0 0.0
  %329 = vmatpush1.msra.mxu0 0.0
  %330 = vmatprep.subr.mxu0 0.0
  %331 = vmatpush1.msra.mxu0 0.0
  %332 = vmatprep.subr.mxu0 0.0
  %333 = vmatpush1.msra.mxu0 0.0
  %334 = vmatprep.subr.mxu0 0.0
  %335 = vmatpush1.msra.mxu0 0.0
  %336 = vmatprep.subr.mxu0 0.0
  %337 = vmatpush1.msra.mxu0 0.0
  %338 = vmatprep.subr.mxu0 0.0
  %339 = vmatpush1.msra.mxu0 0.0
  %340 = vmatprep.subr.mxu0 0.0
  %341 = vmatpush1.msra.mxu0 0.0
  %342 = vmatprep.subr.mxu0 0.0
  %343 = vmatpush1.msra.mxu0 0.0
  %344 = vmatprep.subr.mxu0 0.0
  %345 = vmatpush1.msra.mxu0 0.0
  %346 = vmatprep.subr.mxu0 0.0
  %347 = vmatpush1.msra.mxu0 0.0
  %348 = vmatprep.subr.mxu0 0.0
  %349 = vmatpush1.msra.mxu0 0.0
  %350 = vmatprep.subr.mxu0 0.0
  %351 = vmatpush1.msra.mxu0 0.0
  %352 = vmatprep.subr.mxu0 0.0
  %353 = vmatpush1.msra.mxu0 0.0
  %354 = vmatprep.subr.mxu0 0.0
  %355 = vmatpush1.msra.mxu0 0.0
  %356 = vmatprep.mubr.f32.mxu0 0.0
  %357 = vmatmul.mubr.f32.gmra.mrb[0].mxu0 %v111
  %v358 = vpop.f32.mrb[0].mxu0
  %v359 = vadd.f32 %v274, %v358
  %v360 = vpop.f32.mrb[0].mxu0
  %361 = vmatprep.mubr.f32.mxu0 0.0
  %362 = vmatmul.mubr.f32.gmra.mrb[0].mxu0 %v114
  %v363 = vpop.f32.mrb[0].mxu0
  %v364 = vadd.f32 %v279, %v363
  %v365 = vpop.f32.mrb[0].mxu0
  %366 = vmatprep.mubr.f32.mxu0 0.0
  %367 = vmatmul.mubr.f32.gmra.mrb[0].mxu0 %v117
  %v368 = vpop.f32.mrb[0].mxu0
  %v369 = vadd.f32 %v284, %v368
  %v370 = vpop.f32.mrb[0].mxu0
  %371 = vmatprep.mubr.f32.mxu0 0.0
  %372 = vmatmul.mubr.f32.gmra.mrb[0].mxu0 %v120
  %v373 = vpop.f32.mrb[0].mxu0
  %v374 = vadd.f32 %v289, %v373
  %v375 = vpop.f32.mrb[0].mxu0
  %376 = vdwg.mxu0
  %v377 = vld [vmem:[%s2] sm:$0x1]
  %v378 = vld [vmem:[%s3] sm:$0x1]
  %v379 = vadd.f32 %v359, %v364
  %v380 = vadd.f32 %v379, %v369
  %v381 = vadd.f32 %v380, %v374
  %v382 = vrot.slane %v381, 4
  %v383 = vadd.f32 %v381, %v382
  %v384 = vrot.slane %v383, 2
  %v385 = vadd.f32 %v383, %v384
  %v386 = vrot.slane %v385, 1
  %v387 = vadd.f32 %v385, %v386
  %v388 = vmul.f32 %v359, %v359
  %v389 = vmul.f32 %v364, %v364
  %v390 = vmul.f32 %v369, %v369
  %v391 = vmul.f32 %v374, %v374
  %v392 = vadd.f32 %v388, %v389
  %v393 = vadd.f32 %v392, %v390
  %v394 = vadd.f32 %v393, %v391
  %v395 = vrot.slane %v394, 4
  %v396 = vadd.f32 %v394, %v395
  %v397 = vrot.slane %v396, 2
  %v398 = vadd.f32 %v396, %v397
  %v399 = vrot.slane %v398, 1
  %v400 = vadd.f32 %v398, %v399
  %v401 = vmul.f32 %v387, 0.03125
  %v402 = vmul.f32 %v400, 0.03125
  %v403 = vmul.f32 %v401, %v401
  %v404 = vsub.f32 %v402, %v403
  %v405 = vmax.f32 %v404, 0.0
  %v406 = vadd.f32 %v405, 1e-05
  %v407 = vrsqrt.pop %v406
  %v408 = vmul.f32 %v377, %v407
  %v409 = vmul.f32 %v401, %v408
  %v410 = vsub.f32 %v378, %v409
  %v412 = vlaneseq
  %v413 = vshrl.u32 %v412, 7
  %v414 = vsub.s32 0, %v413
  %v415 = vrot.slane %v408, %v414
  %v417 = vmul.f32 %v359, %v415
  %v418 = vmul.f32 %v364, %v415
  %v419 = vmul.f32 %v369, %v415
  %v420 = vmul.f32 %v374, %v415
  %v422 = vlaneseq
  %v423 = vshrl.u32 %v422, 7
  %v424 = vsub.s32 0, %v423
  %v425 = vrot.slane %v410, %v424
  %v427 = vadd.f32 %v417, %v425
  %v428 = vadd.f32 %v418, %v425
  %v429 = vadd.f32 %v419, %v425
  %v430 = vadd.f32 %v420, %v425
  %v431 = vmax.f32 %v427, 0.0
  %v432 = vmax.f32 %v428, 0.0
  %v433 = vmax.f32 %v429, 0.0
  %v434 = vmax.f32 %v430, 0.0
  %435 = vst [vmem:[%s4] sm:$0xff] %v431
  %436 = vst [vmem:[%s4 + $0x8] sm:$0xff] %v432
  %437 = vst [vmem:[%s4 + $0x10] sm:$0xff] %v433
  %438 = vst [vmem:[%s4 + $0x18] sm:$0xff] %v434
  // Predicated region
  $region18: #{mgvae_forward.11} parent=0 // pred_check
    _
  $region19: #{mgvae_forward.11} parent=0 // pred_check_branch
    %440 = sbr.rel (0) target = $region21
  $region20: #{mgvae_forward.11} parent=0 // pred_region
    _
  $region21: #{mgvae_forward.11} parent=0 // pred_fallthru
    _
  // Predicated region
  $region22: #{mgvae_forward.11} parent=0 // pred_check
    _
  $region23: #{mgvae_forward.11} parent=0 // pred_check_branch
    %442 = sbr.rel (0) target = $region25
  $region24: #{mgvae_forward.11} parent=0 // pred_region
    _
  $region25: #{mgvae_forward.11} parent=0 // pred_fallthru
    _

// kernel: mgvae_forward.12
$region0: #{mgvae_forward.12}
  #allocation0 [shape = 'u32[]', space=smem, size = 0x4, offset = 0x4, fixed_abs, tag = 'smem constant byte address 0x4 - core index']
  #allocation1 [shape = 'u32[144,128]{1,0:T(1,128)}', space=vmem, size = 0x12000, scoped, tag = 'internal scratch']
  %s0 = inlined_call_operand.vmem [shape: f32[2,2048], index: 0, kind: input, shape index: {}]
  %s1 = inlined_call_operand.vmem [shape: f32[2048,64], index: 1, kind: input, shape index: {}]
  %s2 = inlined_call_operand.vmem [shape: f32[1,64], index: 2, kind: input, shape index: {}]
  %s3 = inlined_call_operand.vmem [shape: f32[2,32], index: 3, kind: input, shape index: {}]
  %s4 = inlined_call_operand.vmem [shape: f32[2,64], index: 4, kind: output, shape index: {0}]
  %s5 = inlined_call_operand.vmem [shape: f32[2,32], index: 5, kind: output, shape index: {1}]
  %6 = xla_tuple %s4, %s5
  %s7 = sld [smem:[#allocation0]]
  $region34: #{mgvae_forward.12} parent=0
    _
  %s9 = ssub.s32 1, %s7
  %s10 = scalar_select 0, %s9, %s7
  // Predicated region
  $region2: #{mgvae_forward.12} parent=0 // pred_check
    _
  $region3: #{mgvae_forward.12} parent=0 // pred_check_branch
    %12 = sbr.rel (0) target = $region5
  $region4: #{mgvae_forward.12} parent=0 // pred_region
    _
  $region5: #{mgvae_forward.12} parent=0 // pred_fallthru
    _
  // Predicated region
  $region6: #{mgvae_forward.12} parent=0 // pred_check
    _
  $region7: #{mgvae_forward.12} parent=0 // pred_check_branch
    %14 = sbr.rel (0) target = $region9
  $region8: #{mgvae_forward.12} parent=0 // pred_region
    _
  $region9: #{mgvae_forward.12} parent=0 // pred_fallthru
    _
  // Predicated region
  $region10: #{mgvae_forward.12} parent=0 // pred_check
    _
  $region11: #{mgvae_forward.12} parent=0 // pred_check_branch
    %16 = sbr.rel (0) target = $region13
  $region12: #{mgvae_forward.12} parent=0 // pred_region
    _
  $region13: #{mgvae_forward.12} parent=0 // pred_fallthru
    _
  // Predicated region
  $region14: #{mgvae_forward.12} parent=0 // pred_check
    _
  $region15: #{mgvae_forward.12} parent=0 // pred_check_branch
    %18 = sbr.rel (0) target = $region17
  $region16: #{mgvae_forward.12} parent=0 // pred_region
    _
  $region17: #{mgvae_forward.12} parent=0 // pred_fallthru
    _
  %v19 = vld [vmem:[%s0] sm:$0xff]
  %v20 = vld [vmem:[%s0 + $0x8] sm:$0xff]
  %v21 = vld [vmem:[%s0 + $0x10] sm:$0xff]
  %v22 = vld [vmem:[%s0 + $0x18] sm:$0xff]
  %v23 = vld [vmem:[%s1] sm:$0xff]
  %v24 = vld [vmem:[%s1 + $0x8] sm:$0xff]
  %v25 = vld [vmem:[%s1 + $0x10] sm:$0xff]
  %v26 = vld [vmem:[%s1 + $0x18] sm:$0xff]
  %v27 = vld [vmem:[%s1 + $0x20] sm:$0xff]
  %v28 = vld [vmem:[%s1 + $0x28] sm:$0xff]
  %v29 = vld [vmem:[%s1 + $0x30] sm:$0xff]
  %v30 = vld [vmem:[%s1 + $0x38] sm:$0xff]
  %v31 = vld [vmem:[%s1 + $0x40] sm:$0xff]
  %v32 = vld [vmem:[%s1 + $0x48] sm:$0xff]
  %v33 = vld [vmem:[%s1 + $0x50] sm:$0xff]
  %v34 = vld [vmem:[%s1 + $0x58] sm:$0xff]
  %v35 = vld [vmem:[%s1 + $0x60] sm:$0xff]
  %v36 = vld [vmem:[%s1 + $0x68] sm:$0xff]
  %v37 = vld [vmem:[%s1 + $0x70] sm:$0xff]
  %v38 = vld [vmem:[%s1 + $0x78] sm:$0xff]
  %v39 = vld [vmem:[%s1 + $0x80] sm:$0xff]
  %v40 = vld [vmem:[%s1 + $0x88] sm:$0xff]
  %v41 = vld [vmem:[%s1 + $0x90] sm:$0xff]
  %v42 = vld [vmem:[%s1 + $0x98] sm:$0xff]
  %v43 = vld [vmem:[%s1 + $0xa0] sm:$0xff]
  %v44 = vld [vmem:[%s1 + $0xa8] sm:$0xff]
  %v45 = vld [vmem:[%s1 + $0xb0] sm:$0xff]
  %v46 = vld [vmem:[%s1 + $0xb8] sm:$0xff]
  %v47 = vld [vmem:[%s1 + $0xc0] sm:$0xff]
  %v48 = vld [vmem:[%s1 + $0xc8] sm:$0xff]
  %v49 = vld [vmem:[%s1 + $0xd0] sm:$0xff]
  %v50 = vld [vmem:[%s1 + $0xd8] sm:$0xff]
  %v51 = vld [vmem:[%s1 + $0xe0] sm:$0xff]
  %v52 = vld [vmem:[%s1 + $0xe8] sm:$0xff]
  %v53 = vld [vmem:[%s1 + $0xf0] sm:$0xff]
  %v54 = vld [vmem:[%s1 + $0xf8] sm:$0xff]
  %v55 = vld [vmem:[%s1 + $0x100] sm:$0xff]
  %v56 = vld [vmem:[%s1 + $0x108] sm:$0xff]
  %v57 = vld [vmem:[%s1 + $0x110] sm:$0xff]
  %v58 = vld [vmem:[%s1 + $0x118] sm:$0xff]
  %v59 = vld [vmem:[%s1 + $0x120] sm:$0xff]
  %v60 = vld [vmem:[%s1 + $0x128] sm:$0xff]
  %v61 = vld [vmem:[%s1 + $0x130] sm:$0xff]
  %v62 = vld [vmem:[%s1 + $0x138] sm:$0xff]
  %v63 = vld [vmem:[%s1 + $0x140] sm:$0xff]
  %v64 = vld [vmem:[%s1 + $0x148] sm:$0xff]
  %v65 = vld [vmem:[%s1 + $0x150] sm:$0xff]
  %v66 = vld [vmem:[%s1 + $0x158] sm:$0xff]
  %v67 = vld [vmem:[%s1 + $0x160] sm:$0xff]
  %v68 = vld [vmem:[%s1 + $0x168] sm:$0xff]
  %v69 = vld [vmem:[%s1 + $0x170] sm:$0xff]
  %v70 = vld [vmem:[%s1 + $0x178] sm:$0xff]
  %v71 = vld [vmem:[%s1 + $0x180] sm:$0xff]
  %v72 = vld [vmem:[%s1 + $0x188] sm:$0xff]
  %v73 = vld [vmem:[%s1 + $0x190] sm:$0xff]
  %v74 = vld [vmem:[%s1 + $0x198] sm:$0xff]
  %v75 = vld [vmem:[%s1 + $0x1a0] sm:$0xff]
  %v76 = vld [vmem:[%s1 + $0x1a8] sm:$0xff]
  %v77 = vld [vmem:[%s1 + $0x1b0] sm:$0xff]
  %v78 = vld [vmem:[%s1 + $0x1b8] sm:$0xff]
  %v79 = vld [vmem:[%s1 + $0x1c0] sm:$0xff]
  %v80 = vld [vmem:[%s1 + $0x1c8] sm:$0xff]
  %v81 = vld [vmem:[%s1 + $0x1d0] sm:$0xff]
  %v82 = vld [vmem:[%s1 + $0x1d8] sm:$0xff]
  %v83 = vld [vmem:[%s1 + $0x1e0] sm:$0xff]
  %v84 = vld [vmem:[%s1 + $0x1e8] sm:$0xff]
  %v85 = vld [vmem:[%s1 + $0x1f0] sm:$0xff]
  %v86 = vld [vmem:[%s1 + $0x1f8] sm:$0xff]
  %v87 = vld [vmem:[%s1 + $0x200] sm:$0xff]
  %v88 = vld [vmem:[%s1 + $0x208] sm:$0xff]
  %v89 = vld [vmem:[%s1 + $0x210] sm:$0xff]
  %v90 = vld [vmem:[%s1 + $0x218] sm:$0xff]
  %v91 = vld [vmem:[%s1 + $0x220] sm:$0xff]
  %v92 = vld [vmem:[%s1 + $0x228] sm:$0xff]
  %v93 = vld [vmem:[%s1 + $0x230] sm:$0xff]
  %v94 = vld [vmem:[%s1 + $0x238] sm:$0xff]
  %v95 = vld [vmem:[%s1 + $0x240] sm:$0xff]
  %v96 = vld [vmem:[%s1 + $0x248] sm:$0xff]
  %v97 = vld [vmem:[%s1 + $0x250] sm:$0xff]
  %v98 = vld [vmem:[%s1 + $0x258] sm:$0xff]
  %v99 = vld [vmem:[%s1 + $0x260] sm:$0xff]
  %v100 = vld [vmem:[%s1 + $0x268] sm:$0xff]
  %v101 = vld [vmem:[%s1 + $0x270] sm:$0xff]
  %v102 = vld [vmem:[%s1 + $0x278] sm:$0xff]
  %v103 = vld [vmem:[%s1 + $0x280] sm:$0xff]
  %v104 = vld [vmem:[%s1 + $0x288] sm:$0xff]
  %v105 = vld [vmem:[%s1 + $0x290] sm:$0xff]
  %v106 = vld [vmem:[%s1 + $0x298] sm:$0xff]
  %v107 = vld [vmem:[%s1 + $0x2a0] sm:$0xff]
  %v108 = vld [vmem:[%s1 + $0x2a8] sm:$0xff]
  %v109 = vld [vmem:[%s1 + $0x2b0] sm:$0xff]
  %v110 = vld [vmem:[%s1 + $0x2b8] sm:$0xff]
  %v111 = vld [vmem:[%s1 + $0x2c0] sm:$0xff]
  %v112 = vld [vmem:[%s1 + $0x2c8] sm:$0xff]
  %v113 = vld [vmem:[%s1 + $0x2d0] sm:$0xff]
  %v114 = vld [vmem:[%s1 + $0x2d8] sm:$0xff]
  %v115 = vld [vmem:[%s1 + $0x2e0] sm:$0xff]
  %v116 = vld [vmem:[%s1 + $0x2e8] sm:$0xff]
  %v117 = vld [vmem:[%s1 + $0x2f0] sm:$0xff]
  %v118 = vld [vmem:[%s1 + $0x2f8] sm:$0xff]
  %v119 = vld [vmem:[%s1 + $0x300] sm:$0xff]
  %v120 = vld [vmem:[%s1 + $0x308] sm:$0xff]
  %v121 = vld [vmem:[%s1 + $0x310] sm:$0xff]
  %v122 = vld [vmem:[%s1 + $0x318] sm:$0xff]
  %v123 = vld [vmem:[%s1 + $0x320] sm:$0xff]
  %v124 = vld [vmem:[%s1 + $0x328] sm:$0xff]
  %v125 = vld [vmem:[%s1 + $0x330] sm:$0xff]
  %v126 = vld [vmem:[%s1 + $0x338] sm:$0xff]
  %v127 = vld [vmem:[%s1 + $0x340] sm:$0xff]
  %v128 = vld [vmem:[%s1 + $0x348] sm:$0xff]
  %v129 = vld [vmem:[%s1 + $0x350] sm:$0xff]
  %v130 = vld [vmem:[%s1 + $0x358] sm:$0xff]
  %v131 = vld [vmem:[%s1 + $0x360] sm:$0xff]
  %v132 = vld [vmem:[%s1 + $0x368] sm:$0xff]
  %v133 = vld [vmem:[%s1 + $0x370] sm:$0xff]
  %v134 = vld [vmem:[%s1 + $0x378] sm:$0xff]
  %v135 = vld [vmem:[%s1 + $0x380] sm:$0xff]
  %v136 = vld [vmem:[%s1 + $0x388] sm:$0xff]
  %v137 = vld [vmem:[%s1 + $0x390] sm:$0xff]
  %v138 = vld [vmem:[%s1 + $0x398] sm:$0xff]
  %v139 = vld [vmem:[%s1 + $0x3a0] sm:$0xff]
  %v140 = vld [vmem:[%s1 + $0x3a8] sm:$0xff]
  %v141 = vld [vmem:[%s1 + $0x3b0] sm:$0xff]
  %v142 = vld [vmem:[%s1 + $0x3b8] sm:$0xff]
  %v143 = vld [vmem:[%s1 + $0x3c0] sm:$0xff]
  %v144 = vld [vmem:[%s1 + $0x3c8] sm:$0xff]
  %v145 = vld [vmem:[%s1 + $0x3d0] sm:$0xff]
  %v146 = vld [vmem:[%s1 + $0x3d8] sm:$0xff]
  %v147 = vld [vmem:[%s1 + $0x3e0] sm:$0xff]
  %v148 = vld [vmem:[%s1 + $0x3e8] sm:$0xff]
  %v149 = vld [vmem:[%s1 + $0x3f0] sm:$0xff]
  %v150 = vld [vmem:[%s1 + $0x3f8] sm:$0xff]
  %v151 = vld [vmem:[%s1 + $0x400] sm:$0xff]
  %v152 = vld [vmem:[%s1 + $0x408] sm:$0xff]
  %v153 = vld [vmem:[%s1 + $0x410] sm:$0xff]
  %v154 = vld [vmem:[%s1 + $0x418] sm:$0xff]
  %v155 = vld [vmem:[%s1 + $0x420] sm:$0xff]
  %v156 = vld [vmem:[%s1 + $0x428] sm:$0xff]
  %v157 = vld [vmem:[%s1 + $0x430] sm:$0xff]
  %v158 = vld [vmem:[%s1 + $0x438] sm:$0xff]
  %v159 = vld [vmem:[%s1 + $0x440] sm:$0xff]
  %v160 = vld [vmem:[%s1 + $0x448] sm:$0xff]
  %v161 = vld [vmem:[%s1 + $0x450] sm:$0xff]
  %v162 = vld [vmem:[%s1 + $0x458] sm:$0xff]
  %v163 = vld [vmem:[%s1 + $0x460] sm:$0xff]
  %v164 = vld [vmem:[%s1 + $0x468] sm:$0xff]
  %v165 = vld [vmem:[%s1 + $0x470] sm:$0xff]
  %v166 = vld [vmem:[%s1 + $0x478] sm:$0xff]
  %v167 = vld [vmem:[%s1 + $0x480] sm:$0xff]
  %v168 = vld [vmem:[%s1 + $0x488] sm:$0xff]
  %v169 = vld [vmem:[%s1 + $0x490] sm:$0xff]
  %v170 = vld [vmem:[%s1 + $0x498] sm:$0xff]
  %v171 = vld [vmem:[%s1 + $0x4a0] sm:$0xff]
  %v172 = vld [vmem:[%s1 + $0x4a8] sm:$0xff]
  %v173 = vld [vmem:[%s1 + $0x4b0] sm:$0xff]
  %v174 = vld [vmem:[%s1 + $0x4b8] sm:$0xff]
  %v175 = vld [vmem:[%s1 + $0x4c0] sm:$0xff]
  %v176 = vld [vmem:[%s1 + $0x4c8] sm:$0xff]
  %v177 = vld [vmem:[%s1 + $0x4d0] sm:$0xff]
  %v178 = vld [vmem:[%s1 + $0x4d8] sm:$0xff]
  %v179 = vld [vmem:[%s1 + $0x4e0] sm:$0xff]
  %v180 = vld [vmem:[%s1 + $0x4e8] sm:$0xff]
  %v181 = vld [vmem:[%s1 + $0x4f0] sm:$0xff]
  %v182 = vld [vmem:[%s1 + $0x4f8] sm:$0xff]
  %v183 = vld [vmem:[%s1 + $0x500] sm:$0xff]
  %v184 = vld [vmem:[%s1 + $0x508] sm:$0xff]
  %v185 = vld [vmem:[%s1 + $0x510] sm:$0xff]
  %v186 = vld [vmem:[%s1 + $0x518] sm:$0xff]
  %v187 = vld [vmem:[%s1 + $0x520] sm:$0xff]
  %v188 = vld [vmem:[%s1 + $0x528] sm:$0xff]
  %v189 = vld [vmem:[%s1 + $0x530] sm:$0xff]
  %v190 = vld [vmem:[%s1 + $0x538] sm:$0xff]
  %v191 = vld [vmem:[%s1 + $0x540] sm:$0xff]
  %v192 = vld [vmem:[%s1 + $0x548] sm:$0xff]
  %v193 = vld [vmem:[%s1 + $0x550] sm:$0xff]
  %v194 = vld [vmem:[%s1 + $0x558] sm:$0xff]
  %v195 = vld [vmem:[%s1 + $0x560] sm:$0xff]
  %v196 = vld [vmem:[%s1 + $0x568] sm:$0xff]
  %v197 = vld [vmem:[%s1 + $0x570] sm:$0xff]
  %v198 = vld [vmem:[%s1 + $0x578] sm:$0xff]
  %v199 = vld [vmem:[%s1 + $0x580] sm:$0xff]
  %v200 = vld [vmem:[%s1 + $0x588] sm:$0xff]
  %v201 = vld [vmem:[%s1 + $0x590] sm:$0xff]
  %v202 = vld [vmem:[%s1 + $0x598] sm:$0xff]
  %v203 = vld [vmem:[%s1 + $0x5a0] sm:$0xff]
  %v204 = vld [vmem:[%s1 + $0x5a8] sm:$0xff]
  %v205 = vld [vmem:[%s1 + $0x5b0] sm:$0xff]
  %v206 = vld [vmem:[%s1 + $0x5b8] sm:$0xff]
  %v207 = vld [vmem:[%s1 + $0x5c0] sm:$0xff]
  %v208 = vld [vmem:[%s1 + $0x5c8] sm:$0xff]
  %v209 = vld [vmem:[%s1 + $0x5d0] sm:$0xff]
  %v210 = vld [vmem:[%s1 + $0x5d8] sm:$0xff]
  %v211 = vld [vmem:[%s1 + $0x5e0] sm:$0xff]
  %v212 = vld [vmem:[%s1 + $0x5e8] sm:$0xff]
  %v213 = vld [vmem:[%s1 + $0x5f0] sm:$0xff]
  %v214 = vld [vmem:[%s1 + $0x5f8] sm:$0xff]
  %v215 = vld [vmem:[%s1 + $0x600] sm:$0xff]
  %v216 = vld [vmem:[%s1 + $0x608] sm:$0xff]
  %v217 = vld [vmem:[%s1 + $0x610] sm:$0xff]
  %v218 = vld [vmem:[%s1 + $0x618] sm:$0xff]
  %v219 = vld [vmem:[%s1 + $0x620] sm:$0xff]
  %v220 = vld [vmem:[%s1 + $0x628] sm:$0xff]
  %v221 = vld [vmem:[%s1 + $0x630] sm:$0xff]
  %v222 = vld [vmem:[%s1 + $0x638] sm:$0xff]
  %v223 = vld [vmem:[%s1 + $0x640] sm:$0xff]
  %v224 = vld [vmem:[%s1 + $0x648] sm:$0xff]
  %v225 = vld [vmem:[%s1 + $0x650] sm:$0xff]
  %v226 = vld [vmem:[%s1 + $0x658] sm:$0xff]
  %v227 = vld [vmem:[%s1 + $0x660] sm:$0xff]
  %v228 = vld [vmem:[%s1 + $0x668] sm:$0xff]
  %v229 = vld [vmem:[%s1 + $0x670] sm:$0xff]
  %v230 = vld [vmem:[%s1 + $0x678] sm:$0xff]
  %v231 = vld [vmem:[%s1 + $0x680] sm:$0xff]
  %v232 = vld [vmem:[%s1 + $0x688] sm:$0xff]
  %v233 = vld [vmem:[%s1 + $0x690] sm:$0xff]
  %v234 = vld [vmem:[%s1 + $0x698] sm:$0xff]
  %v235 = vld [vmem:[%s1 + $0x6a0] sm:$0xff]
  %v236 = vld [vmem:[%s1 + $0x6a8] sm:$0xff]
  %v237 = vld [vmem:[%s1 + $0x6b0] sm:$0xff]
  %v238 = vld [vmem:[%s1 + $0x6b8] sm:$0xff]
  %v239 = vld [vmem:[%s1 + $0x6c0] sm:$0xff]
  %v240 = vld [vmem:[%s1 + $0x6c8] sm:$0xff]
  %v241 = vld [vmem:[%s1 + $0x6d0] sm:$0xff]
  %v242 = vld [vmem:[%s1 + $0x6d8] sm:$0xff]
  %v243 = vld [vmem:[%s1 + $0x6e0] sm:$0xff]
  %v244 = vld [vmem:[%s1 + $0x6e8] sm:$0xff]
  %v245 = vld [vmem:[%s1 + $0x6f0] sm:$0xff]
  %v246 = vld [vmem:[%s1 + $0x6f8] sm:$0xff]
  %v247 = vld [vmem:[%s1 + $0x700] sm:$0xff]
  %v248 = vld [vmem:[%s1 + $0x708] sm:$0xff]
  %v249 = vld [vmem:[%s1 + $0x710] sm:$0xff]
  %v250 = vld [vmem:[%s1 + $0x718] sm:$0xff]
  %v251 = vld [vmem:[%s1 + $0x720] sm:$0xff]
  %v252 = vld [vmem:[%s1 + $0x728] sm:$0xff]
  %v253 = vld [vmem:[%s1 + $0x730] sm:$0xff]
  %v254 = vld [vmem:[%s1 + $0x738] sm:$0xff]
  %v255 = vld [vmem:[%s1 + $0x740] sm:$0xff]
  %v256 = vld [vmem:[%s1 + $0x748] sm:$0xff]
  %v257 = vld [vmem:[%s1 + $0x750] sm:$0xff]
  %v258 = vld [vmem:[%s1 + $0x758] sm:$0xff]
  %v259 = vld [vmem:[%s1 + $0x760] sm:$0xff]
  %v260 = vld [vmem:[%s1 + $0x768] sm:$0xff]
  %v261 = vld [vmem:[%s1 + $0x770] sm:$0xff]
  %v262 = vld [vmem:[%s1 + $0x778] sm:$0xff]
  %v263 = vld [vmem:[%s1 + $0x780] sm:$0xff]
  %v264 = vld [vmem:[%s1 + $0x788] sm:$0xff]
  %v265 = vld [vmem:[%s1 + $0x790] sm:$0xff]
  %v266 = vld [vmem:[%s1 + $0x798] sm:$0xff]
  %v267 = vld [vmem:[%s1 + $0x7a0] sm:$0xff]
  %v268 = vld [vmem:[%s1 + $0x7a8] sm:$0xff]
  %v269 = vld [vmem:[%s1 + $0x7b0] sm:$0xff]
  %v270 = vld [vmem:[%s1 + $0x7b8] sm:$0xff]
  %v271 = vld [vmem:[%s1 + $0x7c0] sm:$0xff]
  %v272 = vld [vmem:[%s1 + $0x7c8] sm:$0xff]
  %v273 = vld [vmem:[%s1 + $0x7d0] sm:$0xff]
  %v274 = vld [vmem:[%s1 + $0x7d8] sm:$0xff]
  %v275 = vld [vmem:[%s1 + $0x7e0] sm:$0xff]
  %v276 = vld [vmem:[%s1 + $0x7e8] sm:$0xff]
  %v277 = vld [vmem:[%s1 + $0x7f0] sm:$0xff]
  %v278 = vld [vmem:[%s1 + $0x7f8] sm:$0xff]
  %v279 = vld [vmem:[%s2] sm:$0x1]
  %v281 = vlaneseq
  %v282 = vshrl.u32 %v281, 7
  %v283 = vsub.s32 0, %v282
  %v284 = vrot.slane %v279, %v283
  %v290 = vcombine.high %v19, %v19
  %v292 = vunpack.c.l.s4 1983009808
  %v293 = vunpack.c.0.s8 %v292
  %v294 = vlaneseq
  %v295 = vshrl.u32 %v294, 7
  %v296 = vsub.s32 %v293, %v295
  %v297 = vrot.slane %v19, %v296
  %v299 = vunpack.c.l.s4 1983009808
  %v300 = vunpack.c.0.s8 %v299
  %v301 = vlaneseq
  %v302 = vshrl.u32 %v301, 7
  %v303 = vsub.s32 %v300, %v302
  %v304 = vrot.slane %v290, %v303
  %v305 = vcombine.high %v297, %v297
  %v306 = vcombine.high %v304, %v304
  %v307 = vcombine.high %v20, %v20
  %v309 = vunpack.c.l.s4 1983009808
  %v310 = vunpack.c.0.s8 %v309
  %v311 = vlaneseq
  %v312 = vshrl.u32 %v311, 7
  %v313 = vsub.s32 %v310, %v312
  %v314 = vrot.slane %v20, %v313
  %v316 = vunpack.c.l.s4 1983009808
  %v317 = vunpack.c.0.s8 %v316
  %v318 = vlaneseq
  %v319 = vshrl.u32 %v318, 7
  %v320 = vsub.s32 %v317, %v319
  %v321 = vrot.slane %v307, %v320
  %v322 = vcombine.high %v314, %v314
  %v323 = vcombine.high %v321, %v321
  %v324 = vcombine.high %v21, %v21
  %v326 = vunpack.c.l.s4 1983009808
  %v327 = vunpack.c.0.s8 %v326
  %v328 = vlaneseq
  %v329 = vshrl.u32 %v328, 7
  %v330 = vsub.s32 %v327, %v329
  %v331 = vrot.slane %v21, %v330
  %v333 = vunpack.c.l.s4 1983009808
  %v334 = vunpack.c.0.s8 %v333
  %v335 = vlaneseq
  %v336 = vshrl.u32 %v335, 7
  %v337 = vsub.s32 %v334, %v336
  %v338 = vrot.slane %v324, %v337
  %v339 = vcombine.high %v331, %v331
  %v340 = vcombine.high %v338, %v338
  %v341 = vcombine.high %v22, %v22
  %v343 = vunpack.c.l.s4 1983009808
  %v344 = vunpack.c.0.s8 %v343
  %v345 = vlaneseq
  %v346 = vshrl.u32 %v345, 7
  %v347 = vsub.s32 %v344, %v346
  %v348 = vrot.slane %v22, %v347
  %v350 = vunpack.c.l.s4 1983009808
  %v351 = vunpack.c.0.s8 %v350
  %v352 = vlaneseq
  %v353 = vshrl.u32 %v352, 7
  %v354 = vsub.s32 %v351, %v353
  %v355 = vrot.slane %v341, %v354
  %v356 = vcombine.high %v348, %v348
  %v357 = vcombine.high %v355, %v355
  %374 = vmatprep.subr.mxu0 0.0
  %375 = vmatpush1.msra.mxu0 %v23
  %376 = vmatprep.subr.mxu0 0.0
  %377 = vmatpush1.msra.mxu0 %v24
  %378 = vmatprep.subr.mxu0 0.0
  %379 = vmatpush1.msra.mxu0 %v25
  %380 = vmatprep.subr.mxu0 0.0
  %381 = vmatpush1.msra.mxu0 %v26
  %382 = vmatprep.subr.mxu0 0.0
  %383 = vmatpush1.msra.mxu0 %v27
  %384 = vmatprep.subr.mxu0 0.0
  %385 = vmatpush1.msra.mxu0 %v28
  %386 = vmatprep.subr.mxu0 0.0
  %387 = vmatpush1.msra.mxu0 %v29
  %388 = vmatprep.subr.mxu0 0.0
  %389 = vmatpush1.msra.mxu0 %v30
  %390 = vmatprep.subr.mxu0 0.0
  %391 = vmatpush1.msra.mxu0 %v31
  %392 = vmatprep.subr.mxu0 0.0
  %393 = vmatpush1.msra.mxu0 %v32
  %394 = vmatprep.subr.mxu0 0.0
  %395 = vmatpush1.msra.mxu0 %v33
  %396 = vmatprep.subr.mxu0 0.0
  %397 = vmatpush1.msra.mxu0 %v34
  %398 = vmatprep.subr.mxu0 0.0
  %399 = vmatpush1.msra.mxu0 %v35
  %400 = vmatprep.subr.mxu0 0.0
  %401 = vmatpush1.msra.mxu0 %v36
  %402 = vmatprep.subr.mxu0 0.0
  %403 = vmatpush1.msra.mxu0 %v37
  %404 = vmatprep.subr.mxu0 0.0
  %405 = vmatpush1.msra.mxu0 %v38
  %406 = vmatprep.subr.mxu0 0.0
  %407 = vmatpush1.msra.mxu0 %v39
  %408 = vmatprep.subr.mxu0 0.0
  %409 = vmatpush1.msra.mxu0 %v40
  %410 = vmatprep.subr.mxu0 0.0
  %411 = vmatpush1.msra.mxu0 %v41
  %412 = vmatprep.subr.mxu0 0.0
  %413 = vmatpush1.msra.mxu0 %v42
  %414 = vmatprep.subr.mxu0 0.0
  %415 = vmatpush1.msra.mxu0 %v43
  %416 = vmatprep.subr.mxu0 0.0
  %417 = vmatpush1.msra.mxu0 %v44
  %418 = vmatprep.subr.mxu0 0.0
  %419 = vmatpush1.msra.mxu0 %v45
  %420 = vmatprep.subr.mxu0 0.0
  %421 = vmatpush1.msra.mxu0 %v46
  %422 = vmatprep.subr.mxu0 0.0
  %423 = vmatpush1.msra.mxu0 %v47
  %424 = vmatprep.subr.mxu0 0.0
  %425 = vmatpush1.msra.mxu0 %v48
  %426 = vmatprep.subr.mxu0 0.0
  %427 = vmatpush1.msra.mxu0 %v49
  %428 = vmatprep.subr.mxu0 0.0
  %429 = vmatpush1.msra.mxu0 %v50
  %430 = vmatprep.subr.mxu0 0.0
  %431 = vmatpush1.msra.mxu0 %v51
  %432 = vmatprep.subr.mxu0 0.0
  %433 = vmatpush1.msra.mxu0 %v52
  %434 = vmatprep.subr.mxu0 0.0
  %435 = vmatpush1.msra.mxu0 %v53
  %436 = vmatprep.subr.mxu0 0.0
  %437 = vmatpush1.msra.mxu0 %v54
  %438 = vmatprep.mubr.f32.mxu0 %v305
  %439 = vmatmul.mubr.f32.gmra.mrb[0].mxu0 %v297
  %v440 = vpop.f32.mrb[0].mxu0
  %v441 = vadd.f32 %v284, %v440
  %v442 = vpop.f32.mrb[0].mxu0
  %443 = vdwg.mxu0
  %444 = vmatprep.subr.mxu0 0.0
  %445 = vmatpush1.msra.mxu0 %v55
  %446 = vmatprep.subr.mxu0 0.0
  %447 = vmatpush1.msra.mxu0 %v56
  %448 = vmatprep.subr.mxu0 0.0
  %449 = vmatpush1.msra.mxu0 %v57
  %450 = vmatprep.subr.mxu0 0.0
  %451 = vmatpush1.msra.mxu0 %v58
  %452 = vmatprep.subr.mxu0 0.0
  %453 = vmatpush1.msra.mxu0 %v59
  %454 = vmatprep.subr.mxu0 0.0
  %455 = vmatpush1.msra.mxu0 %v60
  %456 = vmatprep.subr.mxu0 0.0
  %457 = vmatpush1.msra.mxu0 %v61
  %458 = vmatprep.subr.mxu0 0.0
  %459 = vmatpush1.msra.mxu0 %v62
  %460 = vmatprep.subr.mxu0 0.0
  %461 = vmatpush1.msra.mxu0 %v63
  %462 = vmatprep.subr.mxu0 0.0
  %463 = vmatpush1.msra.mxu0 %v64
  %464 = vmatprep.subr.mxu0 0.0
  %465 = vmatpush1.msra.mxu0 %v65
  %466 = vmatprep.subr.mxu0 0.0
  %467 = vmatpush1.msra.mxu0 %v66
  %468 = vmatprep.subr.mxu0 0.0
  %469 = vmatpush1.msra.mxu0 %v67
  %470 = vmatprep.subr.mxu0 0.0
  %471 = vmatpush1.msra.mxu0 %v68
  %472 = vmatprep.subr.mxu0 0.0
  %473 = vmatpush1.msra.mxu0 %v69
  %474 = vmatprep.subr.mxu0 0.0
  %475 = vmatpush1.msra.mxu0 %v70
  %476 = vmatprep.subr.mxu0 0.0
  %477 = vmatpush1.msra.mxu0 %v71
  %478 = vmatprep.subr.mxu0 0.0
  %479 = vmatpush1.msra.mxu0 %v72
  %480 = vmatprep.subr.mxu0 0.0
  %481 = vmatpush1.msra.mxu0 %v73
  %482 = vmatprep.subr.mxu0 0.0
  %483 = vmatpush1.msra.mxu0 %v74
  %484 = vmatprep.subr.mxu0 0.0
  %485 = vmatpush1.msra.mxu0 %v75
  %486 = vmatprep.subr.mxu0 0.0
  %487 = vmatpush1.msra.mxu0 %v76
  %488 = vmatprep.subr.mxu0 0.0
  %489 = vmatpush1.msra.mxu0 %v77
  %490 = vmatprep.subr.mxu0 0.0
  %491 = vmatpush1.msra.mxu0 %v78
  %492 = vmatprep.subr.mxu0 0.0
  %493 = vmatpush1.msra.mxu0 %v79
  %494 = vmatprep.subr.mxu0 0.0
  %495 = vmatpush1.msra.mxu0 %v80
  %496 = vmatprep.subr.mxu0 0.0
  %497 = vmatpush1.msra.mxu0 %v81
  %498 = vmatprep.subr.mxu0 0.0
  %499 = vmatpush1.msra.mxu0 %v82
  %500 = vmatprep.subr.mxu0 0.0
  %501 = vmatpush1.msra.mxu0 %v83
  %502 = vmatprep.subr.mxu0 0.0
  %503 = vmatpush1.msra.mxu0 %v84
  %504 = vmatprep.subr.mxu0 0.0
  %505 = vmatpush1.msra.mxu0 %v85
  %506 = vmatprep.subr.mxu0 0.0
  %507 = vmatpush1.msra.mxu0 %v86
  %508 = vmatprep.mubr.f32.mxu0 %v306
  %509 = vmatmul.mubr.f32.gmra.mrb[0].mxu0 %v304
  %v510 = vpop.f32.mrb[0].mxu0
  %v511 = vadd.f32 %v441, %v510
  %v512 = vpop.f32.mrb[0].mxu0
  %513 = vdwg.mxu0
  %514 = vmatprep.subr.mxu0 0.0
  %515 = vmatpush1.msra.mxu0 %v87
  %516 = vmatprep.subr.mxu0 0.0
  %517 = vmatpush1.msra.mxu0 %v88
  %518 = vmatprep.subr.mxu0 0.0
  %519 = vmatpush1.msra.mxu0 %v89
  %520 = vmatprep.subr.mxu0 0.0
  %521 = vmatpush1.msra.mxu0 %v90
  %522 = vmatprep.subr.mxu0 0.0
  %523 = vmatpush1.msra.mxu0 %v91
  %524 = vmatprep.subr.mxu0 0.0
  %525 = vmatpush1.msra.mxu0 %v92
  %526 = vmatprep.subr.mxu0 0.0
  %527 = vmatpush1.msra.mxu0 %v93
  %528 = vmatprep.subr.mxu0 0.0
  %529 = vmatpush1.msra.mxu0 %v94
  %530 = vmatprep.subr.mxu0 0.0
  %531 = vmatpush1.msra.mxu0 %v95
  %532 = vmatprep.subr.mxu0 0.0
  %533 = vmatpush1.msra.mxu0 %v96
  %534 = vmatprep.subr.mxu0 0.0
  %535 = vmatpush1.msra.mxu0 %v97
  %536 = vmatprep.subr.mxu0 0.0
  %537 = vmatpush1.msra.mxu0 %v98
  %538 = vmatprep.subr.mxu0 0.0
  %539 = vmatpush1.msra.mxu0 %v99
  %540 = vmatprep.subr.mxu0 0.0
  %541 = vmatpush1.msra.mxu0 %v100
  %542 = vmatprep.subr.mxu0 0.0
  %543 = vmatpush1.msra.mxu0 %v101
  %544 = vmatprep.subr.mxu0 0.0
  %545 = vmatpush1.msra.mxu0 %v102
  %546 = vmatprep.subr.mxu0 0.0
  %547 = vmatpush1.msra.mxu0 %v103
  %548 = vmatprep.subr.mxu0 0.0
  %549 = vmatpush1.msra.mxu0 %v104
  %550 = vmatprep.subr.mxu0 0.0
  %551 = vmatpush1.msra.mxu0 %v105
  %552 = vmatprep.subr.mxu0 0.0
  %553 = vmatpush1.msra.mxu0 %v106
  %554 = vmatprep.subr.mxu0 0.0
  %555 = vmatpush1.msra.mxu0 %v107
  %556 = vmatprep.subr.mxu0 0.0
  %557 = vmatpush1.msra.mxu0 %v108
  %558 = vmatprep.subr.mxu0 0.0
  %559 = vmatpush1.msra.mxu0 %v109
  %560 = vmatprep.subr.mxu0 0.0
  %561 = vmatpush1.msra.mxu0 %v110
  %562 = vmatprep.subr.mxu0 0.0
  %563 = vmatpush1.msra.mxu0 %v111
  %564 = vmatprep.subr.mxu0 0.0
  %565 = vmatpush1.msra.mxu0 %v112
  %566 = vmatprep.subr.mxu0 0.0
  %567 = vmatpush1.msra.mxu0 %v113
  %568 = vmatprep.subr.mxu0 0.0
  %569 = vmatpush1.msra.mxu0 %v114
  %570 = vmatprep.subr.mxu0 0.0
  %571 = vmatpush1.msra.mxu0 %v115
  %572 = vmatprep.subr.mxu0 0.0
  %573 = vmatpush1.msra.mxu0 %v116
  %574 = vmatprep.subr.mxu0 0.0
  %575 = vmatpush1.msra.mxu0 %v117
  %576 = vmatprep.subr.mxu0 0.0
  %577 = vmatpush1.msra.mxu0 %v118
  %578 = vmatprep.mubr.f32.mxu0 %v322
  %579 = vmatmul.mubr.f32.gmra.mrb[0].mxu0 %v314
  %v580 = vpop.f32.mrb[0].mxu0
  %v581 = vadd.f32 %v511, %v580
  %v582 = vpop.f32.mrb[0].mxu0
  %583 = vdwg.mxu0
  %584 = vmatprep.subr.mxu0 0.0
  %585 = vmatpush1.msra.mxu0 %v119
  %586 = vmatprep.subr.mxu0 0.0
  %587 = vmatpush1.msra.mxu0 %v120
  %588 = vmatprep.subr.mxu0 0.0
  %589 = vmatpush1.msra.mxu0 %v121
  %590 = vmatprep.subr.mxu0 0.0
  %591 = vmatpush1.msra.mxu0 %v122
  %592 = vmatprep.subr.mxu0 0.0
  %593 = vmatpush1.msra.mxu0 %v123
  %594 = vmatprep.subr.mxu0 0.0
  %595 = vmatpush1.msra.mxu0 %v124
  %596 = vmatprep.subr.mxu0 0.0
  %597 = vmatpush1.msra.mxu0 %v125
  %598 = vmatprep.subr.mxu0 0.0
  %599 = vmatpush1.msra.mxu0 %v126
  %600 = vmatprep.subr.mxu0 0.0
  %601 = vmatpush1.msra.mxu0 %v127
  %602 = vmatprep.subr.mxu0 0.0
  %603 = vmatpush1.msra.mxu0 %v128
  %604 = vmatprep.subr.mxu0 0.0
  %605 = vmatpush1.msra.mxu0 %v129
  %606 = vmatprep.subr.mxu0 0.0
  %607 = vmatpush1.msra.mxu0 %v130
  %608 = vmatprep.subr.mxu0 0.0
  %609 = vmatpush1.msra.mxu0 %v131
  %610 = vmatprep.subr.mxu0 0.0
  %611 = vmatpush1.msra.mxu0 %v132
  %612 = vmatprep.subr.mxu0 0.0
  %613 = vmatpush1.msra.mxu0 %v133
  %614 = vmatprep.subr.mxu0 0.0
  %615 = vmatpush1.msra.mxu0 %v134
  %616 = vmatprep.subr.mxu0 0.0
  %617 = vmatpush1.msra.mxu0 %v135
  %618 = vmatprep.subr.mxu0 0.0
  %619 = vmatpush1.msra.mxu0 %v136
  %620 = vmatprep.subr.mxu0 0.0
  %621 = vmatpush1.msra.mxu0 %v137
  %622 = vmatprep.subr.mxu0 0.0
  %623 = vmatpush1.msra.mxu0 %v138
  %624 = vmatprep.subr.mxu0 0.0
  %625 = vmatpush1.msra.mxu0 %v139
  %626 = vmatprep.subr.mxu0 0.0
  %627 = vmatpush1.msra.mxu0 %v140
  %628 = vmatprep.subr.mxu0 0.0
  %629 = vmatpush1.msra.mxu0 %v141
  %630 = vmatprep.subr.mxu0 0.0
  %631 = vmatpush1.msra.mxu0 %v142
  %632 = vmatprep.subr.mxu0 0.0
  %633 = vmatpush1.msra.mxu0 %v143
  %634 = vmatprep.subr.mxu0 0.0
  %635 = vmatpush1.msra.mxu0 %v144
  %636 = vmatprep.subr.mxu0 0.0
  %637 = vmatpush1.msra.mxu0 %v145
  %638 = vmatprep.subr.mxu0 0.0
  %639 = vmatpush1.msra.mxu0 %v146
  %640 = vmatprep.subr.mxu0 0.0
  %641 = vmatpush1.msra.mxu0 %v147
  %642 = vmatprep.subr.mxu0 0.0
  %643 = vmatpush1.msra.mxu0 %v148
  %644 = vmatprep.subr.mxu0 0.0
  %645 = vmatpush1.msra.mxu0 %v149
  %646 = vmatprep.subr.mxu0 0.0
  %647 = vmatpush1.msra.mxu0 %v150
  %648 = vmatprep.mubr.f32.mxu0 %v323
  %649 = vmatmul.mubr.f32.gmra.mrb[0].mxu0 %v321
  %v650 = vpop.f32.mrb[0].mxu0
  %v651 = vadd.f32 %v581, %v650
  %v652 = vpop.f32.mrb[0].mxu0
  %653 = vdwg.mxu0
  %654 = vmatprep.subr.mxu0 0.0
  %655 = vmatpush1.msra.mxu0 %v151
  %656 = vmatprep.subr.mxu0 0.0
  %657 = vmatpush1.msra.mxu0 %v152
  %658 = vmatprep.subr.mxu0 0.0
  %659 = vmatpush1.msra.mxu0 %v153
  %660 = vmatprep.subr.mxu0 0.0
  %661 = vmatpush1.msra.mxu0 %v154
  %662 = vmatprep.subr.mxu0 0.0
  %663 = vmatpush1.msra.mxu0 %v155
  %664 = vmatprep.subr.mxu0 0.0
  %665 = vmatpush1.msra.mxu0 %v156
  %666 = vmatprep.subr.mxu0 0.0
  %667 = vmatpush1.msra.mxu0 %v157
  %668 = vmatprep.subr.mxu0 0.0
  %669 = vmatpush1.msra.mxu0 %v158
  %670 = vmatprep.subr.mxu0 0.0
  %671 = vmatpush1.msra.mxu0 %v159
  %672 = vmatprep.subr.mxu0 0.0
  %673 = vmatpush1.msra.mxu0 %v160
  %674 = vmatprep.subr.mxu0 0.0
  %675 = vmatpush1.msra.mxu0 %v161
  %676 = vmatprep.subr.mxu0 0.0
  %677 = vmatpush1.msra.mxu0 %v162
  %678 = vmatprep.subr.mxu0 0.0
  %679 = vmatpush1.msra.mxu0 %v163
  %680 = vmatprep.subr.mxu0 0.0
  %681 = vmatpush1.msra.mxu0 %v164
  %682 = vmatprep.subr.mxu0 0.0
  %683 = vmatpush1.msra.mxu0 %v165
  %684 = vmatprep.subr.mxu0 0.0
  %685 = vmatpush1.msra.mxu0 %v166
  %686 = vmatprep.subr.mxu0 0.0
  %687 = vmatpush1.msra.mxu0 %v167
  %688 = vmatprep.subr.mxu0 0.0
  %689 = vmatpush1.msra.mxu0 %v168
  %690 = vmatprep.subr.mxu0 0.0
  %691 = vmatpush1.msra.mxu0 %v169
  %692 = vmatprep.subr.mxu0 0.0
  %693 = vmatpush1.msra.mxu0 %v170
  %694 = vmatprep.subr.mxu0 0.0
  %695 = vmatpush1.msra.mxu0 %v171
  %696 = vmatprep.subr.mxu0 0.0
  %697 = vmatpush1.msra.mxu0 %v172
  %698 = vmatprep.subr.mxu0 0.0
  %699 = vmatpush1.msra.mxu0 %v173
  %700 = vmatprep.subr.mxu0 0.0
  %701 = vmatpush1.msra.mxu0 %v174
  %702 = vmatprep.subr.mxu0 0.0
  %703 = vmatpush1.msra.mxu0 %v175
  %704 = vmatprep.subr.mxu0 0.0
  %705 = vmatpush1.msra.mxu0 %v176
  %706 = vmatprep.subr.mxu0 0.0
  %707 = vmatpush1.msra.mxu0 %v177
  %708 = vmatprep.subr.mxu0 0.0
  %709 = vmatpush1.msra.mxu0 %v178
  %710 = vmatprep.subr.mxu0 0.0
  %711 = vmatpush1.msra.mxu0 %v179
  %712 = vmatprep.subr.mxu0 0.0
  %713 = vmatpush1.msra.mxu0 %v180
  %714 = vmatprep.subr.mxu0 0.0
  %715 = vmatpush1.msra.mxu0 %v181
  %716 = vmatprep.subr.mxu0 0.0
  %717 = vmatpush1.msra.mxu0 %v182
  %718 = vmatprep.mubr.f32.mxu0 %v339
  %719 = vmatmul.mubr.f32.gmra.mrb[0].mxu0 %v331
  %v720 = vpop.f32.mrb[0].mxu0
  %v721 = vadd.f32 %v651, %v720
  %v722 = vpop.f32.mrb[0].mxu0
  %723 = vdwg.mxu0
  %724 = vmatprep.subr.mxu0 0.0
  %725 = vmatpush1.msra.mxu0 %v183
  %726 = vmatprep.subr.mxu0 0.0
  %727 = vmatpush1.msra.mxu0 %v184
  %728 = vmatprep.subr.mxu0 0.0
  %729 = vmatpush1.msra.mxu0 %v185
  %730 = vmatprep.subr.mxu0 0.0
  %731 = vmatpush1.msra.mxu0 %v186
  %732 = vmatprep.subr.mxu0 0.0
  %733 = vmatpush1.msra.mxu0 %v187
  %734 = vmatprep.subr.mxu0 0.0
  %735 = vmatpush1.msra.mxu0 %v188
  %736 = vmatprep.subr.mxu0 0.0
  %737 = vmatpush1.msra.mxu0 %v189
  %738 = vmatprep.subr.mxu0 0.0
  %739 = vmatpush1.msra.mxu0 %v190
  %740 = vmatprep.subr.mxu0 0.0
  %741 = vmatpush1.msra.mxu0 %v191
  %742 = vmatprep.subr.mxu0 0.0
  %743 = vmatpush1.msra.mxu0 %v192
  %744 = vmatprep.subr.mxu0 0.0
  %745 = vmatpush1.msra.mxu0 %v193
  %746 = vmatprep.subr.mxu0 0.0
  %747 = vmatpush1.msra.mxu0 %v194
  %748 = vmatprep.subr.mxu0 0.0
  %749 = vmatpush1.msra.mxu0 %v195
  %750 = vmatprep.subr.mxu0 0.0
  %751 = vmatpush1.msra.mxu0 %v196
  %752 = vmatprep.subr.mxu0 0.0
  %753 = vmatpush1.msra.mxu0 %v197
  %754 = vmatprep.subr.mxu0 0.0
  %755 = vmatpush1.msra.mxu0 %v198
  %756 = vmatprep.subr.mxu0 0.0
  %757 = vmatpush1.msra.mxu0 %v199
  %758 = vmatprep.subr.mxu0 0.0
  %759 = vmatpush1.msra.mxu0 %v200
  %760 = vmatprep.subr.mxu0 0.0
  %761 = vmatpush1.msra.mxu0 %v201
  %762 = vmatprep.subr.mxu0 0.0
  %763 = vmatpush1.msra.mxu0 %v202
  %764 = vmatprep.subr.mxu0 0.0
  %765 = vmatpush1.msra.mxu0 %v203
  %766 = vmatprep.subr.mxu0 0.0
  %767 = vmatpush1.msra.mxu0 %v204
  %768 = vmatprep.subr.mxu0 0.0
  %769 = vmatpush1.msra.mxu0 %v205
  %770 = vmatprep.subr.mxu0 0.0
  %771 = vmatpush1.msra.mxu0 %v206
  %772 = vmatprep.subr.mxu0 0.0
  %773 = vmatpush1.msra.mxu0 %v207
  %774 = vmatprep.subr.mxu0 0.0
  %775 = vmatpush1.msra.mxu0 %v208
  %776 = vmatprep.subr.mxu0 0.0
  %777 = vmatpush1.msra.mxu0 %v209
  %778 = vmatprep.subr.mxu0 0.0
  %779 = vmatpush1.msra.mxu0 %v210
  %780 = vmatprep.subr.mxu0 0.0
  %781 = vmatpush1.msra.mxu0 %v211
  %782 = vmatprep.subr.mxu0 0.0
  %783 = vmatpush1.msra.mxu0 %v212
  %784 = vmatprep.subr.mxu0 0.0
  %785 = vmatpush1.msra.mxu0 %v213
  %786 = vmatprep.subr.mxu0 0.0
  %787 = vmatpush1.msra.mxu0 %v214
  %788 = vmatprep.mubr.f32.mxu0 %v340
  %789 = vmatmul.mubr.f32.gmra.mrb[0].mxu0 %v338
  %v790 = vpop.f32.mrb[0].mxu0
  %v791 = vadd.f32 %v721, %v790
  %v792 = vpop.f32.mrb[0].mxu0
  %793 = vdwg.mxu0
  %794 = vmatprep.subr.mxu0 0.0
  %795 = vmatpush1.msra.mxu0 %v215
  %796 = vmatprep.subr.mxu0 0.0
  %797 = vmatpush1.msra.mxu0 %v216
  %798 = vmatprep.subr.mxu0 0.0
  %799 = vmatpush1.msra.mxu0 %v217
  %800 = vmatprep.subr.mxu0 0.0
  %801 = vmatpush1.msra.mxu0 %v218
  %802 = vmatprep.subr.mxu0 0.0
  %803 = vmatpush1.msra.mxu0 %v219
  %804 = vmatprep.subr.mxu0 0.0
  %805 = vmatpush1.msra.mxu0 %v220
  %806 = vmatprep.subr.mxu0 0.0
  %807 = vmatpush1.msra.mxu0 %v221
  %808 = vmatprep.subr.mxu0 0.0
  %809 = vmatpush1.msra.mxu0 %v222
  %810 = vmatprep.subr.mxu0 0.0
  %811 = vmatpush1.msra.mxu0 %v223
  %812 = vmatprep.subr.mxu0 0.0
  %813 = vmatpush1.msra.mxu0 %v224
  %814 = vmatprep.subr.mxu0 0.0
  %815 = vmatpush1.msra.mxu0 %v225
  %816 = vmatprep.subr.mxu0 0.0
  %817 = vmatpush1.msra.mxu0 %v226
  %818 = vmatprep.subr.mxu0 0.0
  %819 = vmatpush1.msra.mxu0 %v227
  %820 = vmatprep.subr.mxu0 0.0
  %821 = vmatpush1.msra.mxu0 %v228
  %822 = vmatprep.subr.mxu0 0.0
  %823 = vmatpush1.msra.mxu0 %v229
  %824 = vmatprep.subr.mxu0 0.0
  %825 = vmatpush1.msra.mxu0 %v230
  %826 = vmatprep.subr.mxu0 0.0
  %827 = vmatpush1.msra.mxu0 %v231
  %828 = vmatprep.subr.mxu0 0.0
  %829 = vmatpush1.msra.mxu0 %v232
  %830 = vmatprep.subr.mxu0 0.0
  %831 = vmatpush1.msra.mxu0 %v233
  %832 = vmatprep.subr.mxu0 0.0
  %833 = vmatpush1.msra.mxu0 %v234
  %834 = vmatprep.subr.mxu0 0.0
  %835 = vmatpush1.msra.mxu0 %v235
  %836 = vmatprep.subr.mxu0 0.0
  %837 = vmatpush1.msra.mxu0 %v236
  %838 = vmatprep.subr.mxu0 0.0
  %839 = vmatpush1.msra.mxu0 %v237
  %840 = vmatprep.subr.mxu0 0.0
  %841 = vmatpush1.msra.mxu0 %v238
  %842 = vmatprep.subr.mxu0 0.0
  %843 = vmatpush1.msra.mxu0 %v239
  %844 = vmatprep.subr.mxu0 0.0
  %845 = vmatpush1.msra.mxu0 %v240
  %846 = vmatprep.subr.mxu0 0.0
  %847 = vmatpush1.msra.mxu0 %v241
  %848 = vmatprep.subr.mxu0 0.0
  %849 = vmatpush1.msra.mxu0 %v242
  %850 = vmatprep.subr.mxu0 0.0
  %851 = vmatpush1.msra.mxu0 %v243
  %852 = vmatprep.subr.mxu0 0.0
  %853 = vmatpush1.msra.mxu0 %v244
  %854 = vmatprep.subr.mxu0 0.0
  %855 = vmatpush1.msra.mxu0 %v245
  %856 = vmatprep.subr.mxu0 0.0
  %857 = vmatpush1.msra.mxu0 %v246
  %858 = vmatprep.mubr.f32.mxu0 %v356
  %859 = vmatmul.mubr.f32.gmra.mrb[0].mxu0 %v348
  %v860 = vpop.f32.mrb[0].mxu0
  %v861 = vadd.f32 %v791, %v860
  %v862 = vpop.f32.mrb[0].mxu0
  %863 = vdwg.mxu0
  %864 = vmatprep.subr.mxu0 0.0
  %865 = vmatpush1.msra.mxu0 %v247
  %866 = vmatprep.subr.mxu0 0.0
  %867 = vmatpush1.msra.mxu0 %v248
  %868 = vmatprep.subr.mxu0 0.0
  %869 = vmatpush1.msra.mxu0 %v249
  %870 = vmatprep.subr.mxu0 0.0
  %871 = vmatpush1.msra.mxu0 %v250
  %872 = vmatprep.subr.mxu0 0.0
  %873 = vmatpush1.msra.mxu0 %v251
  %874 = vmatprep.subr.mxu0 0.0
  %875 = vmatpush1.msra.mxu0 %v252
  %876 = vmatprep.subr.mxu0 0.0
  %877 = vmatpush1.msra.mxu0 %v253
  %878 = vmatprep.subr.mxu0 0.0
  %879 = vmatpush1.msra.mxu0 %v254
  %880 = vmatprep.subr.mxu0 0.0
  %881 = vmatpush1.msra.mxu0 %v255
  %882 = vmatprep.subr.mxu0 0.0
  %883 = vmatpush1.msra.mxu0 %v256
  %884 = vmatprep.subr.mxu0 0.0
  %885 = vmatpush1.msra.mxu0 %v257
  %886 = vmatprep.subr.mxu0 0.0
  %887 = vmatpush1.msra.mxu0 %v258
  %888 = vmatprep.subr.mxu0 0.0
  %889 = vmatpush1.msra.mxu0 %v259
  %890 = vmatprep.subr.mxu0 0.0
  %891 = vmatpush1.msra.mxu0 %v260
  %892 = vmatprep.subr.mxu0 0.0
  %893 = vmatpush1.msra.mxu0 %v261
  %894 = vmatprep.subr.mxu0 0.0
  %895 = vmatpush1.msra.mxu0 %v262
  %896 = vmatprep.subr.mxu0 0.0
  %897 = vmatpush1.msra.mxu0 %v263
  %898 = vmatprep.subr.mxu0 0.0
  %899 = vmatpush1.msra.mxu0 %v264
  %900 = vmatprep.subr.mxu0 0.0
  %901 = vmatpush1.msra.mxu0 %v265
  %902 = vmatprep.subr.mxu0 0.0
  %903 = vmatpush1.msra.mxu0 %v266
  %904 = vmatprep.subr.mxu0 0.0
  %905 = vmatpush1.msra.mxu0 %v267
  %906 = vmatprep.subr.mxu0 0.0
  %907 = vmatpush1.msra.mxu0 %v268
  %908 = vmatprep.subr.mxu0 0.0
  %909 = vmatpush1.msra.mxu0 %v269
  %910 = vmatprep.subr.mxu0 0.0
  %911 = vmatpush1.msra.mxu0 %v270
  %912 = vmatprep.subr.mxu0 0.0
  %913 = vmatpush1.msra.mxu0 %v271
  %914 = vmatprep.subr.mxu0 0.0
  %915 = vmatpush1.msra.mxu0 %v272
  %916 = vmatprep.subr.mxu0 0.0
  %917 = vmatpush1.msra.mxu0 %v273
  %918 = vmatprep.subr.mxu0 0.0
  %919 = vmatpush1.msra.mxu0 %v274
  %920 = vmatprep.subr.mxu0 0.0
  %921 = vmatpush1.msra.mxu0 %v275
  %922 = vmatprep.subr.mxu0 0.0
  %923 = vmatpush1.msra.mxu0 %v276
  %924 = vmatprep.subr.mxu0 0.0
  %925 = vmatpush1.msra.mxu0 %v277
  %926 = vmatprep.subr.mxu0 0.0
  %927 = vmatpush1.msra.mxu0 %v278
  %928 = vmatprep.mubr.f32.mxu0 %v357
  %929 = vmatmul.mubr.f32.gmra.mrb[0].mxu0 %v355
  %v930 = vpop.f32.mrb[0].mxu0
  %v931 = vadd.f32 %v861, %v930
  %v932 = vpop.f32.mrb[0].mxu0
  %933 = vdwg.mxu0
  %vm934 = vcmask 517120
  %935 = vst.msk [vmem:[%s4] sm:$0x3] %vm934, %v931
  %v936 = vmul.f32 %v931, 0.5
  %v937 = vmul.f32 %v936, 1.442695
  %v938 = vpow.pop %v937
  %v939 = vld [vmem:[%s3] sm:$0x3]
  %941 = vrot.lane.b32.xlu0 %v939, 32
  %v942 = vpop.permute.xlu0 %941
  %v944 = vmul.f32 %v938, %v942
  %946 = vrot.lane.b32.xlu0 %v944, 96
  %v947 = vpop.permute.xlu0 %946
  %v949 = vadd.f32 %v931, %v947
  %vm950 = vcmask 254976
  %951 = vst.msk [vmem:[%s5] sm:$0x3] %vm950, %v949
  // Predicated region
  $region18: #{mgvae_forward.12} parent=0 // pred_check
    _
  $region19: #{mgvae_forward.12} parent=0 // pred_check_branch
    %953 = sbr.rel (0) target = $region21
  $region20: #{mgvae_forward.12} parent=0 // pred_region
    _
  $region21: #{mgvae_forward.12} parent=0 // pred_fallthru
    _
  // Predicated region
  $region22: #{mgvae_forward.12} parent=0 // pred_check
    _
  $region23: #{mgvae_forward.12} parent=0 // pred_check_branch
    %955 = sbr.rel (0) target = $region25
  $region24: #{mgvae_forward.12} parent=0 // pred_region
    _
  $region25: #{mgvae_forward.12} parent=0 // pred_fallthru
    _
  // Predicated region
  $region26: #{mgvae_forward.12} parent=0 // pred_check
    _
  $region27: #{mgvae_forward.12} parent=0 // pred_check_branch
    %957 = sbr.rel (0) target = $region29
  $region28: #{mgvae_forward.12} parent=0 // pred_region
    _
  $region29: #{mgvae_forward.12} parent=0 // pred_fallthru
    _
  // Predicated region
  $region30: #{mgvae_forward.12} parent=0 // pred_check
    _
  $region31: #{mgvae_forward.12} parent=0 // pred_check_branch
    %959 = sbr.rel (0) target = $region33
  $region32: #{mgvae_forward.12} parent=0 // pred_region
    _
  $region33: #{mgvae_forward.12} parent=0 // pred_fallthru
    _

// kernel: mgvae_forward.13
$region0: #{mgvae_forward.13}
  #allocation0 [shape = 'u32[]', space=smem, size = 0x4, offset = 0x4, fixed_abs, tag = 'smem constant byte address 0x4 - core index']
  #allocation1 [shape = 'u32[144,128]{1,0:T(1,128)}', space=vmem, size = 0x12000, scoped, tag = 'internal scratch']
  %s0 = inlined_call_operand.vmem [shape: f32[2,32], index: 0, kind: input, shape index: {}]
  %s1 = inlined_call_operand.vmem [shape: f32[32,2048], index: 1, kind: input, shape index: {}]
  %s2 = inlined_call_operand.vmem [shape: f32[1,2048], index: 2, kind: input, shape index: {}]
  %s3 = inlined_call_operand.vmem [shape: f32[1,2048], index: 3, kind: input, shape index: {}]
  %s4 = inlined_call_operand.vmem [shape: f32[2,2048], index: 4, kind: output, shape index: {}]
  %s5 = sld [smem:[#allocation0]]
  $region72: #{mgvae_forward.13} parent=0
    _
  %s7 = ssub.s32 1, %s5
  %s8 = scalar_select 0, %s7, %s5
  $region1: #{mgvae_forward.13} parent=0
    #allocation2 [shape = 'u8[131072]{0}', space=vmem, size = 0x20000, scoped, tag = 'input window, operand 1']
    loop: start=0, step=1, limit=6
    $region2: #{mgvae_forward.13} parent=1 // loop_pre_header
      _
    $region3: #{mgvae_forward.13} parent=1 // loop_header
      %s10 = sphi 0, %s14
      %p11 = scmp.ge.s32.totalorder %s10, 6
      %s18 = sphi 0, %s18
      %s20 = sphi 0, %s18
      %s21 = sphi 0, %s20
      %s35 = sphi 0, %s21
      %s41 = sphi 0, %s43
      %s44 = sphi 0, %s41
      %s45 = sphi 0, %s44
      %s61 = sphi 0, %s45
      %s67 = sphi 0, %s69
      %s70 = sphi 0, %s67
      %s71 = sphi 0, %s70
      %s87 = sphi 0, %s71
      %s93 = sphi 0, %s95
      %s96 = sphi 0, %s93
      %s97 = sphi 0, %s96
      %s113 = sphi 0, %s97
      %s119 = sphi 0, %s121
      %s122 = sphi 0, %s119
      %s123 = sphi 0, %s122
      %s139 = sphi 0, %s123
    $region4: #{mgvae_forward.13} parent=1 // loop_header_branch
      %13 = sbr.rel (%p11) target = $region8
    $region5: #{mgvae_forward.13} parent=1 // loop_body
      %s15 = ssub.s32 %s10, 1
      %s16 = ssub.s32 %s10, 2
      %s17 = sadd.s32 %s10, 1
      %s19 = sadd.s32 %s18, 1
      %p22 = scmp.eq.s32.totalorder %s10, 3
      %p23 = scmp.ne.s32.totalorder %s18, %s20
      %p24 = scmp.eq.s32.totalorder %s10, 0
      %p25 = por %p23, %p24
      %p26 = scmp.ne.s32.totalorder %s18, %s20
      %p27 = scmp.eq.s32.totalorder %s15, 3
      %p28 = por %p26, %p27
      %p29 = scmp.ne.s32.totalorder %s20, %s21
      %p30 = scmp.eq.s32.totalorder %s15, 0
      %p31 = por %p29, %p30
      %p32 = scmp.ne.s32.totalorder %s20, %s21
      %p33 = scmp.eq.s32.totalorder %s16, 3
      %p34 = por %p32, %p33
      %p36 = scmp.ne.s32.totalorder %s21, %s35
      %p37 = scmp.eq.s32.totalorder %s16, 0
      %p38 = por %p36, %p37
      %s39 = ssub.s32 %s10, %s17
      %p40 = scmp.eq.s32.totalorder %s39, 0
      %s42 = sadd.s32 %s41, 1
      %s43 = scalar_select %p40, %s41, %s42
      %p46 = pneg %p40
      %p47 = scmp.eq.s32.totalorder %s10, 3
      %p48 = por %p46, %p47
      %p49 = scmp.ne.s32.totalorder %s41, %s44
      %p50 = scmp.eq.s32.totalorder %s10, 0
      %p51 = por %p49, %p50
      %p52 = scmp.ne.s32.totalorder %s41, %s44
      %p53 = scmp.eq.s32.totalorder %s15, 3
      %p54 = por %p52, %p53
      %p55 = scmp.ne.s32.totalorder %s44, %s45
      %p56 = scmp.eq.s32.totalorder %s15, 0
      %p57 = por %p55, %p56
      %p58 = scmp.ne.s32.totalorder %s44, %s45
      %p59 = scmp.eq.s32.totalorder %s16, 3
      %p60 = por %p58, %p59
      %p62 = scmp.ne.s32.totalorder %s45, %s61
      %p63 = scmp.eq.s32.totalorder %s16, 0
      %p64 = por %p62, %p63
      %s65 = ssub.s32 %s10, %s17
      %p66 = scmp.eq.s32.totalorder %s65, 0
      %s68 = sadd.s32 %s67, 1
      %s69 = scalar_select %p66, %s67, %s68
      %p72 = pneg %p66
      %p73 = scmp.eq.s32.totalorder %s10, 3
      %p74 = por %p72, %p73
      %p75 = scmp.ne.s32.totalorder %s67, %s70
      %p76 = scmp.eq.s32.totalorder %s10, 0
      %p77 = por %p75, %p76
      %p78 = scmp.ne.s32.totalorder %s67, %s70
      %p79 = scmp.eq.s32.totalorder %s15, 3
      %p80 = por %p78, %p79
      %p81 = scmp.ne.s32.totalorder %s70, %s71
      %p82 = scmp.eq.s32.totalorder %s15, 0
      %p83 = por %p81, %p82
      %p84 = scmp.ne.s32.totalorder %s70, %s71
      %p85 = scmp.eq.s32.totalorder %s16, 3
      %p86 = por %p84, %p85
      %p88 = scmp.ne.s32.totalorder %s71, %s87
      %p89 = scmp.eq.s32.totalorder %s16, 0
      %p90 = por %p88, %p89
      %s91 = ssub.s32 %s10, %s17
      %p92 = scmp.eq.s32.totalorder %s91, 0
      %s94 = sadd.s32 %s93, 1
      %s95 = scalar_select %p92, %s93, %s94
      %p98 = pneg %p92
      %p99 = scmp.eq.s32.totalorder %s10, 3
      %p100 = por %p98, %p99
      %p101 = scmp.ne.s32.totalorder %s93, %s96
      %p102 = scmp.eq.s32.totalorder %s10, 0
      %p103 = por %p101, %p102
      %p104 = scmp.ne.s32.totalorder %s93, %s96
      %p105 = scmp.eq.s32.totalorder %s15, 3
      %p106 = por %p104, %p105
      %p107 = scmp.ne.s32.totalorder %s96, %s97
      %p108 = scmp.eq.s32.totalorder %s15, 0
      %p109 = por %p107, %p108
      %p110 = scmp.ne.s32.totalorder %s96, %s97
      %p111 = scmp.eq.s32.totalorder %s16, 3
      %p112 = por %p110, %p111
      %p114 = scmp.ne.s32.totalorder %s97, %s113
      %p115 = scmp.eq.s32.totalorder %s16, 0
      %p116 = por %p114, %p115
      %s117 = ssub.s32 %s10, %s17
      %p118 = scmp.eq.s32.totalorder %s117, 0
      %s120 = sadd.s32 %s119, 1
      %s121 = scalar_select %p118, %s119, %s120
      %p124 = pneg %p118
      %p125 = scmp.eq.s32.totalorder %s10, 3
      %p126 = por %p124, %p125
      %p127 = scmp.ne.s32.totalorder %s119, %s122
      %p128 = scmp.eq.s32.totalorder %s10, 0
      %p129 = por %p127, %p128
      %p130 = scmp.ne.s32.totalorder %s119, %s122
      %p131 = scmp.eq.s32.totalorder %s15, 3
      %p132 = por %p130, %p131
      %p133 = scmp.ne.s32.totalorder %s122, %s123
      %p134 = scmp.eq.s32.totalorder %s15, 0
      %p135 = por %p133, %p134
      %p136 = scmp.ne.s32.totalorder %s122, %s123
      %p137 = scmp.eq.s32.totalorder %s16, 3
      %p138 = por %p136, %p137
      %p140 = scmp.ne.s32.totalorder %s123, %s139
      %p141 = scmp.eq.s32.totalorder %s16, 0
      %p142 = por %p140, %p141
      %p143 = scmp.le.s32.totalorder 1, %s10
      %p144 = scmp.lt.s32.totalorder %s10, 5
      %p145 = pnand %p143, %p144
      %p146 = pneg %p145
      // Predicated region
      $region9: #{mgvae_forward.13} parent=5 // pred_check
        _
      $region10: #{mgvae_forward.13} parent=5 // pred_check_branch
        %148 = sbr.rel (%p145) target = $region12
      $region11: #{mgvae_forward.13} parent=5 // pred_region
        %s149 = ssub.s32 %s10, 1
        // Predicated region
        $region13: #{mgvae_forward.13} parent=11 // pred_check
          %p150 = pneg %p31
        $region14: #{mgvae_forward.13} parent=11 // pred_check_branch
          %152 = sbr.rel (%p150) target = $region16
        $region15: #{mgvae_forward.13} parent=11 // pred_region
          _
        $region16: #{mgvae_forward.13} parent=11 // pred_fallthru
          _
      $region12: #{mgvae_forward.13} parent=5 // pred_fallthru
        _
      %p153 = scmp.lt.s32.totalorder %s10, 4
      // Predicated region
      $region17: #{mgvae_forward.13} parent=5 // pred_check
        %p154 = pneg %p153
      $region18: #{mgvae_forward.13} parent=5 // pred_check_branch
        %156 = sbr.rel (%p154) target = $region20
      $region19: #{mgvae_forward.13} parent=5 // pred_region
        // Predicated region
        $region21: #{mgvae_forward.13} parent=19 // pred_check
          %p157 = pneg %p51
        $region22: #{mgvae_forward.13} parent=19 // pred_check_branch
          %159 = sbr.rel (%p157) target = $region24
        $region23: #{mgvae_forward.13} parent=19 // pred_region
          %s160 = sand.u32 %s41, 1
          %s161 = sand.u32 %s41, 1
          %s162 = smul.addr %s161, 128
          %s163 = scalar_lea.vmem [#allocation2], %s162
          %s164 = smul.u32 4, %s10
          %s165 = smul.addr %s164, 8
          %s166 = scalar_lea.vmem %s1, %s165
          // Predicated region
          $region25: #{mgvae_forward.13} parent=23 // pred_check
            _
          $region26: #{mgvae_forward.13} parent=23 // pred_check_branch
            %168 = sbr.rel (0) target = $region28
          $region27: #{mgvae_forward.13} parent=23 // pred_region
            // Predicated region
            $region29: #{mgvae_forward.13} parent=27 // pred_check
              _
            $region30: #{mgvae_forward.13} parent=27 // pred_check_branch
              %170 = sbr.rel (0) target = $region32
            $region31: #{mgvae_forward.13} parent=27 // pred_region
              loop: start=0, step=1, limit=1
              $region33: #{mgvae_forward.13} parent=31 // loop_pre_header
                _
              $region34: #{mgvae_forward.13} parent=31 // loop_header
                %s172 = sphi 0, %s176
                %p173 = scmp.ge.s32.totalorder %s172, 1
                %s177 = sphi %s166, %s166
                %s178 = sphi %s163, %s163
              $region35: #{mgvae_forward.13} parent=31 // loop_header_branch
                %175 = sbr.rel (%p173) target = $region39
              $region36: #{mgvae_forward.13} parent=31 // loop_body
                %v179 = vld [vmem:[%s177] sm:$0xff]
                %180 = vst [vmem:[%s178] sm:$0xff] %v179
                %v181 = vld [vmem:[%s177 + $0x8] sm:$0xff]
                %182 = vst [vmem:[%s178 + $0x8] sm:$0xff] %v181
                %v183 = vld [vmem:[%s177 + $0x10] sm:$0xff]
                %184 = vst [vmem:[%s178 + $0x10] sm:$0xff] %v183
                %v185 = vld [vmem:[%s177 + $0x18] sm:$0xff]
                %186 = vst [vmem:[%s178 + $0x18] sm:$0xff] %v185
                %v187 = vld [vmem:[%s177 + $0x80] sm:$0xff]
                %188 = vst [vmem:[%s178 + $0x20] sm:$0xff] %v187
                %v189 = vld [vmem:[%s177 + $0x88] sm:$0xff]
                %190 = vst [vmem:[%s178 + $0x28] sm:$0xff] %v189
                %v191 = vld [vmem:[%s177 + $0x90] sm:$0xff]
                %192 = vst [vmem:[%s178 + $0x30] sm:$0xff] %v191
                %v193 = vld [vmem:[%s177 + $0x98] sm:$0xff]
                %194 = vst [vmem:[%s178 + $0x38] sm:$0xff] %v193
                %v195 = vld [vmem:[%s177 + $0x100] sm:$0xff]
                %196 = vst [vmem:[%s178 + $0x40] sm:$0xff] %v195
                %v197 = vld [vmem:[%s177 + $0x108] sm:$0xff]
                %198 = vst [vmem:[%s178 + $0x48] sm:$0xff] %v197
                %v199 = vld [vmem:[%s177 + $0x110] sm:$0xff]
                %200 = vst [vmem:[%s178 + $0x50] sm:$0xff] %v199
                %v201 = vld [vmem:[%s177 + $0x118] sm:$0xff]
                %202 = vst [vmem:[%s178 + $0x58] sm:$0xff] %v201
                %v203 = vld [vmem:[%s177 + $0x180] sm:$0xff]
                %204 = vst [vmem:[%s178 + $0x60] sm:$0xff] %v203
                %v205 = vld [vmem:[%s177 + $0x188] sm:$0xff]
                %206 = vst [vmem:[%s178 + $0x68] sm:$0xff] %v205
                %v207 = vld [vmem:[%s177 + $0x190] sm:$0xff]
                %208 = vst [vmem:[%s178 + $0x70] sm:$0xff] %v207
                %v209 = vld [vmem:[%s177 + $0x198] sm:$0xff]
                %210 = vst [vmem:[%s178 + $0x78] sm:$0xff] %v209
              $region37: #{mgvae_forward.13} parent=31 // loop_footer
                %s176 = sadd.s32 1, %s172
              $region38: #{mgvae_forward.13} parent=31 // loop_footer_branch
                %171 = sbr.rel target = $region34
              $region39: #{mgvae_forward.13} parent=31 // loop_exit
                _
            $region32: #{mgvae_forward.13} parent=27 // pred_fallthru
              _
            // Predicated region
            $region40: #{mgvae_forward.13} parent=27 // pred_check
              _
            $region41: #{mgvae_forward.13} parent=27 // pred_check_branch
              %212 = sbr.rel target = $region43
            $region42: #{mgvae_forward.13} parent=27 // pred_region
              _
            $region43: #{mgvae_forward.13} parent=27 // pred_fallthru
              _
          $region28: #{mgvae_forward.13} parent=23 // pred_fallthru
            _
          %213 = vnop
        $region24: #{mgvae_forward.13} parent=19 // pred_fallthru
          _
        // Predicated region
        $region44: #{mgvae_forward.13} parent=19 // pred_check
          %p214 = pneg %p77
        $region45: #{mgvae_forward.13} parent=19 // pred_check_branch
          %216 = sbr.rel (%p214) target = $region47
        $region46: #{mgvae_forward.13} parent=19 // pred_region
          %s217 = smul.u32 4, %s10
          %p218 = scmp.lt.s32.totalorder %s217, 15
          %s219 = scalar_select %p218, %s217, 15
          %s220 = scalar_lea.vmem %s2, %s219
          %s221 = smul.u32 4, %s10
        $region47: #{mgvae_forward.13} parent=19 // pred_fallthru
          _
        // Predicated region
        $region48: #{mgvae_forward.13} parent=19 // pred_check
          %p222 = pneg %p103
        $region49: #{mgvae_forward.13} parent=19 // pred_check_branch
          %224 = sbr.rel (%p222) target = $region51
        $region50: #{mgvae_forward.13} parent=19 // pred_region
          %s225 = smul.u32 4, %s10
          %p226 = scmp.lt.s32.totalorder %s225, 15
          %s227 = scalar_select %p226, %s225, 15
          %s228 = scalar_lea.vmem %s3, %s227
          %s229 = smul.u32 4, %s10
        $region51: #{mgvae_forward.13} parent=19 // pred_fallthru
          _
      $region20: #{mgvae_forward.13} parent=5 // pred_fallthru
        _
      %p230 = scmp.le.s32.totalorder 1, %s10
      %p231 = scmp.lt.s32.totalorder %s10, 5
      %p232 = pnand %p230, %p231
      %p233 = pneg %p232
      // Predicated region
      $region52: #{mgvae_forward.13} parent=5 // pred_check
        _
      $region53: #{mgvae_forward.13} parent=5 // pred_check_branch
        %235 = sbr.rel (%p232) target = $region55
      $region54: #{mgvae_forward.13} parent=5 // pred_region
        %s236 = ssub.s32 %s10, 1
        %s237 = sand.u32 %s44, 1
        %s238 = sand.u32 %s44, 1
        %s239 = smul.addr %s238, 128
        %s240 = scalar_lea.vmem [#allocation2], %s239
        // Predicated region
        $region56: #{mgvae_forward.13} parent=54 // pred_check
          %p241 = pneg %p57
        $region57: #{mgvae_forward.13} parent=54 // pred_check_branch
          %243 = sbr.rel (%p241) target = $region59
        $region58: #{mgvae_forward.13} parent=54 // pred_region
          _
        $region59: #{mgvae_forward.13} parent=54 // pred_fallthru
          _
        %p244 = pneg %p31
        %p245 = pneg %p28
        %s246 = sand.u32 %s44, 1
        %s247 = sand.u32 %s44, 1
        %s248 = smul.addr %s247, 128
        %s249 = scalar_lea.vmem [#allocation2], %s248
        %p250 = pneg %p57
        %p251 = pneg %p54
        %s252 = smul.u32 4, %s15
        %p253 = scmp.lt.s32.totalorder %s252, 15
        %s254 = scalar_select %p253, %s252, 15
        %s255 = scalar_lea.vmem %s2, %s254
        %p256 = pneg %p83
        %p257 = pneg %p80
        %s258 = smul.u32 4, %s15
        %p259 = scmp.lt.s32.totalorder %s258, 15
        %s260 = scalar_select %p259, %s258, 15
        %s261 = scalar_lea.vmem %s3, %s260
        %p262 = pneg %p109
        %p263 = pneg %p106
        %p264 = pneg %p135
        %p265 = pneg %p132
        %s266 = smul.u32 4, %s15
        %p267 = scmp.lt.s32.totalorder %s266, 15
        %s268 = scalar_select %p267, %s266, 15
        %s269 = smul.addr %s268, 2
        %s270 = scalar_lea.vmem %s4, %s269
        %s271 = smul.u32 4, %s15
        %s272 = smul.u32 4, %s15
        %p273 = scmp.lt.s32.totalorder %s272, 15
        %s274 = scalar_select %p273, %s272, 15
        %s275 = scalar_lea.vmem %s2, %s274
        %s276 = smul.u32 4, %s15
        %s277 = smul.u32 4, %s15
        %p278 = scmp.lt.s32.totalorder %s277, 15
        %s279 = scalar_select %p278, %s277, 15
        %s280 = scalar_lea.vmem %s3, %s279
        %s281 = smul.u32 4, %s15
        %s282 = smul.u32 4, %s15
        %p283 = scmp.lt.s32.totalorder %s282, 15
        %s284 = scalar_select %p283, %s282, 15
        %s285 = smul.addr %s284, 2
        %s286 = scalar_lea.vmem %s4, %s285
        %s287 = smul.u32 4, %s15
        %v288 = vld [vmem:[%s0] sm:$0x3]
        %v289 = vld [vmem:[%s240] sm:$0xff]
        %v290 = vld [vmem:[%s240 + $0x8] sm:$0xff]
        %v291 = vld [vmem:[%s240 + $0x10] sm:$0xff]
        %v292 = vld [vmem:[%s240 + $0x18] sm:$0xff]
        %v293 = vld [vmem:[%s240 + $0x20] sm:$0xff]
        %v294 = vld [vmem:[%s240 + $0x28] sm:$0xff]
        %v295 = vld [vmem:[%s240 + $0x30] sm:$0xff]
        %v296 = vld [vmem:[%s240 + $0x38] sm:$0xff]
        %v297 = vld [vmem:[%s240 + $0x40] sm:$0xff]
        %v298 = vld [vmem:[%s240 + $0x48] sm:$0xff]
        %v299 = vld [vmem:[%s240 + $0x50] sm:$0xff]
        %v300 = vld [vmem:[%s240 + $0x58] sm:$0xff]
        %v301 = vld [vmem:[%s240 + $0x60] sm:$0xff]
        %v302 = vld [vmem:[%s240 + $0x68] sm:$0xff]
        %v303 = vld [vmem:[%s240 + $0x70] sm:$0xff]
        %v304 = vld [vmem:[%s240 + $0x78] sm:$0xff]
        %vm305 = vcmask 261120
        %v307 = vsel %vm305, %v288, 0
        %309 = vmatprep.subr.mxu0 %v290
        %310 = vmatpush1.msra.mxu0 %v289
        %311 = vmatprep.subr.mxu0 %v294
        %312 = vmatpush1.msra.mxu0 %v293
        %313 = vmatprep.subr.mxu0 %v298
        %314 = vmatpush1.msra.mxu0 %v297
        %315 = vmatprep.subr.mxu0 %v302
        %316 = vmatpush1.msra.mxu0 %v301
        %317 = vmatprep.subr.mxu0 0.0
        %318 = vmatpush1.msra.mxu0 0.0
        %319 = vmatprep.subr.mxu0 0.0
        %320 = vmatpush1.msra.mxu0 0.0
        %321 = vmatprep.subr.mxu0 0.0
        %322 = vmatpush1.msra.mxu0 0.0
        %323 = vmatprep.subr.mxu0 0.0
        %324 = vmatpush1.msra.mxu0 0.0
        %325 = vmatprep.subr.mxu0 0.0
        %326 = vmatpush1.msra.mxu0 0.0
        %327 = vmatprep.subr.mxu0 0.0
        %328 = vmatpush1.msra.mxu0 0.0
        %329 = vmatprep.subr.mxu0 0.0
        %330 = vmatpush1.msra.mxu0 0.0
        %331 = vmatprep.subr.mxu0 0.0
        %332 = vmatpush1.msra.mxu0 0.0
        %333 = vmatprep.subr.mxu0 0.0
        %334 = vmatpush1.msra.mxu0 0.0
        %335 = vmatprep.subr.mxu0 0.0
        %336 = vmatpush1.msra.mxu0 0.0
        %337 = vmatprep.subr.mxu0 0.0
        %338 = vmatpush1.msra.mxu0 0.0
        %339 = vmatprep.subr.mxu0 0.0
        %340 = vmatpush1.msra.mxu0 0.0
        %341 = vmatprep.subr.mxu0 0.0
        %342 = vmatpush1.msra.mxu0 0.0
        %343 = vmatprep.subr.mxu0 0.0
        %344 = vmatpush1.msra.mxu0 0.0
        %345 = vmatprep.subr.mxu0 0.0
        %346 = vmatpush1.msra.mxu0 0.0
        %347 = vmatprep.subr.mxu0 0.0
        %348 = vmatpush1.msra.mxu0 0.0
        %349 = vmatprep.subr.mxu0 0.0
        %350 = vmatpush1.msra.mxu0 0.0
        %351 = vmatprep.subr.mxu0 0.0
        %352 = vmatpush1.msra.mxu0 0.0
        %353 = vmatprep.subr.mxu0 0.0
        %354 = vmatpush1.msra.mxu0 0.0
        %355 = vmatprep.subr.mxu0 0.0
        %356 = vmatpush1.msra.mxu0 0.0
        %357 = vmatprep.subr.mxu0 0.0
        %358 = vmatpush1.msra.mxu0 0.0
        %359 = vmatprep.subr.mxu0 0.0
        %360 = vmatpush1.msra.mxu0 0.0
        %361 = vmatprep.subr.mxu0 0.0
        %362 = vmatpush1.msra.mxu0 0.0
        %363 = vmatprep.subr.mxu0 0.0
        %364 = vmatpush1.msra.mxu0 0.0
        %365 = vmatprep.subr.mxu0 0.0
        %366 = vmatpush1.msra.mxu0 0.0
        %367 = vmatprep.subr.mxu0 0.0
        %368 = vmatpush1.msra.mxu0 0.0
        %369 = vmatprep.subr.mxu0 0.0
        %370 = vmatpush1.msra.mxu0 0.0
        %371 = vmatprep.subr.mxu0 0.0
        %372 = vmatpush1.msra.mxu0 0.0
        %373 = vmatprep.mubr.f32.mxu0 0.0
        %374 = vmatmul.mubr.f32.gmra.mrb[0].mxu0 %v307
        %v375 = vpop.f32.mrb[0].mxu0
        %v376 = vadd.f32 0.0, %v375
        %v377 = vpop.f32.mrb[0].mxu0
        %v378 = vadd.f32 0.0, %v377
        %379 = vdwg.mxu0
        %380 = vmatprep.subr.mxu0 %v292
        %381 = vmatpush1.msra.mxu0 %v291
        %382 = vmatprep.subr.mxu0 %v296
        %383 = vmatpush1.msra.mxu0 %v295
        %384 = vmatprep.subr.mxu0 %v300
        %385 = vmatpush1.msra.mxu0 %v299
        %386 = vmatprep.subr.mxu0 %v304
        %387 = vmatpush1.msra.mxu0 %v303
        %388 = vmatprep.subr.mxu0 0.0
        %389 = vmatpush1.msra.mxu0 0.0
        %390 = vmatprep.subr.mxu0 0.0
        %391 = vmatpush1.msra.mxu0 0.0
        %392 = vmatprep.subr.mxu0 0.0
        %393 = vmatpush1.msra.mxu0 0.0
        %394 = vmatprep.subr.mxu0 0.0
        %395 = vmatpush1.msra.mxu0 0.0
        %396 = vmatprep.subr.mxu0 0.0
        %397 = vmatpush1.msra.mxu0 0.0
        %398 = vmatprep.subr.mxu0 0.0
        %399 = vmatpush1.msra.mxu0 0.0
        %400 = vmatprep.subr.mxu0 0.0
        %401 = vmatpush1.msra.mxu0 0.0
        %402 = vmatprep.subr.mxu0 0.0
        %403 = vmatpush1.msra.mxu0 0.0
        %404 = vmatprep.subr.mxu0 0.0
        %405 = vmatpush1.msra.mxu0 0.0
        %406 = vmatprep.subr.mxu0 0.0
        %407 = vmatpush1.msra.mxu0 0.0
        %408 = vmatprep.subr.mxu0 0.0
        %409 = vmatpush1.msra.mxu0 0.0
        %410 = vmatprep.subr.mxu0 0.0
        %411 = vmatpush1.msra.mxu0 0.0
        %412 = vmatprep.subr.mxu0 0.0
        %413 = vmatpush1.msra.mxu0 0.0
        %414 = vmatprep.subr.mxu0 0.0
        %415 = vmatpush1.msra.mxu0 0.0
        %416 = vmatprep.subr.mxu0 0.0
        %417 = vmatpush1.msra.mxu0 0.0
        %418 = vmatprep.subr.mxu0 0.0
        %419 = vmatpush1.msra.mxu0 0.0
        %420 = vmatprep.subr.mxu0 0.0
        %421 = vmatpush1.msra.mxu0 0.0
        %422 = vmatprep.subr.mxu0 0.0
        %423 = vmatpush1.msra.mxu0 0.0
        %424 = vmatprep.subr.mxu0 0.0
        %425 = vmatpush1.msra.mxu0 0.0
        %426 = vmatprep.subr.mxu0 0.0
        %427 = vmatpush1.msra.mxu0 0.0
        %428 = vmatprep.subr.mxu0 0.0
        %429 = vmatpush1.msra.mxu0 0.0
        %430 = vmatprep.subr.mxu0 0.0
        %431 = vmatpush1.msra.mxu0 0.0
        %432 = vmatprep.subr.mxu0 0.0
        %433 = vmatpush1.msra.mxu0 0.0
        %434 = vmatprep.subr.mxu0 0.0
        %435 = vmatpush1.msra.mxu0 0.0
        %436 = vmatprep.subr.mxu0 0.0
        %437 = vmatpush1.msra.mxu0 0.0
        %438 = vmatprep.subr.mxu0 0.0
        %439 = vmatpush1.msra.mxu0 0.0
        %440 = vmatprep.subr.mxu0 0.0
        %441 = vmatpush1.msra.mxu0 0.0
        %442 = vmatprep.subr.mxu0 0.0
        %443 = vmatpush1.msra.mxu0 0.0
        %444 = vmatprep.mubr.f32.mxu0 0.0
        %445 = vmatmul.mubr.f32.gmra.mrb[0].mxu0 %v307
        %v446 = vpop.f32.mrb[0].mxu0
        %v447 = vadd.f32 0.0, %v446
        %v448 = vpop.f32.mrb[0].mxu0
        %v449 = vadd.f32 0.0, %v448
        %450 = vdwg.mxu0
        %v451 = vld [vmem:[%s275] sm:$0xf]
        %v452 = vld [vmem:[%s280] sm:$0xf]
        %vm453 = vcmask 1041408
        %v454 = vsel %vm453, %v376, 0.0
        %v455 = vrot.slane %v454, 4
        %v456 = vadd.f32 %v454, %v455
        %v457 = vrot.slane %v456, 2
        %v458 = vadd.f32 %v456, %v457
        %v459 = vrot.slane %v458, 1
        %v460 = vadd.f32 %v458, %v459
        %v461 = vsel %vm453, %v378, 0.0
        %v462 = vrot.slane %v461, 4
        %v463 = vadd.f32 %v461, %v462
        %v464 = vrot.slane %v463, 2
        %v465 = vadd.f32 %v463, %v464
        %v466 = vrot.slane %v465, 1
        %v467 = vadd.f32 %v465, %v466
        %v468 = vsel %vm453, %v447, 0.0
        %v469 = vrot.slane %v468, 4
        %v470 = vadd.f32 %v468, %v469
        %v471 = vrot.slane %v470, 2
        %v472 = vadd.f32 %v470, %v471
        %v473 = vrot.slane %v472, 1
        %v474 = vadd.f32 %v472, %v473
        %v475 = vsel %vm453, %v449, 0.0
        %v476 = vrot.slane %v475, 4
        %v477 = vadd.f32 %v475, %v476
        %v478 = vrot.slane %v477, 2
        %v479 = vadd.f32 %v477, %v478
        %v480 = vrot.slane %v479, 1
        %v481 = vadd.f32 %v479, %v480
        %v482 = vmul.f32 %v376, %v376
        %v483 = vmul.f32 %v378, %v378
        %v484 = vmul.f32 %v447, %v447
        %v485 = vmul.f32 %v449, %v449
        %v486 = vsel %vm453, %v482, 0.0
        %v487 = vrot.slane %v486, 4
        %v488 = vadd.f32 %v486, %v487
        %v489 = vrot.slane %v488, 2
        %v490 = vadd.f32 %v488, %v489
        %v491 = vrot.slane %v490, 1
        %v492 = vadd.f32 %v490, %v491
        %v493 = vsel %vm453, %v483, 0.0
        %v494 = vrot.slane %v493, 4
        %v495 = vadd.f32 %v493, %v494
        %v496 = vrot.slane %v495, 2
        %v497 = vadd.f32 %v495, %v496
        %v498 = vrot.slane %v497, 1
        %v499 = vadd.f32 %v497, %v498
        %v500 = vsel %vm453, %v484, 0.0
        %v501 = vrot.slane %v500, 4
        %v502 = vadd.f32 %v500, %v501
        %v503 = vrot.slane %v502, 2
        %v504 = vadd.f32 %v502, %v503
        %v505 = vrot.slane %v504, 1
        %v506 = vadd.f32 %v504, %v505
        %v507 = vsel %vm453, %v485, 0.0
        %v508 = vrot.slane %v507, 4
        %v509 = vadd.f32 %v507, %v508
        %v510 = vrot.slane %v509, 2
        %v511 = vadd.f32 %v509, %v510
        %v512 = vrot.slane %v511, 1
        %v513 = vadd.f32 %v511, %v512
        %v514 = vmul.f32 %v460, 0.5
        %v515 = vmul.f32 %v467, 0.5
        %v516 = vmul.f32 %v474, 0.5
        %v517 = vmul.f32 %v481, 0.5
        %v518 = vmul.f32 %v492, 0.5
        %v519 = vmul.f32 %v499, 0.5
        %v520 = vmul.f32 %v506, 0.5
        %v521 = vmul.f32 %v513, 0.5
        %v522 = vmul.f32 %v514, %v514
        %v523 = vmul.f32 %v515, %v515
        %v524 = vmul.f32 %v516, %v516
        %v525 = vmul.f32 %v517, %v517
        %v526 = vsub.f32 %v518, %v522
        %v527 = vsub.f32 %v519, %v523
        %v528 = vsub.f32 %v520, %v524
        %v529 = vsub.f32 %v521, %v525
        %v530 = vmax.f32 %v526, 0.0
        %v531 = vmax.f32 %v527, 0.0
        %v532 = vmax.f32 %v528, 0.0
        %v533 = vmax.f32 %v529, 0.0
        %v534 = vadd.f32 %v530, 1e-05
        %v535 = vadd.f32 %v531, 1e-05
        %v536 = vadd.f32 %v532, 1e-05
        %v537 = vadd.f32 %v533, 1e-05
        %v538 = vrsqrt.pop %v534
        %v539 = vrsqrt.pop %v535
        %v540 = vrsqrt.pop %v536
        %v541 = vrsqrt.pop %v537
        %v546 = vcombine.low %v538, %v539
        %v547 = vcombine.low %v540, %v541
        %v549 = vunpack.c.l.s4 1966171168
        %v550 = vunpack.c.0.s8 %v549
        %v551 = vlaneseq
        %v552 = vshrl.u32 %v551, 7
        %v553 = vsub.s32 %v550, %v552
        %v554 = vrot.slane %v546, %v553
        %v556 = vunpack.c.l.s4 1966171168
        %v557 = vunpack.c.0.s8 %v556
        %v558 = vlaneseq
        %v559 = vshrl.u32 %v558, 7
        %v560 = vsub.s32 %v557, %v559
        %v561 = vrot.slane %v547, %v560
        %v562 = vcombine.low %v554, %v561
        %v564 = vunpack.c.l.s4 1966171168
        %v565 = vunpack.c.0.s8 %v564
        %v566 = vlaneseq
        %v567 = vshrl.u32 %v566, 7
        %v568 = vsub.s32 %v565, %v567
        %v569 = vrot.slane %v562, %v568
        %v571 = vmul.f32 %v451, %v569
        %v573 = vlaneseq
        %v574 = vshrl.u32 %v573, 7
        %v575 = vsub.s32 0, %v574
        %v576 = vrot.slane %v571, %v575
        %v577 = vlaneseq
        %v578 = vshrl.u32 %v577, 7
        %v579 = vsub.s32 1, %v578
        %v580 = vrot.slane %v571, %v579
        %v581 = vlaneseq
        %v582 = vshrl.u32 %v581, 7
        %v583 = vsub.s32 2, %v582
        %v584 = vrot.slane %v571, %v583
        %v585 = vlaneseq
        %v586 = vshrl.u32 %v585, 7
        %v587 = vsub.s32 3, %v586
        %v588 = vrot.slane %v571, %v587
        %v593 = vmul.f32 %v514, %v576
        %v594 = vmul.f32 %v515, %v580
        %v595 = vmul.f32 %v516, %v584
        %v596 = vmul.f32 %v517, %v588
        %v601 = vcombine.low %v593, %v594
        %v602 = vcombine.low %v595, %v596
        %v604 = vunpack.c.l.s4 1966171168
        %v605 = vunpack.c.0.s8 %v604
        %v606 = vlaneseq
        %v607 = vshrl.u32 %v606, 7
        %v608 = vsub.s32 %v605, %v607
        %v609 = vrot.slane %v601, %v608
        %v611 = vunpack.c.l.s4 1966171168
        %v612 = vunpack.c.0.s8 %v611
        %v613 = vlaneseq
        %v614 = vshrl.u32 %v613, 7
        %v615 = vsub.s32 %v612, %v614
        %v616 = vrot.slane %v602, %v615
        %v617 = vcombine.low %v609, %v616
        %v619 = vunpack.c.l.s4 1966171168
        %v620 = vunpack.c.0.s8 %v619
        %v621 = vlaneseq
        %v622 = vshrl.u32 %v621, 7
        %v623 = vsub.s32 %v620, %v622
        %v624 = vrot.slane %v617, %v623
        %v626 = vsub.f32 %v452, %v624
        %v627 = vmul.f32 %v376, %v576
        %v628 = vmul.f32 %v378, %v580
        %v629 = vmul.f32 %v447, %v584
        %v630 = vmul.f32 %v449, %v588
        %v632 = vlaneseq
        %v633 = vshrl.u32 %v632, 7
        %v634 = vsub.s32 0, %v633
        %v635 = vrot.slane %v626, %v634
        %v636 = vlaneseq
        %v637 = vshrl.u32 %v636, 7
        %v638 = vsub.s32 1, %v637
        %v639 = vrot.slane %v626, %v638
        %v640 = vlaneseq
        %v641 = vshrl.u32 %v640, 7
        %v642 = vsub.s32 2, %v641
        %v643 = vrot.slane %v626, %v642
        %v644 = vlaneseq
        %v645 = vshrl.u32 %v644, 7
        %v646 = vsub.s32 3, %v645
        %v647 = vrot.slane %v626, %v646
        %v652 = vadd.f32 %v627, %v635
        %v653 = vadd.f32 %v628, %v639
        %v654 = vadd.f32 %v629, %v643
        %v655 = vadd.f32 %v630, %v647
        %v656 = vmax.f32 %v652, 0.0
        %v657 = vmax.f32 %v653, 0.0
        %v658 = vmax.f32 %v654, 0.0
        %v659 = vmax.f32 %v655, 0.0
        %v664 = vcombine.low %v656, %v657
        %v665 = vcombine.low %v658, %v659
        %v667 = vunpack.c.l.s4 1983009808
        %v668 = vunpack.c.0.s8 %v667
        %v669 = vlaneseq
        %v670 = vshrl.u32 %v669, 7
        %v671 = vsub.s32 %v668, %v670
        %v672 = vrot.slane %v664, %v671
        %v674 = vunpack.c.l.s4 1983009808
        %v675 = vunpack.c.0.s8 %v674
        %v676 = vlaneseq
        %v677 = vshrl.u32 %v676, 7
        %v678 = vsub.s32 %v675, %v677
        %v679 = vrot.slane %v665, %v678
        %v680 = vcombine.low %v672, %v679
        %682 = vst [vmem:[%s286] sm:$0xff] %v680
        %s683 = smul.u32 4, %s15
        %p684 = scmp.lt.s32.totalorder %s683, 15
        %s685 = scalar_select %p684, %s683, 15
        %s686 = smul.addr %s685, 2
        %s687 = scalar_lea.vmem %s4, %s686
        // Predicated region
        $region60: #{mgvae_forward.13} parent=54 // pred_check
          %p688 = pneg %p132
        $region61: #{mgvae_forward.13} parent=54 // pred_check_branch
          %690 = sbr.rel (%p688) target = $region63
        $region62: #{mgvae_forward.13} parent=54 // pred_region
          %s691 = smul.u32 4, %s15
        $region63: #{mgvae_forward.13} parent=54 // pred_fallthru
          _
      $region55: #{mgvae_forward.13} parent=5 // pred_fallthru
        _
      %p692 = scmp.le.s32.totalorder 2, %s10
      // Predicated region
      $region64: #{mgvae_forward.13} parent=5 // pred_check
        %p693 = pneg %p692
      $region65: #{mgvae_forward.13} parent=5 // pred_check_branch
        %695 = sbr.rel (%p693) target = $region67
      $region66: #{mgvae_forward.13} parent=5 // pred_region
        %s696 = ssub.s32 %s10, 2
        // Predicated region
        $region68: #{mgvae_forward.13} parent=66 // pred_check
          %p697 = pneg %p138
        $region69: #{mgvae_forward.13} parent=66 // pred_check_branch
          %699 = sbr.rel (%p697) target = $region71
        $region70: #{mgvae_forward.13} parent=66 // pred_region
          %s700 = smul.u32 4, %s16
          %p701 = scmp.lt.s32.totalorder %s700, 15
          %s702 = scalar_select %p701, %s700, 15
          %s703 = smul.addr %s702, 2
          %s704 = scalar_lea.vmem %s4, %s703
        $region71: #{mgvae_forward.13} parent=66 // pred_fallthru
          _
      $region67: #{mgvae_forward.13} parent=5 // pred_fallthru
        _
    $region6: #{mgvae_forward.13} parent=1 // loop_footer
      %s14 = sadd.s32 1, %s10
    $region7: #{mgvae_forward.13} parent=1 // loop_footer_branch
      %9 = sbr.rel target = $region3
    $region8: #{mgvae_forward.13} parent=1 // loop_exit
      _

// kernel: mgvae_forward.14
$region0: #{mgvae_forward.14}
  #allocation0 [shape = 'u32[]', space=smem, size = 0x4, offset = 0x4, fixed_abs, tag = 'smem constant byte address 0x4 - core index']
  #allocation1 [shape = 'u32[144,128]{1,0:T(1,128)}', space=vmem, size = 0x12000, scoped, tag = 'internal scratch']
  %s0 = inlined_call_operand.vmem [shape: f32[32,512], index: 0, kind: input, shape index: {}]
  %s1 = inlined_call_operand.vmem [shape: f32[512,256], index: 1, kind: input, shape index: {}]
  %s2 = inlined_call_operand.vmem [shape: f32[32,256], index: 2, kind: output, shape index: {}]
  %s3 = sld [smem:[#allocation0]]
  $region18: #{mgvae_forward.14} parent=0
    _
  %s5 = ssub.s32 1, %s3
  %s6 = scalar_select 0, %s5, %s3
  // Predicated region
  $region2: #{mgvae_forward.14} parent=0 // pred_check
    _
  $region3: #{mgvae_forward.14} parent=0 // pred_check_branch
    %8 = sbr.rel (0) target = $region5
  $region4: #{mgvae_forward.14} parent=0 // pred_region
    _
  $region5: #{mgvae_forward.14} parent=0 // pred_fallthru
    _
  // Predicated region
  $region6: #{mgvae_forward.14} parent=0 // pred_check
    _
  $region7: #{mgvae_forward.14} parent=0 // pred_check_branch
    %10 = sbr.rel (0) target = $region9
  $region8: #{mgvae_forward.14} parent=0 // pred_region
    _
  $region9: #{mgvae_forward.14} parent=0 // pred_fallthru
    _
  %v11 = vld [vmem:[%s0] sm:$0xff]
  %v12 = vld [vmem:[%s0 + $0x8] sm:$0xff]
  %v13 = vld [vmem:[%s0 + $0x10] sm:$0xff]
  %v14 = vld [vmem:[%s0 + $0x18] sm:$0xff]
  %v15 = vld [vmem:[%s0 + $0x20] sm:$0xff]
  %v16 = vld [vmem:[%s0 + $0x28] sm:$0xff]
  %v17 = vld [vmem:[%s0 + $0x30] sm:$0xff]
  %v18 = vld [vmem:[%s0 + $0x38] sm:$0xff]
  %v19 = vld [vmem:[%s0 + $0x40] sm:$0xff]
  %v20 = vld [vmem:[%s0 + $0x48] sm:$0xff]
  %v21 = vld [vmem:[%s0 + $0x50] sm:$0xff]
  %v22 = vld [vmem:[%s0 + $0x58] sm:$0xff]
  %v23 = vld [vmem:[%s0 + $0x60] sm:$0xff]
  %v24 = vld [vmem:[%s0 + $0x68] sm:$0xff]
  %v25 = vld [vmem:[%s0 + $0x70] sm:$0xff]
  %v26 = vld [vmem:[%s0 + $0x78] sm:$0xff]
  %v27 = vld [vmem:[%s1] sm:$0xff]
  %v28 = vld [vmem:[%s1 + $0x8] sm:$0xff]
  %v29 = vld [vmem:[%s1 + $0x10] sm:$0xff]
  %v30 = vld [vmem:[%s1 + $0x18] sm:$0xff]
  %v31 = vld [vmem:[%s1 + $0x20] sm:$0xff]
  %v32 = vld [vmem:[%s1 + $0x28] sm:$0xff]
  %v33 = vld [vmem:[%s1 + $0x30] sm:$0xff]
  %v34 = vld [vmem:[%s1 + $0x38] sm:$0xff]
  %v35 = vld [vmem:[%s1 + $0x40] sm:$0xff]
  %v36 = vld [vmem:[%s1 + $0x48] sm:$0xff]
  %v37 = vld [vmem:[%s1 + $0x50] sm:$0xff]
  %v38 = vld [vmem:[%s1 + $0x58] sm:$0xff]
  %v39 = vld [vmem:[%s1 + $0x60] sm:$0xff]
  %v40 = vld [vmem:[%s1 + $0x68] sm:$0xff]
  %v41 = vld [vmem:[%s1 + $0x70] sm:$0xff]
  %v42 = vld [vmem:[%s1 + $0x78] sm:$0xff]
  %v43 = vld [vmem:[%s1 + $0x80] sm:$0xff]
  %v44 = vld [vmem:[%s1 + $0x88] sm:$0xff]
  %v45 = vld [vmem:[%s1 + $0x90] sm:$0xff]
  %v46 = vld [vmem:[%s1 + $0x98] sm:$0xff]
  %v47 = vld [vmem:[%s1 + $0xa0] sm:$0xff]
  %v48 = vld [vmem:[%s1 + $0xa8] sm:$0xff]
  %v49 = vld [vmem:[%s1 + $0xb0] sm:$0xff]
  %v50 = vld [vmem:[%s1 + $0xb8] sm:$0xff]
  %v51 = vld [vmem:[%s1 + $0xc0] sm:$0xff]
  %v52 = vld [vmem:[%s1 + $0xc8] sm:$0xff]
  %v53 = vld [vmem:[%s1 + $0xd0] sm:$0xff]
  %v54 = vld [vmem:[%s1 + $0xd8] sm:$0xff]
  %v55 = vld [vmem:[%s1 + $0xe0] sm:$0xff]
  %v56 = vld [vmem:[%s1 + $0xe8] sm:$0xff]
  %v57 = vld [vmem:[%s1 + $0xf0] sm:$0xff]
  %v58 = vld [vmem:[%s1 + $0xf8] sm:$0xff]
  %v59 = vld [vmem:[%s1 + $0x100] sm:$0xff]
  %v60 = vld [vmem:[%s1 + $0x108] sm:$0xff]
  %v61 = vld [vmem:[%s1 + $0x110] sm:$0xff]
  %v62 = vld [vmem:[%s1 + $0x118] sm:$0xff]
  %v63 = vld [vmem:[%s1 + $0x120] sm:$0xff]
  %v64 = vld [vmem:[%s1 + $0x128] sm:$0xff]
  %v65 = vld [vmem:[%s1 + $0x130] sm:$0xff]
  %v66 = vld [vmem:[%s1 + $0x138] sm:$0xff]
  %v67 = vld [vmem:[%s1 + $0x140] sm:$0xff]
  %v68 = vld [vmem:[%s1 + $0x148] sm:$0xff]
  %v69 = vld [vmem:[%s1 + $0x150] sm:$0xff]
  %v70 = vld [vmem:[%s1 + $0x158] sm:$0xff]
  %v71 = vld [vmem:[%s1 + $0x160] sm:$0xff]
  %v72 = vld [vmem:[%s1 + $0x168] sm:$0xff]
  %v73 = vld [vmem:[%s1 + $0x170] sm:$0xff]
  %v74 = vld [vmem:[%s1 + $0x178] sm:$0xff]
  %v75 = vld [vmem:[%s1 + $0x180] sm:$0xff]
  %v76 = vld [vmem:[%s1 + $0x188] sm:$0xff]
  %v77 = vld [vmem:[%s1 + $0x190] sm:$0xff]
  %v78 = vld [vmem:[%s1 + $0x198] sm:$0xff]
  %v79 = vld [vmem:[%s1 + $0x1a0] sm:$0xff]
  %v80 = vld [vmem:[%s1 + $0x1a8] sm:$0xff]
  %v81 = vld [vmem:[%s1 + $0x1b0] sm:$0xff]
  %v82 = vld [vmem:[%s1 + $0x1b8] sm:$0xff]
  %v83 = vld [vmem:[%s1 + $0x1c0] sm:$0xff]
  %v84 = vld [vmem:[%s1 + $0x1c8] sm:$0xff]
  %v85 = vld [vmem:[%s1 + $0x1d0] sm:$0xff]
  %v86 = vld [vmem:[%s1 + $0x1d8] sm:$0xff]
  %v87 = vld [vmem:[%s1 + $0x1e0] sm:$0xff]
  %v88 = vld [vmem:[%s1 + $0x1e8] sm:$0xff]
  %v89 = vld [vmem:[%s1 + $0x1f0] sm:$0xff]
  %v90 = vld [vmem:[%s1 + $0x1f8] sm:$0xff]
  %v91 = vld [vmem:[%s1 + $0x200] sm:$0xff]
  %v92 = vld [vmem:[%s1 + $0x208] sm:$0xff]
  %v93 = vld [vmem:[%s1 + $0x210] sm:$0xff]
  %v94 = vld [vmem:[%s1 + $0x218] sm:$0xff]
  %v95 = vld [vmem:[%s1 + $0x220] sm:$0xff]
  %v96 = vld [vmem:[%s1 + $0x228] sm:$0xff]
  %v97 = vld [vmem:[%s1 + $0x230] sm:$0xff]
  %v98 = vld [vmem:[%s1 + $0x238] sm:$0xff]
  %v99 = vld [vmem:[%s1 + $0x240] sm:$0xff]
  %v100 = vld [vmem:[%s1 + $0x248] sm:$0xff]
  %v101 = vld [vmem:[%s1 + $0x250] sm:$0xff]
  %v102 = vld [vmem:[%s1 + $0x258] sm:$0xff]
  %v103 = vld [vmem:[%s1 + $0x260] sm:$0xff]
  %v104 = vld [vmem:[%s1 + $0x268] sm:$0xff]
  %v105 = vld [vmem:[%s1 + $0x270] sm:$0xff]
  %v106 = vld [vmem:[%s1 + $0x278] sm:$0xff]
  %v107 = vld [vmem:[%s1 + $0x280] sm:$0xff]
  %v108 = vld [vmem:[%s1 + $0x288] sm:$0xff]
  %v109 = vld [vmem:[%s1 + $0x290] sm:$0xff]
  %v110 = vld [vmem:[%s1 + $0x298] sm:$0xff]
  %v111 = vld [vmem:[%s1 + $0x2a0] sm:$0xff]
  %v112 = vld [vmem:[%s1 + $0x2a8] sm:$0xff]
  %v113 = vld [vmem:[%s1 + $0x2b0] sm:$0xff]
  %v114 = vld [vmem:[%s1 + $0x2b8] sm:$0xff]
  %v115 = vld [vmem:[%s1 + $0x2c0] sm:$0xff]
  %v116 = vld [vmem:[%s1 + $0x2c8] sm:$0xff]
  %v117 = vld [vmem:[%s1 + $0x2d0] sm:$0xff]
  %v118 = vld [vmem:[%s1 + $0x2d8] sm:$0xff]
  %v119 = vld [vmem:[%s1 + $0x2e0] sm:$0xff]
  %v120 = vld [vmem:[%s1 + $0x2e8] sm:$0xff]
  %v121 = vld [vmem:[%s1 + $0x2f0] sm:$0xff]
  %v122 = vld [vmem:[%s1 + $0x2f8] sm:$0xff]
  %v123 = vld [vmem:[%s1 + $0x300] sm:$0xff]
  %v124 = vld [vmem:[%s1 + $0x308] sm:$0xff]
  %v125 = vld [vmem:[%s1 + $0x310] sm:$0xff]
  %v126 = vld [vmem:[%s1 + $0x318] sm:$0xff]
  %v127 = vld [vmem:[%s1 + $0x320] sm:$0xff]
  %v128 = vld [vmem:[%s1 + $0x328] sm:$0xff]
  %v129 = vld [vmem:[%s1 + $0x330] sm:$0xff]
  %v130 = vld [vmem:[%s1 + $0x338] sm:$0xff]
  %v131 = vld [vmem:[%s1 + $0x340] sm:$0xff]
  %v132 = vld [vmem:[%s1 + $0x348] sm:$0xff]
  %v133 = vld [vmem:[%s1 + $0x350] sm:$0xff]
  %v134 = vld [vmem:[%s1 + $0x358] sm:$0xff]
  %v135 = vld [vmem:[%s1 + $0x360] sm:$0xff]
  %v136 = vld [vmem:[%s1 + $0x368] sm:$0xff]
  %v137 = vld [vmem:[%s1 + $0x370] sm:$0xff]
  %v138 = vld [vmem:[%s1 + $0x378] sm:$0xff]
  %v139 = vld [vmem:[%s1 + $0x380] sm:$0xff]
  %v140 = vld [vmem:[%s1 + $0x388] sm:$0xff]
  %v141 = vld [vmem:[%s1 + $0x390] sm:$0xff]
  %v142 = vld [vmem:[%s1 + $0x398] sm:$0xff]
  %v143 = vld [vmem:[%s1 + $0x3a0] sm:$0xff]
  %v144 = vld [vmem:[%s1 + $0x3a8] sm:$0xff]
  %v145 = vld [vmem:[%s1 + $0x3b0] sm:$0xff]
  %v146 = vld [vmem:[%s1 + $0x3b8] sm:$0xff]
  %v147 = vld [vmem:[%s1 + $0x3c0] sm:$0xff]
  %v148 = vld [vmem:[%s1 + $0x3c8] sm:$0xff]
  %v149 = vld [vmem:[%s1 + $0x3d0] sm:$0xff]
  %v150 = vld [vmem:[%s1 + $0x3d8] sm:$0xff]
  %v151 = vld [vmem:[%s1 + $0x3e0] sm:$0xff]
  %v152 = vld [vmem:[%s1 + $0x3e8] sm:$0xff]
  %v153 = vld [vmem:[%s1 + $0x3f0] sm:$0xff]
  %v154 = vld [vmem:[%s1 + $0x3f8] sm:$0xff]
  %155 = vmatprep.subr.mxu0 %v28
  %156 = vmatpush1.msra.mxu0 %v27
  %157 = vmatprep.subr.mxu0 %v30
  %158 = vmatpush1.msra.mxu0 %v29
  %159 = vmatprep.subr.mxu0 %v32
  %160 = vmatpush1.msra.mxu0 %v31
  %161 = vmatprep.subr.mxu0 %v34
  %162 = vmatpush1.msra.mxu0 %v33
  %163 = vmatprep.subr.mxu0 %v36
  %164 = vmatpush1.msra.mxu0 %v35
  %165 = vmatprep.subr.mxu0 %v38
  %166 = vmatpush1.msra.mxu0 %v37
  %167 = vmatprep.subr.mxu0 %v40
  %168 = vmatpush1.msra.mxu0 %v39
  %169 = vmatprep.subr.mxu0 %v42
  %170 = vmatpush1.msra.mxu0 %v41
  %171 = vmatprep.subr.mxu0 %v44
  %172 = vmatpush1.msra.mxu0 %v43
  %173 = vmatprep.subr.mxu0 %v46
  %174 = vmatpush1.msra.mxu0 %v45
  %175 = vmatprep.subr.mxu0 %v48
  %176 = vmatpush1.msra.mxu0 %v47
  %177 = vmatprep.subr.mxu0 %v50
  %178 = vmatpush1.msra.mxu0 %v49
  %179 = vmatprep.subr.mxu0 %v52
  %180 = vmatpush1.msra.mxu0 %v51
  %181 = vmatprep.subr.mxu0 %v54
  %182 = vmatpush1.msra.mxu0 %v53
  %183 = vmatprep.subr.mxu0 %v56
  %184 = vmatpush1.msra.mxu0 %v55
  %185 = vmatprep.subr.mxu0 %v58
  %186 = vmatpush1.msra.mxu0 %v57
  %187 = vmatprep.subr.mxu0 %v60
  %188 = vmatpush1.msra.mxu0 %v59
  %189 = vmatprep.subr.mxu0 %v62
  %190 = vmatpush1.msra.mxu0 %v61
  %191 = vmatprep.subr.mxu0 %v64
  %192 = vmatpush1.msra.mxu0 %v63
  %193 = vmatprep.subr.mxu0 %v66
  %194 = vmatpush1.msra.mxu0 %v65
  %195 = vmatprep.subr.mxu0 %v68
  %196 = vmatpush1.msra.mxu0 %v67
  %197 = vmatprep.subr.mxu0 %v70
  %198 = vmatpush1.msra.mxu0 %v69
  %199 = vmatprep.subr.mxu0 %v72
  %200 = vmatpush1.msra.mxu0 %v71
  %201 = vmatprep.subr.mxu0 %v74
  %202 = vmatpush1.msra.mxu0 %v73
  %203 = vmatprep.subr.mxu0 %v76
  %204 = vmatpush1.msra.mxu0 %v75
  %205 = vmatprep.subr.mxu0 %v78
  %206 = vmatpush1.msra.mxu0 %v77
  %207 = vmatprep.subr.mxu0 %v80
  %208 = vmatpush1.msra.mxu0 %v79
  %209 = vmatprep.subr.mxu0 %v82
  %210 = vmatpush1.msra.mxu0 %v81
  %211 = vmatprep.subr.mxu0 %v84
  %212 = vmatpush1.msra.mxu0 %v83
  %213 = vmatprep.subr.mxu0 %v86
  %214 = vmatpush1.msra.mxu0 %v85
  %215 = vmatprep.subr.mxu0 %v88
  %216 = vmatpush1.msra.mxu0 %v87
  %217 = vmatprep.subr.mxu0 %v90
  %218 = vmatpush1.msra.mxu0 %v89
  %219 = vmatprep.mubr.f32.mxu0 %v12
  %220 = vmatmul.mubr.f32.gmra.mrb[0].mxu0 %v11
  %v221 = vpop.f32.mrb[0].mxu0
  %v222 = vadd.f32 0.0, %v221
  %v223 = vpop.f32.mrb[0].mxu0
  %v224 = vadd.f32 0.0, %v223
  %225 = vmatprep.mubr.f32.mxu0 %v16
  %226 = vmatmul.mubr.f32.gmra.mrb[0].mxu0 %v15
  %v227 = vpop.f32.mrb[0].mxu0
  %v228 = vadd.f32 0.0, %v227
  %v229 = vpop.f32.mrb[0].mxu0
  %v230 = vadd.f32 0.0, %v229
  %231 = vmatprep.mubr.f32.mxu0 %v20
  %232 = vmatmul.mubr.f32.gmra.mrb[0].mxu0 %v19
  %v233 = vpop.f32.mrb[0].mxu0
  %v234 = vadd.f32 0.0, %v233
  %v235 = vpop.f32.mrb[0].mxu0
  %v236 = vadd.f32 0.0, %v235
  %237 = vmatprep.mubr.f32.mxu0 %v24
  %238 = vmatmul.mubr.f32.gmra.mrb[0].mxu0 %v23
  %v239 = vpop.f32.mrb[0].mxu0
  %v240 = vadd.f32 0.0, %v239
  %v241 = vpop.f32.mrb[0].mxu0
  %v242 = vadd.f32 0.0, %v241
  %243 = vdwg.mxu0
  %244 = vmatprep.subr.mxu0 %v92
  %245 = vmatpush1.msra.mxu0 %v91
  %246 = vmatprep.subr.mxu0 %v94
  %247 = vmatpush1.msra.mxu0 %v93
  %248 = vmatprep.subr.mxu0 %v96
  %249 = vmatpush1.msra.mxu0 %v95
  %250 = vmatprep.subr.mxu0 %v98
  %251 = vmatpush1.msra.mxu0 %v97
  %252 = vmatprep.subr.mxu0 %v100
  %253 = vmatpush1.msra.mxu0 %v99
  %254 = vmatprep.subr.mxu0 %v102
  %255 = vmatpush1.msra.mxu0 %v101
  %256 = vmatprep.subr.mxu0 %v104
  %257 = vmatpush1.msra.mxu0 %v103
  %258 = vmatprep.subr.mxu0 %v106
  %259 = vmatpush1.msra.mxu0 %v105
  %260 = vmatprep.subr.mxu0 %v108
  %261 = vmatpush1.msra.mxu0 %v107
  %262 = vmatprep.subr.mxu0 %v110
  %263 = vmatpush1.msra.mxu0 %v109
  %264 = vmatprep.subr.mxu0 %v112
  %265 = vmatpush1.msra.mxu0 %v111
  %266 = vmatprep.subr.mxu0 %v114
  %267 = vmatpush1.msra.mxu0 %v113
  %268 = vmatprep.subr.mxu0 %v116
  %269 = vmatpush1.msra.mxu0 %v115
  %270 = vmatprep.subr.mxu0 %v118
  %271 = vmatpush1.msra.mxu0 %v117
  %272 = vmatprep.subr.mxu0 %v120
  %273 = vmatpush1.msra.mxu0 %v119
  %274 = vmatprep.subr.mxu0 %v122
  %275 = vmatpush1.msra.mxu0 %v121
  %276 = vmatprep.subr.mxu0 %v124
  %277 = vmatpush1.msra.mxu0 %v123
  %278 = vmatprep.subr.mxu0 %v126
  %279 = vmatpush1.msra.mxu0 %v125
  %280 = vmatprep.subr.mxu0 %v128
  %281 = vmatpush1.msra.mxu0 %v127
  %282 = vmatprep.subr.mxu0 %v130
  %283 = vmatpush1.msra.mxu0 %v129
  %284 = vmatprep.subr.mxu0 %v132
  %285 = vmatpush1.msra.mxu0 %v131
  %286 = vmatprep.subr.mxu0 %v134
  %287 = vmatpush1.msra.mxu0 %v133
  %288 = vmatprep.subr.mxu0 %v136
  %289 = vmatpush1.msra.mxu0 %v135
  %290 = vmatprep.subr.mxu0 %v138
  %291 = vmatpush1.msra.mxu0 %v137
  %292 = vmatprep.subr.mxu0 %v140
  %293 = vmatpush1.msra.mxu0 %v139
  %294 = vmatprep.subr.mxu0 %v142
  %295 = vmatpush1.msra.mxu0 %v141
  %296 = vmatprep.subr.mxu0 %v144
  %297 = vmatpush1.msra.mxu0 %v143
  %298 = vmatprep.subr.mxu0 %v146
  %299 = vmatpush1.msra.mxu0 %v145
  %300 = vmatprep.subr.mxu0 %v148
  %301 = vmatpush1.msra.mxu0 %v147
  %302 = vmatprep.subr.mxu0 %v150
  %303 = vmatpush1.msra.mxu0 %v149
  %304 = vmatprep.subr.mxu0 %v152
  %305 = vmatpush1.msra.mxu0 %v151
  %306 = vmatprep.subr.mxu0 %v154
  %307 = vmatpush1.msra.mxu0 %v153
  %308 = vmatprep.mubr.f32.mxu0 %v14
  %309 = vmatmul.mubr.f32.gmra.mrb[0].mxu0 %v13
  %v310 = vpop.f32.mrb[0].mxu0
  %v311 = vadd.f32 %v222, %v310
  %v312 = vpop.f32.mrb[0].mxu0
  %v313 = vadd.f32 %v224, %v312
  %314 = vmatprep.mubr.f32.mxu0 %v18
  %315 = vmatmul.mubr.f32.gmra.mrb[0].mxu0 %v17
  %v316 = vpop.f32.mrb[0].mxu0
  %v317 = vadd.f32 %v228, %v316
  %v318 = vpop.f32.mrb[0].mxu0
  %v319 = vadd.f32 %v230, %v318
  %320 = vmatprep.mubr.f32.mxu0 %v22
  %321 = vmatmul.mubr.f32.gmra.mrb[0].mxu0 %v21
  %v322 = vpop.f32.mrb[0].mxu0
  %v323 = vadd.f32 %v234, %v322
  %v324 = vpop.f32.mrb[0].mxu0
  %v325 = vadd.f32 %v236, %v324
  %326 = vmatprep.mubr.f32.mxu0 %v26
  %327 = vmatmul.mubr.f32.gmra.mrb[0].mxu0 %v25
  %v328 = vpop.f32.mrb[0].mxu0
  %v329 = vadd.f32 %v240, %v328
  %v330 = vpop.f32.mrb[0].mxu0
  %v331 = vadd.f32 %v242, %v330
  %332 = vdwg.mxu0
  %333 = vst [vmem:[%s2] sm:$0xff] %v311
  %334 = vst [vmem:[%s2 + $0x8] sm:$0xff] %v313
  %335 = vst [vmem:[%s2 + $0x10] sm:$0xff] %v317
  %336 = vst [vmem:[%s2 + $0x18] sm:$0xff] %v319
  %337 = vst [vmem:[%s2 + $0x20] sm:$0xff] %v323
  %338 = vst [vmem:[%s2 + $0x28] sm:$0xff] %v325
  %339 = vst [vmem:[%s2 + $0x30] sm:$0xff] %v329
  %340 = vst [vmem:[%s2 + $0x38] sm:$0xff] %v331
  // Predicated region
  $region10: #{mgvae_forward.14} parent=0 // pred_check
    _
  $region11: #{mgvae_forward.14} parent=0 // pred_check_branch
    %342 = sbr.rel (0) target = $region13
  $region12: #{mgvae_forward.14} parent=0 // pred_region
    _
  $region13: #{mgvae_forward.14} parent=0 // pred_fallthru
    _
  // Predicated region
  $region14: #{mgvae_forward.14} parent=0 // pred_check
    _
  $region15: #{mgvae_forward.14} parent=0 // pred_check_branch
    %344 = sbr.rel (0) target = $region17
  $region16: #{mgvae_forward.14} parent=0 // pred_region
    _
  $region17: #{mgvae_forward.14} parent=0 // pred_fallthru
    _

// kernel: mgvae_forward.15
$region0: #{mgvae_forward.15}
  #allocation0 [shape = 'u32[]', space=smem, size = 0x4, offset = 0x4, fixed_abs, tag = 'smem constant byte address 0x4 - core index']
  #allocation1 [shape = 'u32[144,128]{1,0:T(1,128)}', space=vmem, size = 0x12000, scoped, tag = 'internal scratch']
  %s0 = inlined_call_operand.vmem [shape: f32[98,64], index: 0, kind: input, shape index: {}]
  %s1 = inlined_call_operand.vmem [shape: f32[1,64], index: 1, kind: input, shape index: {}]
  %s2 = inlined_call_operand.vmem [shape: f32[1,64], index: 2, kind: input, shape index: {}]
  %s3 = inlined_call_operand.vmem [shape: f32[98,64], index: 3, kind: output, shape index: {}]
  %s4 = sld [smem:[#allocation0]]
  $region22: #{mgvae_forward.15} parent=0
    _
  %s6 = ssub.s32 1, %s4
  %s7 = scalar_select 0, %s6, %s4
  // Predicated region
  $region2: #{mgvae_forward.15} parent=0 // pred_check
    _
  $region3: #{mgvae_forward.15} parent=0 // pred_check_branch
    %9 = sbr.rel (0) target = $region5
  $region4: #{mgvae_forward.15} parent=0 // pred_region
    _
  $region5: #{mgvae_forward.15} parent=0 // pred_fallthru
    _
  // Predicated region
  $region6: #{mgvae_forward.15} parent=0 // pred_check
    _
  $region7: #{mgvae_forward.15} parent=0 // pred_check_branch
    %11 = sbr.rel (0) target = $region9
  $region8: #{mgvae_forward.15} parent=0 // pred_region
    _
  $region9: #{mgvae_forward.15} parent=0 // pred_fallthru
    _
  // Predicated region
  $region10: #{mgvae_forward.15} parent=0 // pred_check
    _
  $region11: #{mgvae_forward.15} parent=0 // pred_check_branch
    %13 = sbr.rel (0) target = $region13
  $region12: #{mgvae_forward.15} parent=0 // pred_region
    _
  $region13: #{mgvae_forward.15} parent=0 // pred_fallthru
    _
  %v14 = vld [vmem:[%s0] sm:$0xff]
  %v15 = vld [vmem:[%s0 + $0x8] sm:$0xff]
  %v16 = vld [vmem:[%s0 + $0x10] sm:$0xff]
  %v17 = vld [vmem:[%s0 + $0x18] sm:$0xff]
  %v18 = vld [vmem:[%s0 + $0x20] sm:$0xff]
  %v19 = vld [vmem:[%s0 + $0x28] sm:$0xff]
  %v20 = vld [vmem:[%s0 + $0x30] sm:$0xff]
  %v21 = vld [vmem:[%s0 + $0x38] sm:$0xff]
  %v22 = vld [vmem:[%s0 + $0x40] sm:$0xff]
  %v23 = vld [vmem:[%s0 + $0x48] sm:$0xff]
  %v24 = vld [vmem:[%s0 + $0x50] sm:$0xff]
  %v25 = vld [vmem:[%s0 + $0x58] sm:$0xff]
  %v26 = vld [vmem:[%s0 + $0x60] sm:$0x3]
  %v27 = vld [vmem:[%s1] sm:$0x1]
  %v28 = vld [vmem:[%s2] sm:$0x1]
  %vm29 = vcmask 523264
  %v30 = vsel %vm29, %v14, 0.0
  %v31 = vsel %vm29, %v15, 0.0
  %v32 = vadd.f32 %v30, %v31
  %v33 = vsel %vm29, %v16, 0.0
  %v34 = vadd.f32 %v32, %v33
  %v35 = vsel %vm29, %v17, 0.0
  %v36 = vadd.f32 %v34, %v35
  %v37 = vsel %vm29, %v18, 0.0
  %v38 = vadd.f32 %v36, %v37
  %v39 = vsel %vm29, %v19, 0.0
  %v40 = vadd.f32 %v38, %v39
  %v41 = vsel %vm29, %v20, 0.0
  %v42 = vadd.f32 %v40, %v41
  %v43 = vsel %vm29, %v21, 0.0
  %v44 = vadd.f32 %v42, %v43
  %v45 = vsel %vm29, %v22, 0.0
  %v46 = vadd.f32 %v44, %v45
  %v47 = vsel %vm29, %v23, 0.0
  %v48 = vadd.f32 %v46, %v47
  %v49 = vsel %vm29, %v24, 0.0
  %v50 = vadd.f32 %v48, %v49
  %v51 = vsel %vm29, %v25, 0.0
  %v52 = vadd.f32 %v50, %v51
  %vm53 = vcmask 517120
  %v54 = vsel %vm53, %v26, 0.0
  %v55 = vadd.f32 %v52, %v54
  %v56 = vrot.slane %v55, 4
  %v57 = vadd.f32 %v55, %v56
  %v58 = vrot.slane %v57, 2
  %v59 = vadd.f32 %v57, %v58
  %v60 = vrot.slane %v59, 1
  %v61 = vadd.f32 %v59, %v60
  %v62 = vmul.f32 %v14, %v14
  %v63 = vmul.f32 %v15, %v15
  %v64 = vmul.f32 %v16, %v16
  %v65 = vmul.f32 %v17, %v17
  %v66 = vmul.f32 %v18, %v18
  %v67 = vmul.f32 %v19, %v19
  %v68 = vmul.f32 %v20, %v20
  %v69 = vmul.f32 %v21, %v21
  %v70 = vmul.f32 %v22, %v22
  %v71 = vmul.f32 %v23, %v23
  %v72 = vmul.f32 %v24, %v24
  %v73 = vmul.f32 %v25, %v25
  %v74 = vmul.f32 %v26, %v26
  %v75 = vsel %vm29, %v62, 0.0
  %v76 = vsel %vm29, %v63, 0.0
  %v77 = vadd.f32 %v75, %v76
  %v78 = vsel %vm29, %v64, 0.0
  %v79 = vadd.f32 %v77, %v78
  %v80 = vsel %vm29, %v65, 0.0
  %v81 = vadd.f32 %v79, %v80
  %v82 = vsel %vm29, %v66, 0.0
  %v83 = vadd.f32 %v81, %v82
  %v84 = vsel %vm29, %v67, 0.0
  %v85 = vadd.f32 %v83, %v84
  %v86 = vsel %vm29, %v68, 0.0
  %v87 = vadd.f32 %v85, %v86
  %v88 = vsel %vm29, %v69, 0.0
  %v89 = vadd.f32 %v87, %v88
  %v90 = vsel %vm29, %v70, 0.0
  %v91 = vadd.f32 %v89, %v90
  %v92 = vsel %vm29, %v71, 0.0
  %v93 = vadd.f32 %v91, %v92
  %v94 = vsel %vm29, %v72, 0.0
  %v95 = vadd.f32 %v93, %v94
  %v96 = vsel %vm29, %v73, 0.0
  %v97 = vadd.f32 %v95, %v96
  %v98 = vsel %vm53, %v74, 0.0
  %v99 = vadd.f32 %v97, %v98
  %v100 = vrot.slane %v99, 4
  %v101 = vadd.f32 %v99, %v100
  %v102 = vrot.slane %v101, 2
  %v103 = vadd.f32 %v101, %v102
  %v104 = vrot.slane %v103, 1
  %v105 = vadd.f32 %v103, %v104
  %v106 = vmul.f32 %v61, 0.010204081
  %v107 = vmul.f32 %v105, 0.010204081
  %v108 = vmul.f32 %v106, %v106
  %v109 = vsub.f32 %v107, %v108
  %v110 = vmax.f32 %v109, 0.0
  %v111 = vadd.f32 %v110, 1e-05
  %v112 = vrsqrt.pop %v111
  %v113 = vmul.f32 %v27, %v112
  %v114 = vmul.f32 %v106, %v113
  %v115 = vsub.f32 %v28, %v114
  %v117 = vlaneseq
  %v118 = vshrl.u32 %v117, 7
  %v119 = vsub.s32 0, %v118
  %v120 = vrot.slane %v113, %v119
  %v122 = vmul.f32 %v14, %v120
  %v123 = vmul.f32 %v15, %v120
  %v124 = vmul.f32 %v16, %v120
  %v125 = vmul.f32 %v17, %v120
  %v126 = vmul.f32 %v18, %v120
  %v127 = vmul.f32 %v19, %v120
  %v128 = vmul.f32 %v20, %v120
  %v129 = vmul.f32 %v21, %v120
  %v130 = vmul.f32 %v22, %v120
  %v131 = vmul.f32 %v23, %v120
  %v132 = vmul.f32 %v24, %v120
  %v133 = vmul.f32 %v25, %v120
  %v134 = vmul.f32 %v26, %v120
  %v136 = vlaneseq
  %v137 = vshrl.u32 %v136, 7
  %v138 = vsub.s32 0, %v137
  %v139 = vrot.slane %v115, %v138
  %v141 = vadd.f32 %v122, %v139
  %v142 = vadd.f32 %v123, %v139
  %v143 = vadd.f32 %v124, %v139
  %v144 = vadd.f32 %v125, %v139
  %v145 = vadd.f32 %v126, %v139
  %v146 = vadd.f32 %v127, %v139
  %v147 = vadd.f32 %v128, %v139
  %v148 = vadd.f32 %v129, %v139
  %v149 = vadd.f32 %v130, %v139
  %v150 = vadd.f32 %v131, %v139
  %v151 = vadd.f32 %v132, %v139
  %v152 = vadd.f32 %v133, %v139
  %v153 = vadd.f32 %v134, %v139
  %v154 = vmax.f32 %v141, 0.0
  %v155 = vmax.f32 %v142, 0.0
  %v156 = vmax.f32 %v143, 0.0
  %v157 = vmax.f32 %v144, 0.0
  %v158 = vmax.f32 %v145, 0.0
  %v159 = vmax.f32 %v146, 0.0
  %v160 = vmax.f32 %v147, 0.0
  %v161 = vmax.f32 %v148, 0.0
  %v162 = vmax.f32 %v149, 0.0
  %v163 = vmax.f32 %v150, 0.0
  %v164 = vmax.f32 %v151, 0.0
  %v165 = vmax.f32 %v152, 0.0
  %v166 = vmax.f32 %v153, 0.0
  %167 = vst.msk [vmem:[%s3] sm:$0xff] %vm29, %v154
  %168 = vst.msk [vmem:[%s3 + $0x8] sm:$0xff] %vm29, %v155
  %169 = vst.msk [vmem:[%s3 + $0x10] sm:$0xff] %vm29, %v156
  %170 = vst.msk [vmem:[%s3 + $0x18] sm:$0xff] %vm29, %v157
  %171 = vst.msk [vmem:[%s3 + $0x20] sm:$0xff] %vm29, %v158
  %172 = vst.msk [vmem:[%s3 + $0x28] sm:$0xff] %vm29, %v159
  %173 = vst.msk [vmem:[%s3 + $0x30] sm:$0xff] %vm29, %v160
  %174 = vst.msk [vmem:[%s3 + $0x38] sm:$0xff] %vm29, %v161
  %175 = vst.msk [vmem:[%s3 + $0x40] sm:$0xff] %vm29, %v162
  %176 = vst.msk [vmem:[%s3 + $0x48] sm:$0xff] %vm29, %v163
  %177 = vst.msk [vmem:[%s3 + $0x50] sm:$0xff] %vm29, %v164
  %178 = vst.msk [vmem:[%s3 + $0x58] sm:$0xff] %vm29, %v165
  %179 = vst.msk [vmem:[%s3 + $0x60] sm:$0x3] %vm53, %v166
  // Predicated region
  $region14: #{mgvae_forward.15} parent=0 // pred_check
    _
  $region15: #{mgvae_forward.15} parent=0 // pred_check_branch
    %181 = sbr.rel (0) target = $region17
  $region16: #{mgvae_forward.15} parent=0 // pred_region
    _
  $region17: #{mgvae_forward.15} parent=0 // pred_fallthru
    _
  // Predicated region
  $region18: #{mgvae_forward.15} parent=0 // pred_check
    _
  $region19: #{mgvae_forward.15} parent=0 // pred_check_branch
    %183 = sbr.rel (0) target = $region21
  $region20: #{mgvae_forward.15} parent=0 // pred_region
    _
  $region21: #{mgvae_forward.15} parent=0 // pred_fallthru
    _

// kernel: mgvae_forward.16
$region0: #{mgvae_forward.16}
  #allocation0 [shape = 'u32[]', space=smem, size = 0x4, offset = 0x4, fixed_abs, tag = 'smem constant byte address 0x4 - core index']
  #allocation1 [shape = 'u32[144,128]{1,0:T(1,128)}', space=vmem, size = 0x12000, scoped, tag = 'internal scratch']
  %s0 = inlined_call_operand.vmem [shape: f32[98,256], index: 0, kind: input, shape index: {}]
  %s1 = inlined_call_operand.vmem [shape: f32[256,128], index: 1, kind: input, shape index: {}]
  %s2 = inlined_call_operand.vmem [shape: f32[1,32], index: 2, kind: input, shape index: {}]
  %s3 = inlined_call_operand.vmem [shape: f32[1,32], index: 3, kind: input, shape index: {}]
  %s4 = inlined_call_operand.vmem [shape: f32[98,128], index: 4, kind: output, shape index: {}]
  %s5 = sld [smem:[#allocation0]]
  $region26: #{mgvae_forward.16} parent=0
    _
  %s7 = ssub.s32 1, %s5
  %s8 = scalar_select 0, %s7, %s5
  // Predicated region
  $region2: #{mgvae_forward.16} parent=0 // pred_check
    _
  $region3: #{mgvae_forward.16} parent=0 // pred_check_branch
    %10 = sbr.rel (0) target = $region5
  $region4: #{mgvae_forward.16} parent=0 // pred_region
    _
  $region5: #{mgvae_forward.16} parent=0 // pred_fallthru
    _
  // Predicated region
  $region6: #{mgvae_forward.16} parent=0 // pred_check
    _
  $region7: #{mgvae_forward.16} parent=0 // pred_check_branch
    %12 = sbr.rel (0) target = $region9
  $region8: #{mgvae_forward.16} parent=0 // pred_region
    _
  $region9: #{mgvae_forward.16} parent=0 // pred_fallthru
    _
  // Predicated region
  $region10: #{mgvae_forward.16} parent=0 // pred_check
    _
  $region11: #{mgvae_forward.16} parent=0 // pred_check_branch
    %14 = sbr.rel (0) target = $region13
  $region12: #{mgvae_forward.16} parent=0 // pred_region
    _
  $region13: #{mgvae_forward.16} parent=0 // pred_fallthru
    _
  // Predicated region
  $region14: #{mgvae_forward.16} parent=0 // pred_check
    _
  $region15: #{mgvae_forward.16} parent=0 // pred_check_branch
    %16 = sbr.rel (0) target = $region17
  $region16: #{mgvae_forward.16} parent=0 // pred_region
    _
  $region17: #{mgvae_forward.16} parent=0 // pred_fallthru
    _
  %v17 = vld [vmem:[%s0] sm:$0xff]
  %v18 = vld [vmem:[%s0 + $0x8] sm:$0xff]
  %v19 = vld [vmem:[%s0 + $0x10] sm:$0xff]
  %v20 = vld [vmem:[%s0 + $0x18] sm:$0xff]
  %v21 = vld [vmem:[%s0 + $0x20] sm:$0xff]
  %v22 = vld [vmem:[%s0 + $0x28] sm:$0xff]
  %v23 = vld [vmem:[%s0 + $0x30] sm:$0xff]
  %v24 = vld [vmem:[%s0 + $0x38] sm:$0xff]
  %v25 = vld [vmem:[%s0 + $0x40] sm:$0xff]
  %v26 = vld [vmem:[%s0 + $0x48] sm:$0xff]
  %v27 = vld [vmem:[%s0 + $0x50] sm:$0xff]
  %v28 = vld [vmem:[%s0 + $0x58] sm:$0xff]
  %v29 = vld [vmem:[%s0 + $0x60] sm:$0xff]
  %v30 = vld [vmem:[%s0 + $0x68] sm:$0xff]
  %v31 = vld [vmem:[%s0 + $0x70] sm:$0xff]
  %v32 = vld [vmem:[%s0 + $0x78] sm:$0xff]
  %v33 = vld [vmem:[%s0 + $0x80] sm:$0xff]
  %v34 = vld [vmem:[%s0 + $0x88] sm:$0xff]
  %v35 = vld [vmem:[%s0 + $0x90] sm:$0xff]
  %v36 = vld [vmem:[%s0 + $0x98] sm:$0xff]
  %v37 = vld [vmem:[%s0 + $0xa0] sm:$0xff]
  %v38 = vld [vmem:[%s0 + $0xa8] sm:$0xff]
  %v39 = vld [vmem:[%s0 + $0xb0] sm:$0xff]
  %v40 = vld [vmem:[%s0 + $0xb8] sm:$0xff]
  %v41 = vld [vmem:[%s0 + $0xc0] sm:$0x3]
  %v42 = vld [vmem:[%s0 + $0xc8] sm:$0x3]
  %v43 = vld [vmem:[%s1] sm:$0xff]
  %v44 = vld [vmem:[%s1 + $0x8] sm:$0xff]
  %v45 = vld [vmem:[%s1 + $0x10] sm:$0xff]
  %v46 = vld [vmem:[%s1 + $0x18] sm:$0xff]
  %v47 = vld [vmem:[%s1 + $0x20] sm:$0xff]
  %v48 = vld [vmem:[%s1 + $0x28] sm:$0xff]
  %v49 = vld [vmem:[%s1 + $0x30] sm:$0xff]
  %v50 = vld [vmem:[%s1 + $0x38] sm:$0xff]
  %v51 = vld [vmem:[%s1 + $0x40] sm:$0xff]
  %v52 = vld [vmem:[%s1 + $0x48] sm:$0xff]
  %v53 = vld [vmem:[%s1 + $0x50] sm:$0xff]
  %v54 = vld [vmem:[%s1 + $0x58] sm:$0xff]
  %v55 = vld [vmem:[%s1 + $0x60] sm:$0xff]
  %v56 = vld [vmem:[%s1 + $0x68] sm:$0xff]
  %v57 = vld [vmem:[%s1 + $0x70] sm:$0xff]
  %v58 = vld [vmem:[%s1 + $0x78] sm:$0xff]
  %v59 = vld [vmem:[%s1 + $0x80] sm:$0xff]
  %v60 = vld [vmem:[%s1 + $0x88] sm:$0xff]
  %v61 = vld [vmem:[%s1 + $0x90] sm:$0xff]
  %v62 = vld [vmem:[%s1 + $0x98] sm:$0xff]
  %v63 = vld [vmem:[%s1 + $0xa0] sm:$0xff]
  %v64 = vld [vmem:[%s1 + $0xa8] sm:$0xff]
  %v65 = vld [vmem:[%s1 + $0xb0] sm:$0xff]
  %v66 = vld [vmem:[%s1 + $0xb8] sm:$0xff]
  %v67 = vld [vmem:[%s1 + $0xc0] sm:$0xff]
  %v68 = vld [vmem:[%s1 + $0xc8] sm:$0xff]
  %v69 = vld [vmem:[%s1 + $0xd0] sm:$0xff]
  %v70 = vld [vmem:[%s1 + $0xd8] sm:$0xff]
  %v71 = vld [vmem:[%s1 + $0xe0] sm:$0xff]
  %v72 = vld [vmem:[%s1 + $0xe8] sm:$0xff]
  %v73 = vld [vmem:[%s1 + $0xf0] sm:$0xff]
  %v74 = vld [vmem:[%s1 + $0xf8] sm:$0xff]
  %75 = vmatprep.subr.mxu0 0.0
  %76 = vmatpush1.msra.mxu0 %v43
  %77 = vmatprep.subr.mxu0 0.0
  %78 = vmatpush1.msra.mxu0 %v44
  %79 = vmatprep.subr.mxu0 0.0
  %80 = vmatpush1.msra.mxu0 %v45
  %81 = vmatprep.subr.mxu0 0.0
  %82 = vmatpush1.msra.mxu0 %v46
  %83 = vmatprep.subr.mxu0 0.0
  %84 = vmatpush1.msra.mxu0 %v47
  %85 = vmatprep.subr.mxu0 0.0
  %86 = vmatpush1.msra.mxu0 %v48
  %87 = vmatprep.subr.mxu0 0.0
  %88 = vmatpush1.msra.mxu0 %v49
  %89 = vmatprep.subr.mxu0 0.0
  %90 = vmatpush1.msra.mxu0 %v50
  %91 = vmatprep.subr.mxu0 0.0
  %92 = vmatpush1.msra.mxu0 %v51
  %93 = vmatprep.subr.mxu0 0.0
  %94 = vmatpush1.msra.mxu0 %v52
  %95 = vmatprep.subr.mxu0 0.0
  %96 = vmatpush1.msra.mxu0 %v53
  %97 = vmatprep.subr.mxu0 0.0
  %98 = vmatpush1.msra.mxu0 %v54
  %99 = vmatprep.subr.mxu0 0.0
  %100 = vmatpush1.msra.mxu0 %v55
  %101 = vmatprep.subr.mxu0 0.0
  %102 = vmatpush1.msra.mxu0 %v56
  %103 = vmatprep.subr.mxu0 0.0
  %104 = vmatpush1.msra.mxu0 %v57
  %105 = vmatprep.subr.mxu0 0.0
  %106 = vmatpush1.msra.mxu0 %v58
  %107 = vmatprep.subr.mxu0 0.0
  %108 = vmatpush1.msra.mxu0 %v59
  %109 = vmatprep.subr.mxu0 0.0
  %110 = vmatpush1.msra.mxu0 %v60
  %111 = vmatprep.subr.mxu0 0.0
  %112 = vmatpush1.msra.mxu0 %v61
  %113 = vmatprep.subr.mxu0 0.0
  %114 = vmatpush1.msra.mxu0 %v62
  %115 = vmatprep.subr.mxu0 0.0
  %116 = vmatpush1.msra.mxu0 %v63
  %117 = vmatprep.subr.mxu0 0.0
  %118 = vmatpush1.msra.mxu0 %v64
  %119 = vmatprep.subr.mxu0 0.0
  %120 = vmatpush1.msra.mxu0 %v65
  %121 = vmatprep.subr.mxu0 0.0
  %122 = vmatpush1.msra.mxu0 %v66
  %123 = vmatprep.subr.mxu0 0.0
  %124 = vmatpush1.msra.mxu0 %v67
  %125 = vmatprep.subr.mxu0 0.0
  %126 = vmatpush1.msra.mxu0 %v68
  %127 = vmatprep.subr.mxu0 0.0
  %128 = vmatpush1.msra.mxu0 %v69
  %129 = vmatprep.subr.mxu0 0.0
  %130 = vmatpush1.msra.mxu0 %v70
  %131 = vmatprep.subr.mxu0 0.0
  %132 = vmatpush1.msra.mxu0 %v71
  %133 = vmatprep.subr.mxu0 0.0
  %134 = vmatpush1.msra.mxu0 %v72
  %135 = vmatprep.subr.mxu0 0.0
  %136 = vmatpush1.msra.mxu0 %v73
  %137 = vmatprep.subr.mxu0 0.0
  %138 = vmatpush1.msra.mxu0 %v74
  %139 = vmatprep.mubr.f32.mxu0 %v18
  %140 = vmatmul.mubr.f32.gmra.mrb[0].mxu0 %v17
  %v141 = vpop.f32.mrb[0].mxu0
  %v142 = vadd.f32 0.0, %v141
  %v143 = vpop.f32.mrb[0].mxu0
  %144 = vmatprep.mubr.f32.mxu0 %v20
  %145 = vmatmul.mubr.f32.gmra.mrb[0].mxu0 %v19
  %v146 = vpop.f32.mrb[0].mxu0
  %v147 = vadd.f32 0.0, %v146
  %v148 = vpop.f32.mrb[0].mxu0
  %149 = vmatprep.mubr.f32.mxu0 %v22
  %150 = vmatmul.mubr.f32.gmra.mrb[0].mxu0 %v21
  %v151 = vpop.f32.mrb[0].mxu0
  %v152 = vadd.f32 0.0, %v151
  %v153 = vpop.f32.mrb[0].mxu0
  %154 = vmatprep.mubr.f32.mxu0 %v24
  %155 = vmatmul.mubr.f32.gmra.mrb[0].mxu0 %v23
  %v156 = vpop.f32.mrb[0].mxu0
  %v157 = vadd.f32 0.0, %v156
  %v158 = vpop.f32.mrb[0].mxu0
  %159 = vmatprep.mubr.f32.mxu0 %v26
  %160 = vmatmul.mubr.f32.gmra.mrb[0].mxu0 %v25
  %v161 = vpop.f32.mrb[0].mxu0
  %v162 = vadd.f32 0.0, %v161
  %v163 = vpop.f32.mrb[0].mxu0
  %164 = vmatprep.mubr.f32.mxu0 %v28
  %165 = vmatmul.mubr.f32.gmra.mrb[0].mxu0 %v27
  %v166 = vpop.f32.mrb[0].mxu0
  %v167 = vadd.f32 0.0, %v166
  %v168 = vpop.f32.mrb[0].mxu0
  %169 = vmatprep.mubr.f32.mxu0 %v30
  %170 = vmatmul.mubr.f32.gmra.mrb[0].mxu0 %v29
  %v171 = vpop.f32.mrb[0].mxu0
  %v172 = vadd.f32 0.0, %v171
  %v173 = vpop.f32.mrb[0].mxu0
  %174 = vmatprep.mubr.f32.mxu0 %v32
  %175 = vmatmul.mubr.f32.gmra.mrb[0].mxu0 %v31
  %v176 = vpop.f32.mrb[0].mxu0
  %v177 = vadd.f32 0.0, %v176
  %v178 = vpop.f32.mrb[0].mxu0
  %179 = vmatprep.mubr.f32.mxu0 %v34
  %180 = vmatmul.mubr.f32.gmra.mrb[0].mxu0 %v33
  %v181 = vpop.f32.mrb[0].mxu0
  %v182 = vadd.f32 0.0, %v181
  %v183 = vpop.f32.mrb[0].mxu0
  %184 = vmatprep.mubr.f32.mxu0 %v36
  %185 = vmatmul.mubr.f32.gmra.mrb[0].mxu0 %v35
  %v186 = vpop.f32.mrb[0].mxu0
  %v187 = vadd.f32 0.0, %v186
  %v188 = vpop.f32.mrb[0].mxu0
  %189 = vmatprep.mubr.f32.mxu0 %v38
  %190 = vmatmul.mubr.f32.gmra.mrb[0].mxu0 %v37
  %v191 = vpop.f32.mrb[0].mxu0
  %v192 = vadd.f32 0.0, %v191
  %v193 = vpop.f32.mrb[0].mxu0
  %194 = vmatprep.mubr.f32.mxu0 %v40
  %195 = vmatmul.mubr.f32.gmra.mrb[0].mxu0 %v39
  %v196 = vpop.f32.mrb[0].mxu0
  %v197 = vadd.f32 0.0, %v196
  %v198 = vpop.f32.mrb[0].mxu0
  %199 = vmatprep.mubr.f32.mxu0 %v42
  %200 = vmatmul.mubr.f32.gmra.mrb[0].mxu0 %v41
  %v201 = vpop.f32.mrb[0].mxu0
  %v202 = vadd.f32 0.0, %v201
  %v203 = vpop.f32.mrb[0].mxu0
  %204 = vdwg.mxu0
  %v205 = vld [vmem:[%s2] sm:$0x1]
  %v206 = vld [vmem:[%s3] sm:$0x1]
  %v207 = vadd.f32 %v142, %v147
  %v208 = vadd.f32 %v207, %v152
  %v209 = vadd.f32 %v208, %v157
  %v210 = vadd.f32 %v209, %v162
  %v211 = vadd.f32 %v210, %v167
  %v212 = vadd.f32 %v211, %v172
  %v213 = vadd.f32 %v212, %v177
  %v214 = vadd.f32 %v213, %v182
  %v215 = vadd.f32 %v214, %v187
  %v216 = vadd.f32 %v215, %v192
  %v217 = vadd.f32 %v216, %v197
  %vm218 = vcmask 1041408
  %v219 = vsel %vm218, %v202, 0.0
  %v220 = vadd.f32 %v217, %v219
  %v221 = vrot.slane %v220, 4
  %v222 = vadd.f32 %v220, %v221
  %v223 = vrot.slane %v222, 2
  %v224 = vadd.f32 %v222, %v223
  %v225 = vrot.slane %v224, 1
  %v226 = vadd.f32 %v224, %v225
  %v227 = vmul.f32 %v142, %v142
  %v228 = vmul.f32 %v147, %v147
  %v229 = vmul.f32 %v152, %v152
  %v230 = vmul.f32 %v157, %v157
  %v231 = vmul.f32 %v162, %v162
  %v232 = vmul.f32 %v167, %v167
  %v233 = vmul.f32 %v172, %v172
  %v234 = vmul.f32 %v177, %v177
  %v235 = vmul.f32 %v182, %v182
  %v236 = vmul.f32 %v187, %v187
  %v237 = vmul.f32 %v192, %v192
  %v238 = vmul.f32 %v197, %v197
  %v239 = vmul.f32 %v202, %v202
  %v240 = vadd.f32 %v227, %v228
  %v241 = vadd.f32 %v240, %v229
  %v242 = vadd.f32 %v241, %v230
  %v243 = vadd.f32 %v242, %v231
  %v244 = vadd.f32 %v243, %v232
  %v245 = vadd.f32 %v244, %v233
  %v246 = vadd.f32 %v245, %v234
  %v247 = vadd.f32 %v246, %v235
  %v248 = vadd.f32 %v247, %v236
  %v249 = vadd.f32 %v248, %v237
  %v250 = vadd.f32 %v249, %v238
  %v251 = vsel %vm218, %v239, 0.0
  %v252 = vadd.f32 %v250, %v251
  %v253 = vrot.slane %v252, 4
  %v254 = vadd.f32 %v252, %v253
  %v255 = vrot.slane %v254, 2
  %v256 = vadd.f32 %v254, %v255
  %v257 = vrot.slane %v256, 1
  %v258 = vadd.f32 %v256, %v257
  %v259 = vadd.f32 %v226, 0.0
  %261 = vrot.lane.b32.xlu0 %v226, 96
  %v262 = vpop.permute.xlu0 %261
  %v264 = vadd.f32 %v259, %v262
  %265 = vrot.lane.b32.xlu0 %v226, 64
  %v266 = vpop.permute.xlu0 %265
  %v268 = vadd.f32 %v264, %v266
  %269 = vrot.lane.b32.xlu0 %v226, 32
  %v270 = vpop.permute.xlu0 %269
  %v272 = vadd.f32 %v268, %v270
  %v273 = vadd.f32 %v258, 0.0
  %275 = vrot.lane.b32.xlu0 %v258, 96
  %v276 = vpop.permute.xlu0 %275
  %v278 = vadd.f32 %v273, %v276
  %279 = vrot.lane.b32.xlu0 %v258, 64
  %v280 = vpop.permute.xlu0 %279
  %v282 = vadd.f32 %v278, %v280
  %283 = vrot.lane.b32.xlu0 %v258, 32
  %v284 = vpop.permute.xlu0 %283
  %v286 = vadd.f32 %v282, %v284
  %v287 = vmul.f32 %v272, 0.0025510204
  %v288 = vmul.f32 %v286, 0.0025510204
  %v289 = vmul.f32 %v287, %v287
  %v290 = vsub.f32 %v288, %v289
  %v291 = vmax.f32 %v290, 0.0
  %v292 = vadd.f32 %v291, 1e-05
  %v293 = vrsqrt.pop %v292
  %v294 = vmul.f32 %v205, %v293
  %v295 = vmul.f32 %v287, %v294
  %v296 = vsub.f32 %v206, %v295
  %v298 = vlaneseq
  %v299 = vshrl.u32 %v298, 7
  %v300 = vsub.s32 0, %v299
  %v301 = vrot.slane %v294, %v300
  %302 = vrot.lane.b32.xlu0 %v301, 32
  %v303 = vpop.permute.xlu0 %302
  %305 = vrot.lane.b32.xlu0 %v301, 64
  %v306 = vpop.permute.xlu0 %305
  %308 = vrot.lane.b32.xlu0 %v301, 96
  %v309 = vpop.permute.xlu0 %308
  %vm311 = vcmask 261120
  %v312 = vsel %vm311, %v294, %v303
  %vm313 = vcmask 523264
  %v314 = vsel %vm313, %v312, %v306
  %vm315 = vcmask 785408
  %v316 = vsel %vm315, %v314, %v309
  %v318 = vlaneseq
  %v319 = vshrl.u32 %v318, 7
  %v320 = vsub.s32 0, %v319
  %v321 = vrot.slane %v296, %v320
  %322 = vrot.lane.b32.xlu0 %v321, 32
  %v323 = vpop.permute.xlu0 %322
  %325 = vrot.lane.b32.xlu0 %v321, 64
  %v326 = vpop.permute.xlu0 %325
  %328 = vrot.lane.b32.xlu0 %v321, 96
  %v329 = vpop.permute.xlu0 %328
  %v331 = vsel %vm311, %v296, %v323
  %v332 = vsel %vm313, %v331, %v326
  %v333 = vsel %vm315, %v332, %v329
  %v334 = vlaneseq
  %v335 = vshrl.u32 %v334, 7
  %v336 = vsub.s32 0, %v335
  %v337 = vrot.slane %v316, %v336
  %v338 = vmul.f32 %v142, %v337
  %v339 = vmul.f32 %v147, %v337
  %v340 = vmul.f32 %v152, %v337
  %v341 = vmul.f32 %v157, %v337
  %v342 = vmul.f32 %v162, %v337
  %v343 = vmul.f32 %v167, %v337
  %v344 = vmul.f32 %v172, %v337
  %v345 = vmul.f32 %v177, %v337
  %v346 = vmul.f32 %v182, %v337
  %v347 = vmul.f32 %v187, %v337
  %v348 = vmul.f32 %v192, %v337
  %v349 = vmul.f32 %v197, %v337
  %v350 = vmul.f32 %v202, %v337
  %v351 = vlaneseq
  %v352 = vshrl.u32 %v351, 7
  %v353 = vsub.s32 0, %v352
  %v354 = vrot.slane %v333, %v353
  %v355 = vadd.f32 %v338, %v354
  %v356 = vadd.f32 %v339, %v354
  %v357 = vadd.f32 %v340, %v354
  %v358 = vadd.f32 %v341, %v354
  %v359 = vadd.f32 %v342, %v354
  %v360 = vadd.f32 %v343, %v354
  %v361 = vadd.f32 %v344, %v354
  %v362 = vadd.f32 %v345, %v354
  %v363 = vadd.f32 %v346, %v354
  %v364 = vadd.f32 %v347, %v354
  %v365 = vadd.f32 %v348, %v354
  %v366 = vadd.f32 %v349, %v354
  %v367 = vadd.f32 %v350, %v354
  %v368 = vmax.f32 %v355, 0.0
  %v369 = vmax.f32 %v356, 0.0
  %v370 = vmax.f32 %v357, 0.0
  %v371 = vmax.f32 %v358, 0.0
  %v372 = vmax.f32 %v359, 0.0
  %v373 = vmax.f32 %v360, 0.0
  %v374 = vmax.f32 %v361, 0.0
  %v375 = vmax.f32 %v362, 0.0
  %v376 = vmax.f32 %v363, 0.0
  %v377 = vmax.f32 %v364, 0.0
  %v378 = vmax.f32 %v365, 0.0
  %v379 = vmax.f32 %v366, 0.0
  %v380 = vmax.f32 %v367, 0.0
  %381 = vst [vmem:[%s4] sm:$0xff] %v368
  %382 = vst [vmem:[%s4 + $0x8] sm:$0xff] %v369
  %383 = vst [vmem:[%s4 + $0x10] sm:$0xff] %v370
  %384 = vst [vmem:[%s4 + $0x18] sm:$0xff] %v371
  %385 = vst [vmem:[%s4 + $0x20] sm:$0xff] %v372
  %386 = vst [vmem:[%s4 + $0x28] sm:$0xff] %v373
  %387 = vst [vmem:[%s4 + $0x30] sm:$0xff] %v374
  %388 = vst [vmem:[%s4 + $0x38] sm:$0xff] %v375
  %389 = vst [vmem:[%s4 + $0x40] sm:$0xff] %v376
  %390 = vst [vmem:[%s4 + $0x48] sm:$0xff] %v377
  %391 = vst [vmem:[%s4 + $0x50] sm:$0xff] %v378
  %392 = vst [vmem:[%s4 + $0x58] sm:$0xff] %v379
  %393 = vst [vmem:[%s4 + $0x60] sm:$0x3] %v380
  // Predicated region
  $region18: #{mgvae_forward.16} parent=0 // pred_check
    _
  $region19: #{mgvae_forward.16} parent=0 // pred_check_branch
    %395 = sbr.rel (0) target = $region21
  $region20: #{mgvae_forward.16} parent=0 // pred_region
    _
  $region21: #{mgvae_forward.16} parent=0 // pred_fallthru
    _
  // Predicated region
  $region22: #{mgvae_forward.16} parent=0 // pred_check
    _
  $region23: #{mgvae_forward.16} parent=0 // pred_check_branch
    %397 = sbr.rel (0) target = $region25
  $region24: #{mgvae_forward.16} parent=0 // pred_region
    _
  $region25: #{mgvae_forward.16} parent=0 // pred_fallthru
    _

// kernel: mgvae_forward.17
$region0: #{mgvae_forward.17}
  #allocation0 [shape = 'u32[]', space=smem, size = 0x4, offset = 0x4, fixed_abs, tag = 'smem constant byte address 0x4 - core index']
  #allocation1 [shape = 'u32[144,128]{1,0:T(1,128)}', space=vmem, size = 0x12000, scoped, tag = 'internal scratch']
  #allocation2 [shape = 'f32[1,1]{1,0:T(1,128)S(1)}', space=vmem, size = 0x200, scoped, tag = 'scoped memory for mgvae_forward.17']
  #allocation3 [shape = 'f32[1,1]{1,0:T(1,128)S(1)}', space=vmem, size = 0x200, scoped, tag = 'scoped memory for mgvae_forward.17']
  %s0 = inlined_call_operand.vmem [shape: f32[392,128], index: 0, kind: input, shape index: {}]
  %s1 = inlined_call_operand.vmem [shape: f32[128,4], index: 1, kind: input, shape index: {}]
  %s2 = inlined_call_operand.<no memory space> [shape: f32[1,1], index: 2, kind: input, shape index: {}]
  %s3 = inlined_call_operand.<no memory space> [shape: f32[1,1], index: 3, kind: input, shape index: {}]
  %s4 = inlined_call_operand.vmem [shape: f32[392,4], index: 4, kind: output, shape index: {}]
  %s5 = sld [smem:[#allocation0]]
  $region26: #{mgvae_forward.17} parent=0
    _
  %s7 = ssub.s32 1, %s5
  %s8 = scalar_select 0, %s7, %s5
  %v9 = vstv %s2
  %10 = vst [vmem:[#allocation2] sm:$0x1] %v9
  %v11 = vstv %s3
  %12 = vst [vmem:[#allocation3] sm:$0x1] %v11
  // Predicated region
  $region2: #{mgvae_forward.17} parent=0 // pred_check
    _
  $region3: #{mgvae_forward.17} parent=0 // pred_check_branch
    %14 = sbr.rel (0) target = $region5
  $region4: #{mgvae_forward.17} parent=0 // pred_region
    _
  $region5: #{mgvae_forward.17} parent=0 // pred_fallthru
    _
  // Predicated region
  $region6: #{mgvae_forward.17} parent=0 // pred_check
    _
  $region7: #{mgvae_forward.17} parent=0 // pred_check_branch
    %16 = sbr.rel (0) target = $region9
  $region8: #{mgvae_forward.17} parent=0 // pred_region
    _
  $region9: #{mgvae_forward.17} parent=0 // pred_fallthru
    _
  // Predicated region
  $region10: #{mgvae_forward.17} parent=0 // pred_check
    _
  $region11: #{mgvae_forward.17} parent=0 // pred_check_branch
    %18 = sbr.rel (0) target = $region13
  $region12: #{mgvae_forward.17} parent=0 // pred_region
    _
  $region13: #{mgvae_forward.17} parent=0 // pred_fallthru
    _
  // Predicated region
  $region14: #{mgvae_forward.17} parent=0 // pred_check
    _
  $region15: #{mgvae_forward.17} parent=0 // pred_check_branch
    %20 = sbr.rel (0) target = $region17
  $region16: #{mgvae_forward.17} parent=0 // pred_region
    _
  $region17: #{mgvae_forward.17} parent=0 // pred_fallthru
    _
  %v21 = vld [vmem:[%s0] sm:$0xff]
  %v22 = vld [vmem:[%s0 + $0x8] sm:$0xff]
  %v23 = vld [vmem:[%s0 + $0x10] sm:$0xff]
  %v24 = vld [vmem:[%s0 + $0x18] sm:$0xff]
  %v25 = vld [vmem:[%s0 + $0x20] sm:$0xff]
  %v26 = vld [vmem:[%s0 + $0x28] sm:$0xff]
  %v27 = vld [vmem:[%s0 + $0x30] sm:$0xff]
  %v28 = vld [vmem:[%s0 + $0x38] sm:$0xff]
  %v29 = vld [vmem:[%s0 + $0x40] sm:$0xff]
  %v30 = vld [vmem:[%s0 + $0x48] sm:$0xff]
  %v31 = vld [vmem:[%s0 + $0x50] sm:$0xff]
  %v32 = vld [vmem:[%s0 + $0x58] sm:$0xff]
  %v33 = vld [vmem:[%s0 + $0x60] sm:$0xff]
  %v34 = vld [vmem:[%s0 + $0x68] sm:$0xff]
  %v35 = vld [vmem:[%s0 + $0x70] sm:$0xff]
  %v36 = vld [vmem:[%s0 + $0x78] sm:$0xff]
  %v37 = vld [vmem:[%s0 + $0x80] sm:$0xff]
  %v38 = vld [vmem:[%s0 + $0x88] sm:$0xff]
  %v39 = vld [vmem:[%s0 + $0x90] sm:$0xff]
  %v40 = vld [vmem:[%s0 + $0x98] sm:$0xff]
  %v41 = vld [vmem:[%s0 + $0xa0] sm:$0xff]
  %v42 = vld [vmem:[%s0 + $0xa8] sm:$0xff]
  %v43 = vld [vmem:[%s0 + $0xb0] sm:$0xff]
  %v44 = vld [vmem:[%s0 + $0xb8] sm:$0xff]
  %v45 = vld [vmem:[%s0 + $0xc0] sm:$0xff]
  %v46 = vld [vmem:[%s0 + $0xc8] sm:$0xff]
  %v47 = vld [vmem:[%s0 + $0xd0] sm:$0xff]
  %v48 = vld [vmem:[%s0 + $0xd8] sm:$0xff]
  %v49 = vld [vmem:[%s0 + $0xe0] sm:$0xff]
  %v50 = vld [vmem:[%s0 + $0xe8] sm:$0xff]
  %v51 = vld [vmem:[%s0 + $0xf0] sm:$0xff]
  %v52 = vld [vmem:[%s0 + $0xf8] sm:$0xff]
  %v53 = vld [vmem:[%s0 + $0x100] sm:$0xff]
  %v54 = vld [vmem:[%s0 + $0x108] sm:$0xff]
  %v55 = vld [vmem:[%s0 + $0x110] sm:$0xff]
  %v56 = vld [vmem:[%s0 + $0x118] sm:$0xff]
  %v57 = vld [vmem:[%s0 + $0x120] sm:$0xff]
  %v58 = vld [vmem:[%s0 + $0x128] sm:$0xff]
  %v59 = vld [vmem:[%s0 + $0x130] sm:$0xff]
  %v60 = vld [vmem:[%s0 + $0x138] sm:$0xff]
  %v61 = vld [vmem:[%s0 + $0x140] sm:$0xff]
  %v62 = vld [vmem:[%s0 + $0x148] sm:$0xff]
  %v63 = vld [vmem:[%s0 + $0x150] sm:$0xff]
  %v64 = vld [vmem:[%s0 + $0x158] sm:$0xff]
  %v65 = vld [vmem:[%s0 + $0x160] sm:$0xff]
  %v66 = vld [vmem:[%s0 + $0x168] sm:$0xff]
  %v67 = vld [vmem:[%s0 + $0x170] sm:$0xff]
  %v68 = vld [vmem:[%s0 + $0x178] sm:$0xff]
  %v69 = vld [vmem:[%s0 + $0x180] sm:$0xff]
  %v70 = vld [vmem:[%s1] sm:$0xff]
  %v71 = vld [vmem:[%s1 + $0x8] sm:$0xff]
  %v72 = vld [vmem:[%s1 + $0x10] sm:$0xff]
  %v73 = vld [vmem:[%s1 + $0x18] sm:$0xff]
  %v74 = vld [vmem:[%s1 + $0x20] sm:$0xff]
  %v75 = vld [vmem:[%s1 + $0x28] sm:$0xff]
  %v76 = vld [vmem:[%s1 + $0x30] sm:$0xff]
  %v77 = vld [vmem:[%s1 + $0x38] sm:$0xff]
  %v78 = vld [vmem:[%s1 + $0x40] sm:$0xff]
  %v79 = vld [vmem:[%s1 + $0x48] sm:$0xff]
  %v80 = vld [vmem:[%s1 + $0x50] sm:$0xff]
  %v81 = vld [vmem:[%s1 + $0x58] sm:$0xff]
  %v82 = vld [vmem:[%s1 + $0x60] sm:$0xff]
  %v83 = vld [vmem:[%s1 + $0x68] sm:$0xff]
  %v84 = vld [vmem:[%s1 + $0x70] sm:$0xff]
  %v85 = vld [vmem:[%s1 + $0x78] sm:$0xff]
  %86 = vmatprep.subr.mxu0 0.0
  %87 = vmatpush1.msra.mxu0 %v70
  %88 = vmatprep.subr.mxu0 0.0
  %89 = vmatpush1.msra.mxu0 %v71
  %90 = vmatprep.subr.mxu0 0.0
  %91 = vmatpush1.msra.mxu0 %v72
  %92 = vmatprep.subr.mxu0 0.0
  %93 = vmatpush1.msra.mxu0 %v73
  %94 = vmatprep.subr.mxu0 0.0
  %95 = vmatpush1.msra.mxu0 %v74
  %96 = vmatprep.subr.mxu0 0.0
  %97 = vmatpush1.msra.mxu0 %v75
  %98 = vmatprep.subr.mxu0 0.0
  %99 = vmatpush1.msra.mxu0 %v76
  %100 = vmatprep.subr.mxu0 0.0
  %101 = vmatpush1.msra.mxu0 %v77
  %102 = vmatprep.subr.mxu0 0.0
  %103 = vmatpush1.msra.mxu0 %v78
  %104 = vmatprep.subr.mxu0 0.0
  %105 = vmatpush1.msra.mxu0 %v79
  %106 = vmatprep.subr.mxu0 0.0
  %107 = vmatpush1.msra.mxu0 %v80
  %108 = vmatprep.subr.mxu0 0.0
  %109 = vmatpush1.msra.mxu0 %v81
  %110 = vmatprep.subr.mxu0 0.0
  %111 = vmatpush1.msra.mxu0 %v82
  %112 = vmatprep.subr.mxu0 0.0
  %113 = vmatpush1.msra.mxu0 %v83
  %114 = vmatprep.subr.mxu0 0.0
  %115 = vmatpush1.msra.mxu0 %v84
  %116 = vmatprep.subr.mxu0 0.0
  %117 = vmatpush1.msra.mxu0 %v85
  %118 = vmatprep.subr.mxu0 0.0
  %119 = vmatpush1.msra.mxu0 0.0
  %120 = vmatprep.subr.mxu0 0.0
  %121 = vmatpush1.msra.mxu0 0.0
  %122 = vmatprep.subr.mxu0 0.0
  %123 = vmatpush1.msra.mxu0 0.0
  %124 = vmatprep.subr.mxu0 0.0
  %125 = vmatpush1.msra.mxu0 0.0
  %126 = vmatprep.subr.mxu0 0.0
  %127 = vmatpush1.msra.mxu0 0.0
  %128 = vmatprep.subr.mxu0 0.0
  %129 = vmatpush1.msra.mxu0 0.0
  %130 = vmatprep.subr.mxu0 0.0
  %131 = vmatpush1.msra.mxu0 0.0
  %132 = vmatprep.subr.mxu0 0.0
  %133 = vmatpush1.msra.mxu0 0.0
  %134 = vmatprep.subr.mxu0 0.0
  %135 = vmatpush1.msra.mxu0 0.0
  %136 = vmatprep.subr.mxu0 0.0
  %137 = vmatpush1.msra.mxu0 0.0
  %138 = vmatprep.subr.mxu0 0.0
  %139 = vmatpush1.msra.mxu0 0.0
  %140 = vmatprep.subr.mxu0 0.0
  %141 = vmatpush1.msra.mxu0 0.0
  %142 = vmatprep.subr.mxu0 0.0
  %143 = vmatpush1.msra.mxu0 0.0
  %144 = vmatprep.subr.mxu0 0.0
  %145 = vmatpush1.msra.mxu0 0.0
  %146 = vmatprep.subr.mxu0 0.0
  %147 = vmatpush1.msra.mxu0 0.0
  %148 = vmatprep.subr.mxu0 0.0
  %149 = vmatpush1.msra.mxu0 0.0
  %150 = vmatprep.mubr.f32.mxu0 0.0
  %151 = vmatmul.mubr.f32.gmra.mrb[0].mxu0 %v21
  %v152 = vpop.f32.mrb[0].mxu0
  %v153 = vadd.f32 0.0, %v152
  %v154 = vpop.f32.mrb[0].mxu0
  %155 = vmatprep.mubr.f32.mxu0 0.0
  %156 = vmatmul.mubr.f32.gmra.mrb[0].mxu0 %v22
  %v157 = vpop.f32.mrb[0].mxu0
  %v158 = vadd.f32 0.0, %v157
  %v159 = vpop.f32.mrb[0].mxu0
  %160 = vmatprep.mubr.f32.mxu0 0.0
  %161 = vmatmul.mubr.f32.gmra.mrb[0].mxu0 %v23
  %v162 = vpop.f32.mrb[0].mxu0
  %v163 = vadd.f32 0.0, %v162
  %v164 = vpop.f32.mrb[0].mxu0
  %165 = vmatprep.mubr.f32.mxu0 0.0
  %166 = vmatmul.mubr.f32.gmra.mrb[0].mxu0 %v24
  %v167 = vpop.f32.mrb[0].mxu0
  %v168 = vadd.f32 0.0, %v167
  %v169 = vpop.f32.mrb[0].mxu0
  %170 = vmatprep.mubr.f32.mxu0 0.0
  %171 = vmatmul.mubr.f32.gmra.mrb[0].mxu0 %v25
  %v172 = vpop.f32.mrb[0].mxu0
  %v173 = vadd.f32 0.0, %v172
  %v174 = vpop.f32.mrb[0].mxu0
  %175 = vmatprep.mubr.f32.mxu0 0.0
  %176 = vmatmul.mubr.f32.gmra.mrb[0].mxu0 %v26
  %v177 = vpop.f32.mrb[0].mxu0
  %v178 = vadd.f32 0.0, %v177
  %v179 = vpop.f32.mrb[0].mxu0
  %180 = vmatprep.mubr.f32.mxu0 0.0
  %181 = vmatmul.mubr.f32.gmra.mrb[0].mxu0 %v27
  %v182 = vpop.f32.mrb[0].mxu0
  %v183 = vadd.f32 0.0, %v182
  %v184 = vpop.f32.mrb[0].mxu0
  %185 = vmatprep.mubr.f32.mxu0 0.0
  %186 = vmatmul.mubr.f32.gmra.mrb[0].mxu0 %v28
  %v187 = vpop.f32.mrb[0].mxu0
  %v188 = vadd.f32 0.0, %v187
  %v189 = vpop.f32.mrb[0].mxu0
  %190 = vmatprep.mubr.f32.mxu0 0.0
  %191 = vmatmul.mubr.f32.gmra.mrb[0].mxu0 %v29
  %v192 = vpop.f32.mrb[0].mxu0
  %v193 = vadd.f32 0.0, %v192
  %v194 = vpop.f32.mrb[0].mxu0
  %195 = vmatprep.mubr.f32.mxu0 0.0
  %196 = vmatmul.mubr.f32.gmra.mrb[0].mxu0 %v30
  %v197 = vpop.f32.mrb[0].mxu0
  %v198 = vadd.f32 0.0, %v197
  %v199 = vpop.f32.mrb[0].mxu0
  %200 = vmatprep.mubr.f32.mxu0 0.0
  %201 = vmatmul.mubr.f32.gmra.mrb[0].mxu0 %v31
  %v202 = vpop.f32.mrb[0].mxu0
  %v203 = vadd.f32 0.0, %v202
  %v204 = vpop.f32.mrb[0].mxu0
  %205 = vmatprep.mubr.f32.mxu0 0.0
  %206 = vmatmul.mubr.f32.gmra.mrb[0].mxu0 %v32
  %v207 = vpop.f32.mrb[0].mxu0
  %v208 = vadd.f32 0.0, %v207
  %v209 = vpop.f32.mrb[0].mxu0
  %210 = vmatprep.mubr.f32.mxu0 0.0
  %211 = vmatmul.mubr.f32.gmra.mrb[0].mxu0 %v33
  %v212 = vpop.f32.mrb[0].mxu0
  %v213 = vadd.f32 0.0, %v212
  %v214 = vpop.f32.mrb[0].mxu0
  %215 = vmatprep.mubr.f32.mxu0 0.0
  %216 = vmatmul.mubr.f32.gmra.mrb[0].mxu0 %v34
  %v217 = vpop.f32.mrb[0].mxu0
  %v218 = vadd.f32 0.0, %v217
  %v219 = vpop.f32.mrb[0].mxu0
  %220 = vmatprep.mubr.f32.mxu0 0.0
  %221 = vmatmul.mubr.f32.gmra.mrb[0].mxu0 %v35
  %v222 = vpop.f32.mrb[0].mxu0
  %v223 = vadd.f32 0.0, %v222
  %v224 = vpop.f32.mrb[0].mxu0
  %225 = vmatprep.mubr.f32.mxu0 0.0
  %226 = vmatmul.mubr.f32.gmra.mrb[0].mxu0 %v36
  %v227 = vpop.f32.mrb[0].mxu0
  %v228 = vadd.f32 0.0, %v227
  %v229 = vpop.f32.mrb[0].mxu0
  %230 = vmatprep.mubr.f32.mxu0 0.0
  %231 = vmatmul.mubr.f32.gmra.mrb[0].mxu0 %v37
  %v232 = vpop.f32.mrb[0].mxu0
  %v233 = vadd.f32 0.0, %v232
  %v234 = vpop.f32.mrb[0].mxu0
  %235 = vmatprep.mubr.f32.mxu0 0.0
  %236 = vmatmul.mubr.f32.gmra.mrb[0].mxu0 %v38
  %v237 = vpop.f32.mrb[0].mxu0
  %v238 = vadd.f32 0.0, %v237
  %v239 = vpop.f32.mrb[0].mxu0
  %240 = vmatprep.mubr.f32.mxu0 0.0
  %241 = vmatmul.mubr.f32.gmra.mrb[0].mxu0 %v39
  %v242 = vpop.f32.mrb[0].mxu0
  %v243 = vadd.f32 0.0, %v242
  %v244 = vpop.f32.mrb[0].mxu0
  %245 = vmatprep.mubr.f32.mxu0 0.0
  %246 = vmatmul.mubr.f32.gmra.mrb[0].mxu0 %v40
  %v247 = vpop.f32.mrb[0].mxu0
  %v248 = vadd.f32 0.0, %v247
  %v249 = vpop.f32.mrb[0].mxu0
  %250 = vmatprep.mubr.f32.mxu0 0.0
  %251 = vmatmul.mubr.f32.gmra.mrb[0].mxu0 %v41
  %v252 = vpop.f32.mrb[0].mxu0
  %v253 = vadd.f32 0.0, %v252
  %v254 = vpop.f32.mrb[0].mxu0
  %255 = vmatprep.mubr.f32.mxu0 0.0
  %256 = vmatmul.mubr.f32.gmra.mrb[0].mxu0 %v42
  %v257 = vpop.f32.mrb[0].mxu0
  %v258 = vadd.f32 0.0, %v257
  %v259 = vpop.f32.mrb[0].mxu0
  %260 = vmatprep.mubr.f32.mxu0 0.0
  %261 = vmatmul.mubr.f32.gmra.mrb[0].mxu0 %v43
  %v262 = vpop.f32.mrb[0].mxu0
  %v263 = vadd.f32 0.0, %v262
  %v264 = vpop.f32.mrb[0].mxu0
  %265 = vmatprep.mubr.f32.mxu0 0.0
  %266 = vmatmul.mubr.f32.gmra.mrb[0].mxu0 %v44
  %v267 = vpop.f32.mrb[0].mxu0
  %v268 = vadd.f32 0.0, %v267
  %v269 = vpop.f32.mrb[0].mxu0
  %270 = vmatprep.mubr.f32.mxu0 0.0
  %271 = vmatmul.mubr.f32.gmra.mrb[0].mxu0 %v45
  %v272 = vpop.f32.mrb[0].mxu0
  %v273 = vadd.f32 0.0, %v272
  %v274 = vpop.f32.mrb[0].mxu0
  %275 = vmatprep.mubr.f32.mxu0 0.0
  %276 = vmatmul.mubr.f32.gmra.mrb[0].mxu0 %v46
  %v277 = vpop.f32.mrb[0].mxu0
  %v278 = vadd.f32 0.0, %v277
  %v279 = vpop.f32.mrb[0].mxu0
  %280 = vmatprep.mubr.f32.mxu0 0.0
  %281 = vmatmul.mubr.f32.gmra.mrb[0].mxu0 %v47
  %v282 = vpop.f32.mrb[0].mxu0
  %v283 = vadd.f32 0.0, %v282
  %v284 = vpop.f32.mrb[0].mxu0
  %285 = vmatprep.mubr.f32.mxu0 0.0
  %286 = vmatmul.mubr.f32.gmra.mrb[0].mxu0 %v48
  %v287 = vpop.f32.mrb[0].mxu0
  %v288 = vadd.f32 0.0, %v287
  %v289 = vpop.f32.mrb[0].mxu0
  %290 = vmatprep.mubr.f32.mxu0 0.0
  %291 = vmatmul.mubr.f32.gmra.mrb[0].mxu0 %v49
  %v292 = vpop.f32.mrb[0].mxu0
  %v293 = vadd.f32 0.0, %v292
  %v294 = vpop.f32.mrb[0].mxu0
  %295 = vmatprep.mubr.f32.mxu0 0.0
  %296 = vmatmul.mubr.f32.gmra.mrb[0].mxu0 %v50
  %v297 = vpop.f32.mrb[0].mxu0
  %v298 = vadd.f32 0.0, %v297
  %v299 = vpop.f32.mrb[0].mxu0
  %300 = vmatprep.mubr.f32.mxu0 0.0
  %301 = vmatmul.mubr.f32.gmra.mrb[0].mxu0 %v51
  %v302 = vpop.f32.mrb[0].mxu0
  %v303 = vadd.f32 0.0, %v302
  %v304 = vpop.f32.mrb[0].mxu0
  %305 = vmatprep.mubr.f32.mxu0 0.0
  %306 = vmatmul.mubr.f32.gmra.mrb[0].mxu0 %v52
  %v307 = vpop.f32.mrb[0].mxu0
  %v308 = vadd.f32 0.0, %v307
  %v309 = vpop.f32.mrb[0].mxu0
  %310 = vmatprep.mubr.f32.mxu0 0.0
  %311 = vmatmul.mubr.f32.gmra.mrb[0].mxu0 %v53
  %v312 = vpop.f32.mrb[0].mxu0
  %v313 = vadd.f32 0.0, %v312
  %v314 = vpop.f32.mrb[0].mxu0
  %315 = vmatprep.mubr.f32.mxu0 0.0
  %316 = vmatmul.mubr.f32.gmra.mrb[0].mxu0 %v54
  %v317 = vpop.f32.mrb[0].mxu0
  %v318 = vadd.f32 0.0, %v317
  %v319 = vpop.f32.mrb[0].mxu0
  %320 = vmatprep.mubr.f32.mxu0 0.0
  %321 = vmatmul.mubr.f32.gmra.mrb[0].mxu0 %v55
  %v322 = vpop.f32.mrb[0].mxu0
  %v323 = vadd.f32 0.0, %v322
  %v324 = vpop.f32.mrb[0].mxu0
  %325 = vmatprep.mubr.f32.mxu0 0.0
  %326 = vmatmul.mubr.f32.gmra.mrb[0].mxu0 %v56
  %v327 = vpop.f32.mrb[0].mxu0
  %v328 = vadd.f32 0.0, %v327
  %v329 = vpop.f32.mrb[0].mxu0
  %330 = vmatprep.mubr.f32.mxu0 0.0
  %331 = vmatmul.mubr.f32.gmra.mrb[0].mxu0 %v57
  %v332 = vpop.f32.mrb[0].mxu0
  %v333 = vadd.f32 0.0, %v332
  %v334 = vpop.f32.mrb[0].mxu0
  %335 = vmatprep.mubr.f32.mxu0 0.0
  %336 = vmatmul.mubr.f32.gmra.mrb[0].mxu0 %v58
  %v337 = vpop.f32.mrb[0].mxu0
  %v338 = vadd.f32 0.0, %v337
  %v339 = vpop.f32.mrb[0].mxu0
  %340 = vmatprep.mubr.f32.mxu0 0.0
  %341 = vmatmul.mubr.f32.gmra.mrb[0].mxu0 %v59
  %v342 = vpop.f32.mrb[0].mxu0
  %v343 = vadd.f32 0.0, %v342
  %v344 = vpop.f32.mrb[0].mxu0
  %345 = vmatprep.mubr.f32.mxu0 0.0
  %346 = vmatmul.mubr.f32.gmra.mrb[0].mxu0 %v60
  %v347 = vpop.f32.mrb[0].mxu0
  %v348 = vadd.f32 0.0, %v347
  %v349 = vpop.f32.mrb[0].mxu0
  %350 = vmatprep.mubr.f32.mxu0 0.0
  %351 = vmatmul.mubr.f32.gmra.mrb[0].mxu0 %v61
  %v352 = vpop.f32.mrb[0].mxu0
  %v353 = vadd.f32 0.0, %v352
  %v354 = vpop.f32.mrb[0].mxu0
  %355 = vmatprep.mubr.f32.mxu0 0.0
  %356 = vmatmul.mubr.f32.gmra.mrb[0].mxu0 %v62
  %v357 = vpop.f32.mrb[0].mxu0
  %v358 = vadd.f32 0.0, %v357
  %v359 = vpop.f32.mrb[0].mxu0
  %360 = vmatprep.mubr.f32.mxu0 0.0
  %361 = vmatmul.mubr.f32.gmra.mrb[0].mxu0 %v63
  %v362 = vpop.f32.mrb[0].mxu0
  %v363 = vadd.f32 0.0, %v362
  %v364 = vpop.f32.mrb[0].mxu0
  %365 = vmatprep.mubr.f32.mxu0 0.0
  %366 = vmatmul.mubr.f32.gmra.mrb[0].mxu0 %v64
  %v367 = vpop.f32.mrb[0].mxu0
  %v368 = vadd.f32 0.0, %v367
  %v369 = vpop.f32.mrb[0].mxu0
  %370 = vmatprep.mubr.f32.mxu0 0.0
  %371 = vmatmul.mubr.f32.gmra.mrb[0].mxu0 %v65
  %v372 = vpop.f32.mrb[0].mxu0
  %v373 = vadd.f32 0.0, %v372
  %v374 = vpop.f32.mrb[0].mxu0
  %375 = vmatprep.mubr.f32.mxu0 0.0
  %376 = vmatmul.mubr.f32.gmra.mrb[0].mxu0 %v66
  %v377 = vpop.f32.mrb[0].mxu0
  %v378 = vadd.f32 0.0, %v377
  %v379 = vpop.f32.mrb[0].mxu0
  %380 = vmatprep.mubr.f32.mxu0 0.0
  %381 = vmatmul.mubr.f32.gmra.mrb[0].mxu0 %v67
  %v382 = vpop.f32.mrb[0].mxu0
  %v383 = vadd.f32 0.0, %v382
  %v384 = vpop.f32.mrb[0].mxu0
  %385 = vmatprep.mubr.f32.mxu0 0.0
  %386 = vmatmul.mubr.f32.gmra.mrb[0].mxu0 %v68
  %v387 = vpop.f32.mrb[0].mxu0
  %v388 = vadd.f32 0.0, %v387
  %v389 = vpop.f32.mrb[0].mxu0
  %390 = vmatprep.mubr.f32.mxu0 0.0
  %391 = vmatmul.mubr.f32.gmra.mrb[0].mxu0 %v69
  %v392 = vpop.f32.mrb[0].mxu0
  %v393 = vadd.f32 0.0, %v392
  %v394 = vpop.f32.mrb[0].mxu0
  %395 = vdwg.mxu0
  %v396 = vld [vmem:[#allocation2] sm:$0x1]
  %v397 = vld [vmem:[#allocation3] sm:$0x1]
  %vm398 = vcmask 31744
  %v399 = vsel %vm398, %v153, 0.0
  %v400 = vsel %vm398, %v158, 0.0
  %v401 = vadd.f32 %v399, %v400
  %v402 = vsel %vm398, %v163, 0.0
  %v403 = vadd.f32 %v401, %v402
  %v404 = vsel %vm398, %v168, 0.0
  %v405 = vadd.f32 %v403, %v404
  %v406 = vsel %vm398, %v173, 0.0
  %v407 = vadd.f32 %v405, %v406
  %v408 = vsel %vm398, %v178, 0.0
  %v409 = vadd.f32 %v407, %v408
  %v410 = vsel %vm398, %v183, 0.0
  %v411 = vadd.f32 %v409, %v410
  %v412 = vsel %vm398, %v188, 0.0
  %v413 = vadd.f32 %v411, %v412
  %v414 = vsel %vm398, %v193, 0.0
  %v415 = vadd.f32 %v413, %v414
  %v416 = vsel %vm398, %v198, 0.0
  %v417 = vadd.f32 %v415, %v416
  %v418 = vsel %vm398, %v203, 0.0
  %v419 = vadd.f32 %v417, %v418
  %v420 = vsel %vm398, %v208, 0.0
  %v421 = vadd.f32 %v419, %v420
  %v422 = vsel %vm398, %v213, 0.0
  %v423 = vadd.f32 %v421, %v422
  %v424 = vsel %vm398, %v218, 0.0
  %v425 = vadd.f32 %v423, %v424
  %v426 = vsel %vm398, %v223, 0.0
  %v427 = vadd.f32 %v425, %v426
  %v428 = vsel %vm398, %v228, 0.0
  %v429 = vadd.f32 %v427, %v428
  %v430 = vsel %vm398, %v233, 0.0
  %v431 = vadd.f32 %v429, %v430
  %v432 = vsel %vm398, %v238, 0.0
  %v433 = vadd.f32 %v431, %v432
  %v434 = vsel %vm398, %v243, 0.0
  %v435 = vadd.f32 %v433, %v434
  %v436 = vsel %vm398, %v248, 0.0
  %v437 = vadd.f32 %v435, %v436
  %v438 = vsel %vm398, %v253, 0.0
  %v439 = vadd.f32 %v437, %v438
  %v440 = vsel %vm398, %v258, 0.0
  %v441 = vadd.f32 %v439, %v440
  %v442 = vsel %vm398, %v263, 0.0
  %v443 = vadd.f32 %v441, %v442
  %v444 = vsel %vm398, %v268, 0.0
  %v445 = vadd.f32 %v443, %v444
  %v446 = vsel %vm398, %v273, 0.0
  %v447 = vadd.f32 %v445, %v446
  %v448 = vsel %vm398, %v278, 0.0
  %v449 = vadd.f32 %v447, %v448
  %v450 = vsel %vm398, %v283, 0.0
  %v451 = vadd.f32 %v449, %v450
  %v452 = vsel %vm398, %v288, 0.0
  %v453 = vadd.f32 %v451, %v452
  %v454 = vsel %vm398, %v293, 0.0
  %v455 = vadd.f32 %v453, %v454
  %v456 = vsel %vm398, %v298, 0.0
  %v457 = vadd.f32 %v455, %v456
  %v458 = vsel %vm398, %v303, 0.0
  %v459 = vadd.f32 %v457, %v458
  %v460 = vsel %vm398, %v308, 0.0
  %v461 = vadd.f32 %v459, %v460
  %v462 = vsel %vm398, %v313, 0.0
  %v463 = vadd.f32 %v461, %v462
  %v464 = vsel %vm398, %v318, 0.0
  %v465 = vadd.f32 %v463, %v464
  %v466 = vsel %vm398, %v323, 0.0
  %v467 = vadd.f32 %v465, %v466
  %v468 = vsel %vm398, %v328, 0.0
  %v469 = vadd.f32 %v467, %v468
  %v470 = vsel %vm398, %v333, 0.0
  %v471 = vadd.f32 %v469, %v470
  %v472 = vsel %vm398, %v338, 0.0
  %v473 = vadd.f32 %v471, %v472
  %v474 = vsel %vm398, %v343, 0.0
  %v475 = vadd.f32 %v473, %v474
  %v476 = vsel %vm398, %v348, 0.0
  %v477 = vadd.f32 %v475, %v476
  %v478 = vsel %vm398, %v353, 0.0
  %v479 = vadd.f32 %v477, %v478
  %v480 = vsel %vm398, %v358, 0.0
  %v481 = vadd.f32 %v479, %v480
  %v482 = vsel %vm398, %v363, 0.0
  %v483 = vadd.f32 %v481, %v482
  %v484 = vsel %vm398, %v368, 0.0
  %v485 = vadd.f32 %v483, %v484
  %v486 = vsel %vm398, %v373, 0.0
  %v487 = vadd.f32 %v485, %v486
  %v488 = vsel %vm398, %v378, 0.0
  %v489 = vadd.f32 %v487, %v488
  %v490 = vsel %vm398, %v383, 0.0
  %v491 = vadd.f32 %v489, %v490
  %v492 = vsel %vm398, %v388, 0.0
  %v493 = vadd.f32 %v491, %v492
  %v494 = vsel %vm398, %v393, 0.0
  %v495 = vadd.f32 %v493, %v494
  %v496 = vrot.slane %v495, 4
  %v497 = vadd.f32 %v495, %v496
  %v498 = vrot.slane %v497, 2
  %v499 = vadd.f32 %v497, %v498
  %v500 = vrot.slane %v499, 1
  %v501 = vadd.f32 %v499, %v500
  %v502 = vmul.f32 %v153, %v153
  %v503 = vmul.f32 %v158, %v158
  %v504 = vmul.f32 %v163, %v163
  %v505 = vmul.f32 %v168, %v168
  %v506 = vmul.f32 %v173, %v173
  %v507 = vmul.f32 %v178, %v178
  %v508 = vmul.f32 %v183, %v183
  %v509 = vmul.f32 %v188, %v188
  %v510 = vmul.f32 %v193, %v193
  %v511 = vmul.f32 %v198, %v198
  %v512 = vmul.f32 %v203, %v203
  %v513 = vmul.f32 %v208, %v208
  %v514 = vmul.f32 %v213, %v213
  %v515 = vmul.f32 %v218, %v218
  %v516 = vmul.f32 %v223, %v223
  %v517 = vmul.f32 %v228, %v228
  %v518 = vmul.f32 %v233, %v233
  %v519 = vmul.f32 %v238, %v238
  %v520 = vmul.f32 %v243, %v243
  %v521 = vmul.f32 %v248, %v248
  %v522 = vmul.f32 %v253, %v253
  %v523 = vmul.f32 %v258, %v258
  %v524 = vmul.f32 %v263, %v263
  %v525 = vmul.f32 %v268, %v268
  %v526 = vmul.f32 %v273, %v273
  %v527 = vmul.f32 %v278, %v278
  %v528 = vmul.f32 %v283, %v283
  %v529 = vmul.f32 %v288, %v288
  %v530 = vmul.f32 %v293, %v293
  %v531 = vmul.f32 %v298, %v298
  %v532 = vmul.f32 %v303, %v303
  %v533 = vmul.f32 %v308, %v308
  %v534 = vmul.f32 %v313, %v313
  %v535 = vmul.f32 %v318, %v318
  %v536 = vmul.f32 %v323, %v323
  %v537 = vmul.f32 %v328, %v328
  %v538 = vmul.f32 %v333, %v333
  %v539 = vmul.f32 %v338, %v338
  %v540 = vmul.f32 %v343, %v343
  %v541 = vmul.f32 %v348, %v348
  %v542 = vmul.f32 %v353, %v353
  %v543 = vmul.f32 %v358, %v358
  %v544 = vmul.f32 %v363, %v363
  %v545 = vmul.f32 %v368, %v368
  %v546 = vmul.f32 %v373, %v373
  %v547 = vmul.f32 %v378, %v378
  %v548 = vmul.f32 %v383, %v383
  %v549 = vmul.f32 %v388, %v388
  %v550 = vmul.f32 %v393, %v393
  %v551 = vsel %vm398, %v502, 0.0
  %v552 = vsel %vm398, %v503, 0.0
  %v553 = vadd.f32 %v551, %v552
  %v554 = vsel %vm398, %v504, 0.0
  %v555 = vadd.f32 %v553, %v554
  %v556 = vsel %vm398, %v505, 0.0
  %v557 = vadd.f32 %v555, %v556
  %v558 = vsel %vm398, %v506, 0.0
  %v559 = vadd.f32 %v557, %v558
  %v560 = vsel %vm398, %v507, 0.0
  %v561 = vadd.f32 %v559, %v560
  %v562 = vsel %vm398, %v508, 0.0
  %v563 = vadd.f32 %v561, %v562
  %v564 = vsel %vm398, %v509, 0.0
  %v565 = vadd.f32 %v563, %v564
  %v566 = vsel %vm398, %v510, 0.0
  %v567 = vadd.f32 %v565, %v566
  %v568 = vsel %vm398, %v511, 0.0
  %v569 = vadd.f32 %v567, %v568
  %v570 = vsel %vm398, %v512, 0.0
  %v571 = vadd.f32 %v569, %v570
  %v572 = vsel %vm398, %v513, 0.0
  %v573 = vadd.f32 %v571, %v572
  %v574 = vsel %vm398, %v514, 0.0
  %v575 = vadd.f32 %v573, %v574
  %v576 = vsel %vm398, %v515, 0.0
  %v577 = vadd.f32 %v575, %v576
  %v578 = vsel %vm398, %v516, 0.0
  %v579 = vadd.f32 %v577, %v578
  %v580 = vsel %vm398, %v517, 0.0
  %v581 = vadd.f32 %v579, %v580
  %v582 = vsel %vm398, %v518, 0.0
  %v583 = vadd.f32 %v581, %v582
  %v584 = vsel %vm398, %v519, 0.0
  %v585 = vadd.f32 %v583, %v584
  %v586 = vsel %vm398, %v520, 0.0
  %v587 = vadd.f32 %v585, %v586
  %v588 = vsel %vm398, %v521, 0.0
  %v589 = vadd.f32 %v587, %v588
  %v590 = vsel %vm398, %v522, 0.0
  %v591 = vadd.f32 %v589, %v590
  %v592 = vsel %vm398, %v523, 0.0
  %v593 = vadd.f32 %v591, %v592
  %v594 = vsel %vm398, %v524, 0.0
  %v595 = vadd.f32 %v593, %v594
  %v596 = vsel %vm398, %v525, 0.0
  %v597 = vadd.f32 %v595, %v596
  %v598 = vsel %vm398, %v526, 0.0
  %v599 = vadd.f32 %v597, %v598
  %v600 = vsel %vm398, %v527, 0.0
  %v601 = vadd.f32 %v599, %v600
  %v602 = vsel %vm398, %v528, 0.0
  %v603 = vadd.f32 %v601, %v602
  %v604 = vsel %vm398, %v529, 0.0
  %v605 = vadd.f32 %v603, %v604
  %v606 = vsel %vm398, %v530, 0.0
  %v607 = vadd.f32 %v605, %v606
  %v608 = vsel %vm398, %v531, 0.0
  %v609 = vadd.f32 %v607, %v608
  %v610 = vsel %vm398, %v532, 0.0
  %v611 = vadd.f32 %v609, %v610
  %v612 = vsel %vm398, %v533, 0.0
  %v613 = vadd.f32 %v611, %v612
  %v614 = vsel %vm398, %v534, 0.0
  %v615 = vadd.f32 %v613, %v614
  %v616 = vsel %vm398, %v535, 0.0
  %v617 = vadd.f32 %v615, %v616
  %v618 = vsel %vm398, %v536, 0.0
  %v619 = vadd.f32 %v617, %v618
  %v620 = vsel %vm398, %v537, 0.0
  %v621 = vadd.f32 %v619, %v620
  %v622 = vsel %vm398, %v538, 0.0
  %v623 = vadd.f32 %v621, %v622
  %v624 = vsel %vm398, %v539, 0.0
  %v625 = vadd.f32 %v623, %v624
  %v626 = vsel %vm398, %v540, 0.0
  %v627 = vadd.f32 %v625, %v626
  %v628 = vsel %vm398, %v541, 0.0
  %v629 = vadd.f32 %v627, %v628
  %v630 = vsel %vm398, %v542, 0.0
  %v631 = vadd.f32 %v629, %v630
  %v632 = vsel %vm398, %v543, 0.0
  %v633 = vadd.f32 %v631, %v632
  %v634 = vsel %vm398, %v544, 0.0
  %v635 = vadd.f32 %v633, %v634
  %v636 = vsel %vm398, %v545, 0.0
  %v637 = vadd.f32 %v635, %v636
  %v638 = vsel %vm398, %v546, 0.0
  %v639 = vadd.f32 %v637, %v638
  %v640 = vsel %vm398, %v547, 0.0
  %v641 = vadd.f32 %v639, %v640
  %v642 = vsel %vm398, %v548, 0.0
  %v643 = vadd.f32 %v641, %v642
  %v644 = vsel %vm398, %v549, 0.0
  %v645 = vadd.f32 %v643, %v644
  %v646 = vsel %vm398, %v550, 0.0
  %v647 = vadd.f32 %v645, %v646
  %v648 = vrot.slane %v647, 4
  %v649 = vadd.f32 %v647, %v648
  %v650 = vrot.slane %v649, 2
  %v651 = vadd.f32 %v649, %v650
  %v652 = vrot.slane %v651, 1
  %v653 = vadd.f32 %v651, %v652
  %v654 = vadd.f32 %v501, 0.0
  %656 = vrot.lane.b32.xlu0 %v501, 127
  %v657 = vpop.permute.xlu0 %656
  %v659 = vadd.f32 %v654, %v657
  %660 = vrot.lane.b32.xlu0 %v501, 126
  %v661 = vpop.permute.xlu0 %660
  %v663 = vadd.f32 %v659, %v661
  %664 = vrot.lane.b32.xlu0 %v501, 125
  %v665 = vpop.permute.xlu0 %664
  %v667 = vadd.f32 %v663, %v665
  %v668 = vadd.f32 %v653, 0.0
  %670 = vrot.lane.b32.xlu0 %v653, 127
  %v671 = vpop.permute.xlu0 %670
  %v673 = vadd.f32 %v668, %v671
  %674 = vrot.lane.b32.xlu0 %v653, 126
  %v675 = vpop.permute.xlu0 %674
  %v677 = vadd.f32 %v673, %v675
  %678 = vrot.lane.b32.xlu0 %v653, 125
  %v679 = vpop.permute.xlu0 %678
  %v681 = vadd.f32 %v677, %v679
  %v682 = vmul.f32 %v667, 0.0006377551
  %v683 = vmul.f32 %v681, 0.0006377551
  %v684 = vmul.f32 %v682, %v682
  %v685 = vsub.f32 %v683, %v684
  %v686 = vmax.f32 %v685, 0.0
  %v687 = vadd.f32 %v686, 1e-05
  %v688 = vrsqrt.pop %v687
  %v689 = vmul.f32 %v396, %v688
  %v690 = vmul.f32 %v682, %v689
  %v691 = vsub.f32 %v397, %v690
  %v693 = vlaneseq
  %v694 = vshrl.u32 %v693, 7
  %v695 = vsub.s32 0, %v694
  %v696 = vrot.slane %v689, %v695
  %697 = vrot.lane.b32.xlu0 %v696, 1
  %v698 = vpop.permute.xlu0 %697
  %700 = vrot.lane.b32.xlu0 %v696, 2
  %v701 = vpop.permute.xlu0 %700
  %703 = vrot.lane.b32.xlu0 %v696, 3
  %v704 = vpop.permute.xlu0 %703
  %vm706 = vcmask 7168
  %v707 = vsel %vm706, %v689, %v698
  %vm708 = vcmask 15360
  %v709 = vsel %vm708, %v707, %v701
  %vm710 = vcmask 23552
  %v711 = vsel %vm710, %v709, %v704
  %v713 = vlaneseq
  %v714 = vshrl.u32 %v713, 7
  %v715 = vsub.s32 0, %v714
  %v716 = vrot.slane %v691, %v715
  %717 = vrot.lane.b32.xlu0 %v716, 1
  %v718 = vpop.permute.xlu0 %717
  %720 = vrot.lane.b32.xlu0 %v716, 2
  %v721 = vpop.permute.xlu0 %720
  %723 = vrot.lane.b32.xlu0 %v716, 3
  %v724 = vpop.permute.xlu0 %723
  %v726 = vsel %vm706, %v691, %v718
  %v727 = vsel %vm708, %v726, %v721
  %v728 = vsel %vm710, %v727, %v724
  %v729 = vlaneseq
  %v730 = vshrl.u32 %v729, 7
  %v731 = vsub.s32 0, %v730
  %v732 = vrot.slane %v711, %v731
  %v733 = vmul.f32 %v153, %v732
  %v734 = vmul.f32 %v158, %v732
  %v735 = vmul.f32 %v163, %v732
  %v736 = vmul.f32 %v168, %v732
  %v737 = vmul.f32 %v173, %v732
  %v738 = vmul.f32 %v178, %v732
  %v739 = vmul.f32 %v183, %v732
  %v740 = vmul.f32 %v188, %v732
  %v741 = vmul.f32 %v193, %v732
  %v742 = vmul.f32 %v198, %v732
  %v743 = vmul.f32 %v203, %v732
  %v744 = vmul.f32 %v208, %v732
  %v745 = vmul.f32 %v213, %v732
  %v746 = vmul.f32 %v218, %v732
  %v747 = vmul.f32 %v223, %v732
  %v748 = vmul.f32 %v228, %v732
  %v749 = vmul.f32 %v233, %v732
  %v750 = vmul.f32 %v238, %v732
  %v751 = vmul.f32 %v243, %v732
  %v752 = vmul.f32 %v248, %v732
  %v753 = vmul.f32 %v253, %v732
  %v754 = vmul.f32 %v258, %v732
  %v755 = vmul.f32 %v263, %v732
  %v756 = vmul.f32 %v268, %v732
  %v757 = vmul.f32 %v273, %v732
  %v758 = vmul.f32 %v278, %v732
  %v759 = vmul.f32 %v283, %v732
  %v760 = vmul.f32 %v288, %v732
  %v761 = vmul.f32 %v293, %v732
  %v762 = vmul.f32 %v298, %v732
  %v763 = vmul.f32 %v303, %v732
  %v764 = vmul.f32 %v308, %v732
  %v765 = vmul.f32 %v313, %v732
  %v766 = vmul.f32 %v318, %v732
  %v767 = vmul.f32 %v323, %v732
  %v768 = vmul.f32 %v328, %v732
  %v769 = vmul.f32 %v333, %v732
  %v770 = vmul.f32 %v338, %v732
  %v771 = vmul.f32 %v343, %v732
  %v772 = vmul.f32 %v348, %v732
  %v773 = vmul.f32 %v353, %v732
  %v774 = vmul.f32 %v358, %v732
  %v775 = vmul.f32 %v363, %v732
  %v776 = vmul.f32 %v368, %v732
  %v777 = vmul.f32 %v373, %v732
  %v778 = vmul.f32 %v378, %v732
  %v779 = vmul.f32 %v383, %v732
  %v780 = vmul.f32 %v388, %v732
  %v781 = vmul.f32 %v393, %v732
  %v782 = vlaneseq
  %v783 = vshrl.u32 %v782, 7
  %v784 = vsub.s32 0, %v783
  %v785 = vrot.slane %v728, %v784
  %v786 = vadd.f32 %v733, %v785
  %v787 = vadd.f32 %v734, %v785
  %v788 = vadd.f32 %v735, %v785
  %v789 = vadd.f32 %v736, %v785
  %v790 = vadd.f32 %v737, %v785
  %v791 = vadd.f32 %v738, %v785
  %v792 = vadd.f32 %v739, %v785
  %v793 = vadd.f32 %v740, %v785
  %v794 = vadd.f32 %v741, %v785
  %v795 = vadd.f32 %v742, %v785
  %v796 = vadd.f32 %v743, %v785
  %v797 = vadd.f32 %v744, %v785
  %v798 = vadd.f32 %v745, %v785
  %v799 = vadd.f32 %v746, %v785
  %v800 = vadd.f32 %v747, %v785
  %v801 = vadd.f32 %v748, %v785
  %v802 = vadd.f32 %v749, %v785
  %v803 = vadd.f32 %v750, %v785
  %v804 = vadd.f32 %v751, %v785
  %v805 = vadd.f32 %v752, %v785
  %v806 = vadd.f32 %v753, %v785
  %v807 = vadd.f32 %v754, %v785
  %v808 = vadd.f32 %v755, %v785
  %v809 = vadd.f32 %v756, %v785
  %v810 = vadd.f32 %v757, %v785
  %v811 = vadd.f32 %v758, %v785
  %v812 = vadd.f32 %v759, %v785
  %v813 = vadd.f32 %v760, %v785
  %v814 = vadd.f32 %v761, %v785
  %v815 = vadd.f32 %v762, %v785
  %v816 = vadd.f32 %v763, %v785
  %v817 = vadd.f32 %v764, %v785
  %v818 = vadd.f32 %v765, %v785
  %v819 = vadd.f32 %v766, %v785
  %v820 = vadd.f32 %v767, %v785
  %v821 = vadd.f32 %v768, %v785
  %v822 = vadd.f32 %v769, %v785
  %v823 = vadd.f32 %v770, %v785
  %v824 = vadd.f32 %v771, %v785
  %v825 = vadd.f32 %v772, %v785
  %v826 = vadd.f32 %v773, %v785
  %v827 = vadd.f32 %v774, %v785
  %v828 = vadd.f32 %v775, %v785
  %v829 = vadd.f32 %v776, %v785
  %v830 = vadd.f32 %v777, %v785
  %v831 = vadd.f32 %v778, %v785
  %v832 = vadd.f32 %v779, %v785
  %v833 = vadd.f32 %v780, %v785
  %v834 = vadd.f32 %v781, %v785
  %v835 = vsub.f32 0.0, %v786
  %v836 = vsub.f32 0.0, %v787
  %v837 = vsub.f32 0.0, %v788
  %v838 = vsub.f32 0.0, %v789
  %v839 = vsub.f32 0.0, %v790
  %v840 = vsub.f32 0.0, %v791
  %v841 = vsub.f32 0.0, %v792
  %v842 = vsub.f32 0.0, %v793
  %v843 = vsub.f32 0.0, %v794
  %v844 = vsub.f32 0.0, %v795
  %v845 = vsub.f32 0.0, %v796
  %v846 = vsub.f32 0.0, %v797
  %v847 = vsub.f32 0.0, %v798
  %v848 = vsub.f32 0.0, %v799
  %v849 = vsub.f32 0.0, %v800
  %v850 = vsub.f32 0.0, %v801
  %v851 = vsub.f32 0.0, %v802
  %v852 = vsub.f32 0.0, %v803
  %v853 = vsub.f32 0.0, %v804
  %v854 = vsub.f32 0.0, %v805
  %v855 = vsub.f32 0.0, %v806
  %v856 = vsub.f32 0.0, %v807
  %v857 = vsub.f32 0.0, %v808
  %v858 = vsub.f32 0.0, %v809
  %v859 = vsub.f32 0.0, %v810
  %v860 = vsub.f32 0.0, %v811
  %v861 = vsub.f32 0.0, %v812
  %v862 = vsub.f32 0.0, %v813
  %v863 = vsub.f32 0.0, %v814
  %v864 = vsub.f32 0.0, %v815
  %v865 = vsub.f32 0.0, %v816
  %v866 = vsub.f32 0.0, %v817
  %v867 = vsub.f32 0.0, %v818
  %v868 = vsub.f32 0.0, %v819
  %v869 = vsub.f32 0.0, %v820
  %v870 = vsub.f32 0.0, %v821
  %v871 = vsub.f32 0.0, %v822
  %v872 = vsub.f32 0.0, %v823
  %v873 = vsub.f32 0.0, %v824
  %v874 = vsub.f32 0.0, %v825
  %v875 = vsub.f32 0.0, %v826
  %v876 = vsub.f32 0.0, %v827
  %v877 = vsub.f32 0.0, %v828
  %v878 = vsub.f32 0.0, %v829
  %v879 = vsub.f32 0.0, %v830
  %v880 = vsub.f32 0.0, %v831
  %v881 = vsub.f32 0.0, %v832
  %v882 = vsub.f32 0.0, %v833
  %v883 = vsub.f32 0.0, %v834
  %v884 = vmul.f32 %v835, 1.442695
  %v885 = vpow.pop %v884
  %v886 = vmul.f32 %v836, 1.442695
  %v887 = vpow.pop %v886
  %v888 = vmul.f32 %v837, 1.442695
  %v889 = vpow.pop %v888
  %v890 = vmul.f32 %v838, 1.442695
  %v891 = vpow.pop %v890
  %v892 = vmul.f32 %v839, 1.442695
  %v893 = vpow.pop %v892
  %v894 = vmul.f32 %v840, 1.442695
  %v895 = vpow.pop %v894
  %v896 = vmul.f32 %v841, 1.442695
  %v897 = vpow.pop %v896
  %v898 = vmul.f32 %v842, 1.442695
  %v899 = vpow.pop %v898
  %v900 = vmul.f32 %v843, 1.442695
  %v901 = vpow.pop %v900
  %v902 = vmul.f32 %v844, 1.442695
  %v903 = vpow.pop %v902
  %v904 = vmul.f32 %v845, 1.442695
  %v905 = vpow.pop %v904
  %v906 = vmul.f32 %v846, 1.442695
  %v907 = vpow.pop %v906
  %v908 = vmul.f32 %v847, 1.442695
  %v909 = vpow.pop %v908
  %v910 = vmul.f32 %v848, 1.442695
  %v911 = vpow.pop %v910
  %v912 = vmul.f32 %v849, 1.442695
  %v913 = vpow.pop %v912
  %v914 = vmul.f32 %v850, 1.442695
  %v915 = vpow.pop %v914
  %v916 = vmul.f32 %v851, 1.442695
  %v917 = vpow.pop %v916
  %v918 = vmul.f32 %v852, 1.442695
  %v919 = vpow.pop %v918
  %v920 = vmul.f32 %v853, 1.442695
  %v921 = vpow.pop %v920
  %v922 = vmul.f32 %v854, 1.442695
  %v923 = vpow.pop %v922
  %v924 = vmul.f32 %v855, 1.442695
  %v925 = vpow.pop %v924
  %v926 = vmul.f32 %v856, 1.442695
  %v927 = vpow.pop %v926
  %v928 = vmul.f32 %v857, 1.442695
  %v929 = vpow.pop %v928
  %v930 = vmul.f32 %v858, 1.442695
  %v931 = vpow.pop %v930
  %v932 = vmul.f32 %v859, 1.442695
  %v933 = vpow.pop %v932
  %v934 = vmul.f32 %v860, 1.442695
  %v935 = vpow.pop %v934
  %v936 = vmul.f32 %v861, 1.442695
  %v937 = vpow.pop %v936
  %v938 = vmul.f32 %v862, 1.442695
  %v939 = vpow.pop %v938
  %v940 = vmul.f32 %v863, 1.442695
  %v941 = vpow.pop %v940
  %v942 = vmul.f32 %v864, 1.442695
  %v943 = vpow.pop %v942
  %v944 = vmul.f32 %v865, 1.442695
  %v945 = vpow.pop %v944
  %v946 = vmul.f32 %v866, 1.442695
  %v947 = vpow.pop %v946
  %v948 = vmul.f32 %v867, 1.442695
  %v949 = vpow.pop %v948
  %v950 = vmul.f32 %v868, 1.442695
  %v951 = vpow.pop %v950
  %v952 = vmul.f32 %v869, 1.442695
  %v953 = vpow.pop %v952
  %v954 = vmul.f32 %v870, 1.442695
  %v955 = vpow.pop %v954
  %v956 = vmul.f32 %v871, 1.442695
  %v957 = vpow.pop %v956
  %v958 = vmul.f32 %v872, 1.442695
  %v959 = vpow.pop %v958
  %v960 = vmul.f32 %v873, 1.442695
  %v961 = vpow.pop %v960
  %v962 = vmul.f32 %v874, 1.442695
  %v963 = vpow.pop %v962
  %v964 = vmul.f32 %v875, 1.442695
  %v965 = vpow.pop %v964
  %v966 = vmul.f32 %v876, 1.442695
  %v967 = vpow.pop %v966
  %v968 = vmul.f32 %v877, 1.442695
  %v969 = vpow.pop %v968
  %v970 = vmul.f32 %v878, 1.442695
  %v971 = vpow.pop %v970
  %v972 = vmul.f32 %v879, 1.442695
  %v973 = vpow.pop %v972
  %v974 = vmul.f32 %v880, 1.442695
  %v975 = vpow.pop %v974
  %v976 = vmul.f32 %v881, 1.442695
  %v977 = vpow.pop %v976
  %v978 = vmul.f32 %v882, 1.442695
  %v979 = vpow.pop %v978
  %v980 = vmul.f32 %v883, 1.442695
  %v981 = vpow.pop %v980
  %v982 = vadd.f32 %v885, 1.0
  %v983 = vadd.f32 %v887, 1.0
  %v984 = vadd.f32 %v889, 1.0
  %v985 = vadd.f32 %v891, 1.0
  %v986 = vadd.f32 %v893, 1.0
  %v987 = vadd.f32 %v895, 1.0
  %v988 = vadd.f32 %v897, 1.0
  %v989 = vadd.f32 %v899, 1.0
  %v990 = vadd.f32 %v901, 1.0
  %v991 = vadd.f32 %v903, 1.0
  %v992 = vadd.f32 %v905, 1.0
  %v993 = vadd.f32 %v907, 1.0
  %v994 = vadd.f32 %v909, 1.0
  %v995 = vadd.f32 %v911, 1.0
  %v996 = vadd.f32 %v913, 1.0
  %v997 = vadd.f32 %v915, 1.0
  %v998 = vadd.f32 %v917, 1.0
  %v999 = vadd.f32 %v919, 1.0
  %v1000 = vadd.f32 %v921, 1.0
  %v1001 = vadd.f32 %v923, 1.0
  %v1002 = vadd.f32 %v925, 1.0
  %v1003 = vadd.f32 %v927, 1.0
  %v1004 = vadd.f32 %v929, 1.0
  %v1005 = vadd.f32 %v931, 1.0
  %v1006 = vadd.f32 %v933, 1.0
  %v1007 = vadd.f32 %v935, 1.0
  %v1008 = vadd.f32 %v937, 1.0
  %v1009 = vadd.f32 %v939, 1.0
  %v1010 = vadd.f32 %v941, 1.0
  %v1011 = vadd.f32 %v943, 1.0
  %v1012 = vadd.f32 %v945, 1.0
  %v1013 = vadd.f32 %v947, 1.0
  %v1014 = vadd.f32 %v949, 1.0
  %v1015 = vadd.f32 %v951, 1.0
  %v1016 = vadd.f32 %v953, 1.0
  %v1017 = vadd.f32 %v955, 1.0
  %v1018 = vadd.f32 %v957, 1.0
  %v1019 = vadd.f32 %v959, 1.0
  %v1020 = vadd.f32 %v961, 1.0
  %v1021 = vadd.f32 %v963, 1.0
  %v1022 = vadd.f32 %v965, 1.0
  %v1023 = vadd.f32 %v967, 1.0
  %v1024 = vadd.f32 %v969, 1.0
  %v1025 = vadd.f32 %v971, 1.0
  %v1026 = vadd.f32 %v973, 1.0
  %v1027 = vadd.f32 %v975, 1.0
  %v1028 = vadd.f32 %v977, 1.0
  %v1029 = vadd.f32 %v979, 1.0
  %v1030 = vadd.f32 %v981, 1.0
  %v1031 = vrcp.pop %v982
  %v1032 = vmul.f32 1.0, %v1031
  %v1033 = vrcp.pop %v983
  %v1034 = vmul.f32 1.0, %v1033
  %v1035 = vrcp.pop %v984
  %v1036 = vmul.f32 1.0, %v1035
  %v1037 = vrcp.pop %v985
  %v1038 = vmul.f32 1.0, %v1037
  %v1039 = vrcp.pop %v986
  %v1040 = vmul.f32 1.0, %v1039
  %v1041 = vrcp.pop %v987
  %v1042 = vmul.f32 1.0, %v1041
  %v1043 = vrcp.pop %v988
  %v1044 = vmul.f32 1.0, %v1043
  %v1045 = vrcp.pop %v989
  %v1046 = vmul.f32 1.0, %v1045
  %v1047 = vrcp.pop %v990
  %v1048 = vmul.f32 1.0, %v1047
  %v1049 = vrcp.pop %v991
  %v1050 = vmul.f32 1.0, %v1049
  %v1051 = vrcp.pop %v992
  %v1052 = vmul.f32 1.0, %v1051
  %v1053 = vrcp.pop %v993
  %v1054 = vmul.f32 1.0, %v1053
  %v1055 = vrcp.pop %v994
  %v1056 = vmul.f32 1.0, %v1055
  %v1057 = vrcp.pop %v995
  %v1058 = vmul.f32 1.0, %v1057
  %v1059 = vrcp.pop %v996
  %v1060 = vmul.f32 1.0, %v1059
  %v1061 = vrcp.pop %v997
  %v1062 = vmul.f32 1.0, %v1061
  %v1063 = vrcp.pop %v998
  %v1064 = vmul.f32 1.0, %v1063
  %v1065 = vrcp.pop %v999
  %v1066 = vmul.f32 1.0, %v1065
  %v1067 = vrcp.pop %v1000
  %v1068 = vmul.f32 1.0, %v1067
  %v1069 = vrcp.pop %v1001
  %v1070 = vmul.f32 1.0, %v1069
  %v1071 = vrcp.pop %v1002
  %v1072 = vmul.f32 1.0, %v1071
  %v1073 = vrcp.pop %v1003
  %v1074 = vmul.f32 1.0, %v1073
  %v1075 = vrcp.pop %v1004
  %v1076 = vmul.f32 1.0, %v1075
  %v1077 = vrcp.pop %v1005
  %v1078 = vmul.f32 1.0, %v1077
  %v1079 = vrcp.pop %v1006
  %v1080 = vmul.f32 1.0, %v1079
  %v1081 = vrcp.pop %v1007
  %v1082 = vmul.f32 1.0, %v1081
  %v1083 = vrcp.pop %v1008
  %v1084 = vmul.f32 1.0, %v1083
  %v1085 = vrcp.pop %v1009
  %v1086 = vmul.f32 1.0, %v1085
  %v1087 = vrcp.pop %v1010
  %v1088 = vmul.f32 1.0, %v1087
  %v1089 = vrcp.pop %v1011
  %v1090 = vmul.f32 1.0, %v1089
  %v1091 = vrcp.pop %v1012
  %v1092 = vmul.f32 1.0, %v1091
  %v1093 = vrcp.pop %v1013
  %v1094 = vmul.f32 1.0, %v1093
  %v1095 = vrcp.pop %v1014
  %v1096 = vmul.f32 1.0, %v1095
  %v1097 = vrcp.pop %v1015
  %v1098 = vmul.f32 1.0, %v1097
  %v1099 = vrcp.pop %v1016
  %v1100 = vmul.f32 1.0, %v1099
  %v1101 = vrcp.pop %v1017
  %v1102 = vmul.f32 1.0, %v1101
  %v1103 = vrcp.pop %v1018
  %v1104 = vmul.f32 1.0, %v1103
  %v1105 = vrcp.pop %v1019
  %v1106 = vmul.f32 1.0, %v1105
  %v1107 = vrcp.pop %v1020
  %v1108 = vmul.f32 1.0, %v1107
  %v1109 = vrcp.pop %v1021
  %v1110 = vmul.f32 1.0, %v1109
  %v1111 = vrcp.pop %v1022
  %v1112 = vmul.f32 1.0, %v1111
  %v1113 = vrcp.pop %v1023
  %v1114 = vmul.f32 1.0, %v1113
  %v1115 = vrcp.pop %v1024
  %v1116 = vmul.f32 1.0, %v1115
  %v1117 = vrcp.pop %v1025
  %v1118 = vmul.f32 1.0, %v1117
  %v1119 = vrcp.pop %v1026
  %v1120 = vmul.f32 1.0, %v1119
  %v1121 = vrcp.pop %v1027
  %v1122 = vmul.f32 1.0, %v1121
  %v1123 = vrcp.pop %v1028
  %v1124 = vmul.f32 1.0, %v1123
  %v1125 = vrcp.pop %v1029
  %v1126 = vmul.f32 1.0, %v1125
  %v1127 = vrcp.pop %v1030
  %v1128 = vmul.f32 1.0, %v1127
  %1129 = vst.msk [vmem:[%s4] sm:$0xff] %vm398, %v1032
  %1130 = vst.msk [vmem:[%s4 + $0x8] sm:$0xff] %vm398, %v1034
  %1131 = vst.msk [vmem:[%s4 + $0x10] sm:$0xff] %vm398, %v1036
  %1132 = vst.msk [vmem:[%s4 + $0x18] sm:$0xff] %vm398, %v1038
  %1133 = vst.msk [vmem:[%s4 + $0x20] sm:$0xff] %vm398, %v1040
  %1134 = vst.msk [vmem:[%s4 + $0x28] sm:$0xff] %vm398, %v1042
  %1135 = vst.msk [vmem:[%s4 + $0x30] sm:$0xff] %vm398, %v1044
  %1136 = vst.msk [vmem:[%s4 + $0x38] sm:$0xff] %vm398, %v1046
  %1137 = vst.msk [vmem:[%s4 + $0x40] sm:$0xff] %vm398, %v1048
  %1138 = vst.msk [vmem:[%s4 + $0x48] sm:$0xff] %vm398, %v1050
  %1139 = vst.msk [vmem:[%s4 + $0x50] sm:$0xff] %vm398, %v1052
  %1140 = vst.msk [vmem:[%s4 + $0x58] sm:$0xff] %vm398, %v1054
  %1141 = vst.msk [vmem:[%s4 + $0x60] sm:$0xff] %vm398, %v1056
  %1142 = vst.msk [vmem:[%s4 + $0x68] sm:$0xff] %vm398, %v1058
  %1143 = vst.msk [vmem:[%s4 + $0x70] sm:$0xff] %vm398, %v1060
  %1144 = vst.msk [vmem:[%s4 + $0x78] sm:$0xff] %vm398, %v1062
  %1145 = vst.msk [vmem:[%s4 + $0x80] sm:$0xff] %vm398, %v1064
  %1146 = vst.msk [vmem:[%s4 + $0x88] sm:$0xff] %vm398, %v1066
  %1147 = vst.msk [vmem:[%s4 + $0x90] sm:$0xff] %vm398, %v1068
  %1148 = vst.msk [vmem:[%s4 + $0x98] sm:$0xff] %vm398, %v1070
  %1149 = vst.msk [vmem:[%s4 + $0xa0] sm:$0xff] %vm398, %v1072
  %1150 = vst.msk [vmem:[%s4 + $0xa8] sm:$0xff] %vm398, %v1074
  %1151 = vst.msk [vmem:[%s4 + $0xb0] sm:$0xff] %vm398, %v1076
  %1152 = vst.msk [vmem:[%s4 + $0xb8] sm:$0xff] %vm398, %v1078
  %1153 = vst.msk [vmem:[%s4 + $0xc0] sm:$0xff] %vm398, %v1080
  %1154 = vst.msk [vmem:[%s4 + $0xc8] sm:$0xff] %vm398, %v1082
  %1155 = vst.msk [vmem:[%s4 + $0xd0] sm:$0xff] %vm398, %v1084
  %1156 = vst.msk [vmem:[%s4 + $0xd8] sm:$0xff] %vm398, %v1086
  %1157 = vst.msk [vmem:[%s4 + $0xe0] sm:$0xff] %vm398, %v1088
  %1158 = vst.msk [vmem:[%s4 + $0xe8] sm:$0xff] %vm398, %v1090
  %1159 = vst.msk [vmem:[%s4 + $0xf0] sm:$0xff] %vm398, %v1092
  %1160 = vst.msk [vmem:[%s4 + $0xf8] sm:$0xff] %vm398, %v1094
  %1161 = vst.msk [vmem:[%s4 + $0x100] sm:$0xff] %vm398, %v1096
  %1162 = vst.msk [vmem:[%s4 + $0x108] sm:$0xff] %vm398, %v1098
  %1163 = vst.msk [vmem:[%s4 + $0x110] sm:$0xff] %vm398, %v1100
  %1164 = vst.msk [vmem:[%s4 + $0x118] sm:$0xff] %vm398, %v1102
  %1165 = vst.msk [vmem:[%s4 + $0x120] sm:$0xff] %vm398, %v1104
  %1166 = vst.msk [vmem:[%s4 + $0x128] sm:$0xff] %vm398, %v1106
  %1167 = vst.msk [vmem:[%s4 + $0x130] sm:$0xff] %vm398, %v1108
  %1168 = vst.msk [vmem:[%s4 + $0x138] sm:$0xff] %vm398, %v1110
  %1169 = vst.msk [vmem:[%s4 + $0x140] sm:$0xff] %vm398, %v1112
  %1170 = vst.msk [vmem:[%s4 + $0x148] sm:$0xff] %vm398, %v1114
  %1171 = vst.msk [vmem:[%s4 + $0x150] sm:$0xff] %vm398, %v1116
  %1172 = vst.msk [vmem:[%s4 + $0x158] sm:$0xff] %vm398, %v1118
  %1173 = vst.msk [vmem:[%s4 + $0x160] sm:$0xff] %vm398, %v1120
  %1174 = vst.msk [vmem:[%s4 + $0x168] sm:$0xff] %vm398, %v1122
  %1175 = vst.msk [vmem:[%s4 + $0x170] sm:$0xff] %vm398, %v1124
  %1176 = vst.msk [vmem:[%s4 + $0x178] sm:$0xff] %vm398, %v1126
  %1177 = vst.msk [vmem:[%s4 + $0x180] sm:$0xff] %vm398, %v1128
  // Predicated region
  $region18: #{mgvae_forward.17} parent=0 // pred_check
    _
  $region19: #{mgvae_forward.17} parent=0 // pred_check_branch
    %1179 = sbr.rel (0) target = $region21
  $region20: #{mgvae_forward.17} parent=0 // pred_region
    _
  $region21: #{mgvae_forward.17} parent=0 // pred_fallthru
    _
  // Predicated region
  $region22: #{mgvae_forward.17} parent=0 // pred_check
    _
  $region23: #{mgvae_forward.17} parent=0 // pred_check_branch
    %1181 = sbr.rel (0) target = $region25
  $region24: #{mgvae_forward.17} parent=0 // pred_region
    _
  $region25: #{mgvae_forward.17} parent=0 // pred_fallthru
    _

</llo_original>
